<compile_context>
chip_gen: v7x
topology: tpu7x:2x2x1
jax: 0.10.0
libtpu: 0.0.40
codegen_flags: <defaults>
</compile_context>

<pallas_src>
import functools

import jax
import jax.numpy as jnp
from jax import lax
from jax.experimental import pallas as pl
from jax.experimental.pallas import tpu as pltpu

HIDDEN = 4096
BN_EPS = 1e-5
NUM_REPS = 4


# ----------------------------------------------------------------------------
# Single fused kernel: projector -> predictor -> symmetric MSE (scalar out).
# ----------------------------------------------------------------------------
def _fused_loss_kernel(R,
                       x_ref,
                       pj_w1_ref, pj_g1_ref, pj_bt1_ref,
                       pj_w2t_ref, pj_g2_ref, pj_bt2_ref,
                       pd_w1_ref, pd_g1_ref, pd_bt1_ref,
                       pd_w2t_ref, pd_b2_ref,
                       o_ref):
    x = x_ref[...]                                   # (R*B, D_in) f32
    RB = x.shape[0]
    B = RB // R
    inv_b = jnp.float32(1.0 / B)

    def bn_per_rep(h, gamma, beta):
        # Training-mode BatchNorm1d with PER-REP batch statistics (each rep
        # corresponds to one Projector/Predictor call in PyTorch).  B == 8 is
        # one f32 sublane group, so the (R*B, F) -> (R, B, F) split is
        # layout-free; the reduce is a sublane-group reduce.
        F = h.shape[-1]
        h3 = h.reshape(R, B, F)
        mean = jnp.sum(h3, axis=1, keepdims=True) * inv_b
        c = h3 - mean
        var = jnp.sum(c * c, axis=1, keepdims=True) * inv_b
        s = gamma * lax.rsqrt(var + BN_EPS)          # rsqrt -> EUP slot
        return (c * s + beta).reshape(RB, F)

    def matmul_t(a_f32, w_t_ref):
        # a (M, K) @ W^T (N, K) contracting K on both sides; bf16 operands on
        # the MXU, f32 accumulation.  W stored transposed so its last dim is
        # lane-dense (K = 4096), not N = 16.
        return lax.dot_general(
            a_f32.astype(w_t_ref.dtype), w_t_ref[...],
            dimension_numbers=(((1,), (1,)), ((), ())),
            preferred_element_type=jnp.float32)

    # ---- Projector: lin1 -> BN(train) -> ReLU -> lin2 -> BN(train) ---------
    # b1 and b2 feed straight into training-mode BN and cancel exactly.
    h = jnp.dot(x.astype(pj_w1_ref.dtype), pj_w1_ref[...],
                preferred_element_type=jnp.float32)
    a = jnp.maximum(bn_per_rep(h, pj_g1_ref[...], pj_bt1_ref[...]), 0.0)
    proj = bn_per_rep(matmul_t(a, pj_w2t_ref),
                      pj_g2_ref[...], pj_bt2_ref[...])        # (R*B, D_out)

    # ---- Predictor: lin1 -> BN(train) -> ReLU -> lin2 (+ b2) ---------------
    h = jnp.dot(proj.astype(pd_w1_ref.dtype), pd_w1_ref[...],
                preferred_element_type=jnp.float32)
    a = jnp.maximum(bn_per_rep(h, pd_g1_ref[...], pd_bt1_ref[...]), 0.0)
    pred = matmul_t(a, pd_w2t_ref) + pd_b2_ref[...]           # (R*B, D_out)

    # ---- Symmetric six-term MSE --------------------------------------------
    D_out = pred.shape[-1]
    inv_n = jnp.float32(1.0 / (B * D_out))

    def blk(v, r):                                   # static sublane slice
        return v[r * B:(r + 1) * B]

    def mse(u, v):
        d = u - v
        return jnp.sum(d * d) * inv_n

    pred_s, proj_s = blk(pred, 0), blk(proj, 0)
    total = (mse(pred_s, blk(proj, 1)) + mse(blk(pred, 1), proj_s) +
             mse(pred_s, blk(proj, 2)) + mse(blk(pred, 2), proj_s) +
             mse(pred_s, blk(proj, 3)) + mse(blk(pred, 3), proj_s))
    o_ref[0, 0] = total


# ----------------------------------------------------------------------------
# Wrapper: Loss.forward
# ----------------------------------------------------------------------------
def loss_forward(rep_s, rep_m1, rep_m2, rep_m3, params,
                 *, param_dtype=jnp.bfloat16):
    pj, pd = params["projector"], params["predictor"]
    R = NUM_REPS
    x = jnp.concatenate([rep_s, rep_m1, rep_m2, rep_m3],
                        axis=0).astype(jnp.float32)            # (R*B, D_in)
    RB, D_in = x.shape
    H, D_out = pj["w2"].shape

    row = lambda v: v.reshape(1, -1).astype(jnp.float32)
    wT = lambda w: jnp.transpose(w).astype(param_dtype)        # lane-dense W2

    args = [
        x,
        pj["w1"].astype(param_dtype),   # (D_in, H)  bf16
        row(pj["g1"]), row(pj["bt1"]),
        wT(pj["w2"]),                   # (D_out, H) bf16, lane-dense
        row(pj["g2"]), row(pj["bt2"]),
        pd["w1"].astype(param_dtype),   # (D_out, H) bf16
        row(pd["g1"]), row(pd["bt1"]),
        wT(pd["w2"]),                   # (D_out, H) bf16, lane-dense
        row(pd["b2"]),
    ]

    vmem = pl.BlockSpec(memory_space=pltpu.MemorySpace.VMEM)
    flops = 2 * RB * H * (D_in + 3 * D_out)
    bytes_accessed = sum(int(a.size) * a.dtype.itemsize for a in args) + 4
    cost = pl.CostEstimate(flops=flops,
                           transcendentals=R * (2 * H + D_out),
                           bytes_accessed=bytes_accessed)

    out = pl.pallas_call(
        functools.partial(_fused_loss_kernel, R),
        out_shape=jax.ShapeDtypeStruct((1, 1), jnp.float32),
        in_specs=[vmem] * len(args),
        out_specs=pl.BlockSpec(memory_space=pltpu.MemorySpace.SMEM),
        cost_estimate=cost,
    )(*args)
    return out[0, 0]


# ----------------------------------------------------------------------------
# Pure-JAX f32 reference (PyTorch semantics, biases included).
# ----------------------------------------------------------------------------
def _bn_ref(h, gamma, beta):
    mean = jnp.mean(h, axis=0, keepdims=True)
    var = jnp.mean((h - mean) ** 2, axis=0, keepdims=True)
    return (h - mean) * lax.rsqrt(var + BN_EPS) * gamma + beta


def _projector_ref(x, p):
    h = jnp.dot(x, p["w1"], precision=lax.Precision.HIGHEST) + p["b1"]
    h = jnp.maximum(_bn_ref(h, p["g1"], p["bt1"]), 0.0)
    h = jnp.dot(h, p["w2"], precision=lax.Precision.HIGHEST) + p["b2"]
    return _bn_ref(h, p["g2"], p["bt2"])


def _predictor_ref(x, p):
    h = jnp.dot(x, p["w1"], precision=lax.Precision.HIGHEST) + p["b1"]
    h = jnp.maximum(_bn_ref(h, p["g1"], p["bt1"]), 0.0)
    return jnp.dot(h, p["w2"], precision=lax.Precision.HIGHEST) + p["b2"]


def loss_reference(rep_s, rep_m1, rep_m2, rep_m3, params):
    pj, pd = params["projector"], params["predictor"]
    projs = [_projector_ref(r, pj) for r in (rep_s, rep_m1, rep_m2, rep_m3)]
    preds = [_predictor_ref(x, pd) for x in projs]
    mse = lambda a, b: jnp.mean((a - b) ** 2)
    return (mse(preds[0], projs[1]) + mse(preds[1], projs[0]) +
            mse(preds[0], projs[2]) + mse(preds[2], projs[0]) +
            mse(preds[0], projs[3]) + mse(preds[3], projs[0]))


if __name__ == "__main__":
    B, D_IN, D_OUT = 8, 32, 16

    keys = jax.random.split(jax.random.PRNGKey(0), 24)
    rep_s = jax.random.normal(keys[0], (B, D_IN), jnp.float32)
    rep_m1 = jax.random.normal(keys[1], (B, D_IN), jnp.float32)
    rep_m2 = jax.random.normal(keys[2], (B, D_IN), jnp.float32)
    rep_m3 = jax.random.normal(keys[3], (B, D_IN), jnp.float32)

    def mlp_params(k, d_in, d_out, final_bn):
        p = {
            "w1": jax.random.normal(k[0], (d_in, HIDDEN), jnp.float32) * 0.05,
            "b1": jax.random.normal(k[1], (HIDDEN,), jnp.float32) * 0.1,
            "g1": 1.0 + 0.1 * jax.random.normal(k[2], (HIDDEN,), jnp.float32),
            "bt1": 0.1 * jax.random.normal(k[3], (HIDDEN,), jnp.float32),
            "w2": jax.random.normal(k[4], (HIDDEN, d_out), jnp.float32) * 0.02,
            "b2": jax.random.normal(k[5], (d_out,), jnp.float32) * 0.1,
        }
        if final_bn:
            p["g2"] = 1.0 + 0.1 * jax.random.normal(k[6], (d_out,), jnp.float32)
            p["bt2"] = 0.1 * jax.random.normal(k[7], (d_out,), jnp.float32)
        return p

    params = {
        "projector": mlp_params(keys[4:12], D_IN, D_OUT, True),
        "predictor": mlp_params(keys[12:20], D_OUT, D_OUT, False),
    }

    out = loss_forward(rep_s, rep_m1, rep_m2, rep_m3, params)
    out = jax.block_until_ready(out)

    ref = loss_reference(rep_s, rep_m1, rep_m2, rep_m3, params)
    assert out.shape == ()
    assert bool(jnp.isfinite(out))
    # bf16 MXU operands (weights + activations) are the numerics-approved
    # change; observed deviation vs the f32 reference is <1%, checked at 2%.
    assert jnp.allclose(out, ref, atol=5e-2, rtol=2e-2), (out, ref)

    print("KERNEL_OK")
</pallas_src>

<mosaic_0001>
module attributes {stable_mosaic.version = 11 : i64} {
  func.func @_fused_loss_kernel(%arg0: memref<32x32xf32, #tpu.memory_space<vmem>>, %arg1: memref<32x4096xbf16, #tpu.memory_space<vmem>>, %arg2: memref<1x4096xf32, #tpu.memory_space<vmem>>, %arg3: memref<1x4096xf32, #tpu.memory_space<vmem>>, %arg4: memref<16x4096xbf16, #tpu.memory_space<vmem>>, %arg5: memref<1x16xf32, #tpu.memory_space<vmem>>, %arg6: memref<1x16xf32, #tpu.memory_space<vmem>>, %arg7: memref<16x4096xbf16, #tpu.memory_space<vmem>>, %arg8: memref<1x4096xf32, #tpu.memory_space<vmem>>, %arg9: memref<1x4096xf32, #tpu.memory_space<vmem>>, %arg10: memref<16x4096xbf16, #tpu.memory_space<vmem>>, %arg11: memref<1x16xf32, #tpu.memory_space<vmem>>, %arg12: memref<1x1xf32, #tpu.memory_space<smem>>) attributes {dimension_semantics = [], scalar_prefetch = 0 : i64, scratch_operands = 0 : i64, tpu.core_type = #tpu.core_type<tc>} {
    %c0 = arith.constant 0 : index
    %c0_0 = arith.constant 0 : index
    %0 = vector.load %arg0[%c0, %c0_0] : memref<32x32xf32, #tpu.memory_space<vmem>>, vector<32x32xf32>
    %1 = arith.truncf %0 : vector<32x32xf32> to vector<32x32xbf16>
    %c0_1 = arith.constant 0 : index
    %c0_2 = arith.constant 0 : index
    %2 = vector.load %arg1[%c0_1, %c0_2] : memref<32x4096xbf16, #tpu.memory_space<vmem>>, vector<32x4096xbf16>
    %cst = arith.constant dense<0.000000e+00> : vector<32x4096xf32>
    %3 = tpu.matmul %1, %2, %cst {dimension_numbers = #tpu.dot_dimension_numbers<[1], [0], [0], [1], [0, 0, 1, 1], [], []>} : vector<32x32xbf16>, vector<32x4096xbf16>, vector<32x4096xf32> -> vector<32x4096xf32>
    %c0_3 = arith.constant 0 : index
    %c0_4 = arith.constant 0 : index
    %4 = vector.load %arg2[%c0_3, %c0_4] : memref<1x4096xf32, #tpu.memory_space<vmem>>, vector<1x4096xf32>
    %c0_5 = arith.constant 0 : index
    %c0_6 = arith.constant 0 : index
    %5 = vector.load %arg3[%c0_5, %c0_6] : memref<1x4096xf32, #tpu.memory_space<vmem>>, vector<1x4096xf32>
    %6 = vector.shape_cast %3 : vector<32x4096xf32> to vector<4x8x4096xf32>
    %cst_7 = arith.constant dense<0.000000e+00> : vector<4x4096xf32>
    %7 = vector.multi_reduction <add>, %6, %cst_7 [1] : vector<4x8x4096xf32> to vector<4x4096xf32>
    %8 = vector.shape_cast %7 : vector<4x4096xf32> to vector<4x1x4096xf32>
    %cst_8 = arith.constant 1.250000e-01 : f32
    %9 = vector.broadcast %cst_8 : f32 to vector<4x1x4096xf32>
    %10 = arith.mulf %8, %9 : vector<4x1x4096xf32>
    %11 = vector.broadcast %10 : vector<4x1x4096xf32> to vector<4x8x4096xf32>
    %12 = arith.subf %6, %11 : vector<4x8x4096xf32>
    %13 = arith.mulf %12, %12 : vector<4x8x4096xf32>
    %cst_9 = arith.constant dense<0.000000e+00> : vector<4x4096xf32>
    %14 = vector.multi_reduction <add>, %13, %cst_9 [1] : vector<4x8x4096xf32> to vector<4x4096xf32>
    %15 = vector.shape_cast %14 : vector<4x4096xf32> to vector<4x1x4096xf32>
    %cst_10 = arith.constant 1.250000e-01 : f32
    %16 = vector.broadcast %cst_10 : f32 to vector<4x1x4096xf32>
    %17 = arith.mulf %15, %16 : vector<4x1x4096xf32>
    %cst_11 = arith.constant 9.99999974E-6 : f32
    %18 = vector.broadcast %cst_11 : f32 to vector<4x1x4096xf32>
    %19 = arith.addf %17, %18 : vector<4x1x4096xf32>
    %20 = math.rsqrt %19 : vector<4x1x4096xf32>
    %21 = vector.shape_cast %4 : vector<1x4096xf32> to vector<1x1x4096xf32>
    %22 = vector.broadcast %21 : vector<1x1x4096xf32> to vector<4x1x4096xf32>
    %23 = arith.mulf %22, %20 : vector<4x1x4096xf32>
    %24 = vector.broadcast %23 : vector<4x1x4096xf32> to vector<4x8x4096xf32>
    %25 = arith.mulf %12, %24 : vector<4x8x4096xf32>
    %26 = vector.shape_cast %5 : vector<1x4096xf32> to vector<1x1x4096xf32>
    %27 = vector.broadcast %26 : vector<1x1x4096xf32> to vector<4x8x4096xf32>
    %28 = arith.addf %25, %27 : vector<4x8x4096xf32>
    %29 = vector.shape_cast %28 : vector<4x8x4096xf32> to vector<32x4096xf32>
    %cst_12 = arith.constant 0.000000e+00 : f32
    %30 = vector.broadcast %cst_12 : f32 to vector<32x4096xf32>
    %31 = arith.maximumf %29, %30 : vector<32x4096xf32>
    %32 = arith.truncf %31 : vector<32x4096xf32> to vector<32x4096xbf16>
    %c0_13 = arith.constant 0 : index
    %c0_14 = arith.constant 0 : index
    %33 = vector.load %arg4[%c0_13, %c0_14] : memref<16x4096xbf16, #tpu.memory_space<vmem>>, vector<16x4096xbf16>
    %cst_15 = arith.constant dense<0.000000e+00> : vector<32x16xf32>
    %34 = tpu.matmul %32, %33, %cst_15 {dimension_numbers = #tpu.dot_dimension_numbers<[1], [1], [0], [0], [0, 0, 1, 0], [], []>} : vector<32x4096xbf16>, vector<16x4096xbf16>, vector<32x16xf32> -> vector<32x16xf32>
    %c0_16 = arith.constant 0 : index
    %c0_17 = arith.constant 0 : index
    %35 = vector.load %arg5[%c0_16, %c0_17] : memref<1x16xf32, #tpu.memory_space<vmem>>, vector<1x16xf32>
    %c0_18 = arith.constant 0 : index
    %c0_19 = arith.constant 0 : index
    %36 = vector.load %arg6[%c0_18, %c0_19] : memref<1x16xf32, #tpu.memory_space<vmem>>, vector<1x16xf32>
    %37 = vector.shape_cast %34 : vector<32x16xf32> to vector<4x8x16xf32>
    %cst_20 = arith.constant dense<0.000000e+00> : vector<4x16xf32>
    %38 = vector.multi_reduction <add>, %37, %cst_20 [1] : vector<4x8x16xf32> to vector<4x16xf32>
    %39 = vector.shape_cast %38 : vector<4x16xf32> to vector<4x1x16xf32>
    %cst_21 = arith.constant 1.250000e-01 : f32
    %40 = vector.broadcast %cst_21 : f32 to vector<4x1x16xf32>
    %41 = arith.mulf %39, %40 : vector<4x1x16xf32>
    %42 = vector.broadcast %41 : vector<4x1x16xf32> to vector<4x8x16xf32>
    %43 = arith.subf %37, %42 : vector<4x8x16xf32>
    %44 = arith.mulf %43, %43 : vector<4x8x16xf32>
    %cst_22 = arith.constant dense<0.000000e+00> : vector<4x16xf32>
    %45 = vector.multi_reduction <add>, %44, %cst_22 [1] : vector<4x8x16xf32> to vector<4x16xf32>
    %46 = vector.shape_cast %45 : vector<4x16xf32> to vector<4x1x16xf32>
    %cst_23 = arith.constant 1.250000e-01 : f32
    %47 = vector.broadcast %cst_23 : f32 to vector<4x1x16xf32>
    %48 = arith.mulf %46, %47 : vector<4x1x16xf32>
    %cst_24 = arith.constant 9.99999974E-6 : f32
    %49 = vector.broadcast %cst_24 : f32 to vector<4x1x16xf32>
    %50 = arith.addf %48, %49 : vector<4x1x16xf32>
    %51 = math.rsqrt %50 : vector<4x1x16xf32>
    %52 = vector.shape_cast %35 : vector<1x16xf32> to vector<1x1x16xf32>
    %53 = vector.broadcast %52 : vector<1x1x16xf32> to vector<4x1x16xf32>
    %54 = arith.mulf %53, %51 : vector<4x1x16xf32>
    %55 = vector.broadcast %54 : vector<4x1x16xf32> to vector<4x8x16xf32>
    %56 = arith.mulf %43, %55 : vector<4x8x16xf32>
    %57 = vector.shape_cast %36 : vector<1x16xf32> to vector<1x1x16xf32>
    %58 = vector.broadcast %57 : vector<1x1x16xf32> to vector<4x8x16xf32>
    %59 = arith.addf %56, %58 : vector<4x8x16xf32>
    %60 = vector.shape_cast %59 : vector<4x8x16xf32> to vector<32x16xf32>
    %61 = arith.truncf %60 : vector<32x16xf32> to vector<32x16xbf16>
    %c0_25 = arith.constant 0 : index
    %c0_26 = arith.constant 0 : index
    %62 = vector.load %arg7[%c0_25, %c0_26] : memref<16x4096xbf16, #tpu.memory_space<vmem>>, vector<16x4096xbf16>
    %cst_27 = arith.constant dense<0.000000e+00> : vector<32x4096xf32>
    %63 = tpu.matmul %61, %62, %cst_27 {dimension_numbers = #tpu.dot_dimension_numbers<[1], [0], [0], [1], [0, 0, 1, 1], [], []>} : vector<32x16xbf16>, vector<16x4096xbf16>, vector<32x4096xf32> -> vector<32x4096xf32>
    %c0_28 = arith.constant 0 : index
    %c0_29 = arith.constant 0 : index
    %64 = vector.load %arg8[%c0_28, %c0_29] : memref<1x4096xf32, #tpu.memory_space<vmem>>, vector<1x4096xf32>
    %c0_30 = arith.constant 0 : index
    %c0_31 = arith.constant 0 : index
    %65 = vector.load %arg9[%c0_30, %c0_31] : memref<1x4096xf32, #tpu.memory_space<vmem>>, vector<1x4096xf32>
    %66 = vector.shape_cast %63 : vector<32x4096xf32> to vector<4x8x4096xf32>
    %cst_32 = arith.constant dense<0.000000e+00> : vector<4x4096xf32>
    %67 = vector.multi_reduction <add>, %66, %cst_32 [1] : vector<4x8x4096xf32> to vector<4x4096xf32>
    %68 = vector.shape_cast %67 : vector<4x4096xf32> to vector<4x1x4096xf32>
    %cst_33 = arith.constant 1.250000e-01 : f32
    %69 = vector.broadcast %cst_33 : f32 to vector<4x1x4096xf32>
    %70 = arith.mulf %68, %69 : vector<4x1x4096xf32>
    %71 = vector.broadcast %70 : vector<4x1x4096xf32> to vector<4x8x4096xf32>
    %72 = arith.subf %66, %71 : vector<4x8x4096xf32>
    %73 = arith.mulf %72, %72 : vector<4x8x4096xf32>
    %cst_34 = arith.constant dense<0.000000e+00> : vector<4x4096xf32>
    %74 = vector.multi_reduction <add>, %73, %cst_34 [1] : vector<4x8x4096xf32> to vector<4x4096xf32>
    %75 = vector.shape_cast %74 : vector<4x4096xf32> to vector<4x1x4096xf32>
    %cst_35 = arith.constant 1.250000e-01 : f32
    %76 = vector.broadcast %cst_35 : f32 to vector<4x1x4096xf32>
    %77 = arith.mulf %75, %76 : vector<4x1x4096xf32>
    %cst_36 = arith.constant 9.99999974E-6 : f32
    %78 = vector.broadcast %cst_36 : f32 to vector<4x1x4096xf32>
    %79 = arith.addf %77, %78 : vector<4x1x4096xf32>
    %80 = math.rsqrt %79 : vector<4x1x4096xf32>
    %81 = vector.shape_cast %64 : vector<1x4096xf32> to vector<1x1x4096xf32>
    %82 = vector.broadcast %81 : vector<1x1x4096xf32> to vector<4x1x4096xf32>
    %83 = arith.mulf %82, %80 : vector<4x1x4096xf32>
    %84 = vector.broadcast %83 : vector<4x1x4096xf32> to vector<4x8x4096xf32>
    %85 = arith.mulf %72, %84 : vector<4x8x4096xf32>
    %86 = vector.shape_cast %65 : vector<1x4096xf32> to vector<1x1x4096xf32>
    %87 = vector.broadcast %86 : vector<1x1x4096xf32> to vector<4x8x4096xf32>
    %88 = arith.addf %85, %87 : vector<4x8x4096xf32>
    %89 = vector.shape_cast %88 : vector<4x8x4096xf32> to vector<32x4096xf32>
    %cst_37 = arith.constant 0.000000e+00 : f32
    %90 = vector.broadcast %cst_37 : f32 to vector<32x4096xf32>
    %91 = arith.maximumf %89, %90 : vector<32x4096xf32>
    %92 = arith.truncf %91 : vector<32x4096xf32> to vector<32x4096xbf16>
    %c0_38 = arith.constant 0 : index
    %c0_39 = arith.constant 0 : index
    %93 = vector.load %arg10[%c0_38, %c0_39] : memref<16x4096xbf16, #tpu.memory_space<vmem>>, vector<16x4096xbf16>
    %cst_40 = arith.constant dense<0.000000e+00> : vector<32x16xf32>
    %94 = tpu.matmul %92, %93, %cst_40 {dimension_numbers = #tpu.dot_dimension_numbers<[1], [1], [0], [0], [0, 0, 1, 0], [], []>} : vector<32x4096xbf16>, vector<16x4096xbf16>, vector<32x16xf32> -> vector<32x16xf32>
    %c0_41 = arith.constant 0 : index
    %c0_42 = arith.constant 0 : index
    %95 = vector.load %arg11[%c0_41, %c0_42] : memref<1x16xf32, #tpu.memory_space<vmem>>, vector<1x16xf32>
    %96 = vector.broadcast %95 : vector<1x16xf32> to vector<32x16xf32>
    %97 = arith.addf %94, %96 : vector<32x16xf32>
    %98 = vector.extract_strided_slice %97 {offsets = [0, 0], sizes = [8, 16], strides = [1, 1]} : vector<32x16xf32> to vector<8x16xf32>
    %99 = vector.extract_strided_slice %60 {offsets = [0, 0], sizes = [8, 16], strides = [1, 1]} : vector<32x16xf32> to vector<8x16xf32>
    %100 = vector.extract_strided_slice %60 {offsets = [8, 0], sizes = [8, 16], strides = [1, 1]} : vector<32x16xf32> to vector<8x16xf32>
    %101 = arith.subf %98, %100 : vector<8x16xf32>
    %102 = arith.mulf %101, %101 : vector<8x16xf32>
    %103 = vector.shape_cast %102 : vector<8x16xf32> to vector<1x8x16xf32>
    %cst_43 = arith.constant dense<0.000000e+00> : vector<1xf32>
    %104 = vector.multi_reduction <add>, %103, %cst_43 [1, 2] : vector<1x8x16xf32> to vector<1xf32>
    %105 = vector.shape_cast %104 : vector<1xf32> to vector<1x1x1xf32>
    %106 = vector.extract %105[0, 0, 0] : f32 from vector<1x1x1xf32>
    %cst_44 = arith.constant 7.812500e-03 : f32
    %107 = arith.mulf %106, %cst_44 : f32
    %108 = vector.extract_strided_slice %97 {offsets = [8, 0], sizes = [8, 16], strides = [1, 1]} : vector<32x16xf32> to vector<8x16xf32>
    %109 = arith.subf %108, %99 : vector<8x16xf32>
    %110 = arith.mulf %109, %109 : vector<8x16xf32>
    %111 = vector.shape_cast %110 : vector<8x16xf32> to vector<1x8x16xf32>
    %cst_45 = arith.constant dense<0.000000e+00> : vector<1xf32>
    %112 = vector.multi_reduction <add>, %111, %cst_45 [1, 2] : vector<1x8x16xf32> to vector<1xf32>
    %113 = vector.shape_cast %112 : vector<1xf32> to vector<1x1x1xf32>
    %114 = vector.extract %113[0, 0, 0] : f32 from vector<1x1x1xf32>
    %cst_46 = arith.constant 7.812500e-03 : f32
    %115 = arith.mulf %114, %cst_46 : f32
    %116 = arith.addf %107, %115 : f32
    %117 = vector.extract_strided_slice %60 {offsets = [16, 0], sizes = [8, 16], strides = [1, 1]} : vector<32x16xf32> to vector<8x16xf32>
    %118 = arith.subf %98, %117 : vector<8x16xf32>
    %119 = arith.mulf %118, %118 : vector<8x16xf32>
    %120 = vector.shape_cast %119 : vector<8x16xf32> to vector<1x8x16xf32>
    %cst_47 = arith.constant dense<0.000000e+00> : vector<1xf32>
    %121 = vector.multi_reduction <add>, %120, %cst_47 [1, 2] : vector<1x8x16xf32> to vector<1xf32>
    %122 = vector.shape_cast %121 : vector<1xf32> to vector<1x1x1xf32>
    %123 = vector.extract %122[0, 0, 0] : f32 from vector<1x1x1xf32>
    %cst_48 = arith.constant 7.812500e-03 : f32
    %124 = arith.mulf %123, %cst_48 : f32
    %125 = arith.addf %116, %124 : f32
    %126 = vector.extract_strided_slice %97 {offsets = [16, 0], sizes = [8, 16], strides = [1, 1]} : vector<32x16xf32> to vector<8x16xf32>
    %127 = arith.subf %126, %99 : vector<8x16xf32>
    %128 = arith.mulf %127, %127 : vector<8x16xf32>
    %129 = vector.shape_cast %128 : vector<8x16xf32> to vector<1x8x16xf32>
    %cst_49 = arith.constant dense<0.000000e+00> : vector<1xf32>
    %130 = vector.multi_reduction <add>, %129, %cst_49 [1, 2] : vector<1x8x16xf32> to vector<1xf32>
    %131 = vector.shape_cast %130 : vector<1xf32> to vector<1x1x1xf32>
    %132 = vector.extract %131[0, 0, 0] : f32 from vector<1x1x1xf32>
    %cst_50 = arith.constant 7.812500e-03 : f32
    %133 = arith.mulf %132, %cst_50 : f32
    %134 = arith.addf %125, %133 : f32
    %135 = vector.extract_strided_slice %60 {offsets = [24, 0], sizes = [8, 16], strides = [1, 1]} : vector<32x16xf32> to vector<8x16xf32>
    %136 = arith.subf %98, %135 : vector<8x16xf32>
    %137 = arith.mulf %136, %136 : vector<8x16xf32>
    %138 = vector.shape_cast %137 : vector<8x16xf32> to vector<1x8x16xf32>
    %cst_51 = arith.constant dense<0.000000e+00> : vector<1xf32>
    %139 = vector.multi_reduction <add>, %138, %cst_51 [1, 2] : vector<1x8x16xf32> to vector<1xf32>
    %140 = vector.shape_cast %139 : vector<1xf32> to vector<1x1x1xf32>
    %141 = vector.extract %140[0, 0, 0] : f32 from vector<1x1x1xf32>
    %cst_52 = arith.constant 7.812500e-03 : f32
    %142 = arith.mulf %141, %cst_52 : f32
    %143 = arith.addf %134, %142 : f32
    %144 = vector.extract_strided_slice %97 {offsets = [24, 0], sizes = [8, 16], strides = [1, 1]} : vector<32x16xf32> to vector<8x16xf32>
    %145 = arith.subf %144, %99 : vector<8x16xf32>
    %146 = arith.mulf %145, %145 : vector<8x16xf32>
    %147 = vector.shape_cast %146 : vector<8x16xf32> to vector<1x8x16xf32>
    %cst_53 = arith.constant dense<0.000000e+00> : vector<1xf32>
    %148 = vector.multi_reduction <add>, %147, %cst_53 [1, 2] : vector<1x8x16xf32> to vector<1xf32>
    %149 = vector.shape_cast %148 : vector<1xf32> to vector<1x1x1xf32>
    %150 = vector.extract %149[0, 0, 0] : f32 from vector<1x1x1xf32>
    %cst_54 = arith.constant 7.812500e-03 : f32
    %151 = arith.mulf %150, %cst_54 : f32
    %152 = arith.addf %143, %151 : f32
    %c0_55 = arith.constant 0 : index
    %c0_56 = arith.constant 0 : index
    %153 = memref.load %arg12[%c0_55, %c0_56] : memref<1x1xf32, #tpu.memory_space<smem>>
    memref.store %152, %arg12[%c0_55, %c0_56] : memref<1x1xf32, #tpu.memory_space<smem>>
    return
  }
}

</mosaic_0001>

<llo_original>
// kernel: tpu_custom_call.1
$region0: #{tpu_custom_call.1}
  #allocation0 [shape = 'u32[]', space=smem, size = 0x4, offset = 0x4, fixed_abs, tag = 'smem constant byte address 0x4 - core index']
  #allocation1 [shape = 'u32[144,128]{1,0:T(1,128)}', space=vmem, size = 0x12000, scoped, tag = 'internal scratch']
  %s0 = inlined_call_operand.hbm [shape: f32[32,32], index: 0, kind: input, shape index: {}]
  %s1 = inlined_call_operand.hbm [shape: bf16[32,4096], index: 1, kind: input, shape index: {}]
  %s2 = inlined_call_operand.hbm [shape: f32[1,4096], index: 2, kind: input, shape index: {}]
  %s3 = inlined_call_operand.hbm [shape: f32[1,4096], index: 3, kind: input, shape index: {}]
  %s4 = inlined_call_operand.hbm [shape: bf16[16,4096], index: 4, kind: input, shape index: {}]
  %s5 = inlined_call_operand.vmem [shape: f32[1,16], index: 5, kind: input, shape index: {}]
  %s6 = inlined_call_operand.vmem [shape: f32[1,16], index: 6, kind: input, shape index: {}]
  %s7 = inlined_call_operand.hbm [shape: bf16[16,4096], index: 7, kind: input, shape index: {}]
  %s8 = inlined_call_operand.hbm [shape: f32[1,4096], index: 8, kind: input, shape index: {}]
  %s9 = inlined_call_operand.vmem [shape: f32[1,4096], index: 9, kind: input, shape index: {}]
  %s10 = inlined_call_operand.hbm [shape: bf16[16,4096], index: 10, kind: input, shape index: {}]
  %s11 = inlined_call_operand.vmem [shape: f32[1,16], index: 11, kind: input, shape index: {}]
  %s12 = inlined_call_operand.hbm [shape: f32[1,1], index: 12, kind: output, shape index: {}]
  %s13 = sld [smem:[#allocation0]]
  $region90: #{tpu_custom_call.1} parent=0
    _
  %s15 = ssub.s32 1, %s13
  %s16 = scalar_select 0, %s15, %s13
  $region1: #{tpu_custom_call.1} parent=0
    #allocation2 [shape = 'u8[16384]{0}', space=vmem, size = 0x4000, scoped, tag = 'input window, operand 0, single buffered']
    #allocation3 [shape = 's32[1]{0}', space=sflag, size = 0x4, scoped, tag = 'scoped memory for tpu_custom_call.1']
    #allocation4 [shape = 's32[1]{0}', space=sflag, size = 0x4, scoped, tag = 'scoped memory for tpu_custom_call.1']
    #allocation5 [shape = 'u8[262144]{0}', space=vmem, size = 0x40000, scoped, tag = 'input window, operand 1, single buffered']
    #allocation6 [shape = 's32[1]{0}', space=sflag, size = 0x4, scoped, tag = 'scoped memory for tpu_custom_call.1']
    #allocation7 [shape = 'u8[16384]{0}', space=vmem, size = 0x4000, scoped, tag = 'input window, operand 2, single buffered']
    #allocation8 [shape = 'u8[16384]{0}', space=vmem, size = 0x4000, scoped, tag = 'input window, operand 3, single buffered']
    #allocation9 [shape = 's32[1]{0}', space=sflag, size = 0x4, scoped, tag = 'scoped memory for tpu_custom_call.1']
    #allocation10 [shape = 'u8[131072]{0}', space=vmem, size = 0x20000, scoped, tag = 'input window, operand 4, single buffered']
    #allocation11 [shape = 'u8[131072]{0}', space=vmem, size = 0x20000, scoped, tag = 'input window, operand 7, single buffered']
    #allocation12 [shape = 's32[1]{0}', space=sflag, size = 0x4, scoped, tag = 'scoped memory for tpu_custom_call.1']
    #allocation13 [shape = 'u8[16384]{0}', space=vmem, size = 0x4000, scoped, tag = 'input window, operand 8, single buffered']
    #allocation14 [shape = 'u8[131072]{0}', space=vmem, size = 0x20000, scoped, tag = 'input window, operand 10, single buffered']
    #allocation15 [shape = 's32[1]{0}', space=sflag, size = 0x4, scoped, tag = 'scoped memory for tpu_custom_call.1']
    #allocation16 [shape = 'u8[512]{0}', space=smem, size = 0x200, scoped, tag = 'output window, operand 0, single buffered']
    %17 = vsyncpa [#allocation3], 0
    %18 = vsyncpa [#allocation6], 0
    %19 = vsyncpa [#allocation9], 0
    %20 = vsyncpa [#allocation12], 0
    %21 = vsyncpa [#allocation15], 0
    %22 = vsyncpa [#allocation4], 0
    // Predicated region
    $region2: #{tpu_custom_call.1} parent=1 // pred_check
      _
    $region3: #{tpu_custom_call.1} parent=1 // pred_check_branch
      %24 = sbr.rel (0) target = $region5
    $region4: #{tpu_custom_call.1} parent=1 // pred_region
      %s26 = ssub.s32 512, 512
      %27 = vsyncadd [#allocation3], %s26
      %s28 = sshll.u32 [#allocation2], 4
      %s29 = int_to_ptr.vmem [resolvable:$true] %s28
      %34 = dma.hbm_to_vmem [thread:$0]  %s0, 512, %s29, [#allocation3], 128, 128, 8
    $region5: #{tpu_custom_call.1} parent=1 // pred_fallthru
      _
    // Predicated region
    $region6: #{tpu_custom_call.1} parent=1 // pred_check
      _
    $region7: #{tpu_custom_call.1} parent=1 // pred_check_branch
      %36 = sbr.rel (0) target = $region9
    $region8: #{tpu_custom_call.1} parent=1 // pred_region
      %s38 = ssub.s32 8192, 8192
      %39 = vsyncadd [#allocation6], %s38
      %s40 = sshll.u32 [#allocation5], 4
      %s41 = int_to_ptr.vmem [resolvable:$true] %s40
      %46 = dma.hbm_to_vmem [thread:$0]  %s1, 8192, %s41, [#allocation6], 2048, 2048, 128
    $region9: #{tpu_custom_call.1} parent=1 // pred_fallthru
      _
    // Predicated region
    $region10: #{tpu_custom_call.1} parent=1 // pred_check
      _
    $region11: #{tpu_custom_call.1} parent=1 // pred_check_branch
      %48 = sbr.rel (0) target = $region13
    $region12: #{tpu_custom_call.1} parent=1 // pred_region
      %s50 = ssub.s32 512, 512
      %51 = vsyncadd [#allocation6], %s50
      %s53 = sshll.u32 [#allocation7], 4
      %s54 = int_to_ptr.vmem [resolvable:$true] %s53
      %56 = dma.hbm_to_vmem [thread:$0]  %s2, 512, %s54, [#allocation6]
    $region13: #{tpu_custom_call.1} parent=1 // pred_fallthru
      _
    // Predicated region
    $region14: #{tpu_custom_call.1} parent=1 // pred_check
      _
    $region15: #{tpu_custom_call.1} parent=1 // pred_check_branch
      %58 = sbr.rel (0) target = $region17
    $region16: #{tpu_custom_call.1} parent=1 // pred_region
      %s60 = ssub.s32 512, 512
      %61 = vsyncadd [#allocation9], %s60
      %s63 = sshll.u32 [#allocation8], 4
      %s64 = int_to_ptr.vmem [resolvable:$true] %s63
      %66 = dma.hbm_to_vmem [thread:$0]  %s3, 512, %s64, [#allocation9]
    $region17: #{tpu_custom_call.1} parent=1 // pred_fallthru
      _
    // Predicated region
    $region18: #{tpu_custom_call.1} parent=1 // pred_check
      _
    $region19: #{tpu_custom_call.1} parent=1 // pred_check_branch
      %68 = sbr.rel (0) target = $region21
    $region20: #{tpu_custom_call.1} parent=1 // pred_region
      %s70 = ssub.s32 4096, 4096
      %71 = vsyncadd [#allocation9], %s70
      %s72 = sshll.u32 [#allocation10], 4
      %s73 = int_to_ptr.vmem [resolvable:$true] %s72
      %78 = dma.hbm_to_vmem [thread:$0]  %s4, 4096, %s73, [#allocation9], 2048, 2048, 128
    $region21: #{tpu_custom_call.1} parent=1 // pred_fallthru
      _
    // Predicated region
    $region22: #{tpu_custom_call.1} parent=1 // pred_check
      _
    $region23: #{tpu_custom_call.1} parent=1 // pred_check_branch
      %80 = sbr.rel (0) target = $region25
    $region24: #{tpu_custom_call.1} parent=1 // pred_region
      _
    $region25: #{tpu_custom_call.1} parent=1 // pred_fallthru
      _
    // Predicated region
    $region26: #{tpu_custom_call.1} parent=1 // pred_check
      _
    $region27: #{tpu_custom_call.1} parent=1 // pred_check_branch
      %82 = sbr.rel (0) target = $region29
    $region28: #{tpu_custom_call.1} parent=1 // pred_region
      _
    $region29: #{tpu_custom_call.1} parent=1 // pred_fallthru
      _
    // Predicated region
    $region30: #{tpu_custom_call.1} parent=1 // pred_check
      _
    $region31: #{tpu_custom_call.1} parent=1 // pred_check_branch
      %84 = sbr.rel (0) target = $region33
    $region32: #{tpu_custom_call.1} parent=1 // pred_region
      %s86 = ssub.s32 4096, 4096
      %87 = vsyncadd [#allocation12], %s86
      %s88 = sshll.u32 [#allocation11], 4
      %s89 = int_to_ptr.vmem [resolvable:$true] %s88
      %94 = dma.hbm_to_vmem [thread:$0]  %s7, 4096, %s89, [#allocation12], 2048, 2048, 128
    $region33: #{tpu_custom_call.1} parent=1 // pred_fallthru
      _
    // Predicated region
    $region34: #{tpu_custom_call.1} parent=1 // pred_check
      _
    $region35: #{tpu_custom_call.1} parent=1 // pred_check_branch
      %96 = sbr.rel (0) target = $region37
    $region36: #{tpu_custom_call.1} parent=1 // pred_region
      %s98 = ssub.s32 512, 512
      %99 = vsyncadd [#allocation12], %s98
      %s101 = sshll.u32 [#allocation13], 4
      %s102 = int_to_ptr.vmem [resolvable:$true] %s101
      %104 = dma.hbm_to_vmem [thread:$0]  %s8, 512, %s102, [#allocation12]
    $region37: #{tpu_custom_call.1} parent=1 // pred_fallthru
      _
    // Predicated region
    $region38: #{tpu_custom_call.1} parent=1 // pred_check
      _
    $region39: #{tpu_custom_call.1} parent=1 // pred_check_branch
      %106 = sbr.rel (0) target = $region41
    $region40: #{tpu_custom_call.1} parent=1 // pred_region
      _
    $region41: #{tpu_custom_call.1} parent=1 // pred_fallthru
      _
    // Predicated region
    $region42: #{tpu_custom_call.1} parent=1 // pred_check
      _
    $region43: #{tpu_custom_call.1} parent=1 // pred_check_branch
      %108 = sbr.rel (0) target = $region45
    $region44: #{tpu_custom_call.1} parent=1 // pred_region
      %s110 = ssub.s32 4096, 4096
      %111 = vsyncadd [#allocation15], %s110
      %s112 = sshll.u32 [#allocation14], 4
      %s113 = int_to_ptr.vmem [resolvable:$true] %s112
      %118 = dma.hbm_to_vmem [thread:$0]  %s10, 4096, %s113, [#allocation15], 2048, 2048, 128
    $region45: #{tpu_custom_call.1} parent=1 // pred_fallthru
      _
    // Predicated region
    $region46: #{tpu_custom_call.1} parent=1 // pred_check
      _
    $region47: #{tpu_custom_call.1} parent=1 // pred_check_branch
      %120 = sbr.rel (0) target = $region49
    $region48: #{tpu_custom_call.1} parent=1 // pred_region
      _
    $region49: #{tpu_custom_call.1} parent=1 // pred_fallthru
      _
    // Predicated region
    $region50: #{tpu_custom_call.1} parent=1 // pred_check
      _
    $region51: #{tpu_custom_call.1} parent=1 // pred_check_branch
      %122 = sbr.rel (0) target = $region53
    $region52: #{tpu_custom_call.1} parent=1 // pred_region
      %123 = dma.done [#allocation3], 512
    $region53: #{tpu_custom_call.1} parent=1 // pred_fallthru
      _
    // Predicated region
    $region54: #{tpu_custom_call.1} parent=1 // pred_check
      _
    $region55: #{tpu_custom_call.1} parent=1 // pred_check_branch
      %125 = sbr.rel (0) target = $region57
    $region56: #{tpu_custom_call.1} parent=1 // pred_region
      %126 = dma.done [#allocation6], 8192
    $region57: #{tpu_custom_call.1} parent=1 // pred_fallthru
      _
    // Predicated region
    $region58: #{tpu_custom_call.1} parent=1 // pred_check
      _
    $region59: #{tpu_custom_call.1} parent=1 // pred_check_branch
      %128 = sbr.rel (0) target = $region61
    $region60: #{tpu_custom_call.1} parent=1 // pred_region
      %129 = dma.done [#allocation6], 512
    $region61: #{tpu_custom_call.1} parent=1 // pred_fallthru
      _
    // Predicated region
    $region62: #{tpu_custom_call.1} parent=1 // pred_check
      _
    $region63: #{tpu_custom_call.1} parent=1 // pred_check_branch
      %131 = sbr.rel (0) target = $region65
    $region64: #{tpu_custom_call.1} parent=1 // pred_region
      %132 = dma.done [#allocation9], 512
    $region65: #{tpu_custom_call.1} parent=1 // pred_fallthru
      _
    // Predicated region
    $region66: #{tpu_custom_call.1} parent=1 // pred_check
      _
    $region67: #{tpu_custom_call.1} parent=1 // pred_check_branch
      %134 = sbr.rel (0) target = $region69
    $region68: #{tpu_custom_call.1} parent=1 // pred_region
      %135 = dma.done [#allocation9], 4096
    $region69: #{tpu_custom_call.1} parent=1 // pred_fallthru
      _
    // Predicated region
    $region70: #{tpu_custom_call.1} parent=1 // pred_check
      _
    $region71: #{tpu_custom_call.1} parent=1 // pred_check_branch
      %137 = sbr.rel (0) target = $region73
    $region72: #{tpu_custom_call.1} parent=1 // pred_region
      %138 = dma.done [#allocation12], 4096
    $region73: #{tpu_custom_call.1} parent=1 // pred_fallthru
      _
    // Predicated region
    $region74: #{tpu_custom_call.1} parent=1 // pred_check
      _
    $region75: #{tpu_custom_call.1} parent=1 // pred_check_branch
      %140 = sbr.rel (0) target = $region77
    $region76: #{tpu_custom_call.1} parent=1 // pred_region
      %141 = dma.done [#allocation12], 512
    $region77: #{tpu_custom_call.1} parent=1 // pred_fallthru
      _
    // Predicated region
    $region78: #{tpu_custom_call.1} parent=1 // pred_check
      _
    $region79: #{tpu_custom_call.1} parent=1 // pred_check_branch
      %143 = sbr.rel (0) target = $region81
    $region80: #{tpu_custom_call.1} parent=1 // pred_region
      %144 = dma.done [#allocation15], 4096
    $region81: #{tpu_custom_call.1} parent=1 // pred_fallthru
      _
    %v146 = vld [vmem:[#allocation2] sm:$0xff]
    %v147 = vld [vmem:[#allocation2 + $0x8] sm:$0xff]
    %v148 = vld [vmem:[#allocation2 + $0x10] sm:$0xff]
    %v149 = vld [vmem:[#allocation2 + $0x18] sm:$0xff]
    %v150 = vpack.c.bf16 %v147, %v146
    %v151 = vpack.c.bf16 %v149, %v148
    %v152 = vld [vmem:[#allocation5] sm:$0xff]
    %v153 = vld [vmem:[#allocation5 + $0x8] sm:$0xff]
    %v154 = vld [vmem:[#allocation5 + $0x10] sm:$0xff]
    %v155 = vld [vmem:[#allocation5 + $0x18] sm:$0xff]
    %v156 = vld [vmem:[#allocation5 + $0x20] sm:$0xff]
    %v157 = vld [vmem:[#allocation5 + $0x28] sm:$0xff]
    %v158 = vld [vmem:[#allocation5 + $0x30] sm:$0xff]
    %v159 = vld [vmem:[#allocation5 + $0x38] sm:$0xff]
    %v160 = vld [vmem:[#allocation5 + $0x40] sm:$0xff]
    %v161 = vld [vmem:[#allocation5 + $0x48] sm:$0xff]
    %v162 = vld [vmem:[#allocation5 + $0x50] sm:$0xff]
    %v163 = vld [vmem:[#allocation5 + $0x58] sm:$0xff]
    %v164 = vld [vmem:[#allocation5 + $0x60] sm:$0xff]
    %v165 = vld [vmem:[#allocation5 + $0x68] sm:$0xff]
    %v166 = vld [vmem:[#allocation5 + $0x70] sm:$0xff]
    %v167 = vld [vmem:[#allocation5 + $0x78] sm:$0xff]
    %v168 = vld [vmem:[#allocation5 + $0x80] sm:$0xff]
    %v169 = vld [vmem:[#allocation5 + $0x88] sm:$0xff]
    %v170 = vld [vmem:[#allocation5 + $0x90] sm:$0xff]
    %v171 = vld [vmem:[#allocation5 + $0x98] sm:$0xff]
    %v172 = vld [vmem:[#allocation5 + $0xa0] sm:$0xff]
    %v173 = vld [vmem:[#allocation5 + $0xa8] sm:$0xff]
    %v174 = vld [vmem:[#allocation5 + $0xb0] sm:$0xff]
    %v175 = vld [vmem:[#allocation5 + $0xb8] sm:$0xff]
    %v176 = vld [vmem:[#allocation5 + $0xc0] sm:$0xff]
    %v177 = vld [vmem:[#allocation5 + $0xc8] sm:$0xff]
    %v178 = vld [vmem:[#allocation5 + $0xd0] sm:$0xff]
    %v179 = vld [vmem:[#allocation5 + $0xd8] sm:$0xff]
    %v180 = vld [vmem:[#allocation5 + $0xe0] sm:$0xff]
    %v181 = vld [vmem:[#allocation5 + $0xe8] sm:$0xff]
    %v182 = vld [vmem:[#allocation5 + $0xf0] sm:$0xff]
    %v183 = vld [vmem:[#allocation5 + $0xf8] sm:$0xff]
    %v184 = vld [vmem:[#allocation5 + $0x100] sm:$0xff]
    %v185 = vld [vmem:[#allocation5 + $0x108] sm:$0xff]
    %v186 = vld [vmem:[#allocation5 + $0x110] sm:$0xff]
    %v187 = vld [vmem:[#allocation5 + $0x118] sm:$0xff]
    %v188 = vld [vmem:[#allocation5 + $0x120] sm:$0xff]
    %v189 = vld [vmem:[#allocation5 + $0x128] sm:$0xff]
    %v190 = vld [vmem:[#allocation5 + $0x130] sm:$0xff]
    %v191 = vld [vmem:[#allocation5 + $0x138] sm:$0xff]
    %v192 = vld [vmem:[#allocation5 + $0x140] sm:$0xff]
    %v193 = vld [vmem:[#allocation5 + $0x148] sm:$0xff]
    %v194 = vld [vmem:[#allocation5 + $0x150] sm:$0xff]
    %v195 = vld [vmem:[#allocation5 + $0x158] sm:$0xff]
    %v196 = vld [vmem:[#allocation5 + $0x160] sm:$0xff]
    %v197 = vld [vmem:[#allocation5 + $0x168] sm:$0xff]
    %v198 = vld [vmem:[#allocation5 + $0x170] sm:$0xff]
    %v199 = vld [vmem:[#allocation5 + $0x178] sm:$0xff]
    %v200 = vld [vmem:[#allocation5 + $0x180] sm:$0xff]
    %v201 = vld [vmem:[#allocation5 + $0x188] sm:$0xff]
    %v202 = vld [vmem:[#allocation5 + $0x190] sm:$0xff]
    %v203 = vld [vmem:[#allocation5 + $0x198] sm:$0xff]
    %v204 = vld [vmem:[#allocation5 + $0x1a0] sm:$0xff]
    %v205 = vld [vmem:[#allocation5 + $0x1a8] sm:$0xff]
    %v206 = vld [vmem:[#allocation5 + $0x1b0] sm:$0xff]
    %v207 = vld [vmem:[#allocation5 + $0x1b8] sm:$0xff]
    %v208 = vld [vmem:[#allocation5 + $0x1c0] sm:$0xff]
    %v209 = vld [vmem:[#allocation5 + $0x1c8] sm:$0xff]
    %v210 = vld [vmem:[#allocation5 + $0x1d0] sm:$0xff]
    %v211 = vld [vmem:[#allocation5 + $0x1d8] sm:$0xff]
    %v212 = vld [vmem:[#allocation5 + $0x1e0] sm:$0xff]
    %v213 = vld [vmem:[#allocation5 + $0x1e8] sm:$0xff]
    %v214 = vld [vmem:[#allocation5 + $0x1f0] sm:$0xff]
    %v215 = vld [vmem:[#allocation5 + $0x1f8] sm:$0xff]
    %v280 = vunpack.c.l.b16 %v152
    %v281 = vunpack.c.h.b16 %v152
    %v282 = vunpack.c.l.b16 %v153
    %v283 = vunpack.c.h.b16 %v153
    %v284 = vunpack.c.l.b16 %v154
    %v285 = vunpack.c.h.b16 %v154
    %v286 = vunpack.c.l.b16 %v155
    %v287 = vunpack.c.h.b16 %v155
    %v288 = vunpack.c.l.b16 %v156
    %v289 = vunpack.c.h.b16 %v156
    %v290 = vunpack.c.l.b16 %v157
    %v291 = vunpack.c.h.b16 %v157
    %v292 = vunpack.c.l.b16 %v158
    %v293 = vunpack.c.h.b16 %v158
    %v294 = vunpack.c.l.b16 %v159
    %v295 = vunpack.c.h.b16 %v159
    %v296 = vunpack.c.l.b16 %v160
    %v297 = vunpack.c.h.b16 %v160
    %v298 = vunpack.c.l.b16 %v161
    %v299 = vunpack.c.h.b16 %v161
    %v300 = vunpack.c.l.b16 %v162
    %v301 = vunpack.c.h.b16 %v162
    %v302 = vunpack.c.l.b16 %v163
    %v303 = vunpack.c.h.b16 %v163
    %v304 = vunpack.c.l.b16 %v164
    %v305 = vunpack.c.h.b16 %v164
    %v306 = vunpack.c.l.b16 %v165
    %v307 = vunpack.c.h.b16 %v165
    %v308 = vunpack.c.l.b16 %v166
    %v309 = vunpack.c.h.b16 %v166
    %v310 = vunpack.c.l.b16 %v167
    %v311 = vunpack.c.h.b16 %v167
    %v312 = vunpack.c.l.b16 %v168
    %v313 = vunpack.c.h.b16 %v168
    %v314 = vunpack.c.l.b16 %v169
    %v315 = vunpack.c.h.b16 %v169
    %v316 = vunpack.c.l.b16 %v170
    %v317 = vunpack.c.h.b16 %v170
    %v318 = vunpack.c.l.b16 %v171
    %v319 = vunpack.c.h.b16 %v171
    %v320 = vunpack.c.l.b16 %v172
    %v321 = vunpack.c.h.b16 %v172
    %v322 = vunpack.c.l.b16 %v173
    %v323 = vunpack.c.h.b16 %v173
    %v324 = vunpack.c.l.b16 %v174
    %v325 = vunpack.c.h.b16 %v174
    %v326 = vunpack.c.l.b16 %v175
    %v327 = vunpack.c.h.b16 %v175
    %v328 = vunpack.c.l.b16 %v176
    %v329 = vunpack.c.h.b16 %v176
    %v330 = vunpack.c.l.b16 %v177
    %v331 = vunpack.c.h.b16 %v177
    %v332 = vunpack.c.l.b16 %v178
    %v333 = vunpack.c.h.b16 %v178
    %v334 = vunpack.c.l.b16 %v179
    %v335 = vunpack.c.h.b16 %v179
    %v336 = vunpack.c.l.b16 %v180
    %v337 = vunpack.c.h.b16 %v180
    %v338 = vunpack.c.l.b16 %v181
    %v339 = vunpack.c.h.b16 %v181
    %v340 = vunpack.c.l.b16 %v182
    %v341 = vunpack.c.h.b16 %v182
    %v342 = vunpack.c.l.b16 %v183
    %v343 = vunpack.c.h.b16 %v183
    %v344 = vunpack.c.l.b16 %v184
    %v345 = vunpack.c.h.b16 %v184
    %v346 = vunpack.c.l.b16 %v185
    %v347 = vunpack.c.h.b16 %v185
    %v348 = vunpack.c.l.b16 %v186
    %v349 = vunpack.c.h.b16 %v186
    %v350 = vunpack.c.l.b16 %v187
    %v351 = vunpack.c.h.b16 %v187
    %v352 = vunpack.c.l.b16 %v188
    %v353 = vunpack.c.h.b16 %v188
    %v354 = vunpack.c.l.b16 %v189
    %v355 = vunpack.c.h.b16 %v189
    %v356 = vunpack.c.l.b16 %v190
    %v357 = vunpack.c.h.b16 %v190
    %v358 = vunpack.c.l.b16 %v191
    %v359 = vunpack.c.h.b16 %v191
    %v360 = vunpack.c.l.b16 %v192
    %v361 = vunpack.c.h.b16 %v192
    %v362 = vunpack.c.l.b16 %v193
    %v363 = vunpack.c.h.b16 %v193
    %v364 = vunpack.c.l.b16 %v194
    %v365 = vunpack.c.h.b16 %v194
    %v366 = vunpack.c.l.b16 %v195
    %v367 = vunpack.c.h.b16 %v195
    %v368 = vunpack.c.l.b16 %v196
    %v369 = vunpack.c.h.b16 %v196
    %v370 = vunpack.c.l.b16 %v197
    %v371 = vunpack.c.h.b16 %v197
    %v372 = vunpack.c.l.b16 %v198
    %v373 = vunpack.c.h.b16 %v198
    %v374 = vunpack.c.l.b16 %v199
    %v375 = vunpack.c.h.b16 %v199
    %v376 = vunpack.c.l.b16 %v200
    %v377 = vunpack.c.h.b16 %v200
    %v378 = vunpack.c.l.b16 %v201
    %v379 = vunpack.c.h.b16 %v201
    %v380 = vunpack.c.l.b16 %v202
    %v381 = vunpack.c.h.b16 %v202
    %v382 = vunpack.c.l.b16 %v203
    %v383 = vunpack.c.h.b16 %v203
    %v384 = vunpack.c.l.b16 %v204
    %v385 = vunpack.c.h.b16 %v204
    %v386 = vunpack.c.l.b16 %v205
    %v387 = vunpack.c.h.b16 %v205
    %v388 = vunpack.c.l.b16 %v206
    %v389 = vunpack.c.h.b16 %v206
    %v390 = vunpack.c.l.b16 %v207
    %v391 = vunpack.c.h.b16 %v207
    %v392 = vunpack.c.l.b16 %v208
    %v393 = vunpack.c.h.b16 %v208
    %v394 = vunpack.c.l.b16 %v209
    %v395 = vunpack.c.h.b16 %v209
    %v396 = vunpack.c.l.b16 %v210
    %v397 = vunpack.c.h.b16 %v210
    %v398 = vunpack.c.l.b16 %v211
    %v399 = vunpack.c.h.b16 %v211
    %v400 = vunpack.c.l.b16 %v212
    %v401 = vunpack.c.h.b16 %v212
    %v402 = vunpack.c.l.b16 %v213
    %v403 = vunpack.c.h.b16 %v213
    %v404 = vunpack.c.l.b16 %v214
    %v405 = vunpack.c.h.b16 %v214
    %v406 = vunpack.c.l.b16 %v215
    %v407 = vunpack.c.h.b16 %v215
    %v408 = vpack.c.b16 %v312, %v280
    %v409 = vpack.c.b16 %v313, %v281
    %v410 = vpack.c.b16 %v314, %v282
    %v411 = vpack.c.b16 %v315, %v283
    %v412 = vpack.c.b16 %v316, %v284
    %v413 = vpack.c.b16 %v317, %v285
    %v414 = vpack.c.b16 %v318, %v286
    %v415 = vpack.c.b16 %v319, %v287
    %v416 = vpack.c.b16 %v320, %v288
    %v417 = vpack.c.b16 %v321, %v289
    %v418 = vpack.c.b16 %v322, %v290
    %v419 = vpack.c.b16 %v323, %v291
    %v420 = vpack.c.b16 %v324, %v292
    %v421 = vpack.c.b16 %v325, %v293
    %v422 = vpack.c.b16 %v326, %v294
    %v423 = vpack.c.b16 %v327, %v295
    %v424 = vpack.c.b16 %v328, %v296
    %v425 = vpack.c.b16 %v329, %v297
    %v426 = vpack.c.b16 %v330, %v298
    %v427 = vpack.c.b16 %v331, %v299
    %v428 = vpack.c.b16 %v332, %v300
    %v429 = vpack.c.b16 %v333, %v301
    %v430 = vpack.c.b16 %v334, %v302
    %v431 = vpack.c.b16 %v335, %v303
    %v432 = vpack.c.b16 %v336, %v304
    %v433 = vpack.c.b16 %v337, %v305
    %v434 = vpack.c.b16 %v338, %v306
    %v435 = vpack.c.b16 %v339, %v307
    %v436 = vpack.c.b16 %v340, %v308
    %v437 = vpack.c.b16 %v341, %v309
    %v438 = vpack.c.b16 %v342, %v310
    %v439 = vpack.c.b16 %v343, %v311
    %v440 = vpack.c.b16 %v376, %v344
    %v441 = vpack.c.b16 %v377, %v345
    %v442 = vpack.c.b16 %v378, %v346
    %v443 = vpack.c.b16 %v379, %v347
    %v444 = vpack.c.b16 %v380, %v348
    %v445 = vpack.c.b16 %v381, %v349
    %v446 = vpack.c.b16 %v382, %v350
    %v447 = vpack.c.b16 %v383, %v351
    %v448 = vpack.c.b16 %v384, %v352
    %v449 = vpack.c.b16 %v385, %v353
    %v450 = vpack.c.b16 %v386, %v354
    %v451 = vpack.c.b16 %v387, %v355
    %v452 = vpack.c.b16 %v388, %v356
    %v453 = vpack.c.b16 %v389, %v357
    %v454 = vpack.c.b16 %v390, %v358
    %v455 = vpack.c.b16 %v391, %v359
    %v456 = vpack.c.b16 %v392, %v360
    %v457 = vpack.c.b16 %v393, %v361
    %v458 = vpack.c.b16 %v394, %v362
    %v459 = vpack.c.b16 %v395, %v363
    %v460 = vpack.c.b16 %v396, %v364
    %v461 = vpack.c.b16 %v397, %v365
    %v462 = vpack.c.b16 %v398, %v366
    %v463 = vpack.c.b16 %v399, %v367
    %v464 = vpack.c.b16 %v400, %v368
    %v465 = vpack.c.b16 %v401, %v369
    %v466 = vpack.c.b16 %v402, %v370
    %v467 = vpack.c.b16 %v403, %v371
    %v468 = vpack.c.b16 %v404, %v372
    %v469 = vpack.c.b16 %v405, %v373
    %v470 = vpack.c.b16 %v406, %v374
    %v471 = vpack.c.b16 %v407, %v375
    %vm536 = vcmask 261120
    %v538 = vsel %vm536, %v150, 0
    %v541 = vsel %vm536, %v151, 0
    %543 = vmatprep.subr.bf16.mxu0 %v409
    %544 = vmatpush1.bf16.msra.mxu0 %v408
    %545 = vmatprep.subr.bf16.mxu0 %v441
    %546 = vmatpush1.bf16.msra.mxu0 %v440
    %547 = vmatprep.subr.bf16.mxu0 0
    %548 = vmatpush1.bf16.msra.mxu0 0
    %549 = vmatprep.subr.bf16.mxu0 0
    %550 = vmatpush1.bf16.msra.mxu0 0
    %551 = vmatprep.subr.bf16.mxu0 0
    %552 = vmatpush1.bf16.msra.mxu0 0
    %553 = vmatprep.subr.bf16.mxu0 0
    %554 = vmatpush1.bf16.msra.mxu0 0
    %555 = vmatprep.subr.bf16.mxu0 0
    %556 = vmatpush1.bf16.msra.mxu0 0
    %557 = vmatprep.subr.bf16.mxu0 0
    %558 = vmatpush1.bf16.msra.mxu0 0
    %559 = vmatprep.subr.bf16.mxu0 0
    %560 = vmatpush1.bf16.msra.mxu0 0
    %561 = vmatprep.subr.bf16.mxu0 0
    %562 = vmatpush1.bf16.msra.mxu0 0
    %563 = vmatprep.subr.bf16.mxu0 0
    %564 = vmatpush1.bf16.msra.mxu0 0
    %565 = vmatprep.subr.bf16.mxu0 0
    %566 = vmatpush1.bf16.msra.mxu0 0
    %567 = vmatprep.subr.bf16.mxu0 0
    %568 = vmatpush1.bf16.msra.mxu0 0
    %569 = vmatprep.subr.bf16.mxu0 0
    %570 = vmatpush1.bf16.msra.mxu0 0
    %571 = vmatprep.subr.bf16.mxu0 0
    %572 = vmatpush1.bf16.msra.mxu0 0
    %573 = vmatprep.subr.bf16.mxu0 0
    %574 = vmatpush1.bf16.msra.mxu0 0
    %575 = vmatprep.mubr.bf16.mxu0 0
    %576 = vmatmul.mubr.bf16.gmra.mrb[0].mxu0 %v538
    %v577 = vpop.f32.mrb[0].mxu0
    %v578 = vadd.f32 0.0, %v577
    %v579 = vpop.f32.mrb[0].mxu0
    %v580 = vadd.f32 0.0, %v579
    %v581 = vpop.f32.mrb[0].mxu0
    %v582 = vadd.f32 0.0, %v581
    %v583 = vpop.f32.mrb[0].mxu0
    %v584 = vadd.f32 0.0, %v583
    %585 = vmatprep.mubr.bf16.mxu0 0
    %586 = vmatmul.mubr.bf16.gmra.mrb[0].mxu0 %v541
    %v587 = vpop.f32.mrb[0].mxu0
    %v588 = vadd.f32 0.0, %v587
    %v589 = vpop.f32.mrb[0].mxu0
    %v590 = vadd.f32 0.0, %v589
    %v591 = vpop.f32.mrb[0].mxu0
    %v592 = vadd.f32 0.0, %v591
    %v593 = vpop.f32.mrb[0].mxu0
    %v594 = vadd.f32 0.0, %v593
    %595 = vdwg.mxu0
    %596 = vmatprep.subr.bf16.mxu0 %v411
    %597 = vmatpush1.bf16.msra.mxu0 %v410
    %598 = vmatprep.subr.bf16.mxu0 %v443
    %599 = vmatpush1.bf16.msra.mxu0 %v442
    %600 = vmatprep.subr.bf16.mxu0 0
    %601 = vmatpush1.bf16.msra.mxu0 0
    %602 = vmatprep.subr.bf16.mxu0 0
    %603 = vmatpush1.bf16.msra.mxu0 0
    %604 = vmatprep.subr.bf16.mxu0 0
    %605 = vmatpush1.bf16.msra.mxu0 0
    %606 = vmatprep.subr.bf16.mxu0 0
    %607 = vmatpush1.bf16.msra.mxu0 0
    %608 = vmatprep.subr.bf16.mxu0 0
    %609 = vmatpush1.bf16.msra.mxu0 0
    %610 = vmatprep.subr.bf16.mxu0 0
    %611 = vmatpush1.bf16.msra.mxu0 0
    %612 = vmatprep.subr.bf16.mxu0 0
    %613 = vmatpush1.bf16.msra.mxu0 0
    %614 = vmatprep.subr.bf16.mxu0 0
    %615 = vmatpush1.bf16.msra.mxu0 0
    %616 = vmatprep.subr.bf16.mxu0 0
    %617 = vmatpush1.bf16.msra.mxu0 0
    %618 = vmatprep.subr.bf16.mxu0 0
    %619 = vmatpush1.bf16.msra.mxu0 0
    %620 = vmatprep.subr.bf16.mxu0 0
    %621 = vmatpush1.bf16.msra.mxu0 0
    %622 = vmatprep.subr.bf16.mxu0 0
    %623 = vmatpush1.bf16.msra.mxu0 0
    %624 = vmatprep.subr.bf16.mxu0 0
    %625 = vmatpush1.bf16.msra.mxu0 0
    %626 = vmatprep.subr.bf16.mxu0 0
    %627 = vmatpush1.bf16.msra.mxu0 0
    %628 = vmatprep.mubr.bf16.mxu0 0
    %629 = vmatmul.mubr.bf16.gmra.mrb[0].mxu0 %v538
    %v630 = vpop.f32.mrb[0].mxu0
    %v631 = vadd.f32 0.0, %v630
    %v632 = vpop.f32.mrb[0].mxu0
    %v633 = vadd.f32 0.0, %v632
    %v634 = vpop.f32.mrb[0].mxu0
    %v635 = vadd.f32 0.0, %v634
    %v636 = vpop.f32.mrb[0].mxu0
    %v637 = vadd.f32 0.0, %v636
    %638 = vmatprep.mubr.bf16.mxu0 0
    %639 = vmatmul.mubr.bf16.gmra.mrb[0].mxu0 %v541
    %v640 = vpop.f32.mrb[0].mxu0
    %v641 = vadd.f32 0.0, %v640
    %v642 = vpop.f32.mrb[0].mxu0
    %v643 = vadd.f32 0.0, %v642
    %v644 = vpop.f32.mrb[0].mxu0
    %v645 = vadd.f32 0.0, %v644
    %v646 = vpop.f32.mrb[0].mxu0
    %v647 = vadd.f32 0.0, %v646
    %648 = vdwg.mxu0
    %649 = vmatprep.subr.bf16.mxu0 %v413
    %650 = vmatpush1.bf16.msra.mxu0 %v412
    %651 = vmatprep.subr.bf16.mxu0 %v445
    %652 = vmatpush1.bf16.msra.mxu0 %v444
    %653 = vmatprep.subr.bf16.mxu0 0
    %654 = vmatpush1.bf16.msra.mxu0 0
    %655 = vmatprep.subr.bf16.mxu0 0
    %656 = vmatpush1.bf16.msra.mxu0 0
    %657 = vmatprep.subr.bf16.mxu0 0
    %658 = vmatpush1.bf16.msra.mxu0 0
    %659 = vmatprep.subr.bf16.mxu0 0
    %660 = vmatpush1.bf16.msra.mxu0 0
    %661 = vmatprep.subr.bf16.mxu0 0
    %662 = vmatpush1.bf16.msra.mxu0 0
    %663 = vmatprep.subr.bf16.mxu0 0
    %664 = vmatpush1.bf16.msra.mxu0 0
    %665 = vmatprep.subr.bf16.mxu0 0
    %666 = vmatpush1.bf16.msra.mxu0 0
    %667 = vmatprep.subr.bf16.mxu0 0
    %668 = vmatpush1.bf16.msra.mxu0 0
    %669 = vmatprep.subr.bf16.mxu0 0
    %670 = vmatpush1.bf16.msra.mxu0 0
    %671 = vmatprep.subr.bf16.mxu0 0
    %672 = vmatpush1.bf16.msra.mxu0 0
    %673 = vmatprep.subr.bf16.mxu0 0
    %674 = vmatpush1.bf16.msra.mxu0 0
    %675 = vmatprep.subr.bf16.mxu0 0
    %676 = vmatpush1.bf16.msra.mxu0 0
    %677 = vmatprep.subr.bf16.mxu0 0
    %678 = vmatpush1.bf16.msra.mxu0 0
    %679 = vmatprep.subr.bf16.mxu0 0
    %680 = vmatpush1.bf16.msra.mxu0 0
    %681 = vmatprep.mubr.bf16.mxu0 0
    %682 = vmatmul.mubr.bf16.gmra.mrb[0].mxu0 %v538
    %v683 = vpop.f32.mrb[0].mxu0
    %v684 = vadd.f32 0.0, %v683
    %v685 = vpop.f32.mrb[0].mxu0
    %v686 = vadd.f32 0.0, %v685
    %v687 = vpop.f32.mrb[0].mxu0
    %v688 = vadd.f32 0.0, %v687
    %v689 = vpop.f32.mrb[0].mxu0
    %v690 = vadd.f32 0.0, %v689
    %691 = vmatprep.mubr.bf16.mxu0 0
    %692 = vmatmul.mubr.bf16.gmra.mrb[0].mxu0 %v541
    %v693 = vpop.f32.mrb[0].mxu0
    %v694 = vadd.f32 0.0, %v693
    %v695 = vpop.f32.mrb[0].mxu0
    %v696 = vadd.f32 0.0, %v695
    %v697 = vpop.f32.mrb[0].mxu0
    %v698 = vadd.f32 0.0, %v697
    %v699 = vpop.f32.mrb[0].mxu0
    %v700 = vadd.f32 0.0, %v699
    %701 = vdwg.mxu0
    %702 = vmatprep.subr.bf16.mxu0 %v415
    %703 = vmatpush1.bf16.msra.mxu0 %v414
    %704 = vmatprep.subr.bf16.mxu0 %v447
    %705 = vmatpush1.bf16.msra.mxu0 %v446
    %706 = vmatprep.subr.bf16.mxu0 0
    %707 = vmatpush1.bf16.msra.mxu0 0
    %708 = vmatprep.subr.bf16.mxu0 0
    %709 = vmatpush1.bf16.msra.mxu0 0
    %710 = vmatprep.subr.bf16.mxu0 0
    %711 = vmatpush1.bf16.msra.mxu0 0
    %712 = vmatprep.subr.bf16.mxu0 0
    %713 = vmatpush1.bf16.msra.mxu0 0
    %714 = vmatprep.subr.bf16.mxu0 0
    %715 = vmatpush1.bf16.msra.mxu0 0
    %716 = vmatprep.subr.bf16.mxu0 0
    %717 = vmatpush1.bf16.msra.mxu0 0
    %718 = vmatprep.subr.bf16.mxu0 0
    %719 = vmatpush1.bf16.msra.mxu0 0
    %720 = vmatprep.subr.bf16.mxu0 0
    %721 = vmatpush1.bf16.msra.mxu0 0
    %722 = vmatprep.subr.bf16.mxu0 0
    %723 = vmatpush1.bf16.msra.mxu0 0
    %724 = vmatprep.subr.bf16.mxu0 0
    %725 = vmatpush1.bf16.msra.mxu0 0
    %726 = vmatprep.subr.bf16.mxu0 0
    %727 = vmatpush1.bf16.msra.mxu0 0
    %728 = vmatprep.subr.bf16.mxu0 0
    %729 = vmatpush1.bf16.msra.mxu0 0
    %730 = vmatprep.subr.bf16.mxu0 0
    %731 = vmatpush1.bf16.msra.mxu0 0
    %732 = vmatprep.subr.bf16.mxu0 0
    %733 = vmatpush1.bf16.msra.mxu0 0
    %734 = vmatprep.mubr.bf16.mxu0 0
    %735 = vmatmul.mubr.bf16.gmra.mrb[0].mxu0 %v538
    %v736 = vpop.f32.mrb[0].mxu0
    %v737 = vadd.f32 0.0, %v736
    %v738 = vpop.f32.mrb[0].mxu0
    %v739 = vadd.f32 0.0, %v738
    %v740 = vpop.f32.mrb[0].mxu0
    %v741 = vadd.f32 0.0, %v740
    %v742 = vpop.f32.mrb[0].mxu0
    %v743 = vadd.f32 0.0, %v742
    %744 = vmatprep.mubr.bf16.mxu0 0
    %745 = vmatmul.mubr.bf16.gmra.mrb[0].mxu0 %v541
    %v746 = vpop.f32.mrb[0].mxu0
    %v747 = vadd.f32 0.0, %v746
    %v748 = vpop.f32.mrb[0].mxu0
    %v749 = vadd.f32 0.0, %v748
    %v750 = vpop.f32.mrb[0].mxu0
    %v751 = vadd.f32 0.0, %v750
    %v752 = vpop.f32.mrb[0].mxu0
    %v753 = vadd.f32 0.0, %v752
    %754 = vdwg.mxu0
    %755 = vmatprep.subr.bf16.mxu0 %v417
    %756 = vmatpush1.bf16.msra.mxu0 %v416
    %757 = vmatprep.subr.bf16.mxu0 %v449
    %758 = vmatpush1.bf16.msra.mxu0 %v448
    %759 = vmatprep.subr.bf16.mxu0 0
    %760 = vmatpush1.bf16.msra.mxu0 0
    %761 = vmatprep.subr.bf16.mxu0 0
    %762 = vmatpush1.bf16.msra.mxu0 0
    %763 = vmatprep.subr.bf16.mxu0 0
    %764 = vmatpush1.bf16.msra.mxu0 0
    %765 = vmatprep.subr.bf16.mxu0 0
    %766 = vmatpush1.bf16.msra.mxu0 0
    %767 = vmatprep.subr.bf16.mxu0 0
    %768 = vmatpush1.bf16.msra.mxu0 0
    %769 = vmatprep.subr.bf16.mxu0 0
    %770 = vmatpush1.bf16.msra.mxu0 0
    %771 = vmatprep.subr.bf16.mxu0 0
    %772 = vmatpush1.bf16.msra.mxu0 0
    %773 = vmatprep.subr.bf16.mxu0 0
    %774 = vmatpush1.bf16.msra.mxu0 0
    %775 = vmatprep.subr.bf16.mxu0 0
    %776 = vmatpush1.bf16.msra.mxu0 0
    %777 = vmatprep.subr.bf16.mxu0 0
    %778 = vmatpush1.bf16.msra.mxu0 0
    %779 = vmatprep.subr.bf16.mxu0 0
    %780 = vmatpush1.bf16.msra.mxu0 0
    %781 = vmatprep.subr.bf16.mxu0 0
    %782 = vmatpush1.bf16.msra.mxu0 0
    %783 = vmatprep.subr.bf16.mxu0 0
    %784 = vmatpush1.bf16.msra.mxu0 0
    %785 = vmatprep.subr.bf16.mxu0 0
    %786 = vmatpush1.bf16.msra.mxu0 0
    %787 = vmatprep.mubr.bf16.mxu0 0
    %788 = vmatmul.mubr.bf16.gmra.mrb[0].mxu0 %v538
    %v789 = vpop.f32.mrb[0].mxu0
    %v790 = vadd.f32 0.0, %v789
    %v791 = vpop.f32.mrb[0].mxu0
    %v792 = vadd.f32 0.0, %v791
    %v793 = vpop.f32.mrb[0].mxu0
    %v794 = vadd.f32 0.0, %v793
    %v795 = vpop.f32.mrb[0].mxu0
    %v796 = vadd.f32 0.0, %v795
    %797 = vmatprep.mubr.bf16.mxu0 0
    %798 = vmatmul.mubr.bf16.gmra.mrb[0].mxu0 %v541
    %v799 = vpop.f32.mrb[0].mxu0
    %v800 = vadd.f32 0.0, %v799
    %v801 = vpop.f32.mrb[0].mxu0
    %v802 = vadd.f32 0.0, %v801
    %v803 = vpop.f32.mrb[0].mxu0
    %v804 = vadd.f32 0.0, %v803
    %v805 = vpop.f32.mrb[0].mxu0
    %v806 = vadd.f32 0.0, %v805
    %807 = vdwg.mxu0
    %808 = vmatprep.subr.bf16.mxu0 %v419
    %809 = vmatpush1.bf16.msra.mxu0 %v418
    %810 = vmatprep.subr.bf16.mxu0 %v451
    %811 = vmatpush1.bf16.msra.mxu0 %v450
    %812 = vmatprep.subr.bf16.mxu0 0
    %813 = vmatpush1.bf16.msra.mxu0 0
    %814 = vmatprep.subr.bf16.mxu0 0
    %815 = vmatpush1.bf16.msra.mxu0 0
    %816 = vmatprep.subr.bf16.mxu0 0
    %817 = vmatpush1.bf16.msra.mxu0 0
    %818 = vmatprep.subr.bf16.mxu0 0
    %819 = vmatpush1.bf16.msra.mxu0 0
    %820 = vmatprep.subr.bf16.mxu0 0
    %821 = vmatpush1.bf16.msra.mxu0 0
    %822 = vmatprep.subr.bf16.mxu0 0
    %823 = vmatpush1.bf16.msra.mxu0 0
    %824 = vmatprep.subr.bf16.mxu0 0
    %825 = vmatpush1.bf16.msra.mxu0 0
    %826 = vmatprep.subr.bf16.mxu0 0
    %827 = vmatpush1.bf16.msra.mxu0 0
    %828 = vmatprep.subr.bf16.mxu0 0
    %829 = vmatpush1.bf16.msra.mxu0 0
    %830 = vmatprep.subr.bf16.mxu0 0
    %831 = vmatpush1.bf16.msra.mxu0 0
    %832 = vmatprep.subr.bf16.mxu0 0
    %833 = vmatpush1.bf16.msra.mxu0 0
    %834 = vmatprep.subr.bf16.mxu0 0
    %835 = vmatpush1.bf16.msra.mxu0 0
    %836 = vmatprep.subr.bf16.mxu0 0
    %837 = vmatpush1.bf16.msra.mxu0 0
    %838 = vmatprep.subr.bf16.mxu0 0
    %839 = vmatpush1.bf16.msra.mxu0 0
    %840 = vmatprep.mubr.bf16.mxu0 0
    %841 = vmatmul.mubr.bf16.gmra.mrb[0].mxu0 %v538
    %v842 = vpop.f32.mrb[0].mxu0
    %v843 = vadd.f32 0.0, %v842
    %v844 = vpop.f32.mrb[0].mxu0
    %v845 = vadd.f32 0.0, %v844
    %v846 = vpop.f32.mrb[0].mxu0
    %v847 = vadd.f32 0.0, %v846
    %v848 = vpop.f32.mrb[0].mxu0
    %v849 = vadd.f32 0.0, %v848
    %850 = vmatprep.mubr.bf16.mxu0 0
    %851 = vmatmul.mubr.bf16.gmra.mrb[0].mxu0 %v541
    %v852 = vpop.f32.mrb[0].mxu0
    %v853 = vadd.f32 0.0, %v852
    %v854 = vpop.f32.mrb[0].mxu0
    %v855 = vadd.f32 0.0, %v854
    %v856 = vpop.f32.mrb[0].mxu0
    %v857 = vadd.f32 0.0, %v856
    %v858 = vpop.f32.mrb[0].mxu0
    %v859 = vadd.f32 0.0, %v858
    %860 = vdwg.mxu0
    %861 = vmatprep.subr.bf16.mxu0 %v421
    %862 = vmatpush1.bf16.msra.mxu0 %v420
    %863 = vmatprep.subr.bf16.mxu0 %v453
    %864 = vmatpush1.bf16.msra.mxu0 %v452
    %865 = vmatprep.subr.bf16.mxu0 0
    %866 = vmatpush1.bf16.msra.mxu0 0
    %867 = vmatprep.subr.bf16.mxu0 0
    %868 = vmatpush1.bf16.msra.mxu0 0
    %869 = vmatprep.subr.bf16.mxu0 0
    %870 = vmatpush1.bf16.msra.mxu0 0
    %871 = vmatprep.subr.bf16.mxu0 0
    %872 = vmatpush1.bf16.msra.mxu0 0
    %873 = vmatprep.subr.bf16.mxu0 0
    %874 = vmatpush1.bf16.msra.mxu0 0
    %875 = vmatprep.subr.bf16.mxu0 0
    %876 = vmatpush1.bf16.msra.mxu0 0
    %877 = vmatprep.subr.bf16.mxu0 0
    %878 = vmatpush1.bf16.msra.mxu0 0
    %879 = vmatprep.subr.bf16.mxu0 0
    %880 = vmatpush1.bf16.msra.mxu0 0
    %881 = vmatprep.subr.bf16.mxu0 0
    %882 = vmatpush1.bf16.msra.mxu0 0
    %883 = vmatprep.subr.bf16.mxu0 0
    %884 = vmatpush1.bf16.msra.mxu0 0
    %885 = vmatprep.subr.bf16.mxu0 0
    %886 = vmatpush1.bf16.msra.mxu0 0
    %887 = vmatprep.subr.bf16.mxu0 0
    %888 = vmatpush1.bf16.msra.mxu0 0
    %889 = vmatprep.subr.bf16.mxu0 0
    %890 = vmatpush1.bf16.msra.mxu0 0
    %891 = vmatprep.subr.bf16.mxu0 0
    %892 = vmatpush1.bf16.msra.mxu0 0
    %893 = vmatprep.mubr.bf16.mxu0 0
    %894 = vmatmul.mubr.bf16.gmra.mrb[0].mxu0 %v538
    %v895 = vpop.f32.mrb[0].mxu0
    %v896 = vadd.f32 0.0, %v895
    %v897 = vpop.f32.mrb[0].mxu0
    %v898 = vadd.f32 0.0, %v897
    %v899 = vpop.f32.mrb[0].mxu0
    %v900 = vadd.f32 0.0, %v899
    %v901 = vpop.f32.mrb[0].mxu0
    %v902 = vadd.f32 0.0, %v901
    %903 = vmatprep.mubr.bf16.mxu0 0
    %904 = vmatmul.mubr.bf16.gmra.mrb[0].mxu0 %v541
    %v905 = vpop.f32.mrb[0].mxu0
    %v906 = vadd.f32 0.0, %v905
    %v907 = vpop.f32.mrb[0].mxu0
    %v908 = vadd.f32 0.0, %v907
    %v909 = vpop.f32.mrb[0].mxu0
    %v910 = vadd.f32 0.0, %v909
    %v911 = vpop.f32.mrb[0].mxu0
    %v912 = vadd.f32 0.0, %v911
    %913 = vdwg.mxu0
    %914 = vmatprep.subr.bf16.mxu0 %v423
    %915 = vmatpush1.bf16.msra.mxu0 %v422
    %916 = vmatprep.subr.bf16.mxu0 %v455
    %917 = vmatpush1.bf16.msra.mxu0 %v454
    %918 = vmatprep.subr.bf16.mxu0 0
    %919 = vmatpush1.bf16.msra.mxu0 0
    %920 = vmatprep.subr.bf16.mxu0 0
    %921 = vmatpush1.bf16.msra.mxu0 0
    %922 = vmatprep.subr.bf16.mxu0 0
    %923 = vmatpush1.bf16.msra.mxu0 0
    %924 = vmatprep.subr.bf16.mxu0 0
    %925 = vmatpush1.bf16.msra.mxu0 0
    %926 = vmatprep.subr.bf16.mxu0 0
    %927 = vmatpush1.bf16.msra.mxu0 0
    %928 = vmatprep.subr.bf16.mxu0 0
    %929 = vmatpush1.bf16.msra.mxu0 0
    %930 = vmatprep.subr.bf16.mxu0 0
    %931 = vmatpush1.bf16.msra.mxu0 0
    %932 = vmatprep.subr.bf16.mxu0 0
    %933 = vmatpush1.bf16.msra.mxu0 0
    %934 = vmatprep.subr.bf16.mxu0 0
    %935 = vmatpush1.bf16.msra.mxu0 0
    %936 = vmatprep.subr.bf16.mxu0 0
    %937 = vmatpush1.bf16.msra.mxu0 0
    %938 = vmatprep.subr.bf16.mxu0 0
    %939 = vmatpush1.bf16.msra.mxu0 0
    %940 = vmatprep.subr.bf16.mxu0 0
    %941 = vmatpush1.bf16.msra.mxu0 0
    %942 = vmatprep.subr.bf16.mxu0 0
    %943 = vmatpush1.bf16.msra.mxu0 0
    %944 = vmatprep.subr.bf16.mxu0 0
    %945 = vmatpush1.bf16.msra.mxu0 0
    %946 = vmatprep.mubr.bf16.mxu0 0
    %947 = vmatmul.mubr.bf16.gmra.mrb[0].mxu0 %v538
    %v948 = vpop.f32.mrb[0].mxu0
    %v949 = vadd.f32 0.0, %v948
    %v950 = vpop.f32.mrb[0].mxu0
    %v951 = vadd.f32 0.0, %v950
    %v952 = vpop.f32.mrb[0].mxu0
    %v953 = vadd.f32 0.0, %v952
    %v954 = vpop.f32.mrb[0].mxu0
    %v955 = vadd.f32 0.0, %v954
    %956 = vmatprep.mubr.bf16.mxu0 0
    %957 = vmatmul.mubr.bf16.gmra.mrb[0].mxu0 %v541
    %v958 = vpop.f32.mrb[0].mxu0
    %v959 = vadd.f32 0.0, %v958
    %v960 = vpop.f32.mrb[0].mxu0
    %v961 = vadd.f32 0.0, %v960
    %v962 = vpop.f32.mrb[0].mxu0
    %v963 = vadd.f32 0.0, %v962
    %v964 = vpop.f32.mrb[0].mxu0
    %v965 = vadd.f32 0.0, %v964
    %966 = vdwg.mxu0
    %967 = vmatprep.subr.bf16.mxu0 %v425
    %968 = vmatpush1.bf16.msra.mxu0 %v424
    %969 = vmatprep.subr.bf16.mxu0 %v457
    %970 = vmatpush1.bf16.msra.mxu0 %v456
    %971 = vmatprep.subr.bf16.mxu0 0
    %972 = vmatpush1.bf16.msra.mxu0 0
    %973 = vmatprep.subr.bf16.mxu0 0
    %974 = vmatpush1.bf16.msra.mxu0 0
    %975 = vmatprep.subr.bf16.mxu0 0
    %976 = vmatpush1.bf16.msra.mxu0 0
    %977 = vmatprep.subr.bf16.mxu0 0
    %978 = vmatpush1.bf16.msra.mxu0 0
    %979 = vmatprep.subr.bf16.mxu0 0
    %980 = vmatpush1.bf16.msra.mxu0 0
    %981 = vmatprep.subr.bf16.mxu0 0
    %982 = vmatpush1.bf16.msra.mxu0 0
    %983 = vmatprep.subr.bf16.mxu0 0
    %984 = vmatpush1.bf16.msra.mxu0 0
    %985 = vmatprep.subr.bf16.mxu0 0
    %986 = vmatpush1.bf16.msra.mxu0 0
    %987 = vmatprep.subr.bf16.mxu0 0
    %988 = vmatpush1.bf16.msra.mxu0 0
    %989 = vmatprep.subr.bf16.mxu0 0
    %990 = vmatpush1.bf16.msra.mxu0 0
    %991 = vmatprep.subr.bf16.mxu0 0
    %992 = vmatpush1.bf16.msra.mxu0 0
    %993 = vmatprep.subr.bf16.mxu0 0
    %994 = vmatpush1.bf16.msra.mxu0 0
    %995 = vmatprep.subr.bf16.mxu0 0
    %996 = vmatpush1.bf16.msra.mxu0 0
    %997 = vmatprep.subr.bf16.mxu0 0
    %998 = vmatpush1.bf16.msra.mxu0 0
    %999 = vmatprep.mubr.bf16.mxu0 0
    %1000 = vmatmul.mubr.bf16.gmra.mrb[0].mxu0 %v538
    %v1001 = vpop.f32.mrb[0].mxu0
    %v1002 = vadd.f32 0.0, %v1001
    %v1003 = vpop.f32.mrb[0].mxu0
    %v1004 = vadd.f32 0.0, %v1003
    %v1005 = vpop.f32.mrb[0].mxu0
    %v1006 = vadd.f32 0.0, %v1005
    %v1007 = vpop.f32.mrb[0].mxu0
    %v1008 = vadd.f32 0.0, %v1007
    %1009 = vmatprep.mubr.bf16.mxu0 0
    %1010 = vmatmul.mubr.bf16.gmra.mrb[0].mxu0 %v541
    %v1011 = vpop.f32.mrb[0].mxu0
    %v1012 = vadd.f32 0.0, %v1011
    %v1013 = vpop.f32.mrb[0].mxu0
    %v1014 = vadd.f32 0.0, %v1013
    %v1015 = vpop.f32.mrb[0].mxu0
    %v1016 = vadd.f32 0.0, %v1015
    %v1017 = vpop.f32.mrb[0].mxu0
    %v1018 = vadd.f32 0.0, %v1017
    %1019 = vdwg.mxu0
    %1020 = vmatprep.subr.bf16.mxu0 %v427
    %1021 = vmatpush1.bf16.msra.mxu0 %v426
    %1022 = vmatprep.subr.bf16.mxu0 %v459
    %1023 = vmatpush1.bf16.msra.mxu0 %v458
    %1024 = vmatprep.subr.bf16.mxu0 0
    %1025 = vmatpush1.bf16.msra.mxu0 0
    %1026 = vmatprep.subr.bf16.mxu0 0
    %1027 = vmatpush1.bf16.msra.mxu0 0
    %1028 = vmatprep.subr.bf16.mxu0 0
    %1029 = vmatpush1.bf16.msra.mxu0 0
    %1030 = vmatprep.subr.bf16.mxu0 0
    %1031 = vmatpush1.bf16.msra.mxu0 0
    %1032 = vmatprep.subr.bf16.mxu0 0
    %1033 = vmatpush1.bf16.msra.mxu0 0
    %1034 = vmatprep.subr.bf16.mxu0 0
    %1035 = vmatpush1.bf16.msra.mxu0 0
    %1036 = vmatprep.subr.bf16.mxu0 0
    %1037 = vmatpush1.bf16.msra.mxu0 0
    %1038 = vmatprep.subr.bf16.mxu0 0
    %1039 = vmatpush1.bf16.msra.mxu0 0
    %1040 = vmatprep.subr.bf16.mxu0 0
    %1041 = vmatpush1.bf16.msra.mxu0 0
    %1042 = vmatprep.subr.bf16.mxu0 0
    %1043 = vmatpush1.bf16.msra.mxu0 0
    %1044 = vmatprep.subr.bf16.mxu0 0
    %1045 = vmatpush1.bf16.msra.mxu0 0
    %1046 = vmatprep.subr.bf16.mxu0 0
    %1047 = vmatpush1.bf16.msra.mxu0 0
    %1048 = vmatprep.subr.bf16.mxu0 0
    %1049 = vmatpush1.bf16.msra.mxu0 0
    %1050 = vmatprep.subr.bf16.mxu0 0
    %1051 = vmatpush1.bf16.msra.mxu0 0
    %1052 = vmatprep.mubr.bf16.mxu0 0
    %1053 = vmatmul.mubr.bf16.gmra.mrb[0].mxu0 %v538
    %v1054 = vpop.f32.mrb[0].mxu0
    %v1055 = vadd.f32 0.0, %v1054
    %v1056 = vpop.f32.mrb[0].mxu0
    %v1057 = vadd.f32 0.0, %v1056
    %v1058 = vpop.f32.mrb[0].mxu0
    %v1059 = vadd.f32 0.0, %v1058
    %v1060 = vpop.f32.mrb[0].mxu0
    %v1061 = vadd.f32 0.0, %v1060
    %1062 = vmatprep.mubr.bf16.mxu0 0
    %1063 = vmatmul.mubr.bf16.gmra.mrb[0].mxu0 %v541
    %v1064 = vpop.f32.mrb[0].mxu0
    %v1065 = vadd.f32 0.0, %v1064
    %v1066 = vpop.f32.mrb[0].mxu0
    %v1067 = vadd.f32 0.0, %v1066
    %v1068 = vpop.f32.mrb[0].mxu0
    %v1069 = vadd.f32 0.0, %v1068
    %v1070 = vpop.f32.mrb[0].mxu0
    %v1071 = vadd.f32 0.0, %v1070
    %1072 = vdwg.mxu0
    %1073 = vmatprep.subr.bf16.mxu0 %v429
    %1074 = vmatpush1.bf16.msra.mxu0 %v428
    %1075 = vmatprep.subr.bf16.mxu0 %v461
    %1076 = vmatpush1.bf16.msra.mxu0 %v460
    %1077 = vmatprep.subr.bf16.mxu0 0
    %1078 = vmatpush1.bf16.msra.mxu0 0
    %1079 = vmatprep.subr.bf16.mxu0 0
    %1080 = vmatpush1.bf16.msra.mxu0 0
    %1081 = vmatprep.subr.bf16.mxu0 0
    %1082 = vmatpush1.bf16.msra.mxu0 0
    %1083 = vmatprep.subr.bf16.mxu0 0
    %1084 = vmatpush1.bf16.msra.mxu0 0
    %1085 = vmatprep.subr.bf16.mxu0 0
    %1086 = vmatpush1.bf16.msra.mxu0 0
    %1087 = vmatprep.subr.bf16.mxu0 0
    %1088 = vmatpush1.bf16.msra.mxu0 0
    %1089 = vmatprep.subr.bf16.mxu0 0
    %1090 = vmatpush1.bf16.msra.mxu0 0
    %1091 = vmatprep.subr.bf16.mxu0 0
    %1092 = vmatpush1.bf16.msra.mxu0 0
    %1093 = vmatprep.subr.bf16.mxu0 0
    %1094 = vmatpush1.bf16.msra.mxu0 0
    %1095 = vmatprep.subr.bf16.mxu0 0
    %1096 = vmatpush1.bf16.msra.mxu0 0
    %1097 = vmatprep.subr.bf16.mxu0 0
    %1098 = vmatpush1.bf16.msra.mxu0 0
    %1099 = vmatprep.subr.bf16.mxu0 0
    %1100 = vmatpush1.bf16.msra.mxu0 0
    %1101 = vmatprep.subr.bf16.mxu0 0
    %1102 = vmatpush1.bf16.msra.mxu0 0
    %1103 = vmatprep.subr.bf16.mxu0 0
    %1104 = vmatpush1.bf16.msra.mxu0 0
    %1105 = vmatprep.mubr.bf16.mxu0 0
    %1106 = vmatmul.mubr.bf16.gmra.mrb[0].mxu0 %v538
    %v1107 = vpop.f32.mrb[0].mxu0
    %v1108 = vadd.f32 0.0, %v1107
    %v1109 = vpop.f32.mrb[0].mxu0
    %v1110 = vadd.f32 0.0, %v1109
    %v1111 = vpop.f32.mrb[0].mxu0
    %v1112 = vadd.f32 0.0, %v1111
    %v1113 = vpop.f32.mrb[0].mxu0
    %v1114 = vadd.f32 0.0, %v1113
    %1115 = vmatprep.mubr.bf16.mxu0 0
    %1116 = vmatmul.mubr.bf16.gmra.mrb[0].mxu0 %v541
    %v1117 = vpop.f32.mrb[0].mxu0
    %v1118 = vadd.f32 0.0, %v1117
    %v1119 = vpop.f32.mrb[0].mxu0
    %v1120 = vadd.f32 0.0, %v1119
    %v1121 = vpop.f32.mrb[0].mxu0
    %v1122 = vadd.f32 0.0, %v1121
    %v1123 = vpop.f32.mrb[0].mxu0
    %v1124 = vadd.f32 0.0, %v1123
    %1125 = vdwg.mxu0
    %1126 = vmatprep.subr.bf16.mxu0 %v431
    %1127 = vmatpush1.bf16.msra.mxu0 %v430
    %1128 = vmatprep.subr.bf16.mxu0 %v463
    %1129 = vmatpush1.bf16.msra.mxu0 %v462
    %1130 = vmatprep.subr.bf16.mxu0 0
    %1131 = vmatpush1.bf16.msra.mxu0 0
    %1132 = vmatprep.subr.bf16.mxu0 0
    %1133 = vmatpush1.bf16.msra.mxu0 0
    %1134 = vmatprep.subr.bf16.mxu0 0
    %1135 = vmatpush1.bf16.msra.mxu0 0
    %1136 = vmatprep.subr.bf16.mxu0 0
    %1137 = vmatpush1.bf16.msra.mxu0 0
    %1138 = vmatprep.subr.bf16.mxu0 0
    %1139 = vmatpush1.bf16.msra.mxu0 0
    %1140 = vmatprep.subr.bf16.mxu0 0
    %1141 = vmatpush1.bf16.msra.mxu0 0
    %1142 = vmatprep.subr.bf16.mxu0 0
    %1143 = vmatpush1.bf16.msra.mxu0 0
    %1144 = vmatprep.subr.bf16.mxu0 0
    %1145 = vmatpush1.bf16.msra.mxu0 0
    %1146 = vmatprep.subr.bf16.mxu0 0
    %1147 = vmatpush1.bf16.msra.mxu0 0
    %1148 = vmatprep.subr.bf16.mxu0 0
    %1149 = vmatpush1.bf16.msra.mxu0 0
    %1150 = vmatprep.subr.bf16.mxu0 0
    %1151 = vmatpush1.bf16.msra.mxu0 0
    %1152 = vmatprep.subr.bf16.mxu0 0
    %1153 = vmatpush1.bf16.msra.mxu0 0
    %1154 = vmatprep.subr.bf16.mxu0 0
    %1155 = vmatpush1.bf16.msra.mxu0 0
    %1156 = vmatprep.subr.bf16.mxu0 0
    %1157 = vmatpush1.bf16.msra.mxu0 0
    %1158 = vmatprep.mubr.bf16.mxu0 0
    %1159 = vmatmul.mubr.bf16.gmra.mrb[0].mxu0 %v538
    %v1160 = vpop.f32.mrb[0].mxu0
    %v1161 = vadd.f32 0.0, %v1160
    %v1162 = vpop.f32.mrb[0].mxu0
    %v1163 = vadd.f32 0.0, %v1162
    %v1164 = vpop.f32.mrb[0].mxu0
    %v1165 = vadd.f32 0.0, %v1164
    %v1166 = vpop.f32.mrb[0].mxu0
    %v1167 = vadd.f32 0.0, %v1166
    %1168 = vmatprep.mubr.bf16.mxu0 0
    %1169 = vmatmul.mubr.bf16.gmra.mrb[0].mxu0 %v541
    %v1170 = vpop.f32.mrb[0].mxu0
    %v1171 = vadd.f32 0.0, %v1170
    %v1172 = vpop.f32.mrb[0].mxu0
    %v1173 = vadd.f32 0.0, %v1172
    %v1174 = vpop.f32.mrb[0].mxu0
    %v1175 = vadd.f32 0.0, %v1174
    %v1176 = vpop.f32.mrb[0].mxu0
    %v1177 = vadd.f32 0.0, %v1176
    %1178 = vdwg.mxu0
    %1179 = vmatprep.subr.bf16.mxu0 %v433
    %1180 = vmatpush1.bf16.msra.mxu0 %v432
    %1181 = vmatprep.subr.bf16.mxu0 %v465
    %1182 = vmatpush1.bf16.msra.mxu0 %v464
    %1183 = vmatprep.subr.bf16.mxu0 0
    %1184 = vmatpush1.bf16.msra.mxu0 0
    %1185 = vmatprep.subr.bf16.mxu0 0
    %1186 = vmatpush1.bf16.msra.mxu0 0
    %1187 = vmatprep.subr.bf16.mxu0 0
    %1188 = vmatpush1.bf16.msra.mxu0 0
    %1189 = vmatprep.subr.bf16.mxu0 0
    %1190 = vmatpush1.bf16.msra.mxu0 0
    %1191 = vmatprep.subr.bf16.mxu0 0
    %1192 = vmatpush1.bf16.msra.mxu0 0
    %1193 = vmatprep.subr.bf16.mxu0 0
    %1194 = vmatpush1.bf16.msra.mxu0 0
    %1195 = vmatprep.subr.bf16.mxu0 0
    %1196 = vmatpush1.bf16.msra.mxu0 0
    %1197 = vmatprep.subr.bf16.mxu0 0
    %1198 = vmatpush1.bf16.msra.mxu0 0
    %1199 = vmatprep.subr.bf16.mxu0 0
    %1200 = vmatpush1.bf16.msra.mxu0 0
    %1201 = vmatprep.subr.bf16.mxu0 0
    %1202 = vmatpush1.bf16.msra.mxu0 0
    %1203 = vmatprep.subr.bf16.mxu0 0
    %1204 = vmatpush1.bf16.msra.mxu0 0
    %1205 = vmatprep.subr.bf16.mxu0 0
    %1206 = vmatpush1.bf16.msra.mxu0 0
    %1207 = vmatprep.subr.bf16.mxu0 0
    %1208 = vmatpush1.bf16.msra.mxu0 0
    %1209 = vmatprep.subr.bf16.mxu0 0
    %1210 = vmatpush1.bf16.msra.mxu0 0
    %1211 = vmatprep.mubr.bf16.mxu0 0
    %1212 = vmatmul.mubr.bf16.gmra.mrb[0].mxu0 %v538
    %v1213 = vpop.f32.mrb[0].mxu0
    %v1214 = vadd.f32 0.0, %v1213
    %v1215 = vpop.f32.mrb[0].mxu0
    %v1216 = vadd.f32 0.0, %v1215
    %v1217 = vpop.f32.mrb[0].mxu0
    %v1218 = vadd.f32 0.0, %v1217
    %v1219 = vpop.f32.mrb[0].mxu0
    %v1220 = vadd.f32 0.0, %v1219
    %1221 = vmatprep.mubr.bf16.mxu0 0
    %1222 = vmatmul.mubr.bf16.gmra.mrb[0].mxu0 %v541
    %v1223 = vpop.f32.mrb[0].mxu0
    %v1224 = vadd.f32 0.0, %v1223
    %v1225 = vpop.f32.mrb[0].mxu0
    %v1226 = vadd.f32 0.0, %v1225
    %v1227 = vpop.f32.mrb[0].mxu0
    %v1228 = vadd.f32 0.0, %v1227
    %v1229 = vpop.f32.mrb[0].mxu0
    %v1230 = vadd.f32 0.0, %v1229
    %1231 = vdwg.mxu0
    %1232 = vmatprep.subr.bf16.mxu0 %v435
    %1233 = vmatpush1.bf16.msra.mxu0 %v434
    %1234 = vmatprep.subr.bf16.mxu0 %v467
    %1235 = vmatpush1.bf16.msra.mxu0 %v466
    %1236 = vmatprep.subr.bf16.mxu0 0
    %1237 = vmatpush1.bf16.msra.mxu0 0
    %1238 = vmatprep.subr.bf16.mxu0 0
    %1239 = vmatpush1.bf16.msra.mxu0 0
    %1240 = vmatprep.subr.bf16.mxu0 0
    %1241 = vmatpush1.bf16.msra.mxu0 0
    %1242 = vmatprep.subr.bf16.mxu0 0
    %1243 = vmatpush1.bf16.msra.mxu0 0
    %1244 = vmatprep.subr.bf16.mxu0 0
    %1245 = vmatpush1.bf16.msra.mxu0 0
    %1246 = vmatprep.subr.bf16.mxu0 0
    %1247 = vmatpush1.bf16.msra.mxu0 0
    %1248 = vmatprep.subr.bf16.mxu0 0
    %1249 = vmatpush1.bf16.msra.mxu0 0
    %1250 = vmatprep.subr.bf16.mxu0 0
    %1251 = vmatpush1.bf16.msra.mxu0 0
    %1252 = vmatprep.subr.bf16.mxu0 0
    %1253 = vmatpush1.bf16.msra.mxu0 0
    %1254 = vmatprep.subr.bf16.mxu0 0
    %1255 = vmatpush1.bf16.msra.mxu0 0
    %1256 = vmatprep.subr.bf16.mxu0 0
    %1257 = vmatpush1.bf16.msra.mxu0 0
    %1258 = vmatprep.subr.bf16.mxu0 0
    %1259 = vmatpush1.bf16.msra.mxu0 0
    %1260 = vmatprep.subr.bf16.mxu0 0
    %1261 = vmatpush1.bf16.msra.mxu0 0
    %1262 = vmatprep.subr.bf16.mxu0 0
    %1263 = vmatpush1.bf16.msra.mxu0 0
    %1264 = vmatprep.mubr.bf16.mxu0 0
    %1265 = vmatmul.mubr.bf16.gmra.mrb[0].mxu0 %v538
    %v1266 = vpop.f32.mrb[0].mxu0
    %v1267 = vadd.f32 0.0, %v1266
    %v1268 = vpop.f32.mrb[0].mxu0
    %v1269 = vadd.f32 0.0, %v1268
    %v1270 = vpop.f32.mrb[0].mxu0
    %v1271 = vadd.f32 0.0, %v1270
    %v1272 = vpop.f32.mrb[0].mxu0
    %v1273 = vadd.f32 0.0, %v1272
    %1274 = vmatprep.mubr.bf16.mxu0 0
    %1275 = vmatmul.mubr.bf16.gmra.mrb[0].mxu0 %v541
    %v1276 = vpop.f32.mrb[0].mxu0
    %v1277 = vadd.f32 0.0, %v1276
    %v1278 = vpop.f32.mrb[0].mxu0
    %v1279 = vadd.f32 0.0, %v1278
    %v1280 = vpop.f32.mrb[0].mxu0
    %v1281 = vadd.f32 0.0, %v1280
    %v1282 = vpop.f32.mrb[0].mxu0
    %v1283 = vadd.f32 0.0, %v1282
    %1284 = vdwg.mxu0
    %1285 = vmatprep.subr.bf16.mxu0 %v437
    %1286 = vmatpush1.bf16.msra.mxu0 %v436
    %1287 = vmatprep.subr.bf16.mxu0 %v469
    %1288 = vmatpush1.bf16.msra.mxu0 %v468
    %1289 = vmatprep.subr.bf16.mxu0 0
    %1290 = vmatpush1.bf16.msra.mxu0 0
    %1291 = vmatprep.subr.bf16.mxu0 0
    %1292 = vmatpush1.bf16.msra.mxu0 0
    %1293 = vmatprep.subr.bf16.mxu0 0
    %1294 = vmatpush1.bf16.msra.mxu0 0
    %1295 = vmatprep.subr.bf16.mxu0 0
    %1296 = vmatpush1.bf16.msra.mxu0 0
    %1297 = vmatprep.subr.bf16.mxu0 0
    %1298 = vmatpush1.bf16.msra.mxu0 0
    %1299 = vmatprep.subr.bf16.mxu0 0
    %1300 = vmatpush1.bf16.msra.mxu0 0
    %1301 = vmatprep.subr.bf16.mxu0 0
    %1302 = vmatpush1.bf16.msra.mxu0 0
    %1303 = vmatprep.subr.bf16.mxu0 0
    %1304 = vmatpush1.bf16.msra.mxu0 0
    %1305 = vmatprep.subr.bf16.mxu0 0
    %1306 = vmatpush1.bf16.msra.mxu0 0
    %1307 = vmatprep.subr.bf16.mxu0 0
    %1308 = vmatpush1.bf16.msra.mxu0 0
    %1309 = vmatprep.subr.bf16.mxu0 0
    %1310 = vmatpush1.bf16.msra.mxu0 0
    %1311 = vmatprep.subr.bf16.mxu0 0
    %1312 = vmatpush1.bf16.msra.mxu0 0
    %1313 = vmatprep.subr.bf16.mxu0 0
    %1314 = vmatpush1.bf16.msra.mxu0 0
    %1315 = vmatprep.subr.bf16.mxu0 0
    %1316 = vmatpush1.bf16.msra.mxu0 0
    %1317 = vmatprep.mubr.bf16.mxu0 0
    %1318 = vmatmul.mubr.bf16.gmra.mrb[0].mxu0 %v538
    %v1319 = vpop.f32.mrb[0].mxu0
    %v1320 = vadd.f32 0.0, %v1319
    %v1321 = vpop.f32.mrb[0].mxu0
    %v1322 = vadd.f32 0.0, %v1321
    %v1323 = vpop.f32.mrb[0].mxu0
    %v1324 = vadd.f32 0.0, %v1323
    %v1325 = vpop.f32.mrb[0].mxu0
    %v1326 = vadd.f32 0.0, %v1325
    %1327 = vmatprep.mubr.bf16.mxu0 0
    %1328 = vmatmul.mubr.bf16.gmra.mrb[0].mxu0 %v541
    %v1329 = vpop.f32.mrb[0].mxu0
    %v1330 = vadd.f32 0.0, %v1329
    %v1331 = vpop.f32.mrb[0].mxu0
    %v1332 = vadd.f32 0.0, %v1331
    %v1333 = vpop.f32.mrb[0].mxu0
    %v1334 = vadd.f32 0.0, %v1333
    %v1335 = vpop.f32.mrb[0].mxu0
    %v1336 = vadd.f32 0.0, %v1335
    %1337 = vdwg.mxu0
    %1338 = vmatprep.subr.bf16.mxu0 %v439
    %1339 = vmatpush1.bf16.msra.mxu0 %v438
    %1340 = vmatprep.subr.bf16.mxu0 %v471
    %1341 = vmatpush1.bf16.msra.mxu0 %v470
    %1342 = vmatprep.subr.bf16.mxu0 0
    %1343 = vmatpush1.bf16.msra.mxu0 0
    %1344 = vmatprep.subr.bf16.mxu0 0
    %1345 = vmatpush1.bf16.msra.mxu0 0
    %1346 = vmatprep.subr.bf16.mxu0 0
    %1347 = vmatpush1.bf16.msra.mxu0 0
    %1348 = vmatprep.subr.bf16.mxu0 0
    %1349 = vmatpush1.bf16.msra.mxu0 0
    %1350 = vmatprep.subr.bf16.mxu0 0
    %1351 = vmatpush1.bf16.msra.mxu0 0
    %1352 = vmatprep.subr.bf16.mxu0 0
    %1353 = vmatpush1.bf16.msra.mxu0 0
    %1354 = vmatprep.subr.bf16.mxu0 0
    %1355 = vmatpush1.bf16.msra.mxu0 0
    %1356 = vmatprep.subr.bf16.mxu0 0
    %1357 = vmatpush1.bf16.msra.mxu0 0
    %1358 = vmatprep.subr.bf16.mxu0 0
    %1359 = vmatpush1.bf16.msra.mxu0 0
    %1360 = vmatprep.subr.bf16.mxu0 0
    %1361 = vmatpush1.bf16.msra.mxu0 0
    %1362 = vmatprep.subr.bf16.mxu0 0
    %1363 = vmatpush1.bf16.msra.mxu0 0
    %1364 = vmatprep.subr.bf16.mxu0 0
    %1365 = vmatpush1.bf16.msra.mxu0 0
    %1366 = vmatprep.subr.bf16.mxu0 0
    %1367 = vmatpush1.bf16.msra.mxu0 0
    %1368 = vmatprep.subr.bf16.mxu0 0
    %1369 = vmatpush1.bf16.msra.mxu0 0
    %1370 = vmatprep.mubr.bf16.mxu0 0
    %1371 = vmatmul.mubr.bf16.gmra.mrb[0].mxu0 %v538
    %v1372 = vpop.f32.mrb[0].mxu0
    %v1373 = vadd.f32 0.0, %v1372
    %v1374 = vpop.f32.mrb[0].mxu0
    %v1375 = vadd.f32 0.0, %v1374
    %v1376 = vpop.f32.mrb[0].mxu0
    %v1377 = vadd.f32 0.0, %v1376
    %v1378 = vpop.f32.mrb[0].mxu0
    %v1379 = vadd.f32 0.0, %v1378
    %1380 = vmatprep.mubr.bf16.mxu0 0
    %1381 = vmatmul.mubr.bf16.gmra.mrb[0].mxu0 %v541
    %v1382 = vpop.f32.mrb[0].mxu0
    %v1383 = vadd.f32 0.0, %v1382
    %v1384 = vpop.f32.mrb[0].mxu0
    %v1385 = vadd.f32 0.0, %v1384
    %v1386 = vpop.f32.mrb[0].mxu0
    %v1387 = vadd.f32 0.0, %v1386
    %v1388 = vpop.f32.mrb[0].mxu0
    %v1389 = vadd.f32 0.0, %v1388
    %1390 = vdwg.mxu0
    %v1391 = vld [vmem:[#allocation7] sm:$0xff]
    %v1392 = vld [vmem:[#allocation7 + $0x8] sm:$0xff]
    %v1393 = vld [vmem:[#allocation7 + $0x10] sm:$0xff]
    %v1394 = vld [vmem:[#allocation7 + $0x18] sm:$0xff]
    %v1395 = vld [vmem:[#allocation8] sm:$0xff]
    %v1396 = vld [vmem:[#allocation8 + $0x8] sm:$0xff]
    %v1397 = vld [vmem:[#allocation8 + $0x10] sm:$0xff]
    %v1398 = vld [vmem:[#allocation8 + $0x18] sm:$0xff]
    %v1399 = vrot.slane %v578, 4
    %v1400 = vadd.f32 %v578, %v1399
    %v1401 = vrot.slane %v1400, 2
    %v1402 = vadd.f32 %v1400, %v1401
    %v1403 = vrot.slane %v1402, 1
    %v1404 = vadd.f32 %v1402, %v1403
    %v1405 = vrot.slane %v580, 4
    %v1406 = vadd.f32 %v580, %v1405
    %v1407 = vrot.slane %v1406, 2
    %v1408 = vadd.f32 %v1406, %v1407
    %v1409 = vrot.slane %v1408, 1
    %v1410 = vadd.f32 %v1408, %v1409
    %v1411 = vrot.slane %v631, 4
    %v1412 = vadd.f32 %v631, %v1411
    %v1413 = vrot.slane %v1412, 2
    %v1414 = vadd.f32 %v1412, %v1413
    %v1415 = vrot.slane %v1414, 1
    %v1416 = vadd.f32 %v1414, %v1415
    %v1417 = vrot.slane %v633, 4
    %v1418 = vadd.f32 %v633, %v1417
    %v1419 = vrot.slane %v1418, 2
    %v1420 = vadd.f32 %v1418, %v1419
    %v1421 = vrot.slane %v1420, 1
    %v1422 = vadd.f32 %v1420, %v1421
    %v1423 = vrot.slane %v684, 4
    %v1424 = vadd.f32 %v684, %v1423
    %v1425 = vrot.slane %v1424, 2
    %v1426 = vadd.f32 %v1424, %v1425
    %v1427 = vrot.slane %v1426, 1
    %v1428 = vadd.f32 %v1426, %v1427
    %v1429 = vrot.slane %v686, 4
    %v1430 = vadd.f32 %v686, %v1429
    %v1431 = vrot.slane %v1430, 2
    %v1432 = vadd.f32 %v1430, %v1431
    %v1433 = vrot.slane %v1432, 1
    %v1434 = vadd.f32 %v1432, %v1433
    %v1435 = vrot.slane %v737, 4
    %v1436 = vadd.f32 %v737, %v1435
    %v1437 = vrot.slane %v1436, 2
    %v1438 = vadd.f32 %v1436, %v1437
    %v1439 = vrot.slane %v1438, 1
    %v1440 = vadd.f32 %v1438, %v1439
    %v1441 = vrot.slane %v739, 4
    %v1442 = vadd.f32 %v739, %v1441
    %v1443 = vrot.slane %v1442, 2
    %v1444 = vadd.f32 %v1442, %v1443
    %v1445 = vrot.slane %v1444, 1
    %v1446 = vadd.f32 %v1444, %v1445
    %v1447 = vrot.slane %v790, 4
    %v1448 = vadd.f32 %v790, %v1447
    %v1449 = vrot.slane %v1448, 2
    %v1450 = vadd.f32 %v1448, %v1449
    %v1451 = vrot.slane %v1450, 1
    %v1452 = vadd.f32 %v1450, %v1451
    %v1453 = vrot.slane %v792, 4
    %v1454 = vadd.f32 %v792, %v1453
    %v1455 = vrot.slane %v1454, 2
    %v1456 = vadd.f32 %v1454, %v1455
    %v1457 = vrot.slane %v1456, 1
    %v1458 = vadd.f32 %v1456, %v1457
    %v1459 = vrot.slane %v843, 4
    %v1460 = vadd.f32 %v843, %v1459
    %v1461 = vrot.slane %v1460, 2
    %v1462 = vadd.f32 %v1460, %v1461
    %v1463 = vrot.slane %v1462, 1
    %v1464 = vadd.f32 %v1462, %v1463
    %v1465 = vrot.slane %v845, 4
    %v1466 = vadd.f32 %v845, %v1465
    %v1467 = vrot.slane %v1466, 2
    %v1468 = vadd.f32 %v1466, %v1467
    %v1469 = vrot.slane %v1468, 1
    %v1470 = vadd.f32 %v1468, %v1469
    %v1471 = vrot.slane %v896, 4
    %v1472 = vadd.f32 %v896, %v1471
    %v1473 = vrot.slane %v1472, 2
    %v1474 = vadd.f32 %v1472, %v1473
    %v1475 = vrot.slane %v1474, 1
    %v1476 = vadd.f32 %v1474, %v1475
    %v1477 = vrot.slane %v898, 4
    %v1478 = vadd.f32 %v898, %v1477
    %v1479 = vrot.slane %v1478, 2
    %v1480 = vadd.f32 %v1478, %v1479
    %v1481 = vrot.slane %v1480, 1
    %v1482 = vadd.f32 %v1480, %v1481
    %v1483 = vrot.slane %v949, 4
    %v1484 = vadd.f32 %v949, %v1483
    %v1485 = vrot.slane %v1484, 2
    %v1486 = vadd.f32 %v1484, %v1485
    %v1487 = vrot.slane %v1486, 1
    %v1488 = vadd.f32 %v1486, %v1487
    %v1489 = vrot.slane %v951, 4
    %v1490 = vadd.f32 %v951, %v1489
    %v1491 = vrot.slane %v1490, 2
    %v1492 = vadd.f32 %v1490, %v1491
    %v1493 = vrot.slane %v1492, 1
    %v1494 = vadd.f32 %v1492, %v1493
    %v1495 = vrot.slane %v1002, 4
    %v1496 = vadd.f32 %v1002, %v1495
    %v1497 = vrot.slane %v1496, 2
    %v1498 = vadd.f32 %v1496, %v1497
    %v1499 = vrot.slane %v1498, 1
    %v1500 = vadd.f32 %v1498, %v1499
    %v1501 = vrot.slane %v1004, 4
    %v1502 = vadd.f32 %v1004, %v1501
    %v1503 = vrot.slane %v1502, 2
    %v1504 = vadd.f32 %v1502, %v1503
    %v1505 = vrot.slane %v1504, 1
    %v1506 = vadd.f32 %v1504, %v1505
    %v1507 = vrot.slane %v1055, 4
    %v1508 = vadd.f32 %v1055, %v1507
    %v1509 = vrot.slane %v1508, 2
    %v1510 = vadd.f32 %v1508, %v1509
    %v1511 = vrot.slane %v1510, 1
    %v1512 = vadd.f32 %v1510, %v1511
    %v1513 = vrot.slane %v1057, 4
    %v1514 = vadd.f32 %v1057, %v1513
    %v1515 = vrot.slane %v1514, 2
    %v1516 = vadd.f32 %v1514, %v1515
    %v1517 = vrot.slane %v1516, 1
    %v1518 = vadd.f32 %v1516, %v1517
    %v1519 = vrot.slane %v1108, 4
    %v1520 = vadd.f32 %v1108, %v1519
    %v1521 = vrot.slane %v1520, 2
    %v1522 = vadd.f32 %v1520, %v1521
    %v1523 = vrot.slane %v1522, 1
    %v1524 = vadd.f32 %v1522, %v1523
    %v1525 = vrot.slane %v1110, 4
    %v1526 = vadd.f32 %v1110, %v1525
    %v1527 = vrot.slane %v1526, 2
    %v1528 = vadd.f32 %v1526, %v1527
    %v1529 = vrot.slane %v1528, 1
    %v1530 = vadd.f32 %v1528, %v1529
    %v1531 = vrot.slane %v1161, 4
    %v1532 = vadd.f32 %v1161, %v1531
    %v1533 = vrot.slane %v1532, 2
    %v1534 = vadd.f32 %v1532, %v1533
    %v1535 = vrot.slane %v1534, 1
    %v1536 = vadd.f32 %v1534, %v1535
    %v1537 = vrot.slane %v1163, 4
    %v1538 = vadd.f32 %v1163, %v1537
    %v1539 = vrot.slane %v1538, 2
    %v1540 = vadd.f32 %v1538, %v1539
    %v1541 = vrot.slane %v1540, 1
    %v1542 = vadd.f32 %v1540, %v1541
    %v1543 = vrot.slane %v1214, 4
    %v1544 = vadd.f32 %v1214, %v1543
    %v1545 = vrot.slane %v1544, 2
    %v1546 = vadd.f32 %v1544, %v1545
    %v1547 = vrot.slane %v1546, 1
    %v1548 = vadd.f32 %v1546, %v1547
    %v1549 = vrot.slane %v1216, 4
    %v1550 = vadd.f32 %v1216, %v1549
    %v1551 = vrot.slane %v1550, 2
    %v1552 = vadd.f32 %v1550, %v1551
    %v1553 = vrot.slane %v1552, 1
    %v1554 = vadd.f32 %v1552, %v1553
    %v1555 = vrot.slane %v1267, 4
    %v1556 = vadd.f32 %v1267, %v1555
    %v1557 = vrot.slane %v1556, 2
    %v1558 = vadd.f32 %v1556, %v1557
    %v1559 = vrot.slane %v1558, 1
    %v1560 = vadd.f32 %v1558, %v1559
    %v1561 = vrot.slane %v1269, 4
    %v1562 = vadd.f32 %v1269, %v1561
    %v1563 = vrot.slane %v1562, 2
    %v1564 = vadd.f32 %v1562, %v1563
    %v1565 = vrot.slane %v1564, 1
    %v1566 = vadd.f32 %v1564, %v1565
    %v1567 = vrot.slane %v1320, 4
    %v1568 = vadd.f32 %v1320, %v1567
    %v1569 = vrot.slane %v1568, 2
    %v1570 = vadd.f32 %v1568, %v1569
    %v1571 = vrot.slane %v1570, 1
    %v1572 = vadd.f32 %v1570, %v1571
    %v1573 = vrot.slane %v1322, 4
    %v1574 = vadd.f32 %v1322, %v1573
    %v1575 = vrot.slane %v1574, 2
    %v1576 = vadd.f32 %v1574, %v1575
    %v1577 = vrot.slane %v1576, 1
    %v1578 = vadd.f32 %v1576, %v1577
    %v1579 = vrot.slane %v1373, 4
    %v1580 = vadd.f32 %v1373, %v1579
    %v1581 = vrot.slane %v1580, 2
    %v1582 = vadd.f32 %v1580, %v1581
    %v1583 = vrot.slane %v1582, 1
    %v1584 = vadd.f32 %v1582, %v1583
    %v1585 = vrot.slane %v1375, 4
    %v1586 = vadd.f32 %v1375, %v1585
    %v1587 = vrot.slane %v1586, 2
    %v1588 = vadd.f32 %v1586, %v1587
    %v1589 = vrot.slane %v1588, 1
    %v1590 = vadd.f32 %v1588, %v1589
    %v1591 = vrot.slane %v582, 4
    %v1592 = vadd.f32 %v582, %v1591
    %v1593 = vrot.slane %v1592, 2
    %v1594 = vadd.f32 %v1592, %v1593
    %v1595 = vrot.slane %v1594, 1
    %v1596 = vadd.f32 %v1594, %v1595
    %v1597 = vrot.slane %v584, 4
    %v1598 = vadd.f32 %v584, %v1597
    %v1599 = vrot.slane %v1598, 2
    %v1600 = vadd.f32 %v1598, %v1599
    %v1601 = vrot.slane %v1600, 1
    %v1602 = vadd.f32 %v1600, %v1601
    %v1603 = vrot.slane %v635, 4
    %v1604 = vadd.f32 %v635, %v1603
    %v1605 = vrot.slane %v1604, 2
    %v1606 = vadd.f32 %v1604, %v1605
    %v1607 = vrot.slane %v1606, 1
    %v1608 = vadd.f32 %v1606, %v1607
    %v1609 = vrot.slane %v637, 4
    %v1610 = vadd.f32 %v637, %v1609
    %v1611 = vrot.slane %v1610, 2
    %v1612 = vadd.f32 %v1610, %v1611
    %v1613 = vrot.slane %v1612, 1
    %v1614 = vadd.f32 %v1612, %v1613
    %v1615 = vrot.slane %v688, 4
    %v1616 = vadd.f32 %v688, %v1615
    %v1617 = vrot.slane %v1616, 2
    %v1618 = vadd.f32 %v1616, %v1617
    %v1619 = vrot.slane %v1618, 1
    %v1620 = vadd.f32 %v1618, %v1619
    %v1621 = vrot.slane %v690, 4
    %v1622 = vadd.f32 %v690, %v1621
    %v1623 = vrot.slane %v1622, 2
    %v1624 = vadd.f32 %v1622, %v1623
    %v1625 = vrot.slane %v1624, 1
    %v1626 = vadd.f32 %v1624, %v1625
    %v1627 = vrot.slane %v741, 4
    %v1628 = vadd.f32 %v741, %v1627
    %v1629 = vrot.slane %v1628, 2
    %v1630 = vadd.f32 %v1628, %v1629
    %v1631 = vrot.slane %v1630, 1
    %v1632 = vadd.f32 %v1630, %v1631
    %v1633 = vrot.slane %v743, 4
    %v1634 = vadd.f32 %v743, %v1633
    %v1635 = vrot.slane %v1634, 2
    %v1636 = vadd.f32 %v1634, %v1635
    %v1637 = vrot.slane %v1636, 1
    %v1638 = vadd.f32 %v1636, %v1637
    %v1639 = vrot.slane %v794, 4
    %v1640 = vadd.f32 %v794, %v1639
    %v1641 = vrot.slane %v1640, 2
    %v1642 = vadd.f32 %v1640, %v1641
    %v1643 = vrot.slane %v1642, 1
    %v1644 = vadd.f32 %v1642, %v1643
    %v1645 = vrot.slane %v796, 4
    %v1646 = vadd.f32 %v796, %v1645
    %v1647 = vrot.slane %v1646, 2
    %v1648 = vadd.f32 %v1646, %v1647
    %v1649 = vrot.slane %v1648, 1
    %v1650 = vadd.f32 %v1648, %v1649
    %v1651 = vrot.slane %v847, 4
    %v1652 = vadd.f32 %v847, %v1651
    %v1653 = vrot.slane %v1652, 2
    %v1654 = vadd.f32 %v1652, %v1653
    %v1655 = vrot.slane %v1654, 1
    %v1656 = vadd.f32 %v1654, %v1655
    %v1657 = vrot.slane %v849, 4
    %v1658 = vadd.f32 %v849, %v1657
    %v1659 = vrot.slane %v1658, 2
    %v1660 = vadd.f32 %v1658, %v1659
    %v1661 = vrot.slane %v1660, 1
    %v1662 = vadd.f32 %v1660, %v1661
    %v1663 = vrot.slane %v900, 4
    %v1664 = vadd.f32 %v900, %v1663
    %v1665 = vrot.slane %v1664, 2
    %v1666 = vadd.f32 %v1664, %v1665
    %v1667 = vrot.slane %v1666, 1
    %v1668 = vadd.f32 %v1666, %v1667
    %v1669 = vrot.slane %v902, 4
    %v1670 = vadd.f32 %v902, %v1669
    %v1671 = vrot.slane %v1670, 2
    %v1672 = vadd.f32 %v1670, %v1671
    %v1673 = vrot.slane %v1672, 1
    %v1674 = vadd.f32 %v1672, %v1673
    %v1675 = vrot.slane %v953, 4
    %v1676 = vadd.f32 %v953, %v1675
    %v1677 = vrot.slane %v1676, 2
    %v1678 = vadd.f32 %v1676, %v1677
    %v1679 = vrot.slane %v1678, 1
    %v1680 = vadd.f32 %v1678, %v1679
    %v1681 = vrot.slane %v955, 4
    %v1682 = vadd.f32 %v955, %v1681
    %v1683 = vrot.slane %v1682, 2
    %v1684 = vadd.f32 %v1682, %v1683
    %v1685 = vrot.slane %v1684, 1
    %v1686 = vadd.f32 %v1684, %v1685
    %v1687 = vrot.slane %v1006, 4
    %v1688 = vadd.f32 %v1006, %v1687
    %v1689 = vrot.slane %v1688, 2
    %v1690 = vadd.f32 %v1688, %v1689
    %v1691 = vrot.slane %v1690, 1
    %v1692 = vadd.f32 %v1690, %v1691
    %v1693 = vrot.slane %v1008, 4
    %v1694 = vadd.f32 %v1008, %v1693
    %v1695 = vrot.slane %v1694, 2
    %v1696 = vadd.f32 %v1694, %v1695
    %v1697 = vrot.slane %v1696, 1
    %v1698 = vadd.f32 %v1696, %v1697
    %v1699 = vrot.slane %v1059, 4
    %v1700 = vadd.f32 %v1059, %v1699
    %v1701 = vrot.slane %v1700, 2
    %v1702 = vadd.f32 %v1700, %v1701
    %v1703 = vrot.slane %v1702, 1
    %v1704 = vadd.f32 %v1702, %v1703
    %v1705 = vrot.slane %v1061, 4
    %v1706 = vadd.f32 %v1061, %v1705
    %v1707 = vrot.slane %v1706, 2
    %v1708 = vadd.f32 %v1706, %v1707
    %v1709 = vrot.slane %v1708, 1
    %v1710 = vadd.f32 %v1708, %v1709
    %v1711 = vrot.slane %v1112, 4
    %v1712 = vadd.f32 %v1112, %v1711
    %v1713 = vrot.slane %v1712, 2
    %v1714 = vadd.f32 %v1712, %v1713
    %v1715 = vrot.slane %v1714, 1
    %v1716 = vadd.f32 %v1714, %v1715
    %v1717 = vrot.slane %v1114, 4
    %v1718 = vadd.f32 %v1114, %v1717
    %v1719 = vrot.slane %v1718, 2
    %v1720 = vadd.f32 %v1718, %v1719
    %v1721 = vrot.slane %v1720, 1
    %v1722 = vadd.f32 %v1720, %v1721
    %v1723 = vrot.slane %v1165, 4
    %v1724 = vadd.f32 %v1165, %v1723
    %v1725 = vrot.slane %v1724, 2
    %v1726 = vadd.f32 %v1724, %v1725
    %v1727 = vrot.slane %v1726, 1
    %v1728 = vadd.f32 %v1726, %v1727
    %v1729 = vrot.slane %v1167, 4
    %v1730 = vadd.f32 %v1167, %v1729
    %v1731 = vrot.slane %v1730, 2
    %v1732 = vadd.f32 %v1730, %v1731
    %v1733 = vrot.slane %v1732, 1
    %v1734 = vadd.f32 %v1732, %v1733
    %v1735 = vrot.slane %v1218, 4
    %v1736 = vadd.f32 %v1218, %v1735
    %v1737 = vrot.slane %v1736, 2
    %v1738 = vadd.f32 %v1736, %v1737
    %v1739 = vrot.slane %v1738, 1
    %v1740 = vadd.f32 %v1738, %v1739
    %v1741 = vrot.slane %v1220, 4
    %v1742 = vadd.f32 %v1220, %v1741
    %v1743 = vrot.slane %v1742, 2
    %v1744 = vadd.f32 %v1742, %v1743
    %v1745 = vrot.slane %v1744, 1
    %v1746 = vadd.f32 %v1744, %v1745
    %v1747 = vrot.slane %v1271, 4
    %v1748 = vadd.f32 %v1271, %v1747
    %v1749 = vrot.slane %v1748, 2
    %v1750 = vadd.f32 %v1748, %v1749
    %v1751 = vrot.slane %v1750, 1
    %v1752 = vadd.f32 %v1750, %v1751
    %v1753 = vrot.slane %v1273, 4
    %v1754 = vadd.f32 %v1273, %v1753
    %v1755 = vrot.slane %v1754, 2
    %v1756 = vadd.f32 %v1754, %v1755
    %v1757 = vrot.slane %v1756, 1
    %v1758 = vadd.f32 %v1756, %v1757
    %v1759 = vrot.slane %v1324, 4
    %v1760 = vadd.f32 %v1324, %v1759
    %v1761 = vrot.slane %v1760, 2
    %v1762 = vadd.f32 %v1760, %v1761
    %v1763 = vrot.slane %v1762, 1
    %v1764 = vadd.f32 %v1762, %v1763
    %v1765 = vrot.slane %v1326, 4
    %v1766 = vadd.f32 %v1326, %v1765
    %v1767 = vrot.slane %v1766, 2
    %v1768 = vadd.f32 %v1766, %v1767
    %v1769 = vrot.slane %v1768, 1
    %v1770 = vadd.f32 %v1768, %v1769
    %v1771 = vrot.slane %v1377, 4
    %v1772 = vadd.f32 %v1377, %v1771
    %v1773 = vrot.slane %v1772, 2
    %v1774 = vadd.f32 %v1772, %v1773
    %v1775 = vrot.slane %v1774, 1
    %v1776 = vadd.f32 %v1774, %v1775
    %v1777 = vrot.slane %v1379, 4
    %v1778 = vadd.f32 %v1379, %v1777
    %v1779 = vrot.slane %v1778, 2
    %v1780 = vadd.f32 %v1778, %v1779
    %v1781 = vrot.slane %v1780, 1
    %v1782 = vadd.f32 %v1780, %v1781
    %v1783 = vrot.slane %v588, 4
    %v1784 = vadd.f32 %v588, %v1783
    %v1785 = vrot.slane %v1784, 2
    %v1786 = vadd.f32 %v1784, %v1785
    %v1787 = vrot.slane %v1786, 1
    %v1788 = vadd.f32 %v1786, %v1787
    %v1789 = vrot.slane %v590, 4
    %v1790 = vadd.f32 %v590, %v1789
    %v1791 = vrot.slane %v1790, 2
    %v1792 = vadd.f32 %v1790, %v1791
    %v1793 = vrot.slane %v1792, 1
    %v1794 = vadd.f32 %v1792, %v1793
    %v1795 = vrot.slane %v641, 4
    %v1796 = vadd.f32 %v641, %v1795
    %v1797 = vrot.slane %v1796, 2
    %v1798 = vadd.f32 %v1796, %v1797
    %v1799 = vrot.slane %v1798, 1
    %v1800 = vadd.f32 %v1798, %v1799
    %v1801 = vrot.slane %v643, 4
    %v1802 = vadd.f32 %v643, %v1801
    %v1803 = vrot.slane %v1802, 2
    %v1804 = vadd.f32 %v1802, %v1803
    %v1805 = vrot.slane %v1804, 1
    %v1806 = vadd.f32 %v1804, %v1805
    %v1807 = vrot.slane %v694, 4
    %v1808 = vadd.f32 %v694, %v1807
    %v1809 = vrot.slane %v1808, 2
    %v1810 = vadd.f32 %v1808, %v1809
    %v1811 = vrot.slane %v1810, 1
    %v1812 = vadd.f32 %v1810, %v1811
    %v1813 = vrot.slane %v696, 4
    %v1814 = vadd.f32 %v696, %v1813
    %v1815 = vrot.slane %v1814, 2
    %v1816 = vadd.f32 %v1814, %v1815
    %v1817 = vrot.slane %v1816, 1
    %v1818 = vadd.f32 %v1816, %v1817
    %v1819 = vrot.slane %v747, 4
    %v1820 = vadd.f32 %v747, %v1819
    %v1821 = vrot.slane %v1820, 2
    %v1822 = vadd.f32 %v1820, %v1821
    %v1823 = vrot.slane %v1822, 1
    %v1824 = vadd.f32 %v1822, %v1823
    %v1825 = vrot.slane %v749, 4
    %v1826 = vadd.f32 %v749, %v1825
    %v1827 = vrot.slane %v1826, 2
    %v1828 = vadd.f32 %v1826, %v1827
    %v1829 = vrot.slane %v1828, 1
    %v1830 = vadd.f32 %v1828, %v1829
    %v1831 = vrot.slane %v800, 4
    %v1832 = vadd.f32 %v800, %v1831
    %v1833 = vrot.slane %v1832, 2
    %v1834 = vadd.f32 %v1832, %v1833
    %v1835 = vrot.slane %v1834, 1
    %v1836 = vadd.f32 %v1834, %v1835
    %v1837 = vrot.slane %v802, 4
    %v1838 = vadd.f32 %v802, %v1837
    %v1839 = vrot.slane %v1838, 2
    %v1840 = vadd.f32 %v1838, %v1839
    %v1841 = vrot.slane %v1840, 1
    %v1842 = vadd.f32 %v1840, %v1841
    %v1843 = vrot.slane %v853, 4
    %v1844 = vadd.f32 %v853, %v1843
    %v1845 = vrot.slane %v1844, 2
    %v1846 = vadd.f32 %v1844, %v1845
    %v1847 = vrot.slane %v1846, 1
    %v1848 = vadd.f32 %v1846, %v1847
    %v1849 = vrot.slane %v855, 4
    %v1850 = vadd.f32 %v855, %v1849
    %v1851 = vrot.slane %v1850, 2
    %v1852 = vadd.f32 %v1850, %v1851
    %v1853 = vrot.slane %v1852, 1
    %v1854 = vadd.f32 %v1852, %v1853
    %v1855 = vrot.slane %v906, 4
    %v1856 = vadd.f32 %v906, %v1855
    %v1857 = vrot.slane %v1856, 2
    %v1858 = vadd.f32 %v1856, %v1857
    %v1859 = vrot.slane %v1858, 1
    %v1860 = vadd.f32 %v1858, %v1859
    %v1861 = vrot.slane %v908, 4
    %v1862 = vadd.f32 %v908, %v1861
    %v1863 = vrot.slane %v1862, 2
    %v1864 = vadd.f32 %v1862, %v1863
    %v1865 = vrot.slane %v1864, 1
    %v1866 = vadd.f32 %v1864, %v1865
    %v1867 = vrot.slane %v959, 4
    %v1868 = vadd.f32 %v959, %v1867
    %v1869 = vrot.slane %v1868, 2
    %v1870 = vadd.f32 %v1868, %v1869
    %v1871 = vrot.slane %v1870, 1
    %v1872 = vadd.f32 %v1870, %v1871
    %v1873 = vrot.slane %v961, 4
    %v1874 = vadd.f32 %v961, %v1873
    %v1875 = vrot.slane %v1874, 2
    %v1876 = vadd.f32 %v1874, %v1875
    %v1877 = vrot.slane %v1876, 1
    %v1878 = vadd.f32 %v1876, %v1877
    %v1879 = vrot.slane %v1012, 4
    %v1880 = vadd.f32 %v1012, %v1879
    %v1881 = vrot.slane %v1880, 2
    %v1882 = vadd.f32 %v1880, %v1881
    %v1883 = vrot.slane %v1882, 1
    %v1884 = vadd.f32 %v1882, %v1883
    %v1885 = vrot.slane %v1014, 4
    %v1886 = vadd.f32 %v1014, %v1885
    %v1887 = vrot.slane %v1886, 2
    %v1888 = vadd.f32 %v1886, %v1887
    %v1889 = vrot.slane %v1888, 1
    %v1890 = vadd.f32 %v1888, %v1889
    %v1891 = vrot.slane %v1065, 4
    %v1892 = vadd.f32 %v1065, %v1891
    %v1893 = vrot.slane %v1892, 2
    %v1894 = vadd.f32 %v1892, %v1893
    %v1895 = vrot.slane %v1894, 1
    %v1896 = vadd.f32 %v1894, %v1895
    %v1897 = vrot.slane %v1067, 4
    %v1898 = vadd.f32 %v1067, %v1897
    %v1899 = vrot.slane %v1898, 2
    %v1900 = vadd.f32 %v1898, %v1899
    %v1901 = vrot.slane %v1900, 1
    %v1902 = vadd.f32 %v1900, %v1901
    %v1903 = vrot.slane %v1118, 4
    %v1904 = vadd.f32 %v1118, %v1903
    %v1905 = vrot.slane %v1904, 2
    %v1906 = vadd.f32 %v1904, %v1905
    %v1907 = vrot.slane %v1906, 1
    %v1908 = vadd.f32 %v1906, %v1907
    %v1909 = vrot.slane %v1120, 4
    %v1910 = vadd.f32 %v1120, %v1909
    %v1911 = vrot.slane %v1910, 2
    %v1912 = vadd.f32 %v1910, %v1911
    %v1913 = vrot.slane %v1912, 1
    %v1914 = vadd.f32 %v1912, %v1913
    %v1915 = vrot.slane %v1171, 4
    %v1916 = vadd.f32 %v1171, %v1915
    %v1917 = vrot.slane %v1916, 2
    %v1918 = vadd.f32 %v1916, %v1917
    %v1919 = vrot.slane %v1918, 1
    %v1920 = vadd.f32 %v1918, %v1919
    %v1921 = vrot.slane %v1173, 4
    %v1922 = vadd.f32 %v1173, %v1921
    %v1923 = vrot.slane %v1922, 2
    %v1924 = vadd.f32 %v1922, %v1923
    %v1925 = vrot.slane %v1924, 1
    %v1926 = vadd.f32 %v1924, %v1925
    %v1927 = vrot.slane %v1224, 4
    %v1928 = vadd.f32 %v1224, %v1927
    %v1929 = vrot.slane %v1928, 2
    %v1930 = vadd.f32 %v1928, %v1929
    %v1931 = vrot.slane %v1930, 1
    %v1932 = vadd.f32 %v1930, %v1931
    %v1933 = vrot.slane %v1226, 4
    %v1934 = vadd.f32 %v1226, %v1933
    %v1935 = vrot.slane %v1934, 2
    %v1936 = vadd.f32 %v1934, %v1935
    %v1937 = vrot.slane %v1936, 1
    %v1938 = vadd.f32 %v1936, %v1937
    %v1939 = vrot.slane %v1277, 4
    %v1940 = vadd.f32 %v1277, %v1939
    %v1941 = vrot.slane %v1940, 2
    %v1942 = vadd.f32 %v1940, %v1941
    %v1943 = vrot.slane %v1942, 1
    %v1944 = vadd.f32 %v1942, %v1943
    %v1945 = vrot.slane %v1279, 4
    %v1946 = vadd.f32 %v1279, %v1945
    %v1947 = vrot.slane %v1946, 2
    %v1948 = vadd.f32 %v1946, %v1947
    %v1949 = vrot.slane %v1948, 1
    %v1950 = vadd.f32 %v1948, %v1949
    %v1951 = vrot.slane %v1330, 4
    %v1952 = vadd.f32 %v1330, %v1951
    %v1953 = vrot.slane %v1952, 2
    %v1954 = vadd.f32 %v1952, %v1953
    %v1955 = vrot.slane %v1954, 1
    %v1956 = vadd.f32 %v1954, %v1955
    %v1957 = vrot.slane %v1332, 4
    %v1958 = vadd.f32 %v1332, %v1957
    %v1959 = vrot.slane %v1958, 2
    %v1960 = vadd.f32 %v1958, %v1959
    %v1961 = vrot.slane %v1960, 1
    %v1962 = vadd.f32 %v1960, %v1961
    %v1963 = vrot.slane %v1383, 4
    %v1964 = vadd.f32 %v1383, %v1963
    %v1965 = vrot.slane %v1964, 2
    %v1966 = vadd.f32 %v1964, %v1965
    %v1967 = vrot.slane %v1966, 1
    %v1968 = vadd.f32 %v1966, %v1967
    %v1969 = vrot.slane %v1385, 4
    %v1970 = vadd.f32 %v1385, %v1969
    %v1971 = vrot.slane %v1970, 2
    %v1972 = vadd.f32 %v1970, %v1971
    %v1973 = vrot.slane %v1972, 1
    %v1974 = vadd.f32 %v1972, %v1973
    %v1975 = vrot.slane %v592, 4
    %v1976 = vadd.f32 %v592, %v1975
    %v1977 = vrot.slane %v1976, 2
    %v1978 = vadd.f32 %v1976, %v1977
    %v1979 = vrot.slane %v1978, 1
    %v1980 = vadd.f32 %v1978, %v1979
    %v1981 = vrot.slane %v594, 4
    %v1982 = vadd.f32 %v594, %v1981
    %v1983 = vrot.slane %v1982, 2
    %v1984 = vadd.f32 %v1982, %v1983
    %v1985 = vrot.slane %v1984, 1
    %v1986 = vadd.f32 %v1984, %v1985
    %v1987 = vrot.slane %v645, 4
    %v1988 = vadd.f32 %v645, %v1987
    %v1989 = vrot.slane %v1988, 2
    %v1990 = vadd.f32 %v1988, %v1989
    %v1991 = vrot.slane %v1990, 1
    %v1992 = vadd.f32 %v1990, %v1991
    %v1993 = vrot.slane %v647, 4
    %v1994 = vadd.f32 %v647, %v1993
    %v1995 = vrot.slane %v1994, 2
    %v1996 = vadd.f32 %v1994, %v1995
    %v1997 = vrot.slane %v1996, 1
    %v1998 = vadd.f32 %v1996, %v1997
    %v1999 = vrot.slane %v698, 4
    %v2000 = vadd.f32 %v698, %v1999
    %v2001 = vrot.slane %v2000, 2
    %v2002 = vadd.f32 %v2000, %v2001
    %v2003 = vrot.slane %v2002, 1
    %v2004 = vadd.f32 %v2002, %v2003
    %v2005 = vrot.slane %v700, 4
    %v2006 = vadd.f32 %v700, %v2005
    %v2007 = vrot.slane %v2006, 2
    %v2008 = vadd.f32 %v2006, %v2007
    %v2009 = vrot.slane %v2008, 1
    %v2010 = vadd.f32 %v2008, %v2009
    %v2011 = vrot.slane %v751, 4
    %v2012 = vadd.f32 %v751, %v2011
    %v2013 = vrot.slane %v2012, 2
    %v2014 = vadd.f32 %v2012, %v2013
    %v2015 = vrot.slane %v2014, 1
    %v2016 = vadd.f32 %v2014, %v2015
    %v2017 = vrot.slane %v753, 4
    %v2018 = vadd.f32 %v753, %v2017
    %v2019 = vrot.slane %v2018, 2
    %v2020 = vadd.f32 %v2018, %v2019
    %v2021 = vrot.slane %v2020, 1
    %v2022 = vadd.f32 %v2020, %v2021
    %v2023 = vrot.slane %v804, 4
    %v2024 = vadd.f32 %v804, %v2023
    %v2025 = vrot.slane %v2024, 2
    %v2026 = vadd.f32 %v2024, %v2025
    %v2027 = vrot.slane %v2026, 1
    %v2028 = vadd.f32 %v2026, %v2027
    %v2029 = vrot.slane %v806, 4
    %v2030 = vadd.f32 %v806, %v2029
    %v2031 = vrot.slane %v2030, 2
    %v2032 = vadd.f32 %v2030, %v2031
    %v2033 = vrot.slane %v2032, 1
    %v2034 = vadd.f32 %v2032, %v2033
    %v2035 = vrot.slane %v857, 4
    %v2036 = vadd.f32 %v857, %v2035
    %v2037 = vrot.slane %v2036, 2
    %v2038 = vadd.f32 %v2036, %v2037
    %v2039 = vrot.slane %v2038, 1
    %v2040 = vadd.f32 %v2038, %v2039
    %v2041 = vrot.slane %v859, 4
    %v2042 = vadd.f32 %v859, %v2041
    %v2043 = vrot.slane %v2042, 2
    %v2044 = vadd.f32 %v2042, %v2043
    %v2045 = vrot.slane %v2044, 1
    %v2046 = vadd.f32 %v2044, %v2045
    %v2047 = vrot.slane %v910, 4
    %v2048 = vadd.f32 %v910, %v2047
    %v2049 = vrot.slane %v2048, 2
    %v2050 = vadd.f32 %v2048, %v2049
    %v2051 = vrot.slane %v2050, 1
    %v2052 = vadd.f32 %v2050, %v2051
    %v2053 = vrot.slane %v912, 4
    %v2054 = vadd.f32 %v912, %v2053
    %v2055 = vrot.slane %v2054, 2
    %v2056 = vadd.f32 %v2054, %v2055
    %v2057 = vrot.slane %v2056, 1
    %v2058 = vadd.f32 %v2056, %v2057
    %v2059 = vrot.slane %v963, 4
    %v2060 = vadd.f32 %v963, %v2059
    %v2061 = vrot.slane %v2060, 2
    %v2062 = vadd.f32 %v2060, %v2061
    %v2063 = vrot.slane %v2062, 1
    %v2064 = vadd.f32 %v2062, %v2063
    %v2065 = vrot.slane %v965, 4
    %v2066 = vadd.f32 %v965, %v2065
    %v2067 = vrot.slane %v2066, 2
    %v2068 = vadd.f32 %v2066, %v2067
    %v2069 = vrot.slane %v2068, 1
    %v2070 = vadd.f32 %v2068, %v2069
    %v2071 = vrot.slane %v1016, 4
    %v2072 = vadd.f32 %v1016, %v2071
    %v2073 = vrot.slane %v2072, 2
    %v2074 = vadd.f32 %v2072, %v2073
    %v2075 = vrot.slane %v2074, 1
    %v2076 = vadd.f32 %v2074, %v2075
    %v2077 = vrot.slane %v1018, 4
    %v2078 = vadd.f32 %v1018, %v2077
    %v2079 = vrot.slane %v2078, 2
    %v2080 = vadd.f32 %v2078, %v2079
    %v2081 = vrot.slane %v2080, 1
    %v2082 = vadd.f32 %v2080, %v2081
    %v2083 = vrot.slane %v1069, 4
    %v2084 = vadd.f32 %v1069, %v2083
    %v2085 = vrot.slane %v2084, 2
    %v2086 = vadd.f32 %v2084, %v2085
    %v2087 = vrot.slane %v2086, 1
    %v2088 = vadd.f32 %v2086, %v2087
    %v2089 = vrot.slane %v1071, 4
    %v2090 = vadd.f32 %v1071, %v2089
    %v2091 = vrot.slane %v2090, 2
    %v2092 = vadd.f32 %v2090, %v2091
    %v2093 = vrot.slane %v2092, 1
    %v2094 = vadd.f32 %v2092, %v2093
    %v2095 = vrot.slane %v1122, 4
    %v2096 = vadd.f32 %v1122, %v2095
    %v2097 = vrot.slane %v2096, 2
    %v2098 = vadd.f32 %v2096, %v2097
    %v2099 = vrot.slane %v2098, 1
    %v2100 = vadd.f32 %v2098, %v2099
    %v2101 = vrot.slane %v1124, 4
    %v2102 = vadd.f32 %v1124, %v2101
    %v2103 = vrot.slane %v2102, 2
    %v2104 = vadd.f32 %v2102, %v2103
    %v2105 = vrot.slane %v2104, 1
    %v2106 = vadd.f32 %v2104, %v2105
    %v2107 = vrot.slane %v1175, 4
    %v2108 = vadd.f32 %v1175, %v2107
    %v2109 = vrot.slane %v2108, 2
    %v2110 = vadd.f32 %v2108, %v2109
    %v2111 = vrot.slane %v2110, 1
    %v2112 = vadd.f32 %v2110, %v2111
    %v2113 = vrot.slane %v1177, 4
    %v2114 = vadd.f32 %v1177, %v2113
    %v2115 = vrot.slane %v2114, 2
    %v2116 = vadd.f32 %v2114, %v2115
    %v2117 = vrot.slane %v2116, 1
    %v2118 = vadd.f32 %v2116, %v2117
    %v2119 = vrot.slane %v1228, 4
    %v2120 = vadd.f32 %v1228, %v2119
    %v2121 = vrot.slane %v2120, 2
    %v2122 = vadd.f32 %v2120, %v2121
    %v2123 = vrot.slane %v2122, 1
    %v2124 = vadd.f32 %v2122, %v2123
    %v2125 = vrot.slane %v1230, 4
    %v2126 = vadd.f32 %v1230, %v2125
    %v2127 = vrot.slane %v2126, 2
    %v2128 = vadd.f32 %v2126, %v2127
    %v2129 = vrot.slane %v2128, 1
    %v2130 = vadd.f32 %v2128, %v2129
    %v2131 = vrot.slane %v1281, 4
    %v2132 = vadd.f32 %v1281, %v2131
    %v2133 = vrot.slane %v2132, 2
    %v2134 = vadd.f32 %v2132, %v2133
    %v2135 = vrot.slane %v2134, 1
    %v2136 = vadd.f32 %v2134, %v2135
    %v2137 = vrot.slane %v1283, 4
    %v2138 = vadd.f32 %v1283, %v2137
    %v2139 = vrot.slane %v2138, 2
    %v2140 = vadd.f32 %v2138, %v2139
    %v2141 = vrot.slane %v2140, 1
    %v2142 = vadd.f32 %v2140, %v2141
    %v2143 = vrot.slane %v1334, 4
    %v2144 = vadd.f32 %v1334, %v2143
    %v2145 = vrot.slane %v2144, 2
    %v2146 = vadd.f32 %v2144, %v2145
    %v2147 = vrot.slane %v2146, 1
    %v2148 = vadd.f32 %v2146, %v2147
    %v2149 = vrot.slane %v1336, 4
    %v2150 = vadd.f32 %v1336, %v2149
    %v2151 = vrot.slane %v2150, 2
    %v2152 = vadd.f32 %v2150, %v2151
    %v2153 = vrot.slane %v2152, 1
    %v2154 = vadd.f32 %v2152, %v2153
    %v2155 = vrot.slane %v1387, 4
    %v2156 = vadd.f32 %v1387, %v2155
    %v2157 = vrot.slane %v2156, 2
    %v2158 = vadd.f32 %v2156, %v2157
    %v2159 = vrot.slane %v2158, 1
    %v2160 = vadd.f32 %v2158, %v2159
    %v2161 = vrot.slane %v1389, 4
    %v2162 = vadd.f32 %v1389, %v2161
    %v2163 = vrot.slane %v2162, 2
    %v2164 = vadd.f32 %v2162, %v2163
    %v2165 = vrot.slane %v2164, 1
    %v2166 = vadd.f32 %v2164, %v2165
    %v2167 = vmul.f32 %v1404, 0.125
    %v2168 = vmul.f32 %v1410, 0.125
    %v2169 = vmul.f32 %v1416, 0.125
    %v2170 = vmul.f32 %v1422, 0.125
    %v2171 = vmul.f32 %v1428, 0.125
    %v2172 = vmul.f32 %v1434, 0.125
    %v2173 = vmul.f32 %v1440, 0.125
    %v2174 = vmul.f32 %v1446, 0.125
    %v2175 = vmul.f32 %v1452, 0.125
    %v2176 = vmul.f32 %v1458, 0.125
    %v2177 = vmul.f32 %v1464, 0.125
    %v2178 = vmul.f32 %v1470, 0.125
    %v2179 = vmul.f32 %v1476, 0.125
    %v2180 = vmul.f32 %v1482, 0.125
    %v2181 = vmul.f32 %v1488, 0.125
    %v2182 = vmul.f32 %v1494, 0.125
    %v2183 = vmul.f32 %v1500, 0.125
    %v2184 = vmul.f32 %v1506, 0.125
    %v2185 = vmul.f32 %v1512, 0.125
    %v2186 = vmul.f32 %v1518, 0.125
    %v2187 = vmul.f32 %v1524, 0.125
    %v2188 = vmul.f32 %v1530, 0.125
    %v2189 = vmul.f32 %v1536, 0.125
    %v2190 = vmul.f32 %v1542, 0.125
    %v2191 = vmul.f32 %v1548, 0.125
    %v2192 = vmul.f32 %v1554, 0.125
    %v2193 = vmul.f32 %v1560, 0.125
    %v2194 = vmul.f32 %v1566, 0.125
    %v2195 = vmul.f32 %v1572, 0.125
    %v2196 = vmul.f32 %v1578, 0.125
    %v2197 = vmul.f32 %v1584, 0.125
    %v2198 = vmul.f32 %v1590, 0.125
    %v2199 = vmul.f32 %v1596, 0.125
    %v2200 = vmul.f32 %v1602, 0.125
    %v2201 = vmul.f32 %v1608, 0.125
    %v2202 = vmul.f32 %v1614, 0.125
    %v2203 = vmul.f32 %v1620, 0.125
    %v2204 = vmul.f32 %v1626, 0.125
    %v2205 = vmul.f32 %v1632, 0.125
    %v2206 = vmul.f32 %v1638, 0.125
    %v2207 = vmul.f32 %v1644, 0.125
    %v2208 = vmul.f32 %v1650, 0.125
    %v2209 = vmul.f32 %v1656, 0.125
    %v2210 = vmul.f32 %v1662, 0.125
    %v2211 = vmul.f32 %v1668, 0.125
    %v2212 = vmul.f32 %v1674, 0.125
    %v2213 = vmul.f32 %v1680, 0.125
    %v2214 = vmul.f32 %v1686, 0.125
    %v2215 = vmul.f32 %v1692, 0.125
    %v2216 = vmul.f32 %v1698, 0.125
    %v2217 = vmul.f32 %v1704, 0.125
    %v2218 = vmul.f32 %v1710, 0.125
    %v2219 = vmul.f32 %v1716, 0.125
    %v2220 = vmul.f32 %v1722, 0.125
    %v2221 = vmul.f32 %v1728, 0.125
    %v2222 = vmul.f32 %v1734, 0.125
    %v2223 = vmul.f32 %v1740, 0.125
    %v2224 = vmul.f32 %v1746, 0.125
    %v2225 = vmul.f32 %v1752, 0.125
    %v2226 = vmul.f32 %v1758, 0.125
    %v2227 = vmul.f32 %v1764, 0.125
    %v2228 = vmul.f32 %v1770, 0.125
    %v2229 = vmul.f32 %v1776, 0.125
    %v2230 = vmul.f32 %v1782, 0.125
    %v2231 = vmul.f32 %v1788, 0.125
    %v2232 = vmul.f32 %v1794, 0.125
    %v2233 = vmul.f32 %v1800, 0.125
    %v2234 = vmul.f32 %v1806, 0.125
    %v2235 = vmul.f32 %v1812, 0.125
    %v2236 = vmul.f32 %v1818, 0.125
    %v2237 = vmul.f32 %v1824, 0.125
    %v2238 = vmul.f32 %v1830, 0.125
    %v2239 = vmul.f32 %v1836, 0.125
    %v2240 = vmul.f32 %v1842, 0.125
    %v2241 = vmul.f32 %v1848, 0.125
    %v2242 = vmul.f32 %v1854, 0.125
    %v2243 = vmul.f32 %v1860, 0.125
    %v2244 = vmul.f32 %v1866, 0.125
    %v2245 = vmul.f32 %v1872, 0.125
    %v2246 = vmul.f32 %v1878, 0.125
    %v2247 = vmul.f32 %v1884, 0.125
    %v2248 = vmul.f32 %v1890, 0.125
    %v2249 = vmul.f32 %v1896, 0.125
    %v2250 = vmul.f32 %v1902, 0.125
    %v2251 = vmul.f32 %v1908, 0.125
    %v2252 = vmul.f32 %v1914, 0.125
    %v2253 = vmul.f32 %v1920, 0.125
    %v2254 = vmul.f32 %v1926, 0.125
    %v2255 = vmul.f32 %v1932, 0.125
    %v2256 = vmul.f32 %v1938, 0.125
    %v2257 = vmul.f32 %v1944, 0.125
    %v2258 = vmul.f32 %v1950, 0.125
    %v2259 = vmul.f32 %v1956, 0.125
    %v2260 = vmul.f32 %v1962, 0.125
    %v2261 = vmul.f32 %v1968, 0.125
    %v2262 = vmul.f32 %v1974, 0.125
    %v2263 = vmul.f32 %v1980, 0.125
    %v2264 = vmul.f32 %v1986, 0.125
    %v2265 = vmul.f32 %v1992, 0.125
    %v2266 = vmul.f32 %v1998, 0.125
    %v2267 = vmul.f32 %v2004, 0.125
    %v2268 = vmul.f32 %v2010, 0.125
    %v2269 = vmul.f32 %v2016, 0.125
    %v2270 = vmul.f32 %v2022, 0.125
    %v2271 = vmul.f32 %v2028, 0.125
    %v2272 = vmul.f32 %v2034, 0.125
    %v2273 = vmul.f32 %v2040, 0.125
    %v2274 = vmul.f32 %v2046, 0.125
    %v2275 = vmul.f32 %v2052, 0.125
    %v2276 = vmul.f32 %v2058, 0.125
    %v2277 = vmul.f32 %v2064, 0.125
    %v2278 = vmul.f32 %v2070, 0.125
    %v2279 = vmul.f32 %v2076, 0.125
    %v2280 = vmul.f32 %v2082, 0.125
    %v2281 = vmul.f32 %v2088, 0.125
    %v2282 = vmul.f32 %v2094, 0.125
    %v2283 = vmul.f32 %v2100, 0.125
    %v2284 = vmul.f32 %v2106, 0.125
    %v2285 = vmul.f32 %v2112, 0.125
    %v2286 = vmul.f32 %v2118, 0.125
    %v2287 = vmul.f32 %v2124, 0.125
    %v2288 = vmul.f32 %v2130, 0.125
    %v2289 = vmul.f32 %v2136, 0.125
    %v2290 = vmul.f32 %v2142, 0.125
    %v2291 = vmul.f32 %v2148, 0.125
    %v2292 = vmul.f32 %v2154, 0.125
    %v2293 = vmul.f32 %v2160, 0.125
    %v2294 = vmul.f32 %v2166, 0.125
    %v2295 = vsub.f32 %v578, %v2167
    %v2296 = vsub.f32 %v580, %v2168
    %v2297 = vsub.f32 %v631, %v2169
    %v2298 = vsub.f32 %v633, %v2170
    %v2299 = vsub.f32 %v684, %v2171
    %v2300 = vsub.f32 %v686, %v2172
    %v2301 = vsub.f32 %v737, %v2173
    %v2302 = vsub.f32 %v739, %v2174
    %v2303 = vsub.f32 %v790, %v2175
    %v2304 = vsub.f32 %v792, %v2176
    %v2305 = vsub.f32 %v843, %v2177
    %v2306 = vsub.f32 %v845, %v2178
    %v2307 = vsub.f32 %v896, %v2179
    %v2308 = vsub.f32 %v898, %v2180
    %v2309 = vsub.f32 %v949, %v2181
    %v2310 = vsub.f32 %v951, %v2182
    %v2311 = vsub.f32 %v1002, %v2183
    %v2312 = vsub.f32 %v1004, %v2184
    %v2313 = vsub.f32 %v1055, %v2185
    %v2314 = vsub.f32 %v1057, %v2186
    %v2315 = vsub.f32 %v1108, %v2187
    %v2316 = vsub.f32 %v1110, %v2188
    %v2317 = vsub.f32 %v1161, %v2189
    %v2318 = vsub.f32 %v1163, %v2190
    %v2319 = vsub.f32 %v1214, %v2191
    %v2320 = vsub.f32 %v1216, %v2192
    %v2321 = vsub.f32 %v1267, %v2193
    %v2322 = vsub.f32 %v1269, %v2194
    %v2323 = vsub.f32 %v1320, %v2195
    %v2324 = vsub.f32 %v1322, %v2196
    %v2325 = vsub.f32 %v1373, %v2197
    %v2326 = vsub.f32 %v1375, %v2198
    %v2327 = vsub.f32 %v582, %v2199
    %v2328 = vsub.f32 %v584, %v2200
    %v2329 = vsub.f32 %v635, %v2201
    %v2330 = vsub.f32 %v637, %v2202
    %v2331 = vsub.f32 %v688, %v2203
    %v2332 = vsub.f32 %v690, %v2204
    %v2333 = vsub.f32 %v741, %v2205
    %v2334 = vsub.f32 %v743, %v2206
    %v2335 = vsub.f32 %v794, %v2207
    %v2336 = vsub.f32 %v796, %v2208
    %v2337 = vsub.f32 %v847, %v2209
    %v2338 = vsub.f32 %v849, %v2210
    %v2339 = vsub.f32 %v900, %v2211
    %v2340 = vsub.f32 %v902, %v2212
    %v2341 = vsub.f32 %v953, %v2213
    %v2342 = vsub.f32 %v955, %v2214
    %v2343 = vsub.f32 %v1006, %v2215
    %v2344 = vsub.f32 %v1008, %v2216
    %v2345 = vsub.f32 %v1059, %v2217
    %v2346 = vsub.f32 %v1061, %v2218
    %v2347 = vsub.f32 %v1112, %v2219
    %v2348 = vsub.f32 %v1114, %v2220
    %v2349 = vsub.f32 %v1165, %v2221
    %v2350 = vsub.f32 %v1167, %v2222
    %v2351 = vsub.f32 %v1218, %v2223
    %v2352 = vsub.f32 %v1220, %v2224
    %v2353 = vsub.f32 %v1271, %v2225
    %v2354 = vsub.f32 %v1273, %v2226
    %v2355 = vsub.f32 %v1324, %v2227
    %v2356 = vsub.f32 %v1326, %v2228
    %v2357 = vsub.f32 %v1377, %v2229
    %v2358 = vsub.f32 %v1379, %v2230
    %v2359 = vsub.f32 %v588, %v2231
    %v2360 = vsub.f32 %v590, %v2232
    %v2361 = vsub.f32 %v641, %v2233
    %v2362 = vsub.f32 %v643, %v2234
    %v2363 = vsub.f32 %v694, %v2235
    %v2364 = vsub.f32 %v696, %v2236
    %v2365 = vsub.f32 %v747, %v2237
    %v2366 = vsub.f32 %v749, %v2238
    %v2367 = vsub.f32 %v800, %v2239
    %v2368 = vsub.f32 %v802, %v2240
    %v2369 = vsub.f32 %v853, %v2241
    %v2370 = vsub.f32 %v855, %v2242
    %v2371 = vsub.f32 %v906, %v2243
    %v2372 = vsub.f32 %v908, %v2244
    %v2373 = vsub.f32 %v959, %v2245
    %v2374 = vsub.f32 %v961, %v2246
    %v2375 = vsub.f32 %v1012, %v2247
    %v2376 = vsub.f32 %v1014, %v2248
    %v2377 = vsub.f32 %v1065, %v2249
    %v2378 = vsub.f32 %v1067, %v2250
    %v2379 = vsub.f32 %v1118, %v2251
    %v2380 = vsub.f32 %v1120, %v2252
    %v2381 = vsub.f32 %v1171, %v2253
    %v2382 = vsub.f32 %v1173, %v2254
    %v2383 = vsub.f32 %v1224, %v2255
    %v2384 = vsub.f32 %v1226, %v2256
    %v2385 = vsub.f32 %v1277, %v2257
    %v2386 = vsub.f32 %v1279, %v2258
    %v2387 = vsub.f32 %v1330, %v2259
    %v2388 = vsub.f32 %v1332, %v2260
    %v2389 = vsub.f32 %v1383, %v2261
    %v2390 = vsub.f32 %v1385, %v2262
    %v2391 = vsub.f32 %v592, %v2263
    %v2392 = vsub.f32 %v594, %v2264
    %v2393 = vsub.f32 %v645, %v2265
    %v2394 = vsub.f32 %v647, %v2266
    %v2395 = vsub.f32 %v698, %v2267
    %v2396 = vsub.f32 %v700, %v2268
    %v2397 = vsub.f32 %v751, %v2269
    %v2398 = vsub.f32 %v753, %v2270
    %v2399 = vsub.f32 %v804, %v2271
    %v2400 = vsub.f32 %v806, %v2272
    %v2401 = vsub.f32 %v857, %v2273
    %v2402 = vsub.f32 %v859, %v2274
    %v2403 = vsub.f32 %v910, %v2275
    %v2404 = vsub.f32 %v912, %v2276
    %v2405 = vsub.f32 %v963, %v2277
    %v2406 = vsub.f32 %v965, %v2278
    %v2407 = vsub.f32 %v1016, %v2279
    %v2408 = vsub.f32 %v1018, %v2280
    %v2409 = vsub.f32 %v1069, %v2281
    %v2410 = vsub.f32 %v1071, %v2282
    %v2411 = vsub.f32 %v1122, %v2283
    %v2412 = vsub.f32 %v1124, %v2284
    %v2413 = vsub.f32 %v1175, %v2285
    %v2414 = vsub.f32 %v1177, %v2286
    %v2415 = vsub.f32 %v1228, %v2287
    %v2416 = vsub.f32 %v1230, %v2288
    %v2417 = vsub.f32 %v1281, %v2289
    %v2418 = vsub.f32 %v1283, %v2290
    %v2419 = vsub.f32 %v1334, %v2291
    %v2420 = vsub.f32 %v1336, %v2292
    %v2421 = vsub.f32 %v1387, %v2293
    %v2422 = vsub.f32 %v1389, %v2294
    %v2423 = vmul.f32 %v2295, %v2295
    %v2424 = vmul.f32 %v2296, %v2296
    %v2425 = vmul.f32 %v2297, %v2297
    %v2426 = vmul.f32 %v2298, %v2298
    %v2427 = vmul.f32 %v2299, %v2299
    %v2428 = vmul.f32 %v2300, %v2300
    %v2429 = vmul.f32 %v2301, %v2301
    %v2430 = vmul.f32 %v2302, %v2302
    %v2431 = vmul.f32 %v2303, %v2303
    %v2432 = vmul.f32 %v2304, %v2304
    %v2433 = vmul.f32 %v2305, %v2305
    %v2434 = vmul.f32 %v2306, %v2306
    %v2435 = vmul.f32 %v2307, %v2307
    %v2436 = vmul.f32 %v2308, %v2308
    %v2437 = vmul.f32 %v2309, %v2309
    %v2438 = vmul.f32 %v2310, %v2310
    %v2439 = vmul.f32 %v2311, %v2311
    %v2440 = vmul.f32 %v2312, %v2312
    %v2441 = vmul.f32 %v2313, %v2313
    %v2442 = vmul.f32 %v2314, %v2314
    %v2443 = vmul.f32 %v2315, %v2315
    %v2444 = vmul.f32 %v2316, %v2316
    %v2445 = vmul.f32 %v2317, %v2317
    %v2446 = vmul.f32 %v2318, %v2318
    %v2447 = vmul.f32 %v2319, %v2319
    %v2448 = vmul.f32 %v2320, %v2320
    %v2449 = vmul.f32 %v2321, %v2321
    %v2450 = vmul.f32 %v2322, %v2322
    %v2451 = vmul.f32 %v2323, %v2323
    %v2452 = vmul.f32 %v2324, %v2324
    %v2453 = vmul.f32 %v2325, %v2325
    %v2454 = vmul.f32 %v2326, %v2326
    %v2455 = vmul.f32 %v2327, %v2327
    %v2456 = vmul.f32 %v2328, %v2328
    %v2457 = vmul.f32 %v2329, %v2329
    %v2458 = vmul.f32 %v2330, %v2330
    %v2459 = vmul.f32 %v2331, %v2331
    %v2460 = vmul.f32 %v2332, %v2332
    %v2461 = vmul.f32 %v2333, %v2333
    %v2462 = vmul.f32 %v2334, %v2334
    %v2463 = vmul.f32 %v2335, %v2335
    %v2464 = vmul.f32 %v2336, %v2336
    %v2465 = vmul.f32 %v2337, %v2337
    %v2466 = vmul.f32 %v2338, %v2338
    %v2467 = vmul.f32 %v2339, %v2339
    %v2468 = vmul.f32 %v2340, %v2340
    %v2469 = vmul.f32 %v2341, %v2341
    %v2470 = vmul.f32 %v2342, %v2342
    %v2471 = vmul.f32 %v2343, %v2343
    %v2472 = vmul.f32 %v2344, %v2344
    %v2473 = vmul.f32 %v2345, %v2345
    %v2474 = vmul.f32 %v2346, %v2346
    %v2475 = vmul.f32 %v2347, %v2347
    %v2476 = vmul.f32 %v2348, %v2348
    %v2477 = vmul.f32 %v2349, %v2349
    %v2478 = vmul.f32 %v2350, %v2350
    %v2479 = vmul.f32 %v2351, %v2351
    %v2480 = vmul.f32 %v2352, %v2352
    %v2481 = vmul.f32 %v2353, %v2353
    %v2482 = vmul.f32 %v2354, %v2354
    %v2483 = vmul.f32 %v2355, %v2355
    %v2484 = vmul.f32 %v2356, %v2356
    %v2485 = vmul.f32 %v2357, %v2357
    %v2486 = vmul.f32 %v2358, %v2358
    %v2487 = vmul.f32 %v2359, %v2359
    %v2488 = vmul.f32 %v2360, %v2360
    %v2489 = vmul.f32 %v2361, %v2361
    %v2490 = vmul.f32 %v2362, %v2362
    %v2491 = vmul.f32 %v2363, %v2363
    %v2492 = vmul.f32 %v2364, %v2364
    %v2493 = vmul.f32 %v2365, %v2365
    %v2494 = vmul.f32 %v2366, %v2366
    %v2495 = vmul.f32 %v2367, %v2367
    %v2496 = vmul.f32 %v2368, %v2368
    %v2497 = vmul.f32 %v2369, %v2369
    %v2498 = vmul.f32 %v2370, %v2370
    %v2499 = vmul.f32 %v2371, %v2371
    %v2500 = vmul.f32 %v2372, %v2372
    %v2501 = vmul.f32 %v2373, %v2373
    %v2502 = vmul.f32 %v2374, %v2374
    %v2503 = vmul.f32 %v2375, %v2375
    %v2504 = vmul.f32 %v2376, %v2376
    %v2505 = vmul.f32 %v2377, %v2377
    %v2506 = vmul.f32 %v2378, %v2378
    %v2507 = vmul.f32 %v2379, %v2379
    %v2508 = vmul.f32 %v2380, %v2380
    %v2509 = vmul.f32 %v2381, %v2381
    %v2510 = vmul.f32 %v2382, %v2382
    %v2511 = vmul.f32 %v2383, %v2383
    %v2512 = vmul.f32 %v2384, %v2384
    %v2513 = vmul.f32 %v2385, %v2385
    %v2514 = vmul.f32 %v2386, %v2386
    %v2515 = vmul.f32 %v2387, %v2387
    %v2516 = vmul.f32 %v2388, %v2388
    %v2517 = vmul.f32 %v2389, %v2389
    %v2518 = vmul.f32 %v2390, %v2390
    %v2519 = vmul.f32 %v2391, %v2391
    %v2520 = vmul.f32 %v2392, %v2392
    %v2521 = vmul.f32 %v2393, %v2393
    %v2522 = vmul.f32 %v2394, %v2394
    %v2523 = vmul.f32 %v2395, %v2395
    %v2524 = vmul.f32 %v2396, %v2396
    %v2525 = vmul.f32 %v2397, %v2397
    %v2526 = vmul.f32 %v2398, %v2398
    %v2527 = vmul.f32 %v2399, %v2399
    %v2528 = vmul.f32 %v2400, %v2400
    %v2529 = vmul.f32 %v2401, %v2401
    %v2530 = vmul.f32 %v2402, %v2402
    %v2531 = vmul.f32 %v2403, %v2403
    %v2532 = vmul.f32 %v2404, %v2404
    %v2533 = vmul.f32 %v2405, %v2405
    %v2534 = vmul.f32 %v2406, %v2406
    %v2535 = vmul.f32 %v2407, %v2407
    %v2536 = vmul.f32 %v2408, %v2408
    %v2537 = vmul.f32 %v2409, %v2409
    %v2538 = vmul.f32 %v2410, %v2410
    %v2539 = vmul.f32 %v2411, %v2411
    %v2540 = vmul.f32 %v2412, %v2412
    %v2541 = vmul.f32 %v2413, %v2413
    %v2542 = vmul.f32 %v2414, %v2414
    %v2543 = vmul.f32 %v2415, %v2415
    %v2544 = vmul.f32 %v2416, %v2416
    %v2545 = vmul.f32 %v2417, %v2417
    %v2546 = vmul.f32 %v2418, %v2418
    %v2547 = vmul.f32 %v2419, %v2419
    %v2548 = vmul.f32 %v2420, %v2420
    %v2549 = vmul.f32 %v2421, %v2421
    %v2550 = vmul.f32 %v2422, %v2422
    %v2551 = vrot.slane %v2423, 4
    %v2552 = vadd.f32 %v2423, %v2551
    %v2553 = vrot.slane %v2552, 2
    %v2554 = vadd.f32 %v2552, %v2553
    %v2555 = vrot.slane %v2554, 1
    %v2556 = vadd.f32 %v2554, %v2555
    %v2557 = vrot.slane %v2424, 4
    %v2558 = vadd.f32 %v2424, %v2557
    %v2559 = vrot.slane %v2558, 2
    %v2560 = vadd.f32 %v2558, %v2559
    %v2561 = vrot.slane %v2560, 1
    %v2562 = vadd.f32 %v2560, %v2561
    %v2563 = vrot.slane %v2425, 4
    %v2564 = vadd.f32 %v2425, %v2563
    %v2565 = vrot.slane %v2564, 2
    %v2566 = vadd.f32 %v2564, %v2565
    %v2567 = vrot.slane %v2566, 1
    %v2568 = vadd.f32 %v2566, %v2567
    %v2569 = vrot.slane %v2426, 4
    %v2570 = vadd.f32 %v2426, %v2569
    %v2571 = vrot.slane %v2570, 2
    %v2572 = vadd.f32 %v2570, %v2571
    %v2573 = vrot.slane %v2572, 1
    %v2574 = vadd.f32 %v2572, %v2573
    %v2575 = vrot.slane %v2427, 4
    %v2576 = vadd.f32 %v2427, %v2575
    %v2577 = vrot.slane %v2576, 2
    %v2578 = vadd.f32 %v2576, %v2577
    %v2579 = vrot.slane %v2578, 1
    %v2580 = vadd.f32 %v2578, %v2579
    %v2581 = vrot.slane %v2428, 4
    %v2582 = vadd.f32 %v2428, %v2581
    %v2583 = vrot.slane %v2582, 2
    %v2584 = vadd.f32 %v2582, %v2583
    %v2585 = vrot.slane %v2584, 1
    %v2586 = vadd.f32 %v2584, %v2585
    %v2587 = vrot.slane %v2429, 4
    %v2588 = vadd.f32 %v2429, %v2587
    %v2589 = vrot.slane %v2588, 2
    %v2590 = vadd.f32 %v2588, %v2589
    %v2591 = vrot.slane %v2590, 1
    %v2592 = vadd.f32 %v2590, %v2591
    %v2593 = vrot.slane %v2430, 4
    %v2594 = vadd.f32 %v2430, %v2593
    %v2595 = vrot.slane %v2594, 2
    %v2596 = vadd.f32 %v2594, %v2595
    %v2597 = vrot.slane %v2596, 1
    %v2598 = vadd.f32 %v2596, %v2597
    %v2599 = vrot.slane %v2431, 4
    %v2600 = vadd.f32 %v2431, %v2599
    %v2601 = vrot.slane %v2600, 2
    %v2602 = vadd.f32 %v2600, %v2601
    %v2603 = vrot.slane %v2602, 1
    %v2604 = vadd.f32 %v2602, %v2603
    %v2605 = vrot.slane %v2432, 4
    %v2606 = vadd.f32 %v2432, %v2605
    %v2607 = vrot.slane %v2606, 2
    %v2608 = vadd.f32 %v2606, %v2607
    %v2609 = vrot.slane %v2608, 1
    %v2610 = vadd.f32 %v2608, %v2609
    %v2611 = vrot.slane %v2433, 4
    %v2612 = vadd.f32 %v2433, %v2611
    %v2613 = vrot.slane %v2612, 2
    %v2614 = vadd.f32 %v2612, %v2613
    %v2615 = vrot.slane %v2614, 1
    %v2616 = vadd.f32 %v2614, %v2615
    %v2617 = vrot.slane %v2434, 4
    %v2618 = vadd.f32 %v2434, %v2617
    %v2619 = vrot.slane %v2618, 2
    %v2620 = vadd.f32 %v2618, %v2619
    %v2621 = vrot.slane %v2620, 1
    %v2622 = vadd.f32 %v2620, %v2621
    %v2623 = vrot.slane %v2435, 4
    %v2624 = vadd.f32 %v2435, %v2623
    %v2625 = vrot.slane %v2624, 2
    %v2626 = vadd.f32 %v2624, %v2625
    %v2627 = vrot.slane %v2626, 1
    %v2628 = vadd.f32 %v2626, %v2627
    %v2629 = vrot.slane %v2436, 4
    %v2630 = vadd.f32 %v2436, %v2629
    %v2631 = vrot.slane %v2630, 2
    %v2632 = vadd.f32 %v2630, %v2631
    %v2633 = vrot.slane %v2632, 1
    %v2634 = vadd.f32 %v2632, %v2633
    %v2635 = vrot.slane %v2437, 4
    %v2636 = vadd.f32 %v2437, %v2635
    %v2637 = vrot.slane %v2636, 2
    %v2638 = vadd.f32 %v2636, %v2637
    %v2639 = vrot.slane %v2638, 1
    %v2640 = vadd.f32 %v2638, %v2639
    %v2641 = vrot.slane %v2438, 4
    %v2642 = vadd.f32 %v2438, %v2641
    %v2643 = vrot.slane %v2642, 2
    %v2644 = vadd.f32 %v2642, %v2643
    %v2645 = vrot.slane %v2644, 1
    %v2646 = vadd.f32 %v2644, %v2645
    %v2647 = vrot.slane %v2439, 4
    %v2648 = vadd.f32 %v2439, %v2647
    %v2649 = vrot.slane %v2648, 2
    %v2650 = vadd.f32 %v2648, %v2649
    %v2651 = vrot.slane %v2650, 1
    %v2652 = vadd.f32 %v2650, %v2651
    %v2653 = vrot.slane %v2440, 4
    %v2654 = vadd.f32 %v2440, %v2653
    %v2655 = vrot.slane %v2654, 2
    %v2656 = vadd.f32 %v2654, %v2655
    %v2657 = vrot.slane %v2656, 1
    %v2658 = vadd.f32 %v2656, %v2657
    %v2659 = vrot.slane %v2441, 4
    %v2660 = vadd.f32 %v2441, %v2659
    %v2661 = vrot.slane %v2660, 2
    %v2662 = vadd.f32 %v2660, %v2661
    %v2663 = vrot.slane %v2662, 1
    %v2664 = vadd.f32 %v2662, %v2663
    %v2665 = vrot.slane %v2442, 4
    %v2666 = vadd.f32 %v2442, %v2665
    %v2667 = vrot.slane %v2666, 2
    %v2668 = vadd.f32 %v2666, %v2667
    %v2669 = vrot.slane %v2668, 1
    %v2670 = vadd.f32 %v2668, %v2669
    %v2671 = vrot.slane %v2443, 4
    %v2672 = vadd.f32 %v2443, %v2671
    %v2673 = vrot.slane %v2672, 2
    %v2674 = vadd.f32 %v2672, %v2673
    %v2675 = vrot.slane %v2674, 1
    %v2676 = vadd.f32 %v2674, %v2675
    %v2677 = vrot.slane %v2444, 4
    %v2678 = vadd.f32 %v2444, %v2677
    %v2679 = vrot.slane %v2678, 2
    %v2680 = vadd.f32 %v2678, %v2679
    %v2681 = vrot.slane %v2680, 1
    %v2682 = vadd.f32 %v2680, %v2681
    %v2683 = vrot.slane %v2445, 4
    %v2684 = vadd.f32 %v2445, %v2683
    %v2685 = vrot.slane %v2684, 2
    %v2686 = vadd.f32 %v2684, %v2685
    %v2687 = vrot.slane %v2686, 1
    %v2688 = vadd.f32 %v2686, %v2687
    %v2689 = vrot.slane %v2446, 4
    %v2690 = vadd.f32 %v2446, %v2689
    %v2691 = vrot.slane %v2690, 2
    %v2692 = vadd.f32 %v2690, %v2691
    %v2693 = vrot.slane %v2692, 1
    %v2694 = vadd.f32 %v2692, %v2693
    %v2695 = vrot.slane %v2447, 4
    %v2696 = vadd.f32 %v2447, %v2695
    %v2697 = vrot.slane %v2696, 2
    %v2698 = vadd.f32 %v2696, %v2697
    %v2699 = vrot.slane %v2698, 1
    %v2700 = vadd.f32 %v2698, %v2699
    %v2701 = vrot.slane %v2448, 4
    %v2702 = vadd.f32 %v2448, %v2701
    %v2703 = vrot.slane %v2702, 2
    %v2704 = vadd.f32 %v2702, %v2703
    %v2705 = vrot.slane %v2704, 1
    %v2706 = vadd.f32 %v2704, %v2705
    %v2707 = vrot.slane %v2449, 4
    %v2708 = vadd.f32 %v2449, %v2707
    %v2709 = vrot.slane %v2708, 2
    %v2710 = vadd.f32 %v2708, %v2709
    %v2711 = vrot.slane %v2710, 1
    %v2712 = vadd.f32 %v2710, %v2711
    %v2713 = vrot.slane %v2450, 4
    %v2714 = vadd.f32 %v2450, %v2713
    %v2715 = vrot.slane %v2714, 2
    %v2716 = vadd.f32 %v2714, %v2715
    %v2717 = vrot.slane %v2716, 1
    %v2718 = vadd.f32 %v2716, %v2717
    %v2719 = vrot.slane %v2451, 4
    %v2720 = vadd.f32 %v2451, %v2719
    %v2721 = vrot.slane %v2720, 2
    %v2722 = vadd.f32 %v2720, %v2721
    %v2723 = vrot.slane %v2722, 1
    %v2724 = vadd.f32 %v2722, %v2723
    %v2725 = vrot.slane %v2452, 4
    %v2726 = vadd.f32 %v2452, %v2725
    %v2727 = vrot.slane %v2726, 2
    %v2728 = vadd.f32 %v2726, %v2727
    %v2729 = vrot.slane %v2728, 1
    %v2730 = vadd.f32 %v2728, %v2729
    %v2731 = vrot.slane %v2453, 4
    %v2732 = vadd.f32 %v2453, %v2731
    %v2733 = vrot.slane %v2732, 2
    %v2734 = vadd.f32 %v2732, %v2733
    %v2735 = vrot.slane %v2734, 1
    %v2736 = vadd.f32 %v2734, %v2735
    %v2737 = vrot.slane %v2454, 4
    %v2738 = vadd.f32 %v2454, %v2737
    %v2739 = vrot.slane %v2738, 2
    %v2740 = vadd.f32 %v2738, %v2739
    %v2741 = vrot.slane %v2740, 1
    %v2742 = vadd.f32 %v2740, %v2741
    %v2743 = vrot.slane %v2455, 4
    %v2744 = vadd.f32 %v2455, %v2743
    %v2745 = vrot.slane %v2744, 2
    %v2746 = vadd.f32 %v2744, %v2745
    %v2747 = vrot.slane %v2746, 1
    %v2748 = vadd.f32 %v2746, %v2747
    %v2749 = vrot.slane %v2456, 4
    %v2750 = vadd.f32 %v2456, %v2749
    %v2751 = vrot.slane %v2750, 2
    %v2752 = vadd.f32 %v2750, %v2751
    %v2753 = vrot.slane %v2752, 1
    %v2754 = vadd.f32 %v2752, %v2753
    %v2755 = vrot.slane %v2457, 4
    %v2756 = vadd.f32 %v2457, %v2755
    %v2757 = vrot.slane %v2756, 2
    %v2758 = vadd.f32 %v2756, %v2757
    %v2759 = vrot.slane %v2758, 1
    %v2760 = vadd.f32 %v2758, %v2759
    %v2761 = vrot.slane %v2458, 4
    %v2762 = vadd.f32 %v2458, %v2761
    %v2763 = vrot.slane %v2762, 2
    %v2764 = vadd.f32 %v2762, %v2763
    %v2765 = vrot.slane %v2764, 1
    %v2766 = vadd.f32 %v2764, %v2765
    %v2767 = vrot.slane %v2459, 4
    %v2768 = vadd.f32 %v2459, %v2767
    %v2769 = vrot.slane %v2768, 2
    %v2770 = vadd.f32 %v2768, %v2769
    %v2771 = vrot.slane %v2770, 1
    %v2772 = vadd.f32 %v2770, %v2771
    %v2773 = vrot.slane %v2460, 4
    %v2774 = vadd.f32 %v2460, %v2773
    %v2775 = vrot.slane %v2774, 2
    %v2776 = vadd.f32 %v2774, %v2775
    %v2777 = vrot.slane %v2776, 1
    %v2778 = vadd.f32 %v2776, %v2777
    %v2779 = vrot.slane %v2461, 4
    %v2780 = vadd.f32 %v2461, %v2779
    %v2781 = vrot.slane %v2780, 2
    %v2782 = vadd.f32 %v2780, %v2781
    %v2783 = vrot.slane %v2782, 1
    %v2784 = vadd.f32 %v2782, %v2783
    %v2785 = vrot.slane %v2462, 4
    %v2786 = vadd.f32 %v2462, %v2785
    %v2787 = vrot.slane %v2786, 2
    %v2788 = vadd.f32 %v2786, %v2787
    %v2789 = vrot.slane %v2788, 1
    %v2790 = vadd.f32 %v2788, %v2789
    %v2791 = vrot.slane %v2463, 4
    %v2792 = vadd.f32 %v2463, %v2791
    %v2793 = vrot.slane %v2792, 2
    %v2794 = vadd.f32 %v2792, %v2793
    %v2795 = vrot.slane %v2794, 1
    %v2796 = vadd.f32 %v2794, %v2795
    %v2797 = vrot.slane %v2464, 4
    %v2798 = vadd.f32 %v2464, %v2797
    %v2799 = vrot.slane %v2798, 2
    %v2800 = vadd.f32 %v2798, %v2799
    %v2801 = vrot.slane %v2800, 1
    %v2802 = vadd.f32 %v2800, %v2801
    %v2803 = vrot.slane %v2465, 4
    %v2804 = vadd.f32 %v2465, %v2803
    %v2805 = vrot.slane %v2804, 2
    %v2806 = vadd.f32 %v2804, %v2805
    %v2807 = vrot.slane %v2806, 1
    %v2808 = vadd.f32 %v2806, %v2807
    %v2809 = vrot.slane %v2466, 4
    %v2810 = vadd.f32 %v2466, %v2809
    %v2811 = vrot.slane %v2810, 2
    %v2812 = vadd.f32 %v2810, %v2811
    %v2813 = vrot.slane %v2812, 1
    %v2814 = vadd.f32 %v2812, %v2813
    %v2815 = vrot.slane %v2467, 4
    %v2816 = vadd.f32 %v2467, %v2815
    %v2817 = vrot.slane %v2816, 2
    %v2818 = vadd.f32 %v2816, %v2817
    %v2819 = vrot.slane %v2818, 1
    %v2820 = vadd.f32 %v2818, %v2819
    %v2821 = vrot.slane %v2468, 4
    %v2822 = vadd.f32 %v2468, %v2821
    %v2823 = vrot.slane %v2822, 2
    %v2824 = vadd.f32 %v2822, %v2823
    %v2825 = vrot.slane %v2824, 1
    %v2826 = vadd.f32 %v2824, %v2825
    %v2827 = vrot.slane %v2469, 4
    %v2828 = vadd.f32 %v2469, %v2827
    %v2829 = vrot.slane %v2828, 2
    %v2830 = vadd.f32 %v2828, %v2829
    %v2831 = vrot.slane %v2830, 1
    %v2832 = vadd.f32 %v2830, %v2831
    %v2833 = vrot.slane %v2470, 4
    %v2834 = vadd.f32 %v2470, %v2833
    %v2835 = vrot.slane %v2834, 2
    %v2836 = vadd.f32 %v2834, %v2835
    %v2837 = vrot.slane %v2836, 1
    %v2838 = vadd.f32 %v2836, %v2837
    %v2839 = vrot.slane %v2471, 4
    %v2840 = vadd.f32 %v2471, %v2839
    %v2841 = vrot.slane %v2840, 2
    %v2842 = vadd.f32 %v2840, %v2841
    %v2843 = vrot.slane %v2842, 1
    %v2844 = vadd.f32 %v2842, %v2843
    %v2845 = vrot.slane %v2472, 4
    %v2846 = vadd.f32 %v2472, %v2845
    %v2847 = vrot.slane %v2846, 2
    %v2848 = vadd.f32 %v2846, %v2847
    %v2849 = vrot.slane %v2848, 1
    %v2850 = vadd.f32 %v2848, %v2849
    %v2851 = vrot.slane %v2473, 4
    %v2852 = vadd.f32 %v2473, %v2851
    %v2853 = vrot.slane %v2852, 2
    %v2854 = vadd.f32 %v2852, %v2853
    %v2855 = vrot.slane %v2854, 1
    %v2856 = vadd.f32 %v2854, %v2855
    %v2857 = vrot.slane %v2474, 4
    %v2858 = vadd.f32 %v2474, %v2857
    %v2859 = vrot.slane %v2858, 2
    %v2860 = vadd.f32 %v2858, %v2859
    %v2861 = vrot.slane %v2860, 1
    %v2862 = vadd.f32 %v2860, %v2861
    %v2863 = vrot.slane %v2475, 4
    %v2864 = vadd.f32 %v2475, %v2863
    %v2865 = vrot.slane %v2864, 2
    %v2866 = vadd.f32 %v2864, %v2865
    %v2867 = vrot.slane %v2866, 1
    %v2868 = vadd.f32 %v2866, %v2867
    %v2869 = vrot.slane %v2476, 4
    %v2870 = vadd.f32 %v2476, %v2869
    %v2871 = vrot.slane %v2870, 2
    %v2872 = vadd.f32 %v2870, %v2871
    %v2873 = vrot.slane %v2872, 1
    %v2874 = vadd.f32 %v2872, %v2873
    %v2875 = vrot.slane %v2477, 4
    %v2876 = vadd.f32 %v2477, %v2875
    %v2877 = vrot.slane %v2876, 2
    %v2878 = vadd.f32 %v2876, %v2877
    %v2879 = vrot.slane %v2878, 1
    %v2880 = vadd.f32 %v2878, %v2879
    %v2881 = vrot.slane %v2478, 4
    %v2882 = vadd.f32 %v2478, %v2881
    %v2883 = vrot.slane %v2882, 2
    %v2884 = vadd.f32 %v2882, %v2883
    %v2885 = vrot.slane %v2884, 1
    %v2886 = vadd.f32 %v2884, %v2885
    %v2887 = vrot.slane %v2479, 4
    %v2888 = vadd.f32 %v2479, %v2887
    %v2889 = vrot.slane %v2888, 2
    %v2890 = vadd.f32 %v2888, %v2889
    %v2891 = vrot.slane %v2890, 1
    %v2892 = vadd.f32 %v2890, %v2891
    %v2893 = vrot.slane %v2480, 4
    %v2894 = vadd.f32 %v2480, %v2893
    %v2895 = vrot.slane %v2894, 2
    %v2896 = vadd.f32 %v2894, %v2895
    %v2897 = vrot.slane %v2896, 1
    %v2898 = vadd.f32 %v2896, %v2897
    %v2899 = vrot.slane %v2481, 4
    %v2900 = vadd.f32 %v2481, %v2899
    %v2901 = vrot.slane %v2900, 2
    %v2902 = vadd.f32 %v2900, %v2901
    %v2903 = vrot.slane %v2902, 1
    %v2904 = vadd.f32 %v2902, %v2903
    %v2905 = vrot.slane %v2482, 4
    %v2906 = vadd.f32 %v2482, %v2905
    %v2907 = vrot.slane %v2906, 2
    %v2908 = vadd.f32 %v2906, %v2907
    %v2909 = vrot.slane %v2908, 1
    %v2910 = vadd.f32 %v2908, %v2909
    %v2911 = vrot.slane %v2483, 4
    %v2912 = vadd.f32 %v2483, %v2911
    %v2913 = vrot.slane %v2912, 2
    %v2914 = vadd.f32 %v2912, %v2913
    %v2915 = vrot.slane %v2914, 1
    %v2916 = vadd.f32 %v2914, %v2915
    %v2917 = vrot.slane %v2484, 4
    %v2918 = vadd.f32 %v2484, %v2917
    %v2919 = vrot.slane %v2918, 2
    %v2920 = vadd.f32 %v2918, %v2919
    %v2921 = vrot.slane %v2920, 1
    %v2922 = vadd.f32 %v2920, %v2921
    %v2923 = vrot.slane %v2485, 4
    %v2924 = vadd.f32 %v2485, %v2923
    %v2925 = vrot.slane %v2924, 2
    %v2926 = vadd.f32 %v2924, %v2925
    %v2927 = vrot.slane %v2926, 1
    %v2928 = vadd.f32 %v2926, %v2927
    %v2929 = vrot.slane %v2486, 4
    %v2930 = vadd.f32 %v2486, %v2929
    %v2931 = vrot.slane %v2930, 2
    %v2932 = vadd.f32 %v2930, %v2931
    %v2933 = vrot.slane %v2932, 1
    %v2934 = vadd.f32 %v2932, %v2933
    %v2935 = vrot.slane %v2487, 4
    %v2936 = vadd.f32 %v2487, %v2935
    %v2937 = vrot.slane %v2936, 2
    %v2938 = vadd.f32 %v2936, %v2937
    %v2939 = vrot.slane %v2938, 1
    %v2940 = vadd.f32 %v2938, %v2939
    %v2941 = vrot.slane %v2488, 4
    %v2942 = vadd.f32 %v2488, %v2941
    %v2943 = vrot.slane %v2942, 2
    %v2944 = vadd.f32 %v2942, %v2943
    %v2945 = vrot.slane %v2944, 1
    %v2946 = vadd.f32 %v2944, %v2945
    %v2947 = vrot.slane %v2489, 4
    %v2948 = vadd.f32 %v2489, %v2947
    %v2949 = vrot.slane %v2948, 2
    %v2950 = vadd.f32 %v2948, %v2949
    %v2951 = vrot.slane %v2950, 1
    %v2952 = vadd.f32 %v2950, %v2951
    %v2953 = vrot.slane %v2490, 4
    %v2954 = vadd.f32 %v2490, %v2953
    %v2955 = vrot.slane %v2954, 2
    %v2956 = vadd.f32 %v2954, %v2955
    %v2957 = vrot.slane %v2956, 1
    %v2958 = vadd.f32 %v2956, %v2957
    %v2959 = vrot.slane %v2491, 4
    %v2960 = vadd.f32 %v2491, %v2959
    %v2961 = vrot.slane %v2960, 2
    %v2962 = vadd.f32 %v2960, %v2961
    %v2963 = vrot.slane %v2962, 1
    %v2964 = vadd.f32 %v2962, %v2963
    %v2965 = vrot.slane %v2492, 4
    %v2966 = vadd.f32 %v2492, %v2965
    %v2967 = vrot.slane %v2966, 2
    %v2968 = vadd.f32 %v2966, %v2967
    %v2969 = vrot.slane %v2968, 1
    %v2970 = vadd.f32 %v2968, %v2969
    %v2971 = vrot.slane %v2493, 4
    %v2972 = vadd.f32 %v2493, %v2971
    %v2973 = vrot.slane %v2972, 2
    %v2974 = vadd.f32 %v2972, %v2973
    %v2975 = vrot.slane %v2974, 1
    %v2976 = vadd.f32 %v2974, %v2975
    %v2977 = vrot.slane %v2494, 4
    %v2978 = vadd.f32 %v2494, %v2977
    %v2979 = vrot.slane %v2978, 2
    %v2980 = vadd.f32 %v2978, %v2979
    %v2981 = vrot.slane %v2980, 1
    %v2982 = vadd.f32 %v2980, %v2981
    %v2983 = vrot.slane %v2495, 4
    %v2984 = vadd.f32 %v2495, %v2983
    %v2985 = vrot.slane %v2984, 2
    %v2986 = vadd.f32 %v2984, %v2985
    %v2987 = vrot.slane %v2986, 1
    %v2988 = vadd.f32 %v2986, %v2987
    %v2989 = vrot.slane %v2496, 4
    %v2990 = vadd.f32 %v2496, %v2989
    %v2991 = vrot.slane %v2990, 2
    %v2992 = vadd.f32 %v2990, %v2991
    %v2993 = vrot.slane %v2992, 1
    %v2994 = vadd.f32 %v2992, %v2993
    %v2995 = vrot.slane %v2497, 4
    %v2996 = vadd.f32 %v2497, %v2995
    %v2997 = vrot.slane %v2996, 2
    %v2998 = vadd.f32 %v2996, %v2997
    %v2999 = vrot.slane %v2998, 1
    %v3000 = vadd.f32 %v2998, %v2999
    %v3001 = vrot.slane %v2498, 4
    %v3002 = vadd.f32 %v2498, %v3001
    %v3003 = vrot.slane %v3002, 2
    %v3004 = vadd.f32 %v3002, %v3003
    %v3005 = vrot.slane %v3004, 1
    %v3006 = vadd.f32 %v3004, %v3005
    %v3007 = vrot.slane %v2499, 4
    %v3008 = vadd.f32 %v2499, %v3007
    %v3009 = vrot.slane %v3008, 2
    %v3010 = vadd.f32 %v3008, %v3009
    %v3011 = vrot.slane %v3010, 1
    %v3012 = vadd.f32 %v3010, %v3011
    %v3013 = vrot.slane %v2500, 4
    %v3014 = vadd.f32 %v2500, %v3013
    %v3015 = vrot.slane %v3014, 2
    %v3016 = vadd.f32 %v3014, %v3015
    %v3017 = vrot.slane %v3016, 1
    %v3018 = vadd.f32 %v3016, %v3017
    %v3019 = vrot.slane %v2501, 4
    %v3020 = vadd.f32 %v2501, %v3019
    %v3021 = vrot.slane %v3020, 2
    %v3022 = vadd.f32 %v3020, %v3021
    %v3023 = vrot.slane %v3022, 1
    %v3024 = vadd.f32 %v3022, %v3023
    %v3025 = vrot.slane %v2502, 4
    %v3026 = vadd.f32 %v2502, %v3025
    %v3027 = vrot.slane %v3026, 2
    %v3028 = vadd.f32 %v3026, %v3027
    %v3029 = vrot.slane %v3028, 1
    %v3030 = vadd.f32 %v3028, %v3029
    %v3031 = vrot.slane %v2503, 4
    %v3032 = vadd.f32 %v2503, %v3031
    %v3033 = vrot.slane %v3032, 2
    %v3034 = vadd.f32 %v3032, %v3033
    %v3035 = vrot.slane %v3034, 1
    %v3036 = vadd.f32 %v3034, %v3035
    %v3037 = vrot.slane %v2504, 4
    %v3038 = vadd.f32 %v2504, %v3037
    %v3039 = vrot.slane %v3038, 2
    %v3040 = vadd.f32 %v3038, %v3039
    %v3041 = vrot.slane %v3040, 1
    %v3042 = vadd.f32 %v3040, %v3041
    %v3043 = vrot.slane %v2505, 4
    %v3044 = vadd.f32 %v2505, %v3043
    %v3045 = vrot.slane %v3044, 2
    %v3046 = vadd.f32 %v3044, %v3045
    %v3047 = vrot.slane %v3046, 1
    %v3048 = vadd.f32 %v3046, %v3047
    %v3049 = vrot.slane %v2506, 4
    %v3050 = vadd.f32 %v2506, %v3049
    %v3051 = vrot.slane %v3050, 2
    %v3052 = vadd.f32 %v3050, %v3051
    %v3053 = vrot.slane %v3052, 1
    %v3054 = vadd.f32 %v3052, %v3053
    %v3055 = vrot.slane %v2507, 4
    %v3056 = vadd.f32 %v2507, %v3055
    %v3057 = vrot.slane %v3056, 2
    %v3058 = vadd.f32 %v3056, %v3057
    %v3059 = vrot.slane %v3058, 1
    %v3060 = vadd.f32 %v3058, %v3059
    %v3061 = vrot.slane %v2508, 4
    %v3062 = vadd.f32 %v2508, %v3061
    %v3063 = vrot.slane %v3062, 2
    %v3064 = vadd.f32 %v3062, %v3063
    %v3065 = vrot.slane %v3064, 1
    %v3066 = vadd.f32 %v3064, %v3065
    %v3067 = vrot.slane %v2509, 4
    %v3068 = vadd.f32 %v2509, %v3067
    %v3069 = vrot.slane %v3068, 2
    %v3070 = vadd.f32 %v3068, %v3069
    %v3071 = vrot.slane %v3070, 1
    %v3072 = vadd.f32 %v3070, %v3071
    %v3073 = vrot.slane %v2510, 4
    %v3074 = vadd.f32 %v2510, %v3073
    %v3075 = vrot.slane %v3074, 2
    %v3076 = vadd.f32 %v3074, %v3075
    %v3077 = vrot.slane %v3076, 1
    %v3078 = vadd.f32 %v3076, %v3077
    %v3079 = vrot.slane %v2511, 4
    %v3080 = vadd.f32 %v2511, %v3079
    %v3081 = vrot.slane %v3080, 2
    %v3082 = vadd.f32 %v3080, %v3081
    %v3083 = vrot.slane %v3082, 1
    %v3084 = vadd.f32 %v3082, %v3083
    %v3085 = vrot.slane %v2512, 4
    %v3086 = vadd.f32 %v2512, %v3085
    %v3087 = vrot.slane %v3086, 2
    %v3088 = vadd.f32 %v3086, %v3087
    %v3089 = vrot.slane %v3088, 1
    %v3090 = vadd.f32 %v3088, %v3089
    %v3091 = vrot.slane %v2513, 4
    %v3092 = vadd.f32 %v2513, %v3091
    %v3093 = vrot.slane %v3092, 2
    %v3094 = vadd.f32 %v3092, %v3093
    %v3095 = vrot.slane %v3094, 1
    %v3096 = vadd.f32 %v3094, %v3095
    %v3097 = vrot.slane %v2514, 4
    %v3098 = vadd.f32 %v2514, %v3097
    %v3099 = vrot.slane %v3098, 2
    %v3100 = vadd.f32 %v3098, %v3099
    %v3101 = vrot.slane %v3100, 1
    %v3102 = vadd.f32 %v3100, %v3101
    %v3103 = vrot.slane %v2515, 4
    %v3104 = vadd.f32 %v2515, %v3103
    %v3105 = vrot.slane %v3104, 2
    %v3106 = vadd.f32 %v3104, %v3105
    %v3107 = vrot.slane %v3106, 1
    %v3108 = vadd.f32 %v3106, %v3107
    %v3109 = vrot.slane %v2516, 4
    %v3110 = vadd.f32 %v2516, %v3109
    %v3111 = vrot.slane %v3110, 2
    %v3112 = vadd.f32 %v3110, %v3111
    %v3113 = vrot.slane %v3112, 1
    %v3114 = vadd.f32 %v3112, %v3113
    %v3115 = vrot.slane %v2517, 4
    %v3116 = vadd.f32 %v2517, %v3115
    %v3117 = vrot.slane %v3116, 2
    %v3118 = vadd.f32 %v3116, %v3117
    %v3119 = vrot.slane %v3118, 1
    %v3120 = vadd.f32 %v3118, %v3119
    %v3121 = vrot.slane %v2518, 4
    %v3122 = vadd.f32 %v2518, %v3121
    %v3123 = vrot.slane %v3122, 2
    %v3124 = vadd.f32 %v3122, %v3123
    %v3125 = vrot.slane %v3124, 1
    %v3126 = vadd.f32 %v3124, %v3125
    %v3127 = vrot.slane %v2519, 4
    %v3128 = vadd.f32 %v2519, %v3127
    %v3129 = vrot.slane %v3128, 2
    %v3130 = vadd.f32 %v3128, %v3129
    %v3131 = vrot.slane %v3130, 1
    %v3132 = vadd.f32 %v3130, %v3131
    %v3133 = vrot.slane %v2520, 4
    %v3134 = vadd.f32 %v2520, %v3133
    %v3135 = vrot.slane %v3134, 2
    %v3136 = vadd.f32 %v3134, %v3135
    %v3137 = vrot.slane %v3136, 1
    %v3138 = vadd.f32 %v3136, %v3137
    %v3139 = vrot.slane %v2521, 4
    %v3140 = vadd.f32 %v2521, %v3139
    %v3141 = vrot.slane %v3140, 2
    %v3142 = vadd.f32 %v3140, %v3141
    %v3143 = vrot.slane %v3142, 1
    %v3144 = vadd.f32 %v3142, %v3143
    %v3145 = vrot.slane %v2522, 4
    %v3146 = vadd.f32 %v2522, %v3145
    %v3147 = vrot.slane %v3146, 2
    %v3148 = vadd.f32 %v3146, %v3147
    %v3149 = vrot.slane %v3148, 1
    %v3150 = vadd.f32 %v3148, %v3149
    %v3151 = vrot.slane %v2523, 4
    %v3152 = vadd.f32 %v2523, %v3151
    %v3153 = vrot.slane %v3152, 2
    %v3154 = vadd.f32 %v3152, %v3153
    %v3155 = vrot.slane %v3154, 1
    %v3156 = vadd.f32 %v3154, %v3155
    %v3157 = vrot.slane %v2524, 4
    %v3158 = vadd.f32 %v2524, %v3157
    %v3159 = vrot.slane %v3158, 2
    %v3160 = vadd.f32 %v3158, %v3159
    %v3161 = vrot.slane %v3160, 1
    %v3162 = vadd.f32 %v3160, %v3161
    %v3163 = vrot.slane %v2525, 4
    %v3164 = vadd.f32 %v2525, %v3163
    %v3165 = vrot.slane %v3164, 2
    %v3166 = vadd.f32 %v3164, %v3165
    %v3167 = vrot.slane %v3166, 1
    %v3168 = vadd.f32 %v3166, %v3167
    %v3169 = vrot.slane %v2526, 4
    %v3170 = vadd.f32 %v2526, %v3169
    %v3171 = vrot.slane %v3170, 2
    %v3172 = vadd.f32 %v3170, %v3171
    %v3173 = vrot.slane %v3172, 1
    %v3174 = vadd.f32 %v3172, %v3173
    %v3175 = vrot.slane %v2527, 4
    %v3176 = vadd.f32 %v2527, %v3175
    %v3177 = vrot.slane %v3176, 2
    %v3178 = vadd.f32 %v3176, %v3177
    %v3179 = vrot.slane %v3178, 1
    %v3180 = vadd.f32 %v3178, %v3179
    %v3181 = vrot.slane %v2528, 4
    %v3182 = vadd.f32 %v2528, %v3181
    %v3183 = vrot.slane %v3182, 2
    %v3184 = vadd.f32 %v3182, %v3183
    %v3185 = vrot.slane %v3184, 1
    %v3186 = vadd.f32 %v3184, %v3185
    %v3187 = vrot.slane %v2529, 4
    %v3188 = vadd.f32 %v2529, %v3187
    %v3189 = vrot.slane %v3188, 2
    %v3190 = vadd.f32 %v3188, %v3189
    %v3191 = vrot.slane %v3190, 1
    %v3192 = vadd.f32 %v3190, %v3191
    %v3193 = vrot.slane %v2530, 4
    %v3194 = vadd.f32 %v2530, %v3193
    %v3195 = vrot.slane %v3194, 2
    %v3196 = vadd.f32 %v3194, %v3195
    %v3197 = vrot.slane %v3196, 1
    %v3198 = vadd.f32 %v3196, %v3197
    %v3199 = vrot.slane %v2531, 4
    %v3200 = vadd.f32 %v2531, %v3199
    %v3201 = vrot.slane %v3200, 2
    %v3202 = vadd.f32 %v3200, %v3201
    %v3203 = vrot.slane %v3202, 1
    %v3204 = vadd.f32 %v3202, %v3203
    %v3205 = vrot.slane %v2532, 4
    %v3206 = vadd.f32 %v2532, %v3205
    %v3207 = vrot.slane %v3206, 2
    %v3208 = vadd.f32 %v3206, %v3207
    %v3209 = vrot.slane %v3208, 1
    %v3210 = vadd.f32 %v3208, %v3209
    %v3211 = vrot.slane %v2533, 4
    %v3212 = vadd.f32 %v2533, %v3211
    %v3213 = vrot.slane %v3212, 2
    %v3214 = vadd.f32 %v3212, %v3213
    %v3215 = vrot.slane %v3214, 1
    %v3216 = vadd.f32 %v3214, %v3215
    %v3217 = vrot.slane %v2534, 4
    %v3218 = vadd.f32 %v2534, %v3217
    %v3219 = vrot.slane %v3218, 2
    %v3220 = vadd.f32 %v3218, %v3219
    %v3221 = vrot.slane %v3220, 1
    %v3222 = vadd.f32 %v3220, %v3221
    %v3223 = vrot.slane %v2535, 4
    %v3224 = vadd.f32 %v2535, %v3223
    %v3225 = vrot.slane %v3224, 2
    %v3226 = vadd.f32 %v3224, %v3225
    %v3227 = vrot.slane %v3226, 1
    %v3228 = vadd.f32 %v3226, %v3227
    %v3229 = vrot.slane %v2536, 4
    %v3230 = vadd.f32 %v2536, %v3229
    %v3231 = vrot.slane %v3230, 2
    %v3232 = vadd.f32 %v3230, %v3231
    %v3233 = vrot.slane %v3232, 1
    %v3234 = vadd.f32 %v3232, %v3233
    %v3235 = vrot.slane %v2537, 4
    %v3236 = vadd.f32 %v2537, %v3235
    %v3237 = vrot.slane %v3236, 2
    %v3238 = vadd.f32 %v3236, %v3237
    %v3239 = vrot.slane %v3238, 1
    %v3240 = vadd.f32 %v3238, %v3239
    %v3241 = vrot.slane %v2538, 4
    %v3242 = vadd.f32 %v2538, %v3241
    %v3243 = vrot.slane %v3242, 2
    %v3244 = vadd.f32 %v3242, %v3243
    %v3245 = vrot.slane %v3244, 1
    %v3246 = vadd.f32 %v3244, %v3245
    %v3247 = vrot.slane %v2539, 4
    %v3248 = vadd.f32 %v2539, %v3247
    %v3249 = vrot.slane %v3248, 2
    %v3250 = vadd.f32 %v3248, %v3249
    %v3251 = vrot.slane %v3250, 1
    %v3252 = vadd.f32 %v3250, %v3251
    %v3253 = vrot.slane %v2540, 4
    %v3254 = vadd.f32 %v2540, %v3253
    %v3255 = vrot.slane %v3254, 2
    %v3256 = vadd.f32 %v3254, %v3255
    %v3257 = vrot.slane %v3256, 1
    %v3258 = vadd.f32 %v3256, %v3257
    %v3259 = vrot.slane %v2541, 4
    %v3260 = vadd.f32 %v2541, %v3259
    %v3261 = vrot.slane %v3260, 2
    %v3262 = vadd.f32 %v3260, %v3261
    %v3263 = vrot.slane %v3262, 1
    %v3264 = vadd.f32 %v3262, %v3263
    %v3265 = vrot.slane %v2542, 4
    %v3266 = vadd.f32 %v2542, %v3265
    %v3267 = vrot.slane %v3266, 2
    %v3268 = vadd.f32 %v3266, %v3267
    %v3269 = vrot.slane %v3268, 1
    %v3270 = vadd.f32 %v3268, %v3269
    %v3271 = vrot.slane %v2543, 4
    %v3272 = vadd.f32 %v2543, %v3271
    %v3273 = vrot.slane %v3272, 2
    %v3274 = vadd.f32 %v3272, %v3273
    %v3275 = vrot.slane %v3274, 1
    %v3276 = vadd.f32 %v3274, %v3275
    %v3277 = vrot.slane %v2544, 4
    %v3278 = vadd.f32 %v2544, %v3277
    %v3279 = vrot.slane %v3278, 2
    %v3280 = vadd.f32 %v3278, %v3279
    %v3281 = vrot.slane %v3280, 1
    %v3282 = vadd.f32 %v3280, %v3281
    %v3283 = vrot.slane %v2545, 4
    %v3284 = vadd.f32 %v2545, %v3283
    %v3285 = vrot.slane %v3284, 2
    %v3286 = vadd.f32 %v3284, %v3285
    %v3287 = vrot.slane %v3286, 1
    %v3288 = vadd.f32 %v3286, %v3287
    %v3289 = vrot.slane %v2546, 4
    %v3290 = vadd.f32 %v2546, %v3289
    %v3291 = vrot.slane %v3290, 2
    %v3292 = vadd.f32 %v3290, %v3291
    %v3293 = vrot.slane %v3292, 1
    %v3294 = vadd.f32 %v3292, %v3293
    %v3295 = vrot.slane %v2547, 4
    %v3296 = vadd.f32 %v2547, %v3295
    %v3297 = vrot.slane %v3296, 2
    %v3298 = vadd.f32 %v3296, %v3297
    %v3299 = vrot.slane %v3298, 1
    %v3300 = vadd.f32 %v3298, %v3299
    %v3301 = vrot.slane %v2548, 4
    %v3302 = vadd.f32 %v2548, %v3301
    %v3303 = vrot.slane %v3302, 2
    %v3304 = vadd.f32 %v3302, %v3303
    %v3305 = vrot.slane %v3304, 1
    %v3306 = vadd.f32 %v3304, %v3305
    %v3307 = vrot.slane %v2549, 4
    %v3308 = vadd.f32 %v2549, %v3307
    %v3309 = vrot.slane %v3308, 2
    %v3310 = vadd.f32 %v3308, %v3309
    %v3311 = vrot.slane %v3310, 1
    %v3312 = vadd.f32 %v3310, %v3311
    %v3313 = vrot.slane %v2550, 4
    %v3314 = vadd.f32 %v2550, %v3313
    %v3315 = vrot.slane %v3314, 2
    %v3316 = vadd.f32 %v3314, %v3315
    %v3317 = vrot.slane %v3316, 1
    %v3318 = vadd.f32 %v3316, %v3317
    %v3319 = vmul.f32 %v2556, 0.125
    %v3320 = vmul.f32 %v2562, 0.125
    %v3321 = vmul.f32 %v2568, 0.125
    %v3322 = vmul.f32 %v2574, 0.125
    %v3323 = vmul.f32 %v2580, 0.125
    %v3324 = vmul.f32 %v2586, 0.125
    %v3325 = vmul.f32 %v2592, 0.125
    %v3326 = vmul.f32 %v2598, 0.125
    %v3327 = vmul.f32 %v2604, 0.125
    %v3328 = vmul.f32 %v2610, 0.125
    %v3329 = vmul.f32 %v2616, 0.125
    %v3330 = vmul.f32 %v2622, 0.125
    %v3331 = vmul.f32 %v2628, 0.125
    %v3332 = vmul.f32 %v2634, 0.125
    %v3333 = vmul.f32 %v2640, 0.125
    %v3334 = vmul.f32 %v2646, 0.125
    %v3335 = vmul.f32 %v2652, 0.125
    %v3336 = vmul.f32 %v2658, 0.125
    %v3337 = vmul.f32 %v2664, 0.125
    %v3338 = vmul.f32 %v2670, 0.125
    %v3339 = vmul.f32 %v2676, 0.125
    %v3340 = vmul.f32 %v2682, 0.125
    %v3341 = vmul.f32 %v2688, 0.125
    %v3342 = vmul.f32 %v2694, 0.125
    %v3343 = vmul.f32 %v2700, 0.125
    %v3344 = vmul.f32 %v2706, 0.125
    %v3345 = vmul.f32 %v2712, 0.125
    %v3346 = vmul.f32 %v2718, 0.125
    %v3347 = vmul.f32 %v2724, 0.125
    %v3348 = vmul.f32 %v2730, 0.125
    %v3349 = vmul.f32 %v2736, 0.125
    %v3350 = vmul.f32 %v2742, 0.125
    %v3351 = vmul.f32 %v2748, 0.125
    %v3352 = vmul.f32 %v2754, 0.125
    %v3353 = vmul.f32 %v2760, 0.125
    %v3354 = vmul.f32 %v2766, 0.125
    %v3355 = vmul.f32 %v2772, 0.125
    %v3356 = vmul.f32 %v2778, 0.125
    %v3357 = vmul.f32 %v2784, 0.125
    %v3358 = vmul.f32 %v2790, 0.125
    %v3359 = vmul.f32 %v2796, 0.125
    %v3360 = vmul.f32 %v2802, 0.125
    %v3361 = vmul.f32 %v2808, 0.125
    %v3362 = vmul.f32 %v2814, 0.125
    %v3363 = vmul.f32 %v2820, 0.125
    %v3364 = vmul.f32 %v2826, 0.125
    %v3365 = vmul.f32 %v2832, 0.125
    %v3366 = vmul.f32 %v2838, 0.125
    %v3367 = vmul.f32 %v2844, 0.125
    %v3368 = vmul.f32 %v2850, 0.125
    %v3369 = vmul.f32 %v2856, 0.125
    %v3370 = vmul.f32 %v2862, 0.125
    %v3371 = vmul.f32 %v2868, 0.125
    %v3372 = vmul.f32 %v2874, 0.125
    %v3373 = vmul.f32 %v2880, 0.125
    %v3374 = vmul.f32 %v2886, 0.125
    %v3375 = vmul.f32 %v2892, 0.125
    %v3376 = vmul.f32 %v2898, 0.125
    %v3377 = vmul.f32 %v2904, 0.125
    %v3378 = vmul.f32 %v2910, 0.125
    %v3379 = vmul.f32 %v2916, 0.125
    %v3380 = vmul.f32 %v2922, 0.125
    %v3381 = vmul.f32 %v2928, 0.125
    %v3382 = vmul.f32 %v2934, 0.125
    %v3383 = vmul.f32 %v2940, 0.125
    %v3384 = vmul.f32 %v2946, 0.125
    %v3385 = vmul.f32 %v2952, 0.125
    %v3386 = vmul.f32 %v2958, 0.125
    %v3387 = vmul.f32 %v2964, 0.125
    %v3388 = vmul.f32 %v2970, 0.125
    %v3389 = vmul.f32 %v2976, 0.125
    %v3390 = vmul.f32 %v2982, 0.125
    %v3391 = vmul.f32 %v2988, 0.125
    %v3392 = vmul.f32 %v2994, 0.125
    %v3393 = vmul.f32 %v3000, 0.125
    %v3394 = vmul.f32 %v3006, 0.125
    %v3395 = vmul.f32 %v3012, 0.125
    %v3396 = vmul.f32 %v3018, 0.125
    %v3397 = vmul.f32 %v3024, 0.125
    %v3398 = vmul.f32 %v3030, 0.125
    %v3399 = vmul.f32 %v3036, 0.125
    %v3400 = vmul.f32 %v3042, 0.125
    %v3401 = vmul.f32 %v3048, 0.125
    %v3402 = vmul.f32 %v3054, 0.125
    %v3403 = vmul.f32 %v3060, 0.125
    %v3404 = vmul.f32 %v3066, 0.125
    %v3405 = vmul.f32 %v3072, 0.125
    %v3406 = vmul.f32 %v3078, 0.125
    %v3407 = vmul.f32 %v3084, 0.125
    %v3408 = vmul.f32 %v3090, 0.125
    %v3409 = vmul.f32 %v3096, 0.125
    %v3410 = vmul.f32 %v3102, 0.125
    %v3411 = vmul.f32 %v3108, 0.125
    %v3412 = vmul.f32 %v3114, 0.125
    %v3413 = vmul.f32 %v3120, 0.125
    %v3414 = vmul.f32 %v3126, 0.125
    %v3415 = vmul.f32 %v3132, 0.125
    %v3416 = vmul.f32 %v3138, 0.125
    %v3417 = vmul.f32 %v3144, 0.125
    %v3418 = vmul.f32 %v3150, 0.125
    %v3419 = vmul.f32 %v3156, 0.125
    %v3420 = vmul.f32 %v3162, 0.125
    %v3421 = vmul.f32 %v3168, 0.125
    %v3422 = vmul.f32 %v3174, 0.125
    %v3423 = vmul.f32 %v3180, 0.125
    %v3424 = vmul.f32 %v3186, 0.125
    %v3425 = vmul.f32 %v3192, 0.125
    %v3426 = vmul.f32 %v3198, 0.125
    %v3427 = vmul.f32 %v3204, 0.125
    %v3428 = vmul.f32 %v3210, 0.125
    %v3429 = vmul.f32 %v3216, 0.125
    %v3430 = vmul.f32 %v3222, 0.125
    %v3431 = vmul.f32 %v3228, 0.125
    %v3432 = vmul.f32 %v3234, 0.125
    %v3433 = vmul.f32 %v3240, 0.125
    %v3434 = vmul.f32 %v3246, 0.125
    %v3435 = vmul.f32 %v3252, 0.125
    %v3436 = vmul.f32 %v3258, 0.125
    %v3437 = vmul.f32 %v3264, 0.125
    %v3438 = vmul.f32 %v3270, 0.125
    %v3439 = vmul.f32 %v3276, 0.125
    %v3440 = vmul.f32 %v3282, 0.125
    %v3441 = vmul.f32 %v3288, 0.125
    %v3442 = vmul.f32 %v3294, 0.125
    %v3443 = vmul.f32 %v3300, 0.125
    %v3444 = vmul.f32 %v3306, 0.125
    %v3445 = vmul.f32 %v3312, 0.125
    %v3446 = vmul.f32 %v3318, 0.125
    %v3447 = vadd.f32 %v3319, 1e-05
    %v3448 = vadd.f32 %v3320, 1e-05
    %v3449 = vadd.f32 %v3321, 1e-05
    %v3450 = vadd.f32 %v3322, 1e-05
    %v3451 = vadd.f32 %v3323, 1e-05
    %v3452 = vadd.f32 %v3324, 1e-05
    %v3453 = vadd.f32 %v3325, 1e-05
    %v3454 = vadd.f32 %v3326, 1e-05
    %v3455 = vadd.f32 %v3327, 1e-05
    %v3456 = vadd.f32 %v3328, 1e-05
    %v3457 = vadd.f32 %v3329, 1e-05
    %v3458 = vadd.f32 %v3330, 1e-05
    %v3459 = vadd.f32 %v3331, 1e-05
    %v3460 = vadd.f32 %v3332, 1e-05
    %v3461 = vadd.f32 %v3333, 1e-05
    %v3462 = vadd.f32 %v3334, 1e-05
    %v3463 = vadd.f32 %v3335, 1e-05
    %v3464 = vadd.f32 %v3336, 1e-05
    %v3465 = vadd.f32 %v3337, 1e-05
    %v3466 = vadd.f32 %v3338, 1e-05
    %v3467 = vadd.f32 %v3339, 1e-05
    %v3468 = vadd.f32 %v3340, 1e-05
    %v3469 = vadd.f32 %v3341, 1e-05
    %v3470 = vadd.f32 %v3342, 1e-05
    %v3471 = vadd.f32 %v3343, 1e-05
    %v3472 = vadd.f32 %v3344, 1e-05
    %v3473 = vadd.f32 %v3345, 1e-05
    %v3474 = vadd.f32 %v3346, 1e-05
    %v3475 = vadd.f32 %v3347, 1e-05
    %v3476 = vadd.f32 %v3348, 1e-05
    %v3477 = vadd.f32 %v3349, 1e-05
    %v3478 = vadd.f32 %v3350, 1e-05
    %v3479 = vadd.f32 %v3351, 1e-05
    %v3480 = vadd.f32 %v3352, 1e-05
    %v3481 = vadd.f32 %v3353, 1e-05
    %v3482 = vadd.f32 %v3354, 1e-05
    %v3483 = vadd.f32 %v3355, 1e-05
    %v3484 = vadd.f32 %v3356, 1e-05
    %v3485 = vadd.f32 %v3357, 1e-05
    %v3486 = vadd.f32 %v3358, 1e-05
    %v3487 = vadd.f32 %v3359, 1e-05
    %v3488 = vadd.f32 %v3360, 1e-05
    %v3489 = vadd.f32 %v3361, 1e-05
    %v3490 = vadd.f32 %v3362, 1e-05
    %v3491 = vadd.f32 %v3363, 1e-05
    %v3492 = vadd.f32 %v3364, 1e-05
    %v3493 = vadd.f32 %v3365, 1e-05
    %v3494 = vadd.f32 %v3366, 1e-05
    %v3495 = vadd.f32 %v3367, 1e-05
    %v3496 = vadd.f32 %v3368, 1e-05
    %v3497 = vadd.f32 %v3369, 1e-05
    %v3498 = vadd.f32 %v3370, 1e-05
    %v3499 = vadd.f32 %v3371, 1e-05
    %v3500 = vadd.f32 %v3372, 1e-05
    %v3501 = vadd.f32 %v3373, 1e-05
    %v3502 = vadd.f32 %v3374, 1e-05
    %v3503 = vadd.f32 %v3375, 1e-05
    %v3504 = vadd.f32 %v3376, 1e-05
    %v3505 = vadd.f32 %v3377, 1e-05
    %v3506 = vadd.f32 %v3378, 1e-05
    %v3507 = vadd.f32 %v3379, 1e-05
    %v3508 = vadd.f32 %v3380, 1e-05
    %v3509 = vadd.f32 %v3381, 1e-05
    %v3510 = vadd.f32 %v3382, 1e-05
    %v3511 = vadd.f32 %v3383, 1e-05
    %v3512 = vadd.f32 %v3384, 1e-05
    %v3513 = vadd.f32 %v3385, 1e-05
    %v3514 = vadd.f32 %v3386, 1e-05
    %v3515 = vadd.f32 %v3387, 1e-05
    %v3516 = vadd.f32 %v3388, 1e-05
    %v3517 = vadd.f32 %v3389, 1e-05
    %v3518 = vadd.f32 %v3390, 1e-05
    %v3519 = vadd.f32 %v3391, 1e-05
    %v3520 = vadd.f32 %v3392, 1e-05
    %v3521 = vadd.f32 %v3393, 1e-05
    %v3522 = vadd.f32 %v3394, 1e-05
    %v3523 = vadd.f32 %v3395, 1e-05
    %v3524 = vadd.f32 %v3396, 1e-05
    %v3525 = vadd.f32 %v3397, 1e-05
    %v3526 = vadd.f32 %v3398, 1e-05
    %v3527 = vadd.f32 %v3399, 1e-05
    %v3528 = vadd.f32 %v3400, 1e-05
    %v3529 = vadd.f32 %v3401, 1e-05
    %v3530 = vadd.f32 %v3402, 1e-05
    %v3531 = vadd.f32 %v3403, 1e-05
    %v3532 = vadd.f32 %v3404, 1e-05
    %v3533 = vadd.f32 %v3405, 1e-05
    %v3534 = vadd.f32 %v3406, 1e-05
    %v3535 = vadd.f32 %v3407, 1e-05
    %v3536 = vadd.f32 %v3408, 1e-05
    %v3537 = vadd.f32 %v3409, 1e-05
    %v3538 = vadd.f32 %v3410, 1e-05
    %v3539 = vadd.f32 %v3411, 1e-05
    %v3540 = vadd.f32 %v3412, 1e-05
    %v3541 = vadd.f32 %v3413, 1e-05
    %v3542 = vadd.f32 %v3414, 1e-05
    %v3543 = vadd.f32 %v3415, 1e-05
    %v3544 = vadd.f32 %v3416, 1e-05
    %v3545 = vadd.f32 %v3417, 1e-05
    %v3546 = vadd.f32 %v3418, 1e-05
    %v3547 = vadd.f32 %v3419, 1e-05
    %v3548 = vadd.f32 %v3420, 1e-05
    %v3549 = vadd.f32 %v3421, 1e-05
    %v3550 = vadd.f32 %v3422, 1e-05
    %v3551 = vadd.f32 %v3423, 1e-05
    %v3552 = vadd.f32 %v3424, 1e-05
    %v3553 = vadd.f32 %v3425, 1e-05
    %v3554 = vadd.f32 %v3426, 1e-05
    %v3555 = vadd.f32 %v3427, 1e-05
    %v3556 = vadd.f32 %v3428, 1e-05
    %v3557 = vadd.f32 %v3429, 1e-05
    %v3558 = vadd.f32 %v3430, 1e-05
    %v3559 = vadd.f32 %v3431, 1e-05
    %v3560 = vadd.f32 %v3432, 1e-05
    %v3561 = vadd.f32 %v3433, 1e-05
    %v3562 = vadd.f32 %v3434, 1e-05
    %v3563 = vadd.f32 %v3435, 1e-05
    %v3564 = vadd.f32 %v3436, 1e-05
    %v3565 = vadd.f32 %v3437, 1e-05
    %v3566 = vadd.f32 %v3438, 1e-05
    %v3567 = vadd.f32 %v3439, 1e-05
    %v3568 = vadd.f32 %v3440, 1e-05
    %v3569 = vadd.f32 %v3441, 1e-05
    %v3570 = vadd.f32 %v3442, 1e-05
    %v3571 = vadd.f32 %v3443, 1e-05
    %v3572 = vadd.f32 %v3444, 1e-05
    %v3573 = vadd.f32 %v3445, 1e-05
    %v3574 = vadd.f32 %v3446, 1e-05
    %v3575 = vrsqrt.pop %v3447
    %v3576 = vrsqrt.pop %v3448
    %v3577 = vrsqrt.pop %v3449
    %v3578 = vrsqrt.pop %v3450
    %v3579 = vrsqrt.pop %v3451
    %v3580 = vrsqrt.pop %v3452
    %v3581 = vrsqrt.pop %v3453
    %v3582 = vrsqrt.pop %v3454
    %v3583 = vrsqrt.pop %v3455
    %v3584 = vrsqrt.pop %v3456
    %v3585 = vrsqrt.pop %v3457
    %v3586 = vrsqrt.pop %v3458
    %v3587 = vrsqrt.pop %v3459
    %v3588 = vrsqrt.pop %v3460
    %v3589 = vrsqrt.pop %v3461
    %v3590 = vrsqrt.pop %v3462
    %v3591 = vrsqrt.pop %v3463
    %v3592 = vrsqrt.pop %v3464
    %v3593 = vrsqrt.pop %v3465
    %v3594 = vrsqrt.pop %v3466
    %v3595 = vrsqrt.pop %v3467
    %v3596 = vrsqrt.pop %v3468
    %v3597 = vrsqrt.pop %v3469
    %v3598 = vrsqrt.pop %v3470
    %v3599 = vrsqrt.pop %v3471
    %v3600 = vrsqrt.pop %v3472
    %v3601 = vrsqrt.pop %v3473
    %v3602 = vrsqrt.pop %v3474
    %v3603 = vrsqrt.pop %v3475
    %v3604 = vrsqrt.pop %v3476
    %v3605 = vrsqrt.pop %v3477
    %v3606 = vrsqrt.pop %v3478
    %v3607 = vrsqrt.pop %v3479
    %v3608 = vrsqrt.pop %v3480
    %v3609 = vrsqrt.pop %v3481
    %v3610 = vrsqrt.pop %v3482
    %v3611 = vrsqrt.pop %v3483
    %v3612 = vrsqrt.pop %v3484
    %v3613 = vrsqrt.pop %v3485
    %v3614 = vrsqrt.pop %v3486
    %v3615 = vrsqrt.pop %v3487
    %v3616 = vrsqrt.pop %v3488
    %v3617 = vrsqrt.pop %v3489
    %v3618 = vrsqrt.pop %v3490
    %v3619 = vrsqrt.pop %v3491
    %v3620 = vrsqrt.pop %v3492
    %v3621 = vrsqrt.pop %v3493
    %v3622 = vrsqrt.pop %v3494
    %v3623 = vrsqrt.pop %v3495
    %v3624 = vrsqrt.pop %v3496
    %v3625 = vrsqrt.pop %v3497
    %v3626 = vrsqrt.pop %v3498
    %v3627 = vrsqrt.pop %v3499
    %v3628 = vrsqrt.pop %v3500
    %v3629 = vrsqrt.pop %v3501
    %v3630 = vrsqrt.pop %v3502
    %v3631 = vrsqrt.pop %v3503
    %v3632 = vrsqrt.pop %v3504
    %v3633 = vrsqrt.pop %v3505
    %v3634 = vrsqrt.pop %v3506
    %v3635 = vrsqrt.pop %v3507
    %v3636 = vrsqrt.pop %v3508
    %v3637 = vrsqrt.pop %v3509
    %v3638 = vrsqrt.pop %v3510
    %v3639 = vrsqrt.pop %v3511
    %v3640 = vrsqrt.pop %v3512
    %v3641 = vrsqrt.pop %v3513
    %v3642 = vrsqrt.pop %v3514
    %v3643 = vrsqrt.pop %v3515
    %v3644 = vrsqrt.pop %v3516
    %v3645 = vrsqrt.pop %v3517
    %v3646 = vrsqrt.pop %v3518
    %v3647 = vrsqrt.pop %v3519
    %v3648 = vrsqrt.pop %v3520
    %v3649 = vrsqrt.pop %v3521
    %v3650 = vrsqrt.pop %v3522
    %v3651 = vrsqrt.pop %v3523
    %v3652 = vrsqrt.pop %v3524
    %v3653 = vrsqrt.pop %v3525
    %v3654 = vrsqrt.pop %v3526
    %v3655 = vrsqrt.pop %v3527
    %v3656 = vrsqrt.pop %v3528
    %v3657 = vrsqrt.pop %v3529
    %v3658 = vrsqrt.pop %v3530
    %v3659 = vrsqrt.pop %v3531
    %v3660 = vrsqrt.pop %v3532
    %v3661 = vrsqrt.pop %v3533
    %v3662 = vrsqrt.pop %v3534
    %v3663 = vrsqrt.pop %v3535
    %v3664 = vrsqrt.pop %v3536
    %v3665 = vrsqrt.pop %v3537
    %v3666 = vrsqrt.pop %v3538
    %v3667 = vrsqrt.pop %v3539
    %v3668 = vrsqrt.pop %v3540
    %v3669 = vrsqrt.pop %v3541
    %v3670 = vrsqrt.pop %v3542
    %v3671 = vrsqrt.pop %v3543
    %v3672 = vrsqrt.pop %v3544
    %v3673 = vrsqrt.pop %v3545
    %v3674 = vrsqrt.pop %v3546
    %v3675 = vrsqrt.pop %v3547
    %v3676 = vrsqrt.pop %v3548
    %v3677 = vrsqrt.pop %v3549
    %v3678 = vrsqrt.pop %v3550
    %v3679 = vrsqrt.pop %v3551
    %v3680 = vrsqrt.pop %v3552
    %v3681 = vrsqrt.pop %v3553
    %v3682 = vrsqrt.pop %v3554
    %v3683 = vrsqrt.pop %v3555
    %v3684 = vrsqrt.pop %v3556
    %v3685 = vrsqrt.pop %v3557
    %v3686 = vrsqrt.pop %v3558
    %v3687 = vrsqrt.pop %v3559
    %v3688 = vrsqrt.pop %v3560
    %v3689 = vrsqrt.pop %v3561
    %v3690 = vrsqrt.pop %v3562
    %v3691 = vrsqrt.pop %v3563
    %v3692 = vrsqrt.pop %v3564
    %v3693 = vrsqrt.pop %v3565
    %v3694 = vrsqrt.pop %v3566
    %v3695 = vrsqrt.pop %v3567
    %v3696 = vrsqrt.pop %v3568
    %v3697 = vrsqrt.pop %v3569
    %v3698 = vrsqrt.pop %v3570
    %v3699 = vrsqrt.pop %v3571
    %v3700 = vrsqrt.pop %v3572
    %v3701 = vrsqrt.pop %v3573
    %v3702 = vrsqrt.pop %v3574
    %v3831 = vcombine.low %v3575, %v3576
    %v3832 = vcombine.low %v3577, %v3578
    %v3833 = vcombine.low %v3579, %v3580
    %v3834 = vcombine.low %v3581, %v3582
    %v3836 = vunpack.c.l.s4 1966171168
    %v3837 = vunpack.c.0.s8 %v3836
    %v3838 = vlaneseq
    %v3839 = vshrl.u32 %v3838, 7
    %v3840 = vsub.s32 %v3837, %v3839
    %v3841 = vrot.slane %v3831, %v3840
    %v3843 = vunpack.c.l.s4 1966171168
    %v3844 = vunpack.c.0.s8 %v3843
    %v3845 = vlaneseq
    %v3846 = vshrl.u32 %v3845, 7
    %v3847 = vsub.s32 %v3844, %v3846
    %v3848 = vrot.slane %v3832, %v3847
    %v3850 = vunpack.c.l.s4 1966171168
    %v3851 = vunpack.c.0.s8 %v3850
    %v3852 = vlaneseq
    %v3853 = vshrl.u32 %v3852, 7
    %v3854 = vsub.s32 %v3851, %v3853
    %v3855 = vrot.slane %v3833, %v3854
    %v3857 = vunpack.c.l.s4 1966171168
    %v3858 = vunpack.c.0.s8 %v3857
    %v3859 = vlaneseq
    %v3860 = vshrl.u32 %v3859, 7
    %v3861 = vsub.s32 %v3858, %v3860
    %v3862 = vrot.slane %v3834, %v3861
    %v3863 = vcombine.low %v3841, %v3848
    %v3864 = vcombine.low %v3855, %v3862
    %v3866 = vunpack.c.l.s4 1966171168
    %v3867 = vunpack.c.0.s8 %v3866
    %v3868 = vlaneseq
    %v3869 = vshrl.u32 %v3868, 7
    %v3870 = vsub.s32 %v3867, %v3869
    %v3871 = vrot.slane %v3863, %v3870
    %v3873 = vunpack.c.l.s4 1966171168
    %v3874 = vunpack.c.0.s8 %v3873
    %v3875 = vlaneseq
    %v3876 = vshrl.u32 %v3875, 7
    %v3877 = vsub.s32 %v3874, %v3876
    %v3878 = vrot.slane %v3864, %v3877
    %v3879 = vcombine.low %v3871, %v3878
    %v3880 = vcombine.low %v3583, %v3584
    %v3881 = vcombine.low %v3585, %v3586
    %v3882 = vcombine.low %v3587, %v3588
    %v3883 = vcombine.low %v3589, %v3590
    %v3885 = vunpack.c.l.s4 1966171168
    %v3886 = vunpack.c.0.s8 %v3885
    %v3887 = vlaneseq
    %v3888 = vshrl.u32 %v3887, 7
    %v3889 = vsub.s32 %v3886, %v3888
    %v3890 = vrot.slane %v3880, %v3889
    %v3892 = vunpack.c.l.s4 1966171168
    %v3893 = vunpack.c.0.s8 %v3892
    %v3894 = vlaneseq
    %v3895 = vshrl.u32 %v3894, 7
    %v3896 = vsub.s32 %v3893, %v3895
    %v3897 = vrot.slane %v3881, %v3896
    %v3899 = vunpack.c.l.s4 1966171168
    %v3900 = vunpack.c.0.s8 %v3899
    %v3901 = vlaneseq
    %v3902 = vshrl.u32 %v3901, 7
    %v3903 = vsub.s32 %v3900, %v3902
    %v3904 = vrot.slane %v3882, %v3903
    %v3906 = vunpack.c.l.s4 1966171168
    %v3907 = vunpack.c.0.s8 %v3906
    %v3908 = vlaneseq
    %v3909 = vshrl.u32 %v3908, 7
    %v3910 = vsub.s32 %v3907, %v3909
    %v3911 = vrot.slane %v3883, %v3910
    %v3912 = vcombine.low %v3890, %v3897
    %v3913 = vcombine.low %v3904, %v3911
    %v3915 = vunpack.c.l.s4 1966171168
    %v3916 = vunpack.c.0.s8 %v3915
    %v3917 = vlaneseq
    %v3918 = vshrl.u32 %v3917, 7
    %v3919 = vsub.s32 %v3916, %v3918
    %v3920 = vrot.slane %v3912, %v3919
    %v3922 = vunpack.c.l.s4 1966171168
    %v3923 = vunpack.c.0.s8 %v3922
    %v3924 = vlaneseq
    %v3925 = vshrl.u32 %v3924, 7
    %v3926 = vsub.s32 %v3923, %v3925
    %v3927 = vrot.slane %v3913, %v3926
    %v3928 = vcombine.low %v3920, %v3927
    %v3929 = vcombine.low %v3591, %v3592
    %v3930 = vcombine.low %v3593, %v3594
    %v3931 = vcombine.low %v3595, %v3596
    %v3932 = vcombine.low %v3597, %v3598
    %v3934 = vunpack.c.l.s4 1966171168
    %v3935 = vunpack.c.0.s8 %v3934
    %v3936 = vlaneseq
    %v3937 = vshrl.u32 %v3936, 7
    %v3938 = vsub.s32 %v3935, %v3937
    %v3939 = vrot.slane %v3929, %v3938
    %v3941 = vunpack.c.l.s4 1966171168
    %v3942 = vunpack.c.0.s8 %v3941
    %v3943 = vlaneseq
    %v3944 = vshrl.u32 %v3943, 7
    %v3945 = vsub.s32 %v3942, %v3944
    %v3946 = vrot.slane %v3930, %v3945
    %v3948 = vunpack.c.l.s4 1966171168
    %v3949 = vunpack.c.0.s8 %v3948
    %v3950 = vlaneseq
    %v3951 = vshrl.u32 %v3950, 7
    %v3952 = vsub.s32 %v3949, %v3951
    %v3953 = vrot.slane %v3931, %v3952
    %v3955 = vunpack.c.l.s4 1966171168
    %v3956 = vunpack.c.0.s8 %v3955
    %v3957 = vlaneseq
    %v3958 = vshrl.u32 %v3957, 7
    %v3959 = vsub.s32 %v3956, %v3958
    %v3960 = vrot.slane %v3932, %v3959
    %v3961 = vcombine.low %v3939, %v3946
    %v3962 = vcombine.low %v3953, %v3960
    %v3964 = vunpack.c.l.s4 1966171168
    %v3965 = vunpack.c.0.s8 %v3964
    %v3966 = vlaneseq
    %v3967 = vshrl.u32 %v3966, 7
    %v3968 = vsub.s32 %v3965, %v3967
    %v3969 = vrot.slane %v3961, %v3968
    %v3971 = vunpack.c.l.s4 1966171168
    %v3972 = vunpack.c.0.s8 %v3971
    %v3973 = vlaneseq
    %v3974 = vshrl.u32 %v3973, 7
    %v3975 = vsub.s32 %v3972, %v3974
    %v3976 = vrot.slane %v3962, %v3975
    %v3977 = vcombine.low %v3969, %v3976
    %v3978 = vcombine.low %v3599, %v3600
    %v3979 = vcombine.low %v3601, %v3602
    %v3980 = vcombine.low %v3603, %v3604
    %v3981 = vcombine.low %v3605, %v3606
    %v3983 = vunpack.c.l.s4 1966171168
    %v3984 = vunpack.c.0.s8 %v3983
    %v3985 = vlaneseq
    %v3986 = vshrl.u32 %v3985, 7
    %v3987 = vsub.s32 %v3984, %v3986
    %v3988 = vrot.slane %v3978, %v3987
    %v3990 = vunpack.c.l.s4 1966171168
    %v3991 = vunpack.c.0.s8 %v3990
    %v3992 = vlaneseq
    %v3993 = vshrl.u32 %v3992, 7
    %v3994 = vsub.s32 %v3991, %v3993
    %v3995 = vrot.slane %v3979, %v3994
    %v3997 = vunpack.c.l.s4 1966171168
    %v3998 = vunpack.c.0.s8 %v3997
    %v3999 = vlaneseq
    %v4000 = vshrl.u32 %v3999, 7
    %v4001 = vsub.s32 %v3998, %v4000
    %v4002 = vrot.slane %v3980, %v4001
    %v4004 = vunpack.c.l.s4 1966171168
    %v4005 = vunpack.c.0.s8 %v4004
    %v4006 = vlaneseq
    %v4007 = vshrl.u32 %v4006, 7
    %v4008 = vsub.s32 %v4005, %v4007
    %v4009 = vrot.slane %v3981, %v4008
    %v4010 = vcombine.low %v3988, %v3995
    %v4011 = vcombine.low %v4002, %v4009
    %v4013 = vunpack.c.l.s4 1966171168
    %v4014 = vunpack.c.0.s8 %v4013
    %v4015 = vlaneseq
    %v4016 = vshrl.u32 %v4015, 7
    %v4017 = vsub.s32 %v4014, %v4016
    %v4018 = vrot.slane %v4010, %v4017
    %v4020 = vunpack.c.l.s4 1966171168
    %v4021 = vunpack.c.0.s8 %v4020
    %v4022 = vlaneseq
    %v4023 = vshrl.u32 %v4022, 7
    %v4024 = vsub.s32 %v4021, %v4023
    %v4025 = vrot.slane %v4011, %v4024
    %v4026 = vcombine.low %v4018, %v4025
    %v4027 = vcombine.low %v3607, %v3608
    %v4028 = vcombine.low %v3609, %v3610
    %v4029 = vcombine.low %v3611, %v3612
    %v4030 = vcombine.low %v3613, %v3614
    %v4032 = vunpack.c.l.s4 1966171168
    %v4033 = vunpack.c.0.s8 %v4032
    %v4034 = vlaneseq
    %v4035 = vshrl.u32 %v4034, 7
    %v4036 = vsub.s32 %v4033, %v4035
    %v4037 = vrot.slane %v4027, %v4036
    %v4039 = vunpack.c.l.s4 1966171168
    %v4040 = vunpack.c.0.s8 %v4039
    %v4041 = vlaneseq
    %v4042 = vshrl.u32 %v4041, 7
    %v4043 = vsub.s32 %v4040, %v4042
    %v4044 = vrot.slane %v4028, %v4043
    %v4046 = vunpack.c.l.s4 1966171168
    %v4047 = vunpack.c.0.s8 %v4046
    %v4048 = vlaneseq
    %v4049 = vshrl.u32 %v4048, 7
    %v4050 = vsub.s32 %v4047, %v4049
    %v4051 = vrot.slane %v4029, %v4050
    %v4053 = vunpack.c.l.s4 1966171168
    %v4054 = vunpack.c.0.s8 %v4053
    %v4055 = vlaneseq
    %v4056 = vshrl.u32 %v4055, 7
    %v4057 = vsub.s32 %v4054, %v4056
    %v4058 = vrot.slane %v4030, %v4057
    %v4059 = vcombine.low %v4037, %v4044
    %v4060 = vcombine.low %v4051, %v4058
    %v4062 = vunpack.c.l.s4 1966171168
    %v4063 = vunpack.c.0.s8 %v4062
    %v4064 = vlaneseq
    %v4065 = vshrl.u32 %v4064, 7
    %v4066 = vsub.s32 %v4063, %v4065
    %v4067 = vrot.slane %v4059, %v4066
    %v4069 = vunpack.c.l.s4 1966171168
    %v4070 = vunpack.c.0.s8 %v4069
    %v4071 = vlaneseq
    %v4072 = vshrl.u32 %v4071, 7
    %v4073 = vsub.s32 %v4070, %v4072
    %v4074 = vrot.slane %v4060, %v4073
    %v4075 = vcombine.low %v4067, %v4074
    %v4076 = vcombine.low %v3615, %v3616
    %v4077 = vcombine.low %v3617, %v3618
    %v4078 = vcombine.low %v3619, %v3620
    %v4079 = vcombine.low %v3621, %v3622
    %v4081 = vunpack.c.l.s4 1966171168
    %v4082 = vunpack.c.0.s8 %v4081
    %v4083 = vlaneseq
    %v4084 = vshrl.u32 %v4083, 7
    %v4085 = vsub.s32 %v4082, %v4084
    %v4086 = vrot.slane %v4076, %v4085
    %v4088 = vunpack.c.l.s4 1966171168
    %v4089 = vunpack.c.0.s8 %v4088
    %v4090 = vlaneseq
    %v4091 = vshrl.u32 %v4090, 7
    %v4092 = vsub.s32 %v4089, %v4091
    %v4093 = vrot.slane %v4077, %v4092
    %v4095 = vunpack.c.l.s4 1966171168
    %v4096 = vunpack.c.0.s8 %v4095
    %v4097 = vlaneseq
    %v4098 = vshrl.u32 %v4097, 7
    %v4099 = vsub.s32 %v4096, %v4098
    %v4100 = vrot.slane %v4078, %v4099
    %v4102 = vunpack.c.l.s4 1966171168
    %v4103 = vunpack.c.0.s8 %v4102
    %v4104 = vlaneseq
    %v4105 = vshrl.u32 %v4104, 7
    %v4106 = vsub.s32 %v4103, %v4105
    %v4107 = vrot.slane %v4079, %v4106
    %v4108 = vcombine.low %v4086, %v4093
    %v4109 = vcombine.low %v4100, %v4107
    %v4111 = vunpack.c.l.s4 1966171168
    %v4112 = vunpack.c.0.s8 %v4111
    %v4113 = vlaneseq
    %v4114 = vshrl.u32 %v4113, 7
    %v4115 = vsub.s32 %v4112, %v4114
    %v4116 = vrot.slane %v4108, %v4115
    %v4118 = vunpack.c.l.s4 1966171168
    %v4119 = vunpack.c.0.s8 %v4118
    %v4120 = vlaneseq
    %v4121 = vshrl.u32 %v4120, 7
    %v4122 = vsub.s32 %v4119, %v4121
    %v4123 = vrot.slane %v4109, %v4122
    %v4124 = vcombine.low %v4116, %v4123
    %v4125 = vcombine.low %v3623, %v3624
    %v4126 = vcombine.low %v3625, %v3626
    %v4127 = vcombine.low %v3627, %v3628
    %v4128 = vcombine.low %v3629, %v3630
    %v4130 = vunpack.c.l.s4 1966171168
    %v4131 = vunpack.c.0.s8 %v4130
    %v4132 = vlaneseq
    %v4133 = vshrl.u32 %v4132, 7
    %v4134 = vsub.s32 %v4131, %v4133
    %v4135 = vrot.slane %v4125, %v4134
    %v4137 = vunpack.c.l.s4 1966171168
    %v4138 = vunpack.c.0.s8 %v4137
    %v4139 = vlaneseq
    %v4140 = vshrl.u32 %v4139, 7
    %v4141 = vsub.s32 %v4138, %v4140
    %v4142 = vrot.slane %v4126, %v4141
    %v4144 = vunpack.c.l.s4 1966171168
    %v4145 = vunpack.c.0.s8 %v4144
    %v4146 = vlaneseq
    %v4147 = vshrl.u32 %v4146, 7
    %v4148 = vsub.s32 %v4145, %v4147
    %v4149 = vrot.slane %v4127, %v4148
    %v4151 = vunpack.c.l.s4 1966171168
    %v4152 = vunpack.c.0.s8 %v4151
    %v4153 = vlaneseq
    %v4154 = vshrl.u32 %v4153, 7
    %v4155 = vsub.s32 %v4152, %v4154
    %v4156 = vrot.slane %v4128, %v4155
    %v4157 = vcombine.low %v4135, %v4142
    %v4158 = vcombine.low %v4149, %v4156
    %v4160 = vunpack.c.l.s4 1966171168
    %v4161 = vunpack.c.0.s8 %v4160
    %v4162 = vlaneseq
    %v4163 = vshrl.u32 %v4162, 7
    %v4164 = vsub.s32 %v4161, %v4163
    %v4165 = vrot.slane %v4157, %v4164
    %v4167 = vunpack.c.l.s4 1966171168
    %v4168 = vunpack.c.0.s8 %v4167
    %v4169 = vlaneseq
    %v4170 = vshrl.u32 %v4169, 7
    %v4171 = vsub.s32 %v4168, %v4170
    %v4172 = vrot.slane %v4158, %v4171
    %v4173 = vcombine.low %v4165, %v4172
    %v4174 = vcombine.low %v3631, %v3632
    %v4175 = vcombine.low %v3633, %v3634
    %v4176 = vcombine.low %v3635, %v3636
    %v4177 = vcombine.low %v3637, %v3638
    %v4179 = vunpack.c.l.s4 1966171168
    %v4180 = vunpack.c.0.s8 %v4179
    %v4181 = vlaneseq
    %v4182 = vshrl.u32 %v4181, 7
    %v4183 = vsub.s32 %v4180, %v4182
    %v4184 = vrot.slane %v4174, %v4183
    %v4186 = vunpack.c.l.s4 1966171168
    %v4187 = vunpack.c.0.s8 %v4186
    %v4188 = vlaneseq
    %v4189 = vshrl.u32 %v4188, 7
    %v4190 = vsub.s32 %v4187, %v4189
    %v4191 = vrot.slane %v4175, %v4190
    %v4193 = vunpack.c.l.s4 1966171168
    %v4194 = vunpack.c.0.s8 %v4193
    %v4195 = vlaneseq
    %v4196 = vshrl.u32 %v4195, 7
    %v4197 = vsub.s32 %v4194, %v4196
    %v4198 = vrot.slane %v4176, %v4197
    %v4200 = vunpack.c.l.s4 1966171168
    %v4201 = vunpack.c.0.s8 %v4200
    %v4202 = vlaneseq
    %v4203 = vshrl.u32 %v4202, 7
    %v4204 = vsub.s32 %v4201, %v4203
    %v4205 = vrot.slane %v4177, %v4204
    %v4206 = vcombine.low %v4184, %v4191
    %v4207 = vcombine.low %v4198, %v4205
    %v4209 = vunpack.c.l.s4 1966171168
    %v4210 = vunpack.c.0.s8 %v4209
    %v4211 = vlaneseq
    %v4212 = vshrl.u32 %v4211, 7
    %v4213 = vsub.s32 %v4210, %v4212
    %v4214 = vrot.slane %v4206, %v4213
    %v4216 = vunpack.c.l.s4 1966171168
    %v4217 = vunpack.c.0.s8 %v4216
    %v4218 = vlaneseq
    %v4219 = vshrl.u32 %v4218, 7
    %v4220 = vsub.s32 %v4217, %v4219
    %v4221 = vrot.slane %v4207, %v4220
    %v4222 = vcombine.low %v4214, %v4221
    %v4223 = vcombine.low %v3639, %v3640
    %v4224 = vcombine.low %v3641, %v3642
    %v4225 = vcombine.low %v3643, %v3644
    %v4226 = vcombine.low %v3645, %v3646
    %v4228 = vunpack.c.l.s4 1966171168
    %v4229 = vunpack.c.0.s8 %v4228
    %v4230 = vlaneseq
    %v4231 = vshrl.u32 %v4230, 7
    %v4232 = vsub.s32 %v4229, %v4231
    %v4233 = vrot.slane %v4223, %v4232
    %v4235 = vunpack.c.l.s4 1966171168
    %v4236 = vunpack.c.0.s8 %v4235
    %v4237 = vlaneseq
    %v4238 = vshrl.u32 %v4237, 7
    %v4239 = vsub.s32 %v4236, %v4238
    %v4240 = vrot.slane %v4224, %v4239
    %v4242 = vunpack.c.l.s4 1966171168
    %v4243 = vunpack.c.0.s8 %v4242
    %v4244 = vlaneseq
    %v4245 = vshrl.u32 %v4244, 7
    %v4246 = vsub.s32 %v4243, %v4245
    %v4247 = vrot.slane %v4225, %v4246
    %v4249 = vunpack.c.l.s4 1966171168
    %v4250 = vunpack.c.0.s8 %v4249
    %v4251 = vlaneseq
    %v4252 = vshrl.u32 %v4251, 7
    %v4253 = vsub.s32 %v4250, %v4252
    %v4254 = vrot.slane %v4226, %v4253
    %v4255 = vcombine.low %v4233, %v4240
    %v4256 = vcombine.low %v4247, %v4254
    %v4258 = vunpack.c.l.s4 1966171168
    %v4259 = vunpack.c.0.s8 %v4258
    %v4260 = vlaneseq
    %v4261 = vshrl.u32 %v4260, 7
    %v4262 = vsub.s32 %v4259, %v4261
    %v4263 = vrot.slane %v4255, %v4262
    %v4265 = vunpack.c.l.s4 1966171168
    %v4266 = vunpack.c.0.s8 %v4265
    %v4267 = vlaneseq
    %v4268 = vshrl.u32 %v4267, 7
    %v4269 = vsub.s32 %v4266, %v4268
    %v4270 = vrot.slane %v4256, %v4269
    %v4271 = vcombine.low %v4263, %v4270
    %v4272 = vcombine.low %v3647, %v3648
    %v4273 = vcombine.low %v3649, %v3650
    %v4274 = vcombine.low %v3651, %v3652
    %v4275 = vcombine.low %v3653, %v3654
    %v4277 = vunpack.c.l.s4 1966171168
    %v4278 = vunpack.c.0.s8 %v4277
    %v4279 = vlaneseq
    %v4280 = vshrl.u32 %v4279, 7
    %v4281 = vsub.s32 %v4278, %v4280
    %v4282 = vrot.slane %v4272, %v4281
    %v4284 = vunpack.c.l.s4 1966171168
    %v4285 = vunpack.c.0.s8 %v4284
    %v4286 = vlaneseq
    %v4287 = vshrl.u32 %v4286, 7
    %v4288 = vsub.s32 %v4285, %v4287
    %v4289 = vrot.slane %v4273, %v4288
    %v4291 = vunpack.c.l.s4 1966171168
    %v4292 = vunpack.c.0.s8 %v4291
    %v4293 = vlaneseq
    %v4294 = vshrl.u32 %v4293, 7
    %v4295 = vsub.s32 %v4292, %v4294
    %v4296 = vrot.slane %v4274, %v4295
    %v4298 = vunpack.c.l.s4 1966171168
    %v4299 = vunpack.c.0.s8 %v4298
    %v4300 = vlaneseq
    %v4301 = vshrl.u32 %v4300, 7
    %v4302 = vsub.s32 %v4299, %v4301
    %v4303 = vrot.slane %v4275, %v4302
    %v4304 = vcombine.low %v4282, %v4289
    %v4305 = vcombine.low %v4296, %v4303
    %v4307 = vunpack.c.l.s4 1966171168
    %v4308 = vunpack.c.0.s8 %v4307
    %v4309 = vlaneseq
    %v4310 = vshrl.u32 %v4309, 7
    %v4311 = vsub.s32 %v4308, %v4310
    %v4312 = vrot.slane %v4304, %v4311
    %v4314 = vunpack.c.l.s4 1966171168
    %v4315 = vunpack.c.0.s8 %v4314
    %v4316 = vlaneseq
    %v4317 = vshrl.u32 %v4316, 7
    %v4318 = vsub.s32 %v4315, %v4317
    %v4319 = vrot.slane %v4305, %v4318
    %v4320 = vcombine.low %v4312, %v4319
    %v4321 = vcombine.low %v3655, %v3656
    %v4322 = vcombine.low %v3657, %v3658
    %v4323 = vcombine.low %v3659, %v3660
    %v4324 = vcombine.low %v3661, %v3662
    %v4326 = vunpack.c.l.s4 1966171168
    %v4327 = vunpack.c.0.s8 %v4326
    %v4328 = vlaneseq
    %v4329 = vshrl.u32 %v4328, 7
    %v4330 = vsub.s32 %v4327, %v4329
    %v4331 = vrot.slane %v4321, %v4330
    %v4333 = vunpack.c.l.s4 1966171168
    %v4334 = vunpack.c.0.s8 %v4333
    %v4335 = vlaneseq
    %v4336 = vshrl.u32 %v4335, 7
    %v4337 = vsub.s32 %v4334, %v4336
    %v4338 = vrot.slane %v4322, %v4337
    %v4340 = vunpack.c.l.s4 1966171168
    %v4341 = vunpack.c.0.s8 %v4340
    %v4342 = vlaneseq
    %v4343 = vshrl.u32 %v4342, 7
    %v4344 = vsub.s32 %v4341, %v4343
    %v4345 = vrot.slane %v4323, %v4344
    %v4347 = vunpack.c.l.s4 1966171168
    %v4348 = vunpack.c.0.s8 %v4347
    %v4349 = vlaneseq
    %v4350 = vshrl.u32 %v4349, 7
    %v4351 = vsub.s32 %v4348, %v4350
    %v4352 = vrot.slane %v4324, %v4351
    %v4353 = vcombine.low %v4331, %v4338
    %v4354 = vcombine.low %v4345, %v4352
    %v4356 = vunpack.c.l.s4 1966171168
    %v4357 = vunpack.c.0.s8 %v4356
    %v4358 = vlaneseq
    %v4359 = vshrl.u32 %v4358, 7
    %v4360 = vsub.s32 %v4357, %v4359
    %v4361 = vrot.slane %v4353, %v4360
    %v4363 = vunpack.c.l.s4 1966171168
    %v4364 = vunpack.c.0.s8 %v4363
    %v4365 = vlaneseq
    %v4366 = vshrl.u32 %v4365, 7
    %v4367 = vsub.s32 %v4364, %v4366
    %v4368 = vrot.slane %v4354, %v4367
    %v4369 = vcombine.low %v4361, %v4368
    %v4370 = vcombine.low %v3663, %v3664
    %v4371 = vcombine.low %v3665, %v3666
    %v4372 = vcombine.low %v3667, %v3668
    %v4373 = vcombine.low %v3669, %v3670
    %v4375 = vunpack.c.l.s4 1966171168
    %v4376 = vunpack.c.0.s8 %v4375
    %v4377 = vlaneseq
    %v4378 = vshrl.u32 %v4377, 7
    %v4379 = vsub.s32 %v4376, %v4378
    %v4380 = vrot.slane %v4370, %v4379
    %v4382 = vunpack.c.l.s4 1966171168
    %v4383 = vunpack.c.0.s8 %v4382
    %v4384 = vlaneseq
    %v4385 = vshrl.u32 %v4384, 7
    %v4386 = vsub.s32 %v4383, %v4385
    %v4387 = vrot.slane %v4371, %v4386
    %v4389 = vunpack.c.l.s4 1966171168
    %v4390 = vunpack.c.0.s8 %v4389
    %v4391 = vlaneseq
    %v4392 = vshrl.u32 %v4391, 7
    %v4393 = vsub.s32 %v4390, %v4392
    %v4394 = vrot.slane %v4372, %v4393
    %v4396 = vunpack.c.l.s4 1966171168
    %v4397 = vunpack.c.0.s8 %v4396
    %v4398 = vlaneseq
    %v4399 = vshrl.u32 %v4398, 7
    %v4400 = vsub.s32 %v4397, %v4399
    %v4401 = vrot.slane %v4373, %v4400
    %v4402 = vcombine.low %v4380, %v4387
    %v4403 = vcombine.low %v4394, %v4401
    %v4405 = vunpack.c.l.s4 1966171168
    %v4406 = vunpack.c.0.s8 %v4405
    %v4407 = vlaneseq
    %v4408 = vshrl.u32 %v4407, 7
    %v4409 = vsub.s32 %v4406, %v4408
    %v4410 = vrot.slane %v4402, %v4409
    %v4412 = vunpack.c.l.s4 1966171168
    %v4413 = vunpack.c.0.s8 %v4412
    %v4414 = vlaneseq
    %v4415 = vshrl.u32 %v4414, 7
    %v4416 = vsub.s32 %v4413, %v4415
    %v4417 = vrot.slane %v4403, %v4416
    %v4418 = vcombine.low %v4410, %v4417
    %v4419 = vcombine.low %v3671, %v3672
    %v4420 = vcombine.low %v3673, %v3674
    %v4421 = vcombine.low %v3675, %v3676
    %v4422 = vcombine.low %v3677, %v3678
    %v4424 = vunpack.c.l.s4 1966171168
    %v4425 = vunpack.c.0.s8 %v4424
    %v4426 = vlaneseq
    %v4427 = vshrl.u32 %v4426, 7
    %v4428 = vsub.s32 %v4425, %v4427
    %v4429 = vrot.slane %v4419, %v4428
    %v4431 = vunpack.c.l.s4 1966171168
    %v4432 = vunpack.c.0.s8 %v4431
    %v4433 = vlaneseq
    %v4434 = vshrl.u32 %v4433, 7
    %v4435 = vsub.s32 %v4432, %v4434
    %v4436 = vrot.slane %v4420, %v4435
    %v4438 = vunpack.c.l.s4 1966171168
    %v4439 = vunpack.c.0.s8 %v4438
    %v4440 = vlaneseq
    %v4441 = vshrl.u32 %v4440, 7
    %v4442 = vsub.s32 %v4439, %v4441
    %v4443 = vrot.slane %v4421, %v4442
    %v4445 = vunpack.c.l.s4 1966171168
    %v4446 = vunpack.c.0.s8 %v4445
    %v4447 = vlaneseq
    %v4448 = vshrl.u32 %v4447, 7
    %v4449 = vsub.s32 %v4446, %v4448
    %v4450 = vrot.slane %v4422, %v4449
    %v4451 = vcombine.low %v4429, %v4436
    %v4452 = vcombine.low %v4443, %v4450
    %v4454 = vunpack.c.l.s4 1966171168
    %v4455 = vunpack.c.0.s8 %v4454
    %v4456 = vlaneseq
    %v4457 = vshrl.u32 %v4456, 7
    %v4458 = vsub.s32 %v4455, %v4457
    %v4459 = vrot.slane %v4451, %v4458
    %v4461 = vunpack.c.l.s4 1966171168
    %v4462 = vunpack.c.0.s8 %v4461
    %v4463 = vlaneseq
    %v4464 = vshrl.u32 %v4463, 7
    %v4465 = vsub.s32 %v4462, %v4464
    %v4466 = vrot.slane %v4452, %v4465
    %v4467 = vcombine.low %v4459, %v4466
    %v4468 = vcombine.low %v3679, %v3680
    %v4469 = vcombine.low %v3681, %v3682
    %v4470 = vcombine.low %v3683, %v3684
    %v4471 = vcombine.low %v3685, %v3686
    %v4473 = vunpack.c.l.s4 1966171168
    %v4474 = vunpack.c.0.s8 %v4473
    %v4475 = vlaneseq
    %v4476 = vshrl.u32 %v4475, 7
    %v4477 = vsub.s32 %v4474, %v4476
    %v4478 = vrot.slane %v4468, %v4477
    %v4480 = vunpack.c.l.s4 1966171168
    %v4481 = vunpack.c.0.s8 %v4480
    %v4482 = vlaneseq
    %v4483 = vshrl.u32 %v4482, 7
    %v4484 = vsub.s32 %v4481, %v4483
    %v4485 = vrot.slane %v4469, %v4484
    %v4487 = vunpack.c.l.s4 1966171168
    %v4488 = vunpack.c.0.s8 %v4487
    %v4489 = vlaneseq
    %v4490 = vshrl.u32 %v4489, 7
    %v4491 = vsub.s32 %v4488, %v4490
    %v4492 = vrot.slane %v4470, %v4491
    %v4494 = vunpack.c.l.s4 1966171168
    %v4495 = vunpack.c.0.s8 %v4494
    %v4496 = vlaneseq
    %v4497 = vshrl.u32 %v4496, 7
    %v4498 = vsub.s32 %v4495, %v4497
    %v4499 = vrot.slane %v4471, %v4498
    %v4500 = vcombine.low %v4478, %v4485
    %v4501 = vcombine.low %v4492, %v4499
    %v4503 = vunpack.c.l.s4 1966171168
    %v4504 = vunpack.c.0.s8 %v4503
    %v4505 = vlaneseq
    %v4506 = vshrl.u32 %v4505, 7
    %v4507 = vsub.s32 %v4504, %v4506
    %v4508 = vrot.slane %v4500, %v4507
    %v4510 = vunpack.c.l.s4 1966171168
    %v4511 = vunpack.c.0.s8 %v4510
    %v4512 = vlaneseq
    %v4513 = vshrl.u32 %v4512, 7
    %v4514 = vsub.s32 %v4511, %v4513
    %v4515 = vrot.slane %v4501, %v4514
    %v4516 = vcombine.low %v4508, %v4515
    %v4517 = vcombine.low %v3687, %v3688
    %v4518 = vcombine.low %v3689, %v3690
    %v4519 = vcombine.low %v3691, %v3692
    %v4520 = vcombine.low %v3693, %v3694
    %v4522 = vunpack.c.l.s4 1966171168
    %v4523 = vunpack.c.0.s8 %v4522
    %v4524 = vlaneseq
    %v4525 = vshrl.u32 %v4524, 7
    %v4526 = vsub.s32 %v4523, %v4525
    %v4527 = vrot.slane %v4517, %v4526
    %v4529 = vunpack.c.l.s4 1966171168
    %v4530 = vunpack.c.0.s8 %v4529
    %v4531 = vlaneseq
    %v4532 = vshrl.u32 %v4531, 7
    %v4533 = vsub.s32 %v4530, %v4532
    %v4534 = vrot.slane %v4518, %v4533
    %v4536 = vunpack.c.l.s4 1966171168
    %v4537 = vunpack.c.0.s8 %v4536
    %v4538 = vlaneseq
    %v4539 = vshrl.u32 %v4538, 7
    %v4540 = vsub.s32 %v4537, %v4539
    %v4541 = vrot.slane %v4519, %v4540
    %v4543 = vunpack.c.l.s4 1966171168
    %v4544 = vunpack.c.0.s8 %v4543
    %v4545 = vlaneseq
    %v4546 = vshrl.u32 %v4545, 7
    %v4547 = vsub.s32 %v4544, %v4546
    %v4548 = vrot.slane %v4520, %v4547
    %v4549 = vcombine.low %v4527, %v4534
    %v4550 = vcombine.low %v4541, %v4548
    %v4552 = vunpack.c.l.s4 1966171168
    %v4553 = vunpack.c.0.s8 %v4552
    %v4554 = vlaneseq
    %v4555 = vshrl.u32 %v4554, 7
    %v4556 = vsub.s32 %v4553, %v4555
    %v4557 = vrot.slane %v4549, %v4556
    %v4559 = vunpack.c.l.s4 1966171168
    %v4560 = vunpack.c.0.s8 %v4559
    %v4561 = vlaneseq
    %v4562 = vshrl.u32 %v4561, 7
    %v4563 = vsub.s32 %v4560, %v4562
    %v4564 = vrot.slane %v4550, %v4563
    %v4565 = vcombine.low %v4557, %v4564
    %v4566 = vcombine.low %v3695, %v3696
    %v4567 = vcombine.low %v3697, %v3698
    %v4568 = vcombine.low %v3699, %v3700
    %v4569 = vcombine.low %v3701, %v3702
    %v4571 = vunpack.c.l.s4 1966171168
    %v4572 = vunpack.c.0.s8 %v4571
    %v4573 = vlaneseq
    %v4574 = vshrl.u32 %v4573, 7
    %v4575 = vsub.s32 %v4572, %v4574
    %v4576 = vrot.slane %v4566, %v4575
    %v4578 = vunpack.c.l.s4 1966171168
    %v4579 = vunpack.c.0.s8 %v4578
    %v4580 = vlaneseq
    %v4581 = vshrl.u32 %v4580, 7
    %v4582 = vsub.s32 %v4579, %v4581
    %v4583 = vrot.slane %v4567, %v4582
    %v4585 = vunpack.c.l.s4 1966171168
    %v4586 = vunpack.c.0.s8 %v4585
    %v4587 = vlaneseq
    %v4588 = vshrl.u32 %v4587, 7
    %v4589 = vsub.s32 %v4586, %v4588
    %v4590 = vrot.slane %v4568, %v4589
    %v4592 = vunpack.c.l.s4 1966171168
    %v4593 = vunpack.c.0.s8 %v4592
    %v4594 = vlaneseq
    %v4595 = vshrl.u32 %v4594, 7
    %v4596 = vsub.s32 %v4593, %v4595
    %v4597 = vrot.slane %v4569, %v4596
    %v4598 = vcombine.low %v4576, %v4583
    %v4599 = vcombine.low %v4590, %v4597
    %v4601 = vunpack.c.l.s4 1966171168
    %v4602 = vunpack.c.0.s8 %v4601
    %v4603 = vlaneseq
    %v4604 = vshrl.u32 %v4603, 7
    %v4605 = vsub.s32 %v4602, %v4604
    %v4606 = vrot.slane %v4598, %v4605
    %v4608 = vunpack.c.l.s4 1966171168
    %v4609 = vunpack.c.0.s8 %v4608
    %v4610 = vlaneseq
    %v4611 = vshrl.u32 %v4610, 7
    %v4612 = vsub.s32 %v4609, %v4611
    %v4613 = vrot.slane %v4599, %v4612
    %v4614 = vcombine.low %v4606, %v4613
    %v4631 = vmul.f32 %v1391, %v3879
    %v4632 = vmul.f32 %v1392, %v3928
    %v4633 = vmul.f32 %v1393, %v3977
    %v4634 = vmul.f32 %v1394, %v4026
    %v4635 = vmul.f32 %v1391, %v4075
    %v4636 = vmul.f32 %v1392, %v4124
    %v4637 = vmul.f32 %v1393, %v4173
    %v4638 = vmul.f32 %v1394, %v4222
    %v4639 = vmul.f32 %v1391, %v4271
    %v4640 = vmul.f32 %v1392, %v4320
    %v4641 = vmul.f32 %v1393, %v4369
    %v4642 = vmul.f32 %v1394, %v4418
    %v4643 = vmul.f32 %v1391, %v4467
    %v4644 = vmul.f32 %v1392, %v4516
    %v4645 = vmul.f32 %v1393, %v4565
    %v4646 = vmul.f32 %v1394, %v4614
    %v4663 = vlaneseq
    %v4664 = vshrl.u32 %v4663, 7
    %v4665 = vsub.s32 0, %v4664
    %v4666 = vrot.slane %v4631, %v4665
    %v4667 = vlaneseq
    %v4668 = vshrl.u32 %v4667, 7
    %v4669 = vsub.s32 1, %v4668
    %v4670 = vrot.slane %v4631, %v4669
    %v4671 = vlaneseq
    %v4672 = vshrl.u32 %v4671, 7
    %v4673 = vsub.s32 2, %v4672
    %v4674 = vrot.slane %v4631, %v4673
    %v4675 = vlaneseq
    %v4676 = vshrl.u32 %v4675, 7
    %v4677 = vsub.s32 3, %v4676
    %v4678 = vrot.slane %v4631, %v4677
    %v4679 = vlaneseq
    %v4680 = vshrl.u32 %v4679, 7
    %v4681 = vsub.s32 4, %v4680
    %v4682 = vrot.slane %v4631, %v4681
    %v4683 = vlaneseq
    %v4684 = vshrl.u32 %v4683, 7
    %v4685 = vsub.s32 5, %v4684
    %v4686 = vrot.slane %v4631, %v4685
    %v4687 = vlaneseq
    %v4688 = vshrl.u32 %v4687, 7
    %v4689 = vsub.s32 6, %v4688
    %v4690 = vrot.slane %v4631, %v4689
    %v4691 = vlaneseq
    %v4692 = vshrl.u32 %v4691, 7
    %v4693 = vsub.s32 7, %v4692
    %v4694 = vrot.slane %v4631, %v4693
    %v4695 = vlaneseq
    %v4696 = vshrl.u32 %v4695, 7
    %v4697 = vsub.s32 0, %v4696
    %v4698 = vrot.slane %v4632, %v4697
    %v4699 = vlaneseq
    %v4700 = vshrl.u32 %v4699, 7
    %v4701 = vsub.s32 1, %v4700
    %v4702 = vrot.slane %v4632, %v4701
    %v4703 = vlaneseq
    %v4704 = vshrl.u32 %v4703, 7
    %v4705 = vsub.s32 2, %v4704
    %v4706 = vrot.slane %v4632, %v4705
    %v4707 = vlaneseq
    %v4708 = vshrl.u32 %v4707, 7
    %v4709 = vsub.s32 3, %v4708
    %v4710 = vrot.slane %v4632, %v4709
    %v4711 = vlaneseq
    %v4712 = vshrl.u32 %v4711, 7
    %v4713 = vsub.s32 4, %v4712
    %v4714 = vrot.slane %v4632, %v4713
    %v4715 = vlaneseq
    %v4716 = vshrl.u32 %v4715, 7
    %v4717 = vsub.s32 5, %v4716
    %v4718 = vrot.slane %v4632, %v4717
    %v4719 = vlaneseq
    %v4720 = vshrl.u32 %v4719, 7
    %v4721 = vsub.s32 6, %v4720
    %v4722 = vrot.slane %v4632, %v4721
    %v4723 = vlaneseq
    %v4724 = vshrl.u32 %v4723, 7
    %v4725 = vsub.s32 7, %v4724
    %v4726 = vrot.slane %v4632, %v4725
    %v4727 = vlaneseq
    %v4728 = vshrl.u32 %v4727, 7
    %v4729 = vsub.s32 0, %v4728
    %v4730 = vrot.slane %v4633, %v4729
    %v4731 = vlaneseq
    %v4732 = vshrl.u32 %v4731, 7
    %v4733 = vsub.s32 1, %v4732
    %v4734 = vrot.slane %v4633, %v4733
    %v4735 = vlaneseq
    %v4736 = vshrl.u32 %v4735, 7
    %v4737 = vsub.s32 2, %v4736
    %v4738 = vrot.slane %v4633, %v4737
    %v4739 = vlaneseq
    %v4740 = vshrl.u32 %v4739, 7
    %v4741 = vsub.s32 3, %v4740
    %v4742 = vrot.slane %v4633, %v4741
    %v4743 = vlaneseq
    %v4744 = vshrl.u32 %v4743, 7
    %v4745 = vsub.s32 4, %v4744
    %v4746 = vrot.slane %v4633, %v4745
    %v4747 = vlaneseq
    %v4748 = vshrl.u32 %v4747, 7
    %v4749 = vsub.s32 5, %v4748
    %v4750 = vrot.slane %v4633, %v4749
    %v4751 = vlaneseq
    %v4752 = vshrl.u32 %v4751, 7
    %v4753 = vsub.s32 6, %v4752
    %v4754 = vrot.slane %v4633, %v4753
    %v4755 = vlaneseq
    %v4756 = vshrl.u32 %v4755, 7
    %v4757 = vsub.s32 7, %v4756
    %v4758 = vrot.slane %v4633, %v4757
    %v4759 = vlaneseq
    %v4760 = vshrl.u32 %v4759, 7
    %v4761 = vsub.s32 0, %v4760
    %v4762 = vrot.slane %v4634, %v4761
    %v4763 = vlaneseq
    %v4764 = vshrl.u32 %v4763, 7
    %v4765 = vsub.s32 1, %v4764
    %v4766 = vrot.slane %v4634, %v4765
    %v4767 = vlaneseq
    %v4768 = vshrl.u32 %v4767, 7
    %v4769 = vsub.s32 2, %v4768
    %v4770 = vrot.slane %v4634, %v4769
    %v4771 = vlaneseq
    %v4772 = vshrl.u32 %v4771, 7
    %v4773 = vsub.s32 3, %v4772
    %v4774 = vrot.slane %v4634, %v4773
    %v4775 = vlaneseq
    %v4776 = vshrl.u32 %v4775, 7
    %v4777 = vsub.s32 4, %v4776
    %v4778 = vrot.slane %v4634, %v4777
    %v4779 = vlaneseq
    %v4780 = vshrl.u32 %v4779, 7
    %v4781 = vsub.s32 5, %v4780
    %v4782 = vrot.slane %v4634, %v4781
    %v4783 = vlaneseq
    %v4784 = vshrl.u32 %v4783, 7
    %v4785 = vsub.s32 6, %v4784
    %v4786 = vrot.slane %v4634, %v4785
    %v4787 = vlaneseq
    %v4788 = vshrl.u32 %v4787, 7
    %v4789 = vsub.s32 7, %v4788
    %v4790 = vrot.slane %v4634, %v4789
    %v4791 = vlaneseq
    %v4792 = vshrl.u32 %v4791, 7
    %v4793 = vsub.s32 0, %v4792
    %v4794 = vrot.slane %v4635, %v4793
    %v4795 = vlaneseq
    %v4796 = vshrl.u32 %v4795, 7
    %v4797 = vsub.s32 1, %v4796
    %v4798 = vrot.slane %v4635, %v4797
    %v4799 = vlaneseq
    %v4800 = vshrl.u32 %v4799, 7
    %v4801 = vsub.s32 2, %v4800
    %v4802 = vrot.slane %v4635, %v4801
    %v4803 = vlaneseq
    %v4804 = vshrl.u32 %v4803, 7
    %v4805 = vsub.s32 3, %v4804
    %v4806 = vrot.slane %v4635, %v4805
    %v4807 = vlaneseq
    %v4808 = vshrl.u32 %v4807, 7
    %v4809 = vsub.s32 4, %v4808
    %v4810 = vrot.slane %v4635, %v4809
    %v4811 = vlaneseq
    %v4812 = vshrl.u32 %v4811, 7
    %v4813 = vsub.s32 5, %v4812
    %v4814 = vrot.slane %v4635, %v4813
    %v4815 = vlaneseq
    %v4816 = vshrl.u32 %v4815, 7
    %v4817 = vsub.s32 6, %v4816
    %v4818 = vrot.slane %v4635, %v4817
    %v4819 = vlaneseq
    %v4820 = vshrl.u32 %v4819, 7
    %v4821 = vsub.s32 7, %v4820
    %v4822 = vrot.slane %v4635, %v4821
    %v4823 = vlaneseq
    %v4824 = vshrl.u32 %v4823, 7
    %v4825 = vsub.s32 0, %v4824
    %v4826 = vrot.slane %v4636, %v4825
    %v4827 = vlaneseq
    %v4828 = vshrl.u32 %v4827, 7
    %v4829 = vsub.s32 1, %v4828
    %v4830 = vrot.slane %v4636, %v4829
    %v4831 = vlaneseq
    %v4832 = vshrl.u32 %v4831, 7
    %v4833 = vsub.s32 2, %v4832
    %v4834 = vrot.slane %v4636, %v4833
    %v4835 = vlaneseq
    %v4836 = vshrl.u32 %v4835, 7
    %v4837 = vsub.s32 3, %v4836
    %v4838 = vrot.slane %v4636, %v4837
    %v4839 = vlaneseq
    %v4840 = vshrl.u32 %v4839, 7
    %v4841 = vsub.s32 4, %v4840
    %v4842 = vrot.slane %v4636, %v4841
    %v4843 = vlaneseq
    %v4844 = vshrl.u32 %v4843, 7
    %v4845 = vsub.s32 5, %v4844
    %v4846 = vrot.slane %v4636, %v4845
    %v4847 = vlaneseq
    %v4848 = vshrl.u32 %v4847, 7
    %v4849 = vsub.s32 6, %v4848
    %v4850 = vrot.slane %v4636, %v4849
    %v4851 = vlaneseq
    %v4852 = vshrl.u32 %v4851, 7
    %v4853 = vsub.s32 7, %v4852
    %v4854 = vrot.slane %v4636, %v4853
    %v4855 = vlaneseq
    %v4856 = vshrl.u32 %v4855, 7
    %v4857 = vsub.s32 0, %v4856
    %v4858 = vrot.slane %v4637, %v4857
    %v4859 = vlaneseq
    %v4860 = vshrl.u32 %v4859, 7
    %v4861 = vsub.s32 1, %v4860
    %v4862 = vrot.slane %v4637, %v4861
    %v4863 = vlaneseq
    %v4864 = vshrl.u32 %v4863, 7
    %v4865 = vsub.s32 2, %v4864
    %v4866 = vrot.slane %v4637, %v4865
    %v4867 = vlaneseq
    %v4868 = vshrl.u32 %v4867, 7
    %v4869 = vsub.s32 3, %v4868
    %v4870 = vrot.slane %v4637, %v4869
    %v4871 = vlaneseq
    %v4872 = vshrl.u32 %v4871, 7
    %v4873 = vsub.s32 4, %v4872
    %v4874 = vrot.slane %v4637, %v4873
    %v4875 = vlaneseq
    %v4876 = vshrl.u32 %v4875, 7
    %v4877 = vsub.s32 5, %v4876
    %v4878 = vrot.slane %v4637, %v4877
    %v4879 = vlaneseq
    %v4880 = vshrl.u32 %v4879, 7
    %v4881 = vsub.s32 6, %v4880
    %v4882 = vrot.slane %v4637, %v4881
    %v4883 = vlaneseq
    %v4884 = vshrl.u32 %v4883, 7
    %v4885 = vsub.s32 7, %v4884
    %v4886 = vrot.slane %v4637, %v4885
    %v4887 = vlaneseq
    %v4888 = vshrl.u32 %v4887, 7
    %v4889 = vsub.s32 0, %v4888
    %v4890 = vrot.slane %v4638, %v4889
    %v4891 = vlaneseq
    %v4892 = vshrl.u32 %v4891, 7
    %v4893 = vsub.s32 1, %v4892
    %v4894 = vrot.slane %v4638, %v4893
    %v4895 = vlaneseq
    %v4896 = vshrl.u32 %v4895, 7
    %v4897 = vsub.s32 2, %v4896
    %v4898 = vrot.slane %v4638, %v4897
    %v4899 = vlaneseq
    %v4900 = vshrl.u32 %v4899, 7
    %v4901 = vsub.s32 3, %v4900
    %v4902 = vrot.slane %v4638, %v4901
    %v4903 = vlaneseq
    %v4904 = vshrl.u32 %v4903, 7
    %v4905 = vsub.s32 4, %v4904
    %v4906 = vrot.slane %v4638, %v4905
    %v4907 = vlaneseq
    %v4908 = vshrl.u32 %v4907, 7
    %v4909 = vsub.s32 5, %v4908
    %v4910 = vrot.slane %v4638, %v4909
    %v4911 = vlaneseq
    %v4912 = vshrl.u32 %v4911, 7
    %v4913 = vsub.s32 6, %v4912
    %v4914 = vrot.slane %v4638, %v4913
    %v4915 = vlaneseq
    %v4916 = vshrl.u32 %v4915, 7
    %v4917 = vsub.s32 7, %v4916
    %v4918 = vrot.slane %v4638, %v4917
    %v4919 = vlaneseq
    %v4920 = vshrl.u32 %v4919, 7
    %v4921 = vsub.s32 0, %v4920
    %v4922 = vrot.slane %v4639, %v4921
    %v4923 = vlaneseq
    %v4924 = vshrl.u32 %v4923, 7
    %v4925 = vsub.s32 1, %v4924
    %v4926 = vrot.slane %v4639, %v4925
    %v4927 = vlaneseq
    %v4928 = vshrl.u32 %v4927, 7
    %v4929 = vsub.s32 2, %v4928
    %v4930 = vrot.slane %v4639, %v4929
    %v4931 = vlaneseq
    %v4932 = vshrl.u32 %v4931, 7
    %v4933 = vsub.s32 3, %v4932
    %v4934 = vrot.slane %v4639, %v4933
    %v4935 = vlaneseq
    %v4936 = vshrl.u32 %v4935, 7
    %v4937 = vsub.s32 4, %v4936
    %v4938 = vrot.slane %v4639, %v4937
    %v4939 = vlaneseq
    %v4940 = vshrl.u32 %v4939, 7
    %v4941 = vsub.s32 5, %v4940
    %v4942 = vrot.slane %v4639, %v4941
    %v4943 = vlaneseq
    %v4944 = vshrl.u32 %v4943, 7
    %v4945 = vsub.s32 6, %v4944
    %v4946 = vrot.slane %v4639, %v4945
    %v4947 = vlaneseq
    %v4948 = vshrl.u32 %v4947, 7
    %v4949 = vsub.s32 7, %v4948
    %v4950 = vrot.slane %v4639, %v4949
    %v4951 = vlaneseq
    %v4952 = vshrl.u32 %v4951, 7
    %v4953 = vsub.s32 0, %v4952
    %v4954 = vrot.slane %v4640, %v4953
    %v4955 = vlaneseq
    %v4956 = vshrl.u32 %v4955, 7
    %v4957 = vsub.s32 1, %v4956
    %v4958 = vrot.slane %v4640, %v4957
    %v4959 = vlaneseq
    %v4960 = vshrl.u32 %v4959, 7
    %v4961 = vsub.s32 2, %v4960
    %v4962 = vrot.slane %v4640, %v4961
    %v4963 = vlaneseq
    %v4964 = vshrl.u32 %v4963, 7
    %v4965 = vsub.s32 3, %v4964
    %v4966 = vrot.slane %v4640, %v4965
    %v4967 = vlaneseq
    %v4968 = vshrl.u32 %v4967, 7
    %v4969 = vsub.s32 4, %v4968
    %v4970 = vrot.slane %v4640, %v4969
    %v4971 = vlaneseq
    %v4972 = vshrl.u32 %v4971, 7
    %v4973 = vsub.s32 5, %v4972
    %v4974 = vrot.slane %v4640, %v4973
    %v4975 = vlaneseq
    %v4976 = vshrl.u32 %v4975, 7
    %v4977 = vsub.s32 6, %v4976
    %v4978 = vrot.slane %v4640, %v4977
    %v4979 = vlaneseq
    %v4980 = vshrl.u32 %v4979, 7
    %v4981 = vsub.s32 7, %v4980
    %v4982 = vrot.slane %v4640, %v4981
    %v4983 = vlaneseq
    %v4984 = vshrl.u32 %v4983, 7
    %v4985 = vsub.s32 0, %v4984
    %v4986 = vrot.slane %v4641, %v4985
    %v4987 = vlaneseq
    %v4988 = vshrl.u32 %v4987, 7
    %v4989 = vsub.s32 1, %v4988
    %v4990 = vrot.slane %v4641, %v4989
    %v4991 = vlaneseq
    %v4992 = vshrl.u32 %v4991, 7
    %v4993 = vsub.s32 2, %v4992
    %v4994 = vrot.slane %v4641, %v4993
    %v4995 = vlaneseq
    %v4996 = vshrl.u32 %v4995, 7
    %v4997 = vsub.s32 3, %v4996
    %v4998 = vrot.slane %v4641, %v4997
    %v4999 = vlaneseq
    %v5000 = vshrl.u32 %v4999, 7
    %v5001 = vsub.s32 4, %v5000
    %v5002 = vrot.slane %v4641, %v5001
    %v5003 = vlaneseq
    %v5004 = vshrl.u32 %v5003, 7
    %v5005 = vsub.s32 5, %v5004
    %v5006 = vrot.slane %v4641, %v5005
    %v5007 = vlaneseq
    %v5008 = vshrl.u32 %v5007, 7
    %v5009 = vsub.s32 6, %v5008
    %v5010 = vrot.slane %v4641, %v5009
    %v5011 = vlaneseq
    %v5012 = vshrl.u32 %v5011, 7
    %v5013 = vsub.s32 7, %v5012
    %v5014 = vrot.slane %v4641, %v5013
    %v5015 = vlaneseq
    %v5016 = vshrl.u32 %v5015, 7
    %v5017 = vsub.s32 0, %v5016
    %v5018 = vrot.slane %v4642, %v5017
    %v5019 = vlaneseq
    %v5020 = vshrl.u32 %v5019, 7
    %v5021 = vsub.s32 1, %v5020
    %v5022 = vrot.slane %v4642, %v5021
    %v5023 = vlaneseq
    %v5024 = vshrl.u32 %v5023, 7
    %v5025 = vsub.s32 2, %v5024
    %v5026 = vrot.slane %v4642, %v5025
    %v5027 = vlaneseq
    %v5028 = vshrl.u32 %v5027, 7
    %v5029 = vsub.s32 3, %v5028
    %v5030 = vrot.slane %v4642, %v5029
    %v5031 = vlaneseq
    %v5032 = vshrl.u32 %v5031, 7
    %v5033 = vsub.s32 4, %v5032
    %v5034 = vrot.slane %v4642, %v5033
    %v5035 = vlaneseq
    %v5036 = vshrl.u32 %v5035, 7
    %v5037 = vsub.s32 5, %v5036
    %v5038 = vrot.slane %v4642, %v5037
    %v5039 = vlaneseq
    %v5040 = vshrl.u32 %v5039, 7
    %v5041 = vsub.s32 6, %v5040
    %v5042 = vrot.slane %v4642, %v5041
    %v5043 = vlaneseq
    %v5044 = vshrl.u32 %v5043, 7
    %v5045 = vsub.s32 7, %v5044
    %v5046 = vrot.slane %v4642, %v5045
    %v5047 = vlaneseq
    %v5048 = vshrl.u32 %v5047, 7
    %v5049 = vsub.s32 0, %v5048
    %v5050 = vrot.slane %v4643, %v5049
    %v5051 = vlaneseq
    %v5052 = vshrl.u32 %v5051, 7
    %v5053 = vsub.s32 1, %v5052
    %v5054 = vrot.slane %v4643, %v5053
    %v5055 = vlaneseq
    %v5056 = vshrl.u32 %v5055, 7
    %v5057 = vsub.s32 2, %v5056
    %v5058 = vrot.slane %v4643, %v5057
    %v5059 = vlaneseq
    %v5060 = vshrl.u32 %v5059, 7
    %v5061 = vsub.s32 3, %v5060
    %v5062 = vrot.slane %v4643, %v5061
    %v5063 = vlaneseq
    %v5064 = vshrl.u32 %v5063, 7
    %v5065 = vsub.s32 4, %v5064
    %v5066 = vrot.slane %v4643, %v5065
    %v5067 = vlaneseq
    %v5068 = vshrl.u32 %v5067, 7
    %v5069 = vsub.s32 5, %v5068
    %v5070 = vrot.slane %v4643, %v5069
    %v5071 = vlaneseq
    %v5072 = vshrl.u32 %v5071, 7
    %v5073 = vsub.s32 6, %v5072
    %v5074 = vrot.slane %v4643, %v5073
    %v5075 = vlaneseq
    %v5076 = vshrl.u32 %v5075, 7
    %v5077 = vsub.s32 7, %v5076
    %v5078 = vrot.slane %v4643, %v5077
    %v5079 = vlaneseq
    %v5080 = vshrl.u32 %v5079, 7
    %v5081 = vsub.s32 0, %v5080
    %v5082 = vrot.slane %v4644, %v5081
    %v5083 = vlaneseq
    %v5084 = vshrl.u32 %v5083, 7
    %v5085 = vsub.s32 1, %v5084
    %v5086 = vrot.slane %v4644, %v5085
    %v5087 = vlaneseq
    %v5088 = vshrl.u32 %v5087, 7
    %v5089 = vsub.s32 2, %v5088
    %v5090 = vrot.slane %v4644, %v5089
    %v5091 = vlaneseq
    %v5092 = vshrl.u32 %v5091, 7
    %v5093 = vsub.s32 3, %v5092
    %v5094 = vrot.slane %v4644, %v5093
    %v5095 = vlaneseq
    %v5096 = vshrl.u32 %v5095, 7
    %v5097 = vsub.s32 4, %v5096
    %v5098 = vrot.slane %v4644, %v5097
    %v5099 = vlaneseq
    %v5100 = vshrl.u32 %v5099, 7
    %v5101 = vsub.s32 5, %v5100
    %v5102 = vrot.slane %v4644, %v5101
    %v5103 = vlaneseq
    %v5104 = vshrl.u32 %v5103, 7
    %v5105 = vsub.s32 6, %v5104
    %v5106 = vrot.slane %v4644, %v5105
    %v5107 = vlaneseq
    %v5108 = vshrl.u32 %v5107, 7
    %v5109 = vsub.s32 7, %v5108
    %v5110 = vrot.slane %v4644, %v5109
    %v5111 = vlaneseq
    %v5112 = vshrl.u32 %v5111, 7
    %v5113 = vsub.s32 0, %v5112
    %v5114 = vrot.slane %v4645, %v5113
    %v5115 = vlaneseq
    %v5116 = vshrl.u32 %v5115, 7
    %v5117 = vsub.s32 1, %v5116
    %v5118 = vrot.slane %v4645, %v5117
    %v5119 = vlaneseq
    %v5120 = vshrl.u32 %v5119, 7
    %v5121 = vsub.s32 2, %v5120
    %v5122 = vrot.slane %v4645, %v5121
    %v5123 = vlaneseq
    %v5124 = vshrl.u32 %v5123, 7
    %v5125 = vsub.s32 3, %v5124
    %v5126 = vrot.slane %v4645, %v5125
    %v5127 = vlaneseq
    %v5128 = vshrl.u32 %v5127, 7
    %v5129 = vsub.s32 4, %v5128
    %v5130 = vrot.slane %v4645, %v5129
    %v5131 = vlaneseq
    %v5132 = vshrl.u32 %v5131, 7
    %v5133 = vsub.s32 5, %v5132
    %v5134 = vrot.slane %v4645, %v5133
    %v5135 = vlaneseq
    %v5136 = vshrl.u32 %v5135, 7
    %v5137 = vsub.s32 6, %v5136
    %v5138 = vrot.slane %v4645, %v5137
    %v5139 = vlaneseq
    %v5140 = vshrl.u32 %v5139, 7
    %v5141 = vsub.s32 7, %v5140
    %v5142 = vrot.slane %v4645, %v5141
    %v5143 = vlaneseq
    %v5144 = vshrl.u32 %v5143, 7
    %v5145 = vsub.s32 0, %v5144
    %v5146 = vrot.slane %v4646, %v5145
    %v5147 = vlaneseq
    %v5148 = vshrl.u32 %v5147, 7
    %v5149 = vsub.s32 1, %v5148
    %v5150 = vrot.slane %v4646, %v5149
    %v5151 = vlaneseq
    %v5152 = vshrl.u32 %v5151, 7
    %v5153 = vsub.s32 2, %v5152
    %v5154 = vrot.slane %v4646, %v5153
    %v5155 = vlaneseq
    %v5156 = vshrl.u32 %v5155, 7
    %v5157 = vsub.s32 3, %v5156
    %v5158 = vrot.slane %v4646, %v5157
    %v5159 = vlaneseq
    %v5160 = vshrl.u32 %v5159, 7
    %v5161 = vsub.s32 4, %v5160
    %v5162 = vrot.slane %v4646, %v5161
    %v5163 = vlaneseq
    %v5164 = vshrl.u32 %v5163, 7
    %v5165 = vsub.s32 5, %v5164
    %v5166 = vrot.slane %v4646, %v5165
    %v5167 = vlaneseq
    %v5168 = vshrl.u32 %v5167, 7
    %v5169 = vsub.s32 6, %v5168
    %v5170 = vrot.slane %v4646, %v5169
    %v5171 = vlaneseq
    %v5172 = vshrl.u32 %v5171, 7
    %v5173 = vsub.s32 7, %v5172
    %v5174 = vrot.slane %v4646, %v5173
    %v5303 = vmul.f32 %v2295, %v4666
    %v5304 = vmul.f32 %v2296, %v4670
    %v5305 = vmul.f32 %v2297, %v4674
    %v5306 = vmul.f32 %v2298, %v4678
    %v5307 = vmul.f32 %v2299, %v4682
    %v5308 = vmul.f32 %v2300, %v4686
    %v5309 = vmul.f32 %v2301, %v4690
    %v5310 = vmul.f32 %v2302, %v4694
    %v5311 = vmul.f32 %v2303, %v4698
    %v5312 = vmul.f32 %v2304, %v4702
    %v5313 = vmul.f32 %v2305, %v4706
    %v5314 = vmul.f32 %v2306, %v4710
    %v5315 = vmul.f32 %v2307, %v4714
    %v5316 = vmul.f32 %v2308, %v4718
    %v5317 = vmul.f32 %v2309, %v4722
    %v5318 = vmul.f32 %v2310, %v4726
    %v5319 = vmul.f32 %v2311, %v4730
    %v5320 = vmul.f32 %v2312, %v4734
    %v5321 = vmul.f32 %v2313, %v4738
    %v5322 = vmul.f32 %v2314, %v4742
    %v5323 = vmul.f32 %v2315, %v4746
    %v5324 = vmul.f32 %v2316, %v4750
    %v5325 = vmul.f32 %v2317, %v4754
    %v5326 = vmul.f32 %v2318, %v4758
    %v5327 = vmul.f32 %v2319, %v4762
    %v5328 = vmul.f32 %v2320, %v4766
    %v5329 = vmul.f32 %v2321, %v4770
    %v5330 = vmul.f32 %v2322, %v4774
    %v5331 = vmul.f32 %v2323, %v4778
    %v5332 = vmul.f32 %v2324, %v4782
    %v5333 = vmul.f32 %v2325, %v4786
    %v5334 = vmul.f32 %v2326, %v4790
    %v5335 = vmul.f32 %v2327, %v4794
    %v5336 = vmul.f32 %v2328, %v4798
    %v5337 = vmul.f32 %v2329, %v4802
    %v5338 = vmul.f32 %v2330, %v4806
    %v5339 = vmul.f32 %v2331, %v4810
    %v5340 = vmul.f32 %v2332, %v4814
    %v5341 = vmul.f32 %v2333, %v4818
    %v5342 = vmul.f32 %v2334, %v4822
    %v5343 = vmul.f32 %v2335, %v4826
    %v5344 = vmul.f32 %v2336, %v4830
    %v5345 = vmul.f32 %v2337, %v4834
    %v5346 = vmul.f32 %v2338, %v4838
    %v5347 = vmul.f32 %v2339, %v4842
    %v5348 = vmul.f32 %v2340, %v4846
    %v5349 = vmul.f32 %v2341, %v4850
    %v5350 = vmul.f32 %v2342, %v4854
    %v5351 = vmul.f32 %v2343, %v4858
    %v5352 = vmul.f32 %v2344, %v4862
    %v5353 = vmul.f32 %v2345, %v4866
    %v5354 = vmul.f32 %v2346, %v4870
    %v5355 = vmul.f32 %v2347, %v4874
    %v5356 = vmul.f32 %v2348, %v4878
    %v5357 = vmul.f32 %v2349, %v4882
    %v5358 = vmul.f32 %v2350, %v4886
    %v5359 = vmul.f32 %v2351, %v4890
    %v5360 = vmul.f32 %v2352, %v4894
    %v5361 = vmul.f32 %v2353, %v4898
    %v5362 = vmul.f32 %v2354, %v4902
    %v5363 = vmul.f32 %v2355, %v4906
    %v5364 = vmul.f32 %v2356, %v4910
    %v5365 = vmul.f32 %v2357, %v4914
    %v5366 = vmul.f32 %v2358, %v4918
    %v5367 = vmul.f32 %v2359, %v4922
    %v5368 = vmul.f32 %v2360, %v4926
    %v5369 = vmul.f32 %v2361, %v4930
    %v5370 = vmul.f32 %v2362, %v4934
    %v5371 = vmul.f32 %v2363, %v4938
    %v5372 = vmul.f32 %v2364, %v4942
    %v5373 = vmul.f32 %v2365, %v4946
    %v5374 = vmul.f32 %v2366, %v4950
    %v5375 = vmul.f32 %v2367, %v4954
    %v5376 = vmul.f32 %v2368, %v4958
    %v5377 = vmul.f32 %v2369, %v4962
    %v5378 = vmul.f32 %v2370, %v4966
    %v5379 = vmul.f32 %v2371, %v4970
    %v5380 = vmul.f32 %v2372, %v4974
    %v5381 = vmul.f32 %v2373, %v4978
    %v5382 = vmul.f32 %v2374, %v4982
    %v5383 = vmul.f32 %v2375, %v4986
    %v5384 = vmul.f32 %v2376, %v4990
    %v5385 = vmul.f32 %v2377, %v4994
    %v5386 = vmul.f32 %v2378, %v4998
    %v5387 = vmul.f32 %v2379, %v5002
    %v5388 = vmul.f32 %v2380, %v5006
    %v5389 = vmul.f32 %v2381, %v5010
    %v5390 = vmul.f32 %v2382, %v5014
    %v5391 = vmul.f32 %v2383, %v5018
    %v5392 = vmul.f32 %v2384, %v5022
    %v5393 = vmul.f32 %v2385, %v5026
    %v5394 = vmul.f32 %v2386, %v5030
    %v5395 = vmul.f32 %v2387, %v5034
    %v5396 = vmul.f32 %v2388, %v5038
    %v5397 = vmul.f32 %v2389, %v5042
    %v5398 = vmul.f32 %v2390, %v5046
    %v5399 = vmul.f32 %v2391, %v5050
    %v5400 = vmul.f32 %v2392, %v5054
    %v5401 = vmul.f32 %v2393, %v5058
    %v5402 = vmul.f32 %v2394, %v5062
    %v5403 = vmul.f32 %v2395, %v5066
    %v5404 = vmul.f32 %v2396, %v5070
    %v5405 = vmul.f32 %v2397, %v5074
    %v5406 = vmul.f32 %v2398, %v5078
    %v5407 = vmul.f32 %v2399, %v5082
    %v5408 = vmul.f32 %v2400, %v5086
    %v5409 = vmul.f32 %v2401, %v5090
    %v5410 = vmul.f32 %v2402, %v5094
    %v5411 = vmul.f32 %v2403, %v5098
    %v5412 = vmul.f32 %v2404, %v5102
    %v5413 = vmul.f32 %v2405, %v5106
    %v5414 = vmul.f32 %v2406, %v5110
    %v5415 = vmul.f32 %v2407, %v5114
    %v5416 = vmul.f32 %v2408, %v5118
    %v5417 = vmul.f32 %v2409, %v5122
    %v5418 = vmul.f32 %v2410, %v5126
    %v5419 = vmul.f32 %v2411, %v5130
    %v5420 = vmul.f32 %v2412, %v5134
    %v5421 = vmul.f32 %v2413, %v5138
    %v5422 = vmul.f32 %v2414, %v5142
    %v5423 = vmul.f32 %v2415, %v5146
    %v5424 = vmul.f32 %v2416, %v5150
    %v5425 = vmul.f32 %v2417, %v5154
    %v5426 = vmul.f32 %v2418, %v5158
    %v5427 = vmul.f32 %v2419, %v5162
    %v5428 = vmul.f32 %v2420, %v5166
    %v5429 = vmul.f32 %v2421, %v5170
    %v5430 = vmul.f32 %v2422, %v5174
    %v5435 = vlaneseq
    %v5436 = vshrl.u32 %v5435, 7
    %v5437 = vsub.s32 0, %v5436
    %v5438 = vrot.slane %v1395, %v5437
    %v5439 = vlaneseq
    %v5440 = vshrl.u32 %v5439, 7
    %v5441 = vsub.s32 1, %v5440
    %v5442 = vrot.slane %v1395, %v5441
    %v5443 = vlaneseq
    %v5444 = vshrl.u32 %v5443, 7
    %v5445 = vsub.s32 2, %v5444
    %v5446 = vrot.slane %v1395, %v5445
    %v5447 = vlaneseq
    %v5448 = vshrl.u32 %v5447, 7
    %v5449 = vsub.s32 3, %v5448
    %v5450 = vrot.slane %v1395, %v5449
    %v5451 = vlaneseq
    %v5452 = vshrl.u32 %v5451, 7
    %v5453 = vsub.s32 4, %v5452
    %v5454 = vrot.slane %v1395, %v5453
    %v5455 = vlaneseq
    %v5456 = vshrl.u32 %v5455, 7
    %v5457 = vsub.s32 5, %v5456
    %v5458 = vrot.slane %v1395, %v5457
    %v5459 = vlaneseq
    %v5460 = vshrl.u32 %v5459, 7
    %v5461 = vsub.s32 6, %v5460
    %v5462 = vrot.slane %v1395, %v5461
    %v5463 = vlaneseq
    %v5464 = vshrl.u32 %v5463, 7
    %v5465 = vsub.s32 7, %v5464
    %v5466 = vrot.slane %v1395, %v5465
    %v5467 = vlaneseq
    %v5468 = vshrl.u32 %v5467, 7
    %v5469 = vsub.s32 0, %v5468
    %v5470 = vrot.slane %v1396, %v5469
    %v5471 = vlaneseq
    %v5472 = vshrl.u32 %v5471, 7
    %v5473 = vsub.s32 1, %v5472
    %v5474 = vrot.slane %v1396, %v5473
    %v5475 = vlaneseq
    %v5476 = vshrl.u32 %v5475, 7
    %v5477 = vsub.s32 2, %v5476
    %v5478 = vrot.slane %v1396, %v5477
    %v5479 = vlaneseq
    %v5480 = vshrl.u32 %v5479, 7
    %v5481 = vsub.s32 3, %v5480
    %v5482 = vrot.slane %v1396, %v5481
    %v5483 = vlaneseq
    %v5484 = vshrl.u32 %v5483, 7
    %v5485 = vsub.s32 4, %v5484
    %v5486 = vrot.slane %v1396, %v5485
    %v5487 = vlaneseq
    %v5488 = vshrl.u32 %v5487, 7
    %v5489 = vsub.s32 5, %v5488
    %v5490 = vrot.slane %v1396, %v5489
    %v5491 = vlaneseq
    %v5492 = vshrl.u32 %v5491, 7
    %v5493 = vsub.s32 6, %v5492
    %v5494 = vrot.slane %v1396, %v5493
    %v5495 = vlaneseq
    %v5496 = vshrl.u32 %v5495, 7
    %v5497 = vsub.s32 7, %v5496
    %v5498 = vrot.slane %v1396, %v5497
    %v5499 = vlaneseq
    %v5500 = vshrl.u32 %v5499, 7
    %v5501 = vsub.s32 0, %v5500
    %v5502 = vrot.slane %v1397, %v5501
    %v5503 = vlaneseq
    %v5504 = vshrl.u32 %v5503, 7
    %v5505 = vsub.s32 1, %v5504
    %v5506 = vrot.slane %v1397, %v5505
    %v5507 = vlaneseq
    %v5508 = vshrl.u32 %v5507, 7
    %v5509 = vsub.s32 2, %v5508
    %v5510 = vrot.slane %v1397, %v5509
    %v5511 = vlaneseq
    %v5512 = vshrl.u32 %v5511, 7
    %v5513 = vsub.s32 3, %v5512
    %v5514 = vrot.slane %v1397, %v5513
    %v5515 = vlaneseq
    %v5516 = vshrl.u32 %v5515, 7
    %v5517 = vsub.s32 4, %v5516
    %v5518 = vrot.slane %v1397, %v5517
    %v5519 = vlaneseq
    %v5520 = vshrl.u32 %v5519, 7
    %v5521 = vsub.s32 5, %v5520
    %v5522 = vrot.slane %v1397, %v5521
    %v5523 = vlaneseq
    %v5524 = vshrl.u32 %v5523, 7
    %v5525 = vsub.s32 6, %v5524
    %v5526 = vrot.slane %v1397, %v5525
    %v5527 = vlaneseq
    %v5528 = vshrl.u32 %v5527, 7
    %v5529 = vsub.s32 7, %v5528
    %v5530 = vrot.slane %v1397, %v5529
    %v5531 = vlaneseq
    %v5532 = vshrl.u32 %v5531, 7
    %v5533 = vsub.s32 0, %v5532
    %v5534 = vrot.slane %v1398, %v5533
    %v5535 = vlaneseq
    %v5536 = vshrl.u32 %v5535, 7
    %v5537 = vsub.s32 1, %v5536
    %v5538 = vrot.slane %v1398, %v5537
    %v5539 = vlaneseq
    %v5540 = vshrl.u32 %v5539, 7
    %v5541 = vsub.s32 2, %v5540
    %v5542 = vrot.slane %v1398, %v5541
    %v5543 = vlaneseq
    %v5544 = vshrl.u32 %v5543, 7
    %v5545 = vsub.s32 3, %v5544
    %v5546 = vrot.slane %v1398, %v5545
    %v5547 = vlaneseq
    %v5548 = vshrl.u32 %v5547, 7
    %v5549 = vsub.s32 4, %v5548
    %v5550 = vrot.slane %v1398, %v5549
    %v5551 = vlaneseq
    %v5552 = vshrl.u32 %v5551, 7
    %v5553 = vsub.s32 5, %v5552
    %v5554 = vrot.slane %v1398, %v5553
    %v5555 = vlaneseq
    %v5556 = vshrl.u32 %v5555, 7
    %v5557 = vsub.s32 6, %v5556
    %v5558 = vrot.slane %v1398, %v5557
    %v5559 = vlaneseq
    %v5560 = vshrl.u32 %v5559, 7
    %v5561 = vsub.s32 7, %v5560
    %v5562 = vrot.slane %v1398, %v5561
    %v5595 = vadd.f32 %v5303, %v5438
    %v5596 = vadd.f32 %v5304, %v5442
    %v5597 = vadd.f32 %v5305, %v5446
    %v5598 = vadd.f32 %v5306, %v5450
    %v5599 = vadd.f32 %v5307, %v5454
    %v5600 = vadd.f32 %v5308, %v5458
    %v5601 = vadd.f32 %v5309, %v5462
    %v5602 = vadd.f32 %v5310, %v5466
    %v5603 = vadd.f32 %v5311, %v5470
    %v5604 = vadd.f32 %v5312, %v5474
    %v5605 = vadd.f32 %v5313, %v5478
    %v5606 = vadd.f32 %v5314, %v5482
    %v5607 = vadd.f32 %v5315, %v5486
    %v5608 = vadd.f32 %v5316, %v5490
    %v5609 = vadd.f32 %v5317, %v5494
    %v5610 = vadd.f32 %v5318, %v5498
    %v5611 = vadd.f32 %v5319, %v5502
    %v5612 = vadd.f32 %v5320, %v5506
    %v5613 = vadd.f32 %v5321, %v5510
    %v5614 = vadd.f32 %v5322, %v5514
    %v5615 = vadd.f32 %v5323, %v5518
    %v5616 = vadd.f32 %v5324, %v5522
    %v5617 = vadd.f32 %v5325, %v5526
    %v5618 = vadd.f32 %v5326, %v5530
    %v5619 = vadd.f32 %v5327, %v5534
    %v5620 = vadd.f32 %v5328, %v5538
    %v5621 = vadd.f32 %v5329, %v5542
    %v5622 = vadd.f32 %v5330, %v5546
    %v5623 = vadd.f32 %v5331, %v5550
    %v5624 = vadd.f32 %v5332, %v5554
    %v5625 = vadd.f32 %v5333, %v5558
    %v5626 = vadd.f32 %v5334, %v5562
    %v5627 = vadd.f32 %v5335, %v5438
    %v5628 = vadd.f32 %v5336, %v5442
    %v5629 = vadd.f32 %v5337, %v5446
    %v5630 = vadd.f32 %v5338, %v5450
    %v5631 = vadd.f32 %v5339, %v5454
    %v5632 = vadd.f32 %v5340, %v5458
    %v5633 = vadd.f32 %v5341, %v5462
    %v5634 = vadd.f32 %v5342, %v5466
    %v5635 = vadd.f32 %v5343, %v5470
    %v5636 = vadd.f32 %v5344, %v5474
    %v5637 = vadd.f32 %v5345, %v5478
    %v5638 = vadd.f32 %v5346, %v5482
    %v5639 = vadd.f32 %v5347, %v5486
    %v5640 = vadd.f32 %v5348, %v5490
    %v5641 = vadd.f32 %v5349, %v5494
    %v5642 = vadd.f32 %v5350, %v5498
    %v5643 = vadd.f32 %v5351, %v5502
    %v5644 = vadd.f32 %v5352, %v5506
    %v5645 = vadd.f32 %v5353, %v5510
    %v5646 = vadd.f32 %v5354, %v5514
    %v5647 = vadd.f32 %v5355, %v5518
    %v5648 = vadd.f32 %v5356, %v5522
    %v5649 = vadd.f32 %v5357, %v5526
    %v5650 = vadd.f32 %v5358, %v5530
    %v5651 = vadd.f32 %v5359, %v5534
    %v5652 = vadd.f32 %v5360, %v5538
    %v5653 = vadd.f32 %v5361, %v5542
    %v5654 = vadd.f32 %v5362, %v5546
    %v5655 = vadd.f32 %v5363, %v5550
    %v5656 = vadd.f32 %v5364, %v5554
    %v5657 = vadd.f32 %v5365, %v5558
    %v5658 = vadd.f32 %v5366, %v5562
    %v5659 = vadd.f32 %v5367, %v5438
    %v5660 = vadd.f32 %v5368, %v5442
    %v5661 = vadd.f32 %v5369, %v5446
    %v5662 = vadd.f32 %v5370, %v5450
    %v5663 = vadd.f32 %v5371, %v5454
    %v5664 = vadd.f32 %v5372, %v5458
    %v5665 = vadd.f32 %v5373, %v5462
    %v5666 = vadd.f32 %v5374, %v5466
    %v5667 = vadd.f32 %v5375, %v5470
    %v5668 = vadd.f32 %v5376, %v5474
    %v5669 = vadd.f32 %v5377, %v5478
    %v5670 = vadd.f32 %v5378, %v5482
    %v5671 = vadd.f32 %v5379, %v5486
    %v5672 = vadd.f32 %v5380, %v5490
    %v5673 = vadd.f32 %v5381, %v5494
    %v5674 = vadd.f32 %v5382, %v5498
    %v5675 = vadd.f32 %v5383, %v5502
    %v5676 = vadd.f32 %v5384, %v5506
    %v5677 = vadd.f32 %v5385, %v5510
    %v5678 = vadd.f32 %v5386, %v5514
    %v5679 = vadd.f32 %v5387, %v5518
    %v5680 = vadd.f32 %v5388, %v5522
    %v5681 = vadd.f32 %v5389, %v5526
    %v5682 = vadd.f32 %v5390, %v5530
    %v5683 = vadd.f32 %v5391, %v5534
    %v5684 = vadd.f32 %v5392, %v5538
    %v5685 = vadd.f32 %v5393, %v5542
    %v5686 = vadd.f32 %v5394, %v5546
    %v5687 = vadd.f32 %v5395, %v5550
    %v5688 = vadd.f32 %v5396, %v5554
    %v5689 = vadd.f32 %v5397, %v5558
    %v5690 = vadd.f32 %v5398, %v5562
    %v5691 = vadd.f32 %v5399, %v5438
    %v5692 = vadd.f32 %v5400, %v5442
    %v5693 = vadd.f32 %v5401, %v5446
    %v5694 = vadd.f32 %v5402, %v5450
    %v5695 = vadd.f32 %v5403, %v5454
    %v5696 = vadd.f32 %v5404, %v5458
    %v5697 = vadd.f32 %v5405, %v5462
    %v5698 = vadd.f32 %v5406, %v5466
    %v5699 = vadd.f32 %v5407, %v5470
    %v5700 = vadd.f32 %v5408, %v5474
    %v5701 = vadd.f32 %v5409, %v5478
    %v5702 = vadd.f32 %v5410, %v5482
    %v5703 = vadd.f32 %v5411, %v5486
    %v5704 = vadd.f32 %v5412, %v5490
    %v5705 = vadd.f32 %v5413, %v5494
    %v5706 = vadd.f32 %v5414, %v5498
    %v5707 = vadd.f32 %v5415, %v5502
    %v5708 = vadd.f32 %v5416, %v5506
    %v5709 = vadd.f32 %v5417, %v5510
    %v5710 = vadd.f32 %v5418, %v5514
    %v5711 = vadd.f32 %v5419, %v5518
    %v5712 = vadd.f32 %v5420, %v5522
    %v5713 = vadd.f32 %v5421, %v5526
    %v5714 = vadd.f32 %v5422, %v5530
    %v5715 = vadd.f32 %v5423, %v5534
    %v5716 = vadd.f32 %v5424, %v5538
    %v5717 = vadd.f32 %v5425, %v5542
    %v5718 = vadd.f32 %v5426, %v5546
    %v5719 = vadd.f32 %v5427, %v5550
    %v5720 = vadd.f32 %v5428, %v5554
    %v5721 = vadd.f32 %v5429, %v5558
    %v5722 = vadd.f32 %v5430, %v5562
    %v5723 = vmax.f32 %v5595, 0.0
    %v5724 = vmax.f32 %v5596, 0.0
    %v5725 = vmax.f32 %v5597, 0.0
    %v5726 = vmax.f32 %v5598, 0.0
    %v5727 = vmax.f32 %v5599, 0.0
    %v5728 = vmax.f32 %v5600, 0.0
    %v5729 = vmax.f32 %v5601, 0.0
    %v5730 = vmax.f32 %v5602, 0.0
    %v5731 = vmax.f32 %v5603, 0.0
    %v5732 = vmax.f32 %v5604, 0.0
    %v5733 = vmax.f32 %v5605, 0.0
    %v5734 = vmax.f32 %v5606, 0.0
    %v5735 = vmax.f32 %v5607, 0.0
    %v5736 = vmax.f32 %v5608, 0.0
    %v5737 = vmax.f32 %v5609, 0.0
    %v5738 = vmax.f32 %v5610, 0.0
    %v5739 = vmax.f32 %v5611, 0.0
    %v5740 = vmax.f32 %v5612, 0.0
    %v5741 = vmax.f32 %v5613, 0.0
    %v5742 = vmax.f32 %v5614, 0.0
    %v5743 = vmax.f32 %v5615, 0.0
    %v5744 = vmax.f32 %v5616, 0.0
    %v5745 = vmax.f32 %v5617, 0.0
    %v5746 = vmax.f32 %v5618, 0.0
    %v5747 = vmax.f32 %v5619, 0.0
    %v5748 = vmax.f32 %v5620, 0.0
    %v5749 = vmax.f32 %v5621, 0.0
    %v5750 = vmax.f32 %v5622, 0.0
    %v5751 = vmax.f32 %v5623, 0.0
    %v5752 = vmax.f32 %v5624, 0.0
    %v5753 = vmax.f32 %v5625, 0.0
    %v5754 = vmax.f32 %v5626, 0.0
    %v5755 = vmax.f32 %v5627, 0.0
    %v5756 = vmax.f32 %v5628, 0.0
    %v5757 = vmax.f32 %v5629, 0.0
    %v5758 = vmax.f32 %v5630, 0.0
    %v5759 = vmax.f32 %v5631, 0.0
    %v5760 = vmax.f32 %v5632, 0.0
    %v5761 = vmax.f32 %v5633, 0.0
    %v5762 = vmax.f32 %v5634, 0.0
    %v5763 = vmax.f32 %v5635, 0.0
    %v5764 = vmax.f32 %v5636, 0.0
    %v5765 = vmax.f32 %v5637, 0.0
    %v5766 = vmax.f32 %v5638, 0.0
    %v5767 = vmax.f32 %v5639, 0.0
    %v5768 = vmax.f32 %v5640, 0.0
    %v5769 = vmax.f32 %v5641, 0.0
    %v5770 = vmax.f32 %v5642, 0.0
    %v5771 = vmax.f32 %v5643, 0.0
    %v5772 = vmax.f32 %v5644, 0.0
    %v5773 = vmax.f32 %v5645, 0.0
    %v5774 = vmax.f32 %v5646, 0.0
    %v5775 = vmax.f32 %v5647, 0.0
    %v5776 = vmax.f32 %v5648, 0.0
    %v5777 = vmax.f32 %v5649, 0.0
    %v5778 = vmax.f32 %v5650, 0.0
    %v5779 = vmax.f32 %v5651, 0.0
    %v5780 = vmax.f32 %v5652, 0.0
    %v5781 = vmax.f32 %v5653, 0.0
    %v5782 = vmax.f32 %v5654, 0.0
    %v5783 = vmax.f32 %v5655, 0.0
    %v5784 = vmax.f32 %v5656, 0.0
    %v5785 = vmax.f32 %v5657, 0.0
    %v5786 = vmax.f32 %v5658, 0.0
    %v5787 = vmax.f32 %v5659, 0.0
    %v5788 = vmax.f32 %v5660, 0.0
    %v5789 = vmax.f32 %v5661, 0.0
    %v5790 = vmax.f32 %v5662, 0.0
    %v5791 = vmax.f32 %v5663, 0.0
    %v5792 = vmax.f32 %v5664, 0.0
    %v5793 = vmax.f32 %v5665, 0.0
    %v5794 = vmax.f32 %v5666, 0.0
    %v5795 = vmax.f32 %v5667, 0.0
    %v5796 = vmax.f32 %v5668, 0.0
    %v5797 = vmax.f32 %v5669, 0.0
    %v5798 = vmax.f32 %v5670, 0.0
    %v5799 = vmax.f32 %v5671, 0.0
    %v5800 = vmax.f32 %v5672, 0.0
    %v5801 = vmax.f32 %v5673, 0.0
    %v5802 = vmax.f32 %v5674, 0.0
    %v5803 = vmax.f32 %v5675, 0.0
    %v5804 = vmax.f32 %v5676, 0.0
    %v5805 = vmax.f32 %v5677, 0.0
    %v5806 = vmax.f32 %v5678, 0.0
    %v5807 = vmax.f32 %v5679, 0.0
    %v5808 = vmax.f32 %v5680, 0.0
    %v5809 = vmax.f32 %v5681, 0.0
    %v5810 = vmax.f32 %v5682, 0.0
    %v5811 = vmax.f32 %v5683, 0.0
    %v5812 = vmax.f32 %v5684, 0.0
    %v5813 = vmax.f32 %v5685, 0.0
    %v5814 = vmax.f32 %v5686, 0.0
    %v5815 = vmax.f32 %v5687, 0.0
    %v5816 = vmax.f32 %v5688, 0.0
    %v5817 = vmax.f32 %v5689, 0.0
    %v5818 = vmax.f32 %v5690, 0.0
    %v5819 = vmax.f32 %v5691, 0.0
    %v5820 = vmax.f32 %v5692, 0.0
    %v5821 = vmax.f32 %v5693, 0.0
    %v5822 = vmax.f32 %v5694, 0.0
    %v5823 = vmax.f32 %v5695, 0.0
    %v5824 = vmax.f32 %v5696, 0.0
    %v5825 = vmax.f32 %v5697, 0.0
    %v5826 = vmax.f32 %v5698, 0.0
    %v5827 = vmax.f32 %v5699, 0.0
    %v5828 = vmax.f32 %v5700, 0.0
    %v5829 = vmax.f32 %v5701, 0.0
    %v5830 = vmax.f32 %v5702, 0.0
    %v5831 = vmax.f32 %v5703, 0.0
    %v5832 = vmax.f32 %v5704, 0.0
    %v5833 = vmax.f32 %v5705, 0.0
    %v5834 = vmax.f32 %v5706, 0.0
    %v5835 = vmax.f32 %v5707, 0.0
    %v5836 = vmax.f32 %v5708, 0.0
    %v5837 = vmax.f32 %v5709, 0.0
    %v5838 = vmax.f32 %v5710, 0.0
    %v5839 = vmax.f32 %v5711, 0.0
    %v5840 = vmax.f32 %v5712, 0.0
    %v5841 = vmax.f32 %v5713, 0.0
    %v5842 = vmax.f32 %v5714, 0.0
    %v5843 = vmax.f32 %v5715, 0.0
    %v5844 = vmax.f32 %v5716, 0.0
    %v5845 = vmax.f32 %v5717, 0.0
    %v5846 = vmax.f32 %v5718, 0.0
    %v5847 = vmax.f32 %v5719, 0.0
    %v5848 = vmax.f32 %v5720, 0.0
    %v5849 = vmax.f32 %v5721, 0.0
    %v5850 = vmax.f32 %v5722, 0.0
    %v5851 = vpack.c.bf16 %v5755, %v5723
    %v5852 = vpack.c.bf16 %v5756, %v5724
    %v5853 = vpack.c.bf16 %v5757, %v5725
    %v5854 = vpack.c.bf16 %v5758, %v5726
    %v5855 = vpack.c.bf16 %v5759, %v5727
    %v5856 = vpack.c.bf16 %v5760, %v5728
    %v5857 = vpack.c.bf16 %v5761, %v5729
    %v5858 = vpack.c.bf16 %v5762, %v5730
    %v5859 = vpack.c.bf16 %v5763, %v5731
    %v5860 = vpack.c.bf16 %v5764, %v5732
    %v5861 = vpack.c.bf16 %v5765, %v5733
    %v5862 = vpack.c.bf16 %v5766, %v5734
    %v5863 = vpack.c.bf16 %v5767, %v5735
    %v5864 = vpack.c.bf16 %v5768, %v5736
    %v5865 = vpack.c.bf16 %v5769, %v5737
    %v5866 = vpack.c.bf16 %v5770, %v5738
    %v5867 = vpack.c.bf16 %v5771, %v5739
    %v5868 = vpack.c.bf16 %v5772, %v5740
    %v5869 = vpack.c.bf16 %v5773, %v5741
    %v5870 = vpack.c.bf16 %v5774, %v5742
    %v5871 = vpack.c.bf16 %v5775, %v5743
    %v5872 = vpack.c.bf16 %v5776, %v5744
    %v5873 = vpack.c.bf16 %v5777, %v5745
    %v5874 = vpack.c.bf16 %v5778, %v5746
    %v5875 = vpack.c.bf16 %v5779, %v5747
    %v5876 = vpack.c.bf16 %v5780, %v5748
    %v5877 = vpack.c.bf16 %v5781, %v5749
    %v5878 = vpack.c.bf16 %v5782, %v5750
    %v5879 = vpack.c.bf16 %v5783, %v5751
    %v5880 = vpack.c.bf16 %v5784, %v5752
    %v5881 = vpack.c.bf16 %v5785, %v5753
    %v5882 = vpack.c.bf16 %v5786, %v5754
    %v5883 = vpack.c.bf16 %v5819, %v5787
    %v5884 = vpack.c.bf16 %v5820, %v5788
    %v5885 = vpack.c.bf16 %v5821, %v5789
    %v5886 = vpack.c.bf16 %v5822, %v5790
    %v5887 = vpack.c.bf16 %v5823, %v5791
    %v5888 = vpack.c.bf16 %v5824, %v5792
    %v5889 = vpack.c.bf16 %v5825, %v5793
    %v5890 = vpack.c.bf16 %v5826, %v5794
    %v5891 = vpack.c.bf16 %v5827, %v5795
    %v5892 = vpack.c.bf16 %v5828, %v5796
    %v5893 = vpack.c.bf16 %v5829, %v5797
    %v5894 = vpack.c.bf16 %v5830, %v5798
    %v5895 = vpack.c.bf16 %v5831, %v5799
    %v5896 = vpack.c.bf16 %v5832, %v5800
    %v5897 = vpack.c.bf16 %v5833, %v5801
    %v5898 = vpack.c.bf16 %v5834, %v5802
    %v5899 = vpack.c.bf16 %v5835, %v5803
    %v5900 = vpack.c.bf16 %v5836, %v5804
    %v5901 = vpack.c.bf16 %v5837, %v5805
    %v5902 = vpack.c.bf16 %v5838, %v5806
    %v5903 = vpack.c.bf16 %v5839, %v5807
    %v5904 = vpack.c.bf16 %v5840, %v5808
    %v5905 = vpack.c.bf16 %v5841, %v5809
    %v5906 = vpack.c.bf16 %v5842, %v5810
    %v5907 = vpack.c.bf16 %v5843, %v5811
    %v5908 = vpack.c.bf16 %v5844, %v5812
    %v5909 = vpack.c.bf16 %v5845, %v5813
    %v5910 = vpack.c.bf16 %v5846, %v5814
    %v5911 = vpack.c.bf16 %v5847, %v5815
    %v5912 = vpack.c.bf16 %v5848, %v5816
    %v5913 = vpack.c.bf16 %v5849, %v5817
    %v5914 = vpack.c.bf16 %v5850, %v5818
    %v5915 = vld [vmem:[#allocation10] sm:$0xff]
    %v5916 = vld [vmem:[#allocation10 + $0x8] sm:$0xff]
    %v5917 = vld [vmem:[#allocation10 + $0x10] sm:$0xff]
    %v5918 = vld [vmem:[#allocation10 + $0x18] sm:$0xff]
    %v5919 = vld [vmem:[#allocation10 + $0x20] sm:$0xff]
    %v5920 = vld [vmem:[#allocation10 + $0x28] sm:$0xff]
    %v5921 = vld [vmem:[#allocation10 + $0x30] sm:$0xff]
    %v5922 = vld [vmem:[#allocation10 + $0x38] sm:$0xff]
    %v5923 = vld [vmem:[#allocation10 + $0x40] sm:$0xff]
    %v5924 = vld [vmem:[#allocation10 + $0x48] sm:$0xff]
    %v5925 = vld [vmem:[#allocation10 + $0x50] sm:$0xff]
    %v5926 = vld [vmem:[#allocation10 + $0x58] sm:$0xff]
    %v5927 = vld [vmem:[#allocation10 + $0x60] sm:$0xff]
    %v5928 = vld [vmem:[#allocation10 + $0x68] sm:$0xff]
    %v5929 = vld [vmem:[#allocation10 + $0x70] sm:$0xff]
    %v5930 = vld [vmem:[#allocation10 + $0x78] sm:$0xff]
    %v5931 = vld [vmem:[#allocation10 + $0x80] sm:$0xff]
    %v5932 = vld [vmem:[#allocation10 + $0x88] sm:$0xff]
    %v5933 = vld [vmem:[#allocation10 + $0x90] sm:$0xff]
    %v5934 = vld [vmem:[#allocation10 + $0x98] sm:$0xff]
    %v5935 = vld [vmem:[#allocation10 + $0xa0] sm:$0xff]
    %v5936 = vld [vmem:[#allocation10 + $0xa8] sm:$0xff]
    %v5937 = vld [vmem:[#allocation10 + $0xb0] sm:$0xff]
    %v5938 = vld [vmem:[#allocation10 + $0xb8] sm:$0xff]
    %v5939 = vld [vmem:[#allocation10 + $0xc0] sm:$0xff]
    %v5940 = vld [vmem:[#allocation10 + $0xc8] sm:$0xff]
    %v5941 = vld [vmem:[#allocation10 + $0xd0] sm:$0xff]
    %v5942 = vld [vmem:[#allocation10 + $0xd8] sm:$0xff]
    %v5943 = vld [vmem:[#allocation10 + $0xe0] sm:$0xff]
    %v5944 = vld [vmem:[#allocation10 + $0xe8] sm:$0xff]
    %v5945 = vld [vmem:[#allocation10 + $0xf0] sm:$0xff]
    %v5946 = vld [vmem:[#allocation10 + $0xf8] sm:$0xff]
    %v5979 = vunpack.c.l.b16 %v5915
    %v5980 = vunpack.c.h.b16 %v5915
    %v5981 = vunpack.c.l.b16 %v5916
    %v5982 = vunpack.c.h.b16 %v5916
    %v5983 = vunpack.c.l.b16 %v5917
    %v5984 = vunpack.c.h.b16 %v5917
    %v5985 = vunpack.c.l.b16 %v5918
    %v5986 = vunpack.c.h.b16 %v5918
    %v5987 = vunpack.c.l.b16 %v5919
    %v5988 = vunpack.c.h.b16 %v5919
    %v5989 = vunpack.c.l.b16 %v5920
    %v5990 = vunpack.c.h.b16 %v5920
    %v5991 = vunpack.c.l.b16 %v5921
    %v5992 = vunpack.c.h.b16 %v5921
    %v5993 = vunpack.c.l.b16 %v5922
    %v5994 = vunpack.c.h.b16 %v5922
    %v5995 = vunpack.c.l.b16 %v5923
    %v5996 = vunpack.c.h.b16 %v5923
    %v5997 = vunpack.c.l.b16 %v5924
    %v5998 = vunpack.c.h.b16 %v5924
    %v5999 = vunpack.c.l.b16 %v5925
    %v6000 = vunpack.c.h.b16 %v5925
    %v6001 = vunpack.c.l.b16 %v5926
    %v6002 = vunpack.c.h.b16 %v5926
    %v6003 = vunpack.c.l.b16 %v5927
    %v6004 = vunpack.c.h.b16 %v5927
    %v6005 = vunpack.c.l.b16 %v5928
    %v6006 = vunpack.c.h.b16 %v5928
    %v6007 = vunpack.c.l.b16 %v5929
    %v6008 = vunpack.c.h.b16 %v5929
    %v6009 = vunpack.c.l.b16 %v5930
    %v6010 = vunpack.c.h.b16 %v5930
    %v6011 = vunpack.c.l.b16 %v5931
    %v6012 = vunpack.c.h.b16 %v5931
    %v6013 = vunpack.c.l.b16 %v5932
    %v6014 = vunpack.c.h.b16 %v5932
    %v6015 = vunpack.c.l.b16 %v5933
    %v6016 = vunpack.c.h.b16 %v5933
    %v6017 = vunpack.c.l.b16 %v5934
    %v6018 = vunpack.c.h.b16 %v5934
    %v6019 = vunpack.c.l.b16 %v5935
    %v6020 = vunpack.c.h.b16 %v5935
    %v6021 = vunpack.c.l.b16 %v5936
    %v6022 = vunpack.c.h.b16 %v5936
    %v6023 = vunpack.c.l.b16 %v5937
    %v6024 = vunpack.c.h.b16 %v5937
    %v6025 = vunpack.c.l.b16 %v5938
    %v6026 = vunpack.c.h.b16 %v5938
    %v6027 = vunpack.c.l.b16 %v5939
    %v6028 = vunpack.c.h.b16 %v5939
    %v6029 = vunpack.c.l.b16 %v5940
    %v6030 = vunpack.c.h.b16 %v5940
    %v6031 = vunpack.c.l.b16 %v5941
    %v6032 = vunpack.c.h.b16 %v5941
    %v6033 = vunpack.c.l.b16 %v5942
    %v6034 = vunpack.c.h.b16 %v5942
    %v6035 = vunpack.c.l.b16 %v5943
    %v6036 = vunpack.c.h.b16 %v5943
    %v6037 = vunpack.c.l.b16 %v5944
    %v6038 = vunpack.c.h.b16 %v5944
    %v6039 = vunpack.c.l.b16 %v5945
    %v6040 = vunpack.c.h.b16 %v5945
    %v6041 = vunpack.c.l.b16 %v5946
    %v6042 = vunpack.c.h.b16 %v5946
    %v6043 = vpack.c.b16 %v6011, %v5979
    %v6044 = vpack.c.b16 %v6012, %v5980
    %v6045 = vpack.c.b16 %v6013, %v5981
    %v6046 = vpack.c.b16 %v6014, %v5982
    %v6047 = vpack.c.b16 %v6015, %v5983
    %v6048 = vpack.c.b16 %v6016, %v5984
    %v6049 = vpack.c.b16 %v6017, %v5985
    %v6050 = vpack.c.b16 %v6018, %v5986
    %v6051 = vpack.c.b16 %v6019, %v5987
    %v6052 = vpack.c.b16 %v6020, %v5988
    %v6053 = vpack.c.b16 %v6021, %v5989
    %v6054 = vpack.c.b16 %v6022, %v5990
    %v6055 = vpack.c.b16 %v6023, %v5991
    %v6056 = vpack.c.b16 %v6024, %v5992
    %v6057 = vpack.c.b16 %v6025, %v5993
    %v6058 = vpack.c.b16 %v6026, %v5994
    %v6059 = vpack.c.b16 %v6027, %v5995
    %v6060 = vpack.c.b16 %v6028, %v5996
    %v6061 = vpack.c.b16 %v6029, %v5997
    %v6062 = vpack.c.b16 %v6030, %v5998
    %v6063 = vpack.c.b16 %v6031, %v5999
    %v6064 = vpack.c.b16 %v6032, %v6000
    %v6065 = vpack.c.b16 %v6033, %v6001
    %v6066 = vpack.c.b16 %v6034, %v6002
    %v6067 = vpack.c.b16 %v6035, %v6003
    %v6068 = vpack.c.b16 %v6036, %v6004
    %v6069 = vpack.c.b16 %v6037, %v6005
    %v6070 = vpack.c.b16 %v6038, %v6006
    %v6071 = vpack.c.b16 %v6039, %v6007
    %v6072 = vpack.c.b16 %v6040, %v6008
    %v6073 = vpack.c.b16 %v6041, %v6009
    %v6074 = vpack.c.b16 %v6042, %v6010
    %6107 = vmatprep.subr.bf16.mxu0 %v6044
    %6108 = vmatpush1.bf16.xpose.msra.mxu0 %v6043
    %6109 = vmatprep.subr.bf16.mxu0 0
    %6110 = vmatpush1.bf16.xpose.msra.mxu0 0
    %6111 = vmatprep.subr.bf16.mxu0 0
    %6112 = vmatpush1.bf16.xpose.msra.mxu0 0
    %6113 = vmatprep.subr.bf16.mxu0 0
    %6114 = vmatpush1.bf16.xpose.msra.mxu0 0
    %6115 = vmatprep.subr.bf16.mxu0 0
    %6116 = vmatpush1.bf16.xpose.msra.mxu0 0
    %6117 = vmatprep.subr.bf16.mxu0 0
    %6118 = vmatpush1.bf16.xpose.msra.mxu0 0
    %6119 = vmatprep.subr.bf16.mxu0 0
    %6120 = vmatpush1.bf16.xpose.msra.mxu0 0
    %6121 = vmatprep.subr.bf16.mxu0 0
    %6122 = vmatpush1.bf16.xpose.msra.mxu0 0
    %6123 = vmatprep.subr.bf16.mxu0 0
    %6124 = vmatpush1.bf16.xpose.msra.mxu0 0
    %6125 = vmatprep.subr.bf16.mxu0 0
    %6126 = vmatpush1.bf16.xpose.msra.mxu0 0
    %6127 = vmatprep.subr.bf16.mxu0 0
    %6128 = vmatpush1.bf16.xpose.msra.mxu0 0
    %6129 = vmatprep.subr.bf16.mxu0 0
    %6130 = vmatpush1.bf16.xpose.msra.mxu0 0
    %6131 = vmatprep.subr.bf16.mxu0 0
    %6132 = vmatpush1.bf16.xpose.msra.mxu0 0
    %6133 = vmatprep.subr.bf16.mxu0 0
    %6134 = vmatpush1.bf16.xpose.msra.mxu0 0
    %6135 = vmatprep.subr.bf16.mxu0 0
    %6136 = vmatpush1.bf16.xpose.msra.mxu0 0
    %6137 = vmatprep.subr.bf16.mxu0 0
    %6138 = vmatpush1.bf16.xpose.msra.mxu0 0
    %6139 = vmatprep.mubr.bf16.mxu0 %v5852
    %6140 = vmatmul.mubr.bf16.gmra.mrb[0].mxu0 %v5851
    %v6141 = vpop.f32.mrb[0].mxu0
    %v6142 = vadd.f32 0.0, %v6141
    %v6143 = vpop.f32.mrb[0].mxu0
    %v6144 = vpop.f32.mrb[0].mxu0
    %v6145 = vadd.f32 0.0, %v6144
    %v6146 = vpop.f32.mrb[0].mxu0
    %6147 = vmatprep.mubr.bf16.mxu0 %v5884
    %6148 = vmatmul.mubr.bf16.gmra.mrb[0].mxu0 %v5883
    %v6149 = vpop.f32.mrb[0].mxu0
    %v6150 = vadd.f32 0.0, %v6149
    %v6151 = vpop.f32.mrb[0].mxu0
    %v6152 = vpop.f32.mrb[0].mxu0
    %v6153 = vadd.f32 0.0, %v6152
    %v6154 = vpop.f32.mrb[0].mxu0
    %6155 = vdwg.mxu0
    %6156 = vmatprep.subr.bf16.mxu0 %v6046
    %6157 = vmatpush1.bf16.xpose.msra.mxu0 %v6045
    %6158 = vmatprep.subr.bf16.mxu0 0
    %6159 = vmatpush1.bf16.xpose.msra.mxu0 0
    %6160 = vmatprep.subr.bf16.mxu0 0
    %6161 = vmatpush1.bf16.xpose.msra.mxu0 0
    %6162 = vmatprep.subr.bf16.mxu0 0
    %6163 = vmatpush1.bf16.xpose.msra.mxu0 0
    %6164 = vmatprep.subr.bf16.mxu0 0
    %6165 = vmatpush1.bf16.xpose.msra.mxu0 0
    %6166 = vmatprep.subr.bf16.mxu0 0
    %6167 = vmatpush1.bf16.xpose.msra.mxu0 0
    %6168 = vmatprep.subr.bf16.mxu0 0
    %6169 = vmatpush1.bf16.xpose.msra.mxu0 0
    %6170 = vmatprep.subr.bf16.mxu0 0
    %6171 = vmatpush1.bf16.xpose.msra.mxu0 0
    %6172 = vmatprep.subr.bf16.mxu0 0
    %6173 = vmatpush1.bf16.xpose.msra.mxu0 0
    %6174 = vmatprep.subr.bf16.mxu0 0
    %6175 = vmatpush1.bf16.xpose.msra.mxu0 0
    %6176 = vmatprep.subr.bf16.mxu0 0
    %6177 = vmatpush1.bf16.xpose.msra.mxu0 0
    %6178 = vmatprep.subr.bf16.mxu0 0
    %6179 = vmatpush1.bf16.xpose.msra.mxu0 0
    %6180 = vmatprep.subr.bf16.mxu0 0
    %6181 = vmatpush1.bf16.xpose.msra.mxu0 0
    %6182 = vmatprep.subr.bf16.mxu0 0
    %6183 = vmatpush1.bf16.xpose.msra.mxu0 0
    %6184 = vmatprep.subr.bf16.mxu0 0
    %6185 = vmatpush1.bf16.xpose.msra.mxu0 0
    %6186 = vmatprep.subr.bf16.mxu0 0
    %6187 = vmatpush1.bf16.xpose.msra.mxu0 0
    %6188 = vmatprep.mubr.bf16.mxu0 %v5854
    %6189 = vmatmul.mubr.bf16.gmra.mrb[0].mxu0 %v5853
    %v6190 = vpop.f32.mrb[0].mxu0
    %v6191 = vadd.f32 %v6142, %v6190
    %v6192 = vpop.f32.mrb[0].mxu0
    %v6193 = vpop.f32.mrb[0].mxu0
    %v6194 = vadd.f32 %v6145, %v6193
    %v6195 = vpop.f32.mrb[0].mxu0
    %6196 = vmatprep.mubr.bf16.mxu0 %v5886
    %6197 = vmatmul.mubr.bf16.gmra.mrb[0].mxu0 %v5885
    %v6198 = vpop.f32.mrb[0].mxu0
    %v6199 = vadd.f32 %v6150, %v6198
    %v6200 = vpop.f32.mrb[0].mxu0
    %v6201 = vpop.f32.mrb[0].mxu0
    %v6202 = vadd.f32 %v6153, %v6201
    %v6203 = vpop.f32.mrb[0].mxu0
    %6204 = vdwg.mxu0
    %6205 = vmatprep.subr.bf16.mxu0 %v6048
    %6206 = vmatpush1.bf16.xpose.msra.mxu0 %v6047
    %6207 = vmatprep.subr.bf16.mxu0 0
    %6208 = vmatpush1.bf16.xpose.msra.mxu0 0
    %6209 = vmatprep.subr.bf16.mxu0 0
    %6210 = vmatpush1.bf16.xpose.msra.mxu0 0
    %6211 = vmatprep.subr.bf16.mxu0 0
    %6212 = vmatpush1.bf16.xpose.msra.mxu0 0
    %6213 = vmatprep.subr.bf16.mxu0 0
    %6214 = vmatpush1.bf16.xpose.msra.mxu0 0
    %6215 = vmatprep.subr.bf16.mxu0 0
    %6216 = vmatpush1.bf16.xpose.msra.mxu0 0
    %6217 = vmatprep.subr.bf16.mxu0 0
    %6218 = vmatpush1.bf16.xpose.msra.mxu0 0
    %6219 = vmatprep.subr.bf16.mxu0 0
    %6220 = vmatpush1.bf16.xpose.msra.mxu0 0
    %6221 = vmatprep.subr.bf16.mxu0 0
    %6222 = vmatpush1.bf16.xpose.msra.mxu0 0
    %6223 = vmatprep.subr.bf16.mxu0 0
    %6224 = vmatpush1.bf16.xpose.msra.mxu0 0
    %6225 = vmatprep.subr.bf16.mxu0 0
    %6226 = vmatpush1.bf16.xpose.msra.mxu0 0
    %6227 = vmatprep.subr.bf16.mxu0 0
    %6228 = vmatpush1.bf16.xpose.msra.mxu0 0
    %6229 = vmatprep.subr.bf16.mxu0 0
    %6230 = vmatpush1.bf16.xpose.msra.mxu0 0
    %6231 = vmatprep.subr.bf16.mxu0 0
    %6232 = vmatpush1.bf16.xpose.msra.mxu0 0
    %6233 = vmatprep.subr.bf16.mxu0 0
    %6234 = vmatpush1.bf16.xpose.msra.mxu0 0
    %6235 = vmatprep.subr.bf16.mxu0 0
    %6236 = vmatpush1.bf16.xpose.msra.mxu0 0
    %6237 = vmatprep.mubr.bf16.mxu0 %v5856
    %6238 = vmatmul.mubr.bf16.gmra.mrb[0].mxu0 %v5855
    %v6239 = vpop.f32.mrb[0].mxu0
    %v6240 = vadd.f32 %v6191, %v6239
    %v6241 = vpop.f32.mrb[0].mxu0
    %v6242 = vpop.f32.mrb[0].mxu0
    %v6243 = vadd.f32 %v6194, %v6242
    %v6244 = vpop.f32.mrb[0].mxu0
    %6245 = vmatprep.mubr.bf16.mxu0 %v5888
    %6246 = vmatmul.mubr.bf16.gmra.mrb[0].mxu0 %v5887
    %v6247 = vpop.f32.mrb[0].mxu0
    %v6248 = vadd.f32 %v6199, %v6247
    %v6249 = vpop.f32.mrb[0].mxu0
    %v6250 = vpop.f32.mrb[0].mxu0
    %v6251 = vadd.f32 %v6202, %v6250
    %v6252 = vpop.f32.mrb[0].mxu0
    %6253 = vdwg.mxu0
    %6254 = vmatprep.subr.bf16.mxu0 %v6050
    %6255 = vmatpush1.bf16.xpose.msra.mxu0 %v6049
    %6256 = vmatprep.subr.bf16.mxu0 0
    %6257 = vmatpush1.bf16.xpose.msra.mxu0 0
    %6258 = vmatprep.subr.bf16.mxu0 0
    %6259 = vmatpush1.bf16.xpose.msra.mxu0 0
    %6260 = vmatprep.subr.bf16.mxu0 0
    %6261 = vmatpush1.bf16.xpose.msra.mxu0 0
    %6262 = vmatprep.subr.bf16.mxu0 0
    %6263 = vmatpush1.bf16.xpose.msra.mxu0 0
    %6264 = vmatprep.subr.bf16.mxu0 0
    %6265 = vmatpush1.bf16.xpose.msra.mxu0 0
    %6266 = vmatprep.subr.bf16.mxu0 0
    %6267 = vmatpush1.bf16.xpose.msra.mxu0 0
    %6268 = vmatprep.subr.bf16.mxu0 0
    %6269 = vmatpush1.bf16.xpose.msra.mxu0 0
    %6270 = vmatprep.subr.bf16.mxu0 0
    %6271 = vmatpush1.bf16.xpose.msra.mxu0 0
    %6272 = vmatprep.subr.bf16.mxu0 0
    %6273 = vmatpush1.bf16.xpose.msra.mxu0 0
    %6274 = vmatprep.subr.bf16.mxu0 0
    %6275 = vmatpush1.bf16.xpose.msra.mxu0 0
    %6276 = vmatprep.subr.bf16.mxu0 0
    %6277 = vmatpush1.bf16.xpose.msra.mxu0 0
    %6278 = vmatprep.subr.bf16.mxu0 0
    %6279 = vmatpush1.bf16.xpose.msra.mxu0 0
    %6280 = vmatprep.subr.bf16.mxu0 0
    %6281 = vmatpush1.bf16.xpose.msra.mxu0 0
    %6282 = vmatprep.subr.bf16.mxu0 0
    %6283 = vmatpush1.bf16.xpose.msra.mxu0 0
    %6284 = vmatprep.subr.bf16.mxu0 0
    %6285 = vmatpush1.bf16.xpose.msra.mxu0 0
    %6286 = vmatprep.mubr.bf16.mxu0 %v5858
    %6287 = vmatmul.mubr.bf16.gmra.mrb[0].mxu0 %v5857
    %v6288 = vpop.f32.mrb[0].mxu0
    %v6289 = vadd.f32 %v6240, %v6288
    %v6290 = vpop.f32.mrb[0].mxu0
    %v6291 = vpop.f32.mrb[0].mxu0
    %v6292 = vadd.f32 %v6243, %v6291
    %v6293 = vpop.f32.mrb[0].mxu0
    %6294 = vmatprep.mubr.bf16.mxu0 %v5890
    %6295 = vmatmul.mubr.bf16.gmra.mrb[0].mxu0 %v5889
    %v6296 = vpop.f32.mrb[0].mxu0
    %v6297 = vadd.f32 %v6248, %v6296
    %v6298 = vpop.f32.mrb[0].mxu0
    %v6299 = vpop.f32.mrb[0].mxu0
    %v6300 = vadd.f32 %v6251, %v6299
    %v6301 = vpop.f32.mrb[0].mxu0
    %6302 = vdwg.mxu0
    %6303 = vmatprep.subr.bf16.mxu0 %v6052
    %6304 = vmatpush1.bf16.xpose.msra.mxu0 %v6051
    %6305 = vmatprep.subr.bf16.mxu0 0
    %6306 = vmatpush1.bf16.xpose.msra.mxu0 0
    %6307 = vmatprep.subr.bf16.mxu0 0
    %6308 = vmatpush1.bf16.xpose.msra.mxu0 0
    %6309 = vmatprep.subr.bf16.mxu0 0
    %6310 = vmatpush1.bf16.xpose.msra.mxu0 0
    %6311 = vmatprep.subr.bf16.mxu0 0
    %6312 = vmatpush1.bf16.xpose.msra.mxu0 0
    %6313 = vmatprep.subr.bf16.mxu0 0
    %6314 = vmatpush1.bf16.xpose.msra.mxu0 0
    %6315 = vmatprep.subr.bf16.mxu0 0
    %6316 = vmatpush1.bf16.xpose.msra.mxu0 0
    %6317 = vmatprep.subr.bf16.mxu0 0
    %6318 = vmatpush1.bf16.xpose.msra.mxu0 0
    %6319 = vmatprep.subr.bf16.mxu0 0
    %6320 = vmatpush1.bf16.xpose.msra.mxu0 0
    %6321 = vmatprep.subr.bf16.mxu0 0
    %6322 = vmatpush1.bf16.xpose.msra.mxu0 0
    %6323 = vmatprep.subr.bf16.mxu0 0
    %6324 = vmatpush1.bf16.xpose.msra.mxu0 0
    %6325 = vmatprep.subr.bf16.mxu0 0
    %6326 = vmatpush1.bf16.xpose.msra.mxu0 0
    %6327 = vmatprep.subr.bf16.mxu0 0
    %6328 = vmatpush1.bf16.xpose.msra.mxu0 0
    %6329 = vmatprep.subr.bf16.mxu0 0
    %6330 = vmatpush1.bf16.xpose.msra.mxu0 0
    %6331 = vmatprep.subr.bf16.mxu0 0
    %6332 = vmatpush1.bf16.xpose.msra.mxu0 0
    %6333 = vmatprep.subr.bf16.mxu0 0
    %6334 = vmatpush1.bf16.xpose.msra.mxu0 0
    %6335 = vmatprep.mubr.bf16.mxu0 %v5860
    %6336 = vmatmul.mubr.bf16.gmra.mrb[0].mxu0 %v5859
    %v6337 = vpop.f32.mrb[0].mxu0
    %v6338 = vadd.f32 %v6289, %v6337
    %v6339 = vpop.f32.mrb[0].mxu0
    %v6340 = vpop.f32.mrb[0].mxu0
    %v6341 = vadd.f32 %v6292, %v6340
    %v6342 = vpop.f32.mrb[0].mxu0
    %6343 = vmatprep.mubr.bf16.mxu0 %v5892
    %6344 = vmatmul.mubr.bf16.gmra.mrb[0].mxu0 %v5891
    %v6345 = vpop.f32.mrb[0].mxu0
    %v6346 = vadd.f32 %v6297, %v6345
    %v6347 = vpop.f32.mrb[0].mxu0
    %v6348 = vpop.f32.mrb[0].mxu0
    %v6349 = vadd.f32 %v6300, %v6348
    %v6350 = vpop.f32.mrb[0].mxu0
    %6351 = vdwg.mxu0
    %6352 = vmatprep.subr.bf16.mxu0 %v6054
    %6353 = vmatpush1.bf16.xpose.msra.mxu0 %v6053
    %6354 = vmatprep.subr.bf16.mxu0 0
    %6355 = vmatpush1.bf16.xpose.msra.mxu0 0
    %6356 = vmatprep.subr.bf16.mxu0 0
    %6357 = vmatpush1.bf16.xpose.msra.mxu0 0
    %6358 = vmatprep.subr.bf16.mxu0 0
    %6359 = vmatpush1.bf16.xpose.msra.mxu0 0
    %6360 = vmatprep.subr.bf16.mxu0 0
    %6361 = vmatpush1.bf16.xpose.msra.mxu0 0
    %6362 = vmatprep.subr.bf16.mxu0 0
    %6363 = vmatpush1.bf16.xpose.msra.mxu0 0
    %6364 = vmatprep.subr.bf16.mxu0 0
    %6365 = vmatpush1.bf16.xpose.msra.mxu0 0
    %6366 = vmatprep.subr.bf16.mxu0 0
    %6367 = vmatpush1.bf16.xpose.msra.mxu0 0
    %6368 = vmatprep.subr.bf16.mxu0 0
    %6369 = vmatpush1.bf16.xpose.msra.mxu0 0
    %6370 = vmatprep.subr.bf16.mxu0 0
    %6371 = vmatpush1.bf16.xpose.msra.mxu0 0
    %6372 = vmatprep.subr.bf16.mxu0 0
    %6373 = vmatpush1.bf16.xpose.msra.mxu0 0
    %6374 = vmatprep.subr.bf16.mxu0 0
    %6375 = vmatpush1.bf16.xpose.msra.mxu0 0
    %6376 = vmatprep.subr.bf16.mxu0 0
    %6377 = vmatpush1.bf16.xpose.msra.mxu0 0
    %6378 = vmatprep.subr.bf16.mxu0 0
    %6379 = vmatpush1.bf16.xpose.msra.mxu0 0
    %6380 = vmatprep.subr.bf16.mxu0 0
    %6381 = vmatpush1.bf16.xpose.msra.mxu0 0
    %6382 = vmatprep.subr.bf16.mxu0 0
    %6383 = vmatpush1.bf16.xpose.msra.mxu0 0
    %6384 = vmatprep.mubr.bf16.mxu0 %v5862
    %6385 = vmatmul.mubr.bf16.gmra.mrb[0].mxu0 %v5861
    %v6386 = vpop.f32.mrb[0].mxu0
    %v6387 = vadd.f32 %v6338, %v6386
    %v6388 = vpop.f32.mrb[0].mxu0
    %v6389 = vpop.f32.mrb[0].mxu0
    %v6390 = vadd.f32 %v6341, %v6389
    %v6391 = vpop.f32.mrb[0].mxu0
    %6392 = vmatprep.mubr.bf16.mxu0 %v5894
    %6393 = vmatmul.mubr.bf16.gmra.mrb[0].mxu0 %v5893
    %v6394 = vpop.f32.mrb[0].mxu0
    %v6395 = vadd.f32 %v6346, %v6394
    %v6396 = vpop.f32.mrb[0].mxu0
    %v6397 = vpop.f32.mrb[0].mxu0
    %v6398 = vadd.f32 %v6349, %v6397
    %v6399 = vpop.f32.mrb[0].mxu0
    %6400 = vdwg.mxu0
    %6401 = vmatprep.subr.bf16.mxu0 %v6056
    %6402 = vmatpush1.bf16.xpose.msra.mxu0 %v6055
    %6403 = vmatprep.subr.bf16.mxu0 0
    %6404 = vmatpush1.bf16.xpose.msra.mxu0 0
    %6405 = vmatprep.subr.bf16.mxu0 0
    %6406 = vmatpush1.bf16.xpose.msra.mxu0 0
    %6407 = vmatprep.subr.bf16.mxu0 0
    %6408 = vmatpush1.bf16.xpose.msra.mxu0 0
    %6409 = vmatprep.subr.bf16.mxu0 0
    %6410 = vmatpush1.bf16.xpose.msra.mxu0 0
    %6411 = vmatprep.subr.bf16.mxu0 0
    %6412 = vmatpush1.bf16.xpose.msra.mxu0 0
    %6413 = vmatprep.subr.bf16.mxu0 0
    %6414 = vmatpush1.bf16.xpose.msra.mxu0 0
    %6415 = vmatprep.subr.bf16.mxu0 0
    %6416 = vmatpush1.bf16.xpose.msra.mxu0 0
    %6417 = vmatprep.subr.bf16.mxu0 0
    %6418 = vmatpush1.bf16.xpose.msra.mxu0 0
    %6419 = vmatprep.subr.bf16.mxu0 0
    %6420 = vmatpush1.bf16.xpose.msra.mxu0 0
    %6421 = vmatprep.subr.bf16.mxu0 0
    %6422 = vmatpush1.bf16.xpose.msra.mxu0 0
    %6423 = vmatprep.subr.bf16.mxu0 0
    %6424 = vmatpush1.bf16.xpose.msra.mxu0 0
    %6425 = vmatprep.subr.bf16.mxu0 0
    %6426 = vmatpush1.bf16.xpose.msra.mxu0 0
    %6427 = vmatprep.subr.bf16.mxu0 0
    %6428 = vmatpush1.bf16.xpose.msra.mxu0 0
    %6429 = vmatprep.subr.bf16.mxu0 0
    %6430 = vmatpush1.bf16.xpose.msra.mxu0 0
    %6431 = vmatprep.subr.bf16.mxu0 0
    %6432 = vmatpush1.bf16.xpose.msra.mxu0 0
    %6433 = vmatprep.mubr.bf16.mxu0 %v5864
    %6434 = vmatmul.mubr.bf16.gmra.mrb[0].mxu0 %v5863
    %v6435 = vpop.f32.mrb[0].mxu0
    %v6436 = vadd.f32 %v6387, %v6435
    %v6437 = vpop.f32.mrb[0].mxu0
    %v6438 = vpop.f32.mrb[0].mxu0
    %v6439 = vadd.f32 %v6390, %v6438
    %v6440 = vpop.f32.mrb[0].mxu0
    %6441 = vmatprep.mubr.bf16.mxu0 %v5896
    %6442 = vmatmul.mubr.bf16.gmra.mrb[0].mxu0 %v5895
    %v6443 = vpop.f32.mrb[0].mxu0
    %v6444 = vadd.f32 %v6395, %v6443
    %v6445 = vpop.f32.mrb[0].mxu0
    %v6446 = vpop.f32.mrb[0].mxu0
    %v6447 = vadd.f32 %v6398, %v6446
    %v6448 = vpop.f32.mrb[0].mxu0
    %6449 = vdwg.mxu0
    %6450 = vmatprep.subr.bf16.mxu0 %v6058
    %6451 = vmatpush1.bf16.xpose.msra.mxu0 %v6057
    %6452 = vmatprep.subr.bf16.mxu0 0
    %6453 = vmatpush1.bf16.xpose.msra.mxu0 0
    %6454 = vmatprep.subr.bf16.mxu0 0
    %6455 = vmatpush1.bf16.xpose.msra.mxu0 0
    %6456 = vmatprep.subr.bf16.mxu0 0
    %6457 = vmatpush1.bf16.xpose.msra.mxu0 0
    %6458 = vmatprep.subr.bf16.mxu0 0
    %6459 = vmatpush1.bf16.xpose.msra.mxu0 0
    %6460 = vmatprep.subr.bf16.mxu0 0
    %6461 = vmatpush1.bf16.xpose.msra.mxu0 0
    %6462 = vmatprep.subr.bf16.mxu0 0
    %6463 = vmatpush1.bf16.xpose.msra.mxu0 0
    %6464 = vmatprep.subr.bf16.mxu0 0
    %6465 = vmatpush1.bf16.xpose.msra.mxu0 0
    %6466 = vmatprep.subr.bf16.mxu0 0
    %6467 = vmatpush1.bf16.xpose.msra.mxu0 0
    %6468 = vmatprep.subr.bf16.mxu0 0
    %6469 = vmatpush1.bf16.xpose.msra.mxu0 0
    %6470 = vmatprep.subr.bf16.mxu0 0
    %6471 = vmatpush1.bf16.xpose.msra.mxu0 0
    %6472 = vmatprep.subr.bf16.mxu0 0
    %6473 = vmatpush1.bf16.xpose.msra.mxu0 0
    %6474 = vmatprep.subr.bf16.mxu0 0
    %6475 = vmatpush1.bf16.xpose.msra.mxu0 0
    %6476 = vmatprep.subr.bf16.mxu0 0
    %6477 = vmatpush1.bf16.xpose.msra.mxu0 0
    %6478 = vmatprep.subr.bf16.mxu0 0
    %6479 = vmatpush1.bf16.xpose.msra.mxu0 0
    %6480 = vmatprep.subr.bf16.mxu0 0
    %6481 = vmatpush1.bf16.xpose.msra.mxu0 0
    %6482 = vmatprep.mubr.bf16.mxu0 %v5866
    %6483 = vmatmul.mubr.bf16.gmra.mrb[0].mxu0 %v5865
    %v6484 = vpop.f32.mrb[0].mxu0
    %v6485 = vadd.f32 %v6436, %v6484
    %v6486 = vpop.f32.mrb[0].mxu0
    %v6487 = vpop.f32.mrb[0].mxu0
    %v6488 = vadd.f32 %v6439, %v6487
    %v6489 = vpop.f32.mrb[0].mxu0
    %6490 = vmatprep.mubr.bf16.mxu0 %v5898
    %6491 = vmatmul.mubr.bf16.gmra.mrb[0].mxu0 %v5897
    %v6492 = vpop.f32.mrb[0].mxu0
    %v6493 = vadd.f32 %v6444, %v6492
    %v6494 = vpop.f32.mrb[0].mxu0
    %v6495 = vpop.f32.mrb[0].mxu0
    %v6496 = vadd.f32 %v6447, %v6495
    %v6497 = vpop.f32.mrb[0].mxu0
    %6498 = vdwg.mxu0
    %6499 = vmatprep.subr.bf16.mxu0 %v6060
    %6500 = vmatpush1.bf16.xpose.msra.mxu0 %v6059
    %6501 = vmatprep.subr.bf16.mxu0 0
    %6502 = vmatpush1.bf16.xpose.msra.mxu0 0
    %6503 = vmatprep.subr.bf16.mxu0 0
    %6504 = vmatpush1.bf16.xpose.msra.mxu0 0
    %6505 = vmatprep.subr.bf16.mxu0 0
    %6506 = vmatpush1.bf16.xpose.msra.mxu0 0
    %6507 = vmatprep.subr.bf16.mxu0 0
    %6508 = vmatpush1.bf16.xpose.msra.mxu0 0
    %6509 = vmatprep.subr.bf16.mxu0 0
    %6510 = vmatpush1.bf16.xpose.msra.mxu0 0
    %6511 = vmatprep.subr.bf16.mxu0 0
    %6512 = vmatpush1.bf16.xpose.msra.mxu0 0
    %6513 = vmatprep.subr.bf16.mxu0 0
    %6514 = vmatpush1.bf16.xpose.msra.mxu0 0
    %6515 = vmatprep.subr.bf16.mxu0 0
    %6516 = vmatpush1.bf16.xpose.msra.mxu0 0
    %6517 = vmatprep.subr.bf16.mxu0 0
    %6518 = vmatpush1.bf16.xpose.msra.mxu0 0
    %6519 = vmatprep.subr.bf16.mxu0 0
    %6520 = vmatpush1.bf16.xpose.msra.mxu0 0
    %6521 = vmatprep.subr.bf16.mxu0 0
    %6522 = vmatpush1.bf16.xpose.msra.mxu0 0
    %6523 = vmatprep.subr.bf16.mxu0 0
    %6524 = vmatpush1.bf16.xpose.msra.mxu0 0
    %6525 = vmatprep.subr.bf16.mxu0 0
    %6526 = vmatpush1.bf16.xpose.msra.mxu0 0
    %6527 = vmatprep.subr.bf16.mxu0 0
    %6528 = vmatpush1.bf16.xpose.msra.mxu0 0
    %6529 = vmatprep.subr.bf16.mxu0 0
    %6530 = vmatpush1.bf16.xpose.msra.mxu0 0
    %6531 = vmatprep.mubr.bf16.mxu0 %v5868
    %6532 = vmatmul.mubr.bf16.gmra.mrb[0].mxu0 %v5867
    %v6533 = vpop.f32.mrb[0].mxu0
    %v6534 = vadd.f32 %v6485, %v6533
    %v6535 = vpop.f32.mrb[0].mxu0
    %v6536 = vpop.f32.mrb[0].mxu0
    %v6537 = vadd.f32 %v6488, %v6536
    %v6538 = vpop.f32.mrb[0].mxu0
    %6539 = vmatprep.mubr.bf16.mxu0 %v5900
    %6540 = vmatmul.mubr.bf16.gmra.mrb[0].mxu0 %v5899
    %v6541 = vpop.f32.mrb[0].mxu0
    %v6542 = vadd.f32 %v6493, %v6541
    %v6543 = vpop.f32.mrb[0].mxu0
    %v6544 = vpop.f32.mrb[0].mxu0
    %v6545 = vadd.f32 %v6496, %v6544
    %v6546 = vpop.f32.mrb[0].mxu0
    %6547 = vdwg.mxu0
    %6548 = vmatprep.subr.bf16.mxu0 %v6062
    %6549 = vmatpush1.bf16.xpose.msra.mxu0 %v6061
    %6550 = vmatprep.subr.bf16.mxu0 0
    %6551 = vmatpush1.bf16.xpose.msra.mxu0 0
    %6552 = vmatprep.subr.bf16.mxu0 0
    %6553 = vmatpush1.bf16.xpose.msra.mxu0 0
    %6554 = vmatprep.subr.bf16.mxu0 0
    %6555 = vmatpush1.bf16.xpose.msra.mxu0 0
    %6556 = vmatprep.subr.bf16.mxu0 0
    %6557 = vmatpush1.bf16.xpose.msra.mxu0 0
    %6558 = vmatprep.subr.bf16.mxu0 0
    %6559 = vmatpush1.bf16.xpose.msra.mxu0 0
    %6560 = vmatprep.subr.bf16.mxu0 0
    %6561 = vmatpush1.bf16.xpose.msra.mxu0 0
    %6562 = vmatprep.subr.bf16.mxu0 0
    %6563 = vmatpush1.bf16.xpose.msra.mxu0 0
    %6564 = vmatprep.subr.bf16.mxu0 0
    %6565 = vmatpush1.bf16.xpose.msra.mxu0 0
    %6566 = vmatprep.subr.bf16.mxu0 0
    %6567 = vmatpush1.bf16.xpose.msra.mxu0 0
    %6568 = vmatprep.subr.bf16.mxu0 0
    %6569 = vmatpush1.bf16.xpose.msra.mxu0 0
    %6570 = vmatprep.subr.bf16.mxu0 0
    %6571 = vmatpush1.bf16.xpose.msra.mxu0 0
    %6572 = vmatprep.subr.bf16.mxu0 0
    %6573 = vmatpush1.bf16.xpose.msra.mxu0 0
    %6574 = vmatprep.subr.bf16.mxu0 0
    %6575 = vmatpush1.bf16.xpose.msra.mxu0 0
    %6576 = vmatprep.subr.bf16.mxu0 0
    %6577 = vmatpush1.bf16.xpose.msra.mxu0 0
    %6578 = vmatprep.subr.bf16.mxu0 0
    %6579 = vmatpush1.bf16.xpose.msra.mxu0 0
    %6580 = vmatprep.mubr.bf16.mxu0 %v5870
    %6581 = vmatmul.mubr.bf16.gmra.mrb[0].mxu0 %v5869
    %v6582 = vpop.f32.mrb[0].mxu0
    %v6583 = vadd.f32 %v6534, %v6582
    %v6584 = vpop.f32.mrb[0].mxu0
    %v6585 = vpop.f32.mrb[0].mxu0
    %v6586 = vadd.f32 %v6537, %v6585
    %v6587 = vpop.f32.mrb[0].mxu0
    %6588 = vmatprep.mubr.bf16.mxu0 %v5902
    %6589 = vmatmul.mubr.bf16.gmra.mrb[0].mxu0 %v5901
    %v6590 = vpop.f32.mrb[0].mxu0
    %v6591 = vadd.f32 %v6542, %v6590
    %v6592 = vpop.f32.mrb[0].mxu0
    %v6593 = vpop.f32.mrb[0].mxu0
    %v6594 = vadd.f32 %v6545, %v6593
    %v6595 = vpop.f32.mrb[0].mxu0
    %6596 = vdwg.mxu0
    %6597 = vmatprep.subr.bf16.mxu0 %v6064
    %6598 = vmatpush1.bf16.xpose.msra.mxu0 %v6063
    %6599 = vmatprep.subr.bf16.mxu0 0
    %6600 = vmatpush1.bf16.xpose.msra.mxu0 0
    %6601 = vmatprep.subr.bf16.mxu0 0
    %6602 = vmatpush1.bf16.xpose.msra.mxu0 0
    %6603 = vmatprep.subr.bf16.mxu0 0
    %6604 = vmatpush1.bf16.xpose.msra.mxu0 0
    %6605 = vmatprep.subr.bf16.mxu0 0
    %6606 = vmatpush1.bf16.xpose.msra.mxu0 0
    %6607 = vmatprep.subr.bf16.mxu0 0
    %6608 = vmatpush1.bf16.xpose.msra.mxu0 0
    %6609 = vmatprep.subr.bf16.mxu0 0
    %6610 = vmatpush1.bf16.xpose.msra.mxu0 0
    %6611 = vmatprep.subr.bf16.mxu0 0
    %6612 = vmatpush1.bf16.xpose.msra.mxu0 0
    %6613 = vmatprep.subr.bf16.mxu0 0
    %6614 = vmatpush1.bf16.xpose.msra.mxu0 0
    %6615 = vmatprep.subr.bf16.mxu0 0
    %6616 = vmatpush1.bf16.xpose.msra.mxu0 0
    %6617 = vmatprep.subr.bf16.mxu0 0
    %6618 = vmatpush1.bf16.xpose.msra.mxu0 0
    %6619 = vmatprep.subr.bf16.mxu0 0
    %6620 = vmatpush1.bf16.xpose.msra.mxu0 0
    %6621 = vmatprep.subr.bf16.mxu0 0
    %6622 = vmatpush1.bf16.xpose.msra.mxu0 0
    %6623 = vmatprep.subr.bf16.mxu0 0
    %6624 = vmatpush1.bf16.xpose.msra.mxu0 0
    %6625 = vmatprep.subr.bf16.mxu0 0
    %6626 = vmatpush1.bf16.xpose.msra.mxu0 0
    %6627 = vmatprep.subr.bf16.mxu0 0
    %6628 = vmatpush1.bf16.xpose.msra.mxu0 0
    %6629 = vmatprep.mubr.bf16.mxu0 %v5872
    %6630 = vmatmul.mubr.bf16.gmra.mrb[0].mxu0 %v5871
    %v6631 = vpop.f32.mrb[0].mxu0
    %v6632 = vadd.f32 %v6583, %v6631
    %v6633 = vpop.f32.mrb[0].mxu0
    %v6634 = vpop.f32.mrb[0].mxu0
    %v6635 = vadd.f32 %v6586, %v6634
    %v6636 = vpop.f32.mrb[0].mxu0
    %6637 = vmatprep.mubr.bf16.mxu0 %v5904
    %6638 = vmatmul.mubr.bf16.gmra.mrb[0].mxu0 %v5903
    %v6639 = vpop.f32.mrb[0].mxu0
    %v6640 = vadd.f32 %v6591, %v6639
    %v6641 = vpop.f32.mrb[0].mxu0
    %v6642 = vpop.f32.mrb[0].mxu0
    %v6643 = vadd.f32 %v6594, %v6642
    %v6644 = vpop.f32.mrb[0].mxu0
    %6645 = vdwg.mxu0
    %6646 = vmatprep.subr.bf16.mxu0 %v6066
    %6647 = vmatpush1.bf16.xpose.msra.mxu0 %v6065
    %6648 = vmatprep.subr.bf16.mxu0 0
    %6649 = vmatpush1.bf16.xpose.msra.mxu0 0
    %6650 = vmatprep.subr.bf16.mxu0 0
    %6651 = vmatpush1.bf16.xpose.msra.mxu0 0
    %6652 = vmatprep.subr.bf16.mxu0 0
    %6653 = vmatpush1.bf16.xpose.msra.mxu0 0
    %6654 = vmatprep.subr.bf16.mxu0 0
    %6655 = vmatpush1.bf16.xpose.msra.mxu0 0
    %6656 = vmatprep.subr.bf16.mxu0 0
    %6657 = vmatpush1.bf16.xpose.msra.mxu0 0
    %6658 = vmatprep.subr.bf16.mxu0 0
    %6659 = vmatpush1.bf16.xpose.msra.mxu0 0
    %6660 = vmatprep.subr.bf16.mxu0 0
    %6661 = vmatpush1.bf16.xpose.msra.mxu0 0
    %6662 = vmatprep.subr.bf16.mxu0 0
    %6663 = vmatpush1.bf16.xpose.msra.mxu0 0
    %6664 = vmatprep.subr.bf16.mxu0 0
    %6665 = vmatpush1.bf16.xpose.msra.mxu0 0
    %6666 = vmatprep.subr.bf16.mxu0 0
    %6667 = vmatpush1.bf16.xpose.msra.mxu0 0
    %6668 = vmatprep.subr.bf16.mxu0 0
    %6669 = vmatpush1.bf16.xpose.msra.mxu0 0
    %6670 = vmatprep.subr.bf16.mxu0 0
    %6671 = vmatpush1.bf16.xpose.msra.mxu0 0
    %6672 = vmatprep.subr.bf16.mxu0 0
    %6673 = vmatpush1.bf16.xpose.msra.mxu0 0
    %6674 = vmatprep.subr.bf16.mxu0 0
    %6675 = vmatpush1.bf16.xpose.msra.mxu0 0
    %6676 = vmatprep.subr.bf16.mxu0 0
    %6677 = vmatpush1.bf16.xpose.msra.mxu0 0
    %6678 = vmatprep.mubr.bf16.mxu0 %v5874
    %6679 = vmatmul.mubr.bf16.gmra.mrb[0].mxu0 %v5873
    %v6680 = vpop.f32.mrb[0].mxu0
    %v6681 = vadd.f32 %v6632, %v6680
    %v6682 = vpop.f32.mrb[0].mxu0
    %v6683 = vpop.f32.mrb[0].mxu0
    %v6684 = vadd.f32 %v6635, %v6683
    %v6685 = vpop.f32.mrb[0].mxu0
    %6686 = vmatprep.mubr.bf16.mxu0 %v5906
    %6687 = vmatmul.mubr.bf16.gmra.mrb[0].mxu0 %v5905
    %v6688 = vpop.f32.mrb[0].mxu0
    %v6689 = vadd.f32 %v6640, %v6688
    %v6690 = vpop.f32.mrb[0].mxu0
    %v6691 = vpop.f32.mrb[0].mxu0
    %v6692 = vadd.f32 %v6643, %v6691
    %v6693 = vpop.f32.mrb[0].mxu0
    %6694 = vdwg.mxu0
    %6695 = vmatprep.subr.bf16.mxu0 %v6068
    %6696 = vmatpush1.bf16.xpose.msra.mxu0 %v6067
    %6697 = vmatprep.subr.bf16.mxu0 0
    %6698 = vmatpush1.bf16.xpose.msra.mxu0 0
    %6699 = vmatprep.subr.bf16.mxu0 0
    %6700 = vmatpush1.bf16.xpose.msra.mxu0 0
    %6701 = vmatprep.subr.bf16.mxu0 0
    %6702 = vmatpush1.bf16.xpose.msra.mxu0 0
    %6703 = vmatprep.subr.bf16.mxu0 0
    %6704 = vmatpush1.bf16.xpose.msra.mxu0 0
    %6705 = vmatprep.subr.bf16.mxu0 0
    %6706 = vmatpush1.bf16.xpose.msra.mxu0 0
    %6707 = vmatprep.subr.bf16.mxu0 0
    %6708 = vmatpush1.bf16.xpose.msra.mxu0 0
    %6709 = vmatprep.subr.bf16.mxu0 0
    %6710 = vmatpush1.bf16.xpose.msra.mxu0 0
    %6711 = vmatprep.subr.bf16.mxu0 0
    %6712 = vmatpush1.bf16.xpose.msra.mxu0 0
    %6713 = vmatprep.subr.bf16.mxu0 0
    %6714 = vmatpush1.bf16.xpose.msra.mxu0 0
    %6715 = vmatprep.subr.bf16.mxu0 0
    %6716 = vmatpush1.bf16.xpose.msra.mxu0 0
    %6717 = vmatprep.subr.bf16.mxu0 0
    %6718 = vmatpush1.bf16.xpose.msra.mxu0 0
    %6719 = vmatprep.subr.bf16.mxu0 0
    %6720 = vmatpush1.bf16.xpose.msra.mxu0 0
    %6721 = vmatprep.subr.bf16.mxu0 0
    %6722 = vmatpush1.bf16.xpose.msra.mxu0 0
    %6723 = vmatprep.subr.bf16.mxu0 0
    %6724 = vmatpush1.bf16.xpose.msra.mxu0 0
    %6725 = vmatprep.subr.bf16.mxu0 0
    %6726 = vmatpush1.bf16.xpose.msra.mxu0 0
    %6727 = vmatprep.mubr.bf16.mxu0 %v5876
    %6728 = vmatmul.mubr.bf16.gmra.mrb[0].mxu0 %v5875
    %v6729 = vpop.f32.mrb[0].mxu0
    %v6730 = vadd.f32 %v6681, %v6729
    %v6731 = vpop.f32.mrb[0].mxu0
    %v6732 = vpop.f32.mrb[0].mxu0
    %v6733 = vadd.f32 %v6684, %v6732
    %v6734 = vpop.f32.mrb[0].mxu0
    %6735 = vmatprep.mubr.bf16.mxu0 %v5908
    %6736 = vmatmul.mubr.bf16.gmra.mrb[0].mxu0 %v5907
    %v6737 = vpop.f32.mrb[0].mxu0
    %v6738 = vadd.f32 %v6689, %v6737
    %v6739 = vpop.f32.mrb[0].mxu0
    %v6740 = vpop.f32.mrb[0].mxu0
    %v6741 = vadd.f32 %v6692, %v6740
    %v6742 = vpop.f32.mrb[0].mxu0
    %6743 = vdwg.mxu0
    %6744 = vmatprep.subr.bf16.mxu0 %v6070
    %6745 = vmatpush1.bf16.xpose.msra.mxu0 %v6069
    %6746 = vmatprep.subr.bf16.mxu0 0
    %6747 = vmatpush1.bf16.xpose.msra.mxu0 0
    %6748 = vmatprep.subr.bf16.mxu0 0
    %6749 = vmatpush1.bf16.xpose.msra.mxu0 0
    %6750 = vmatprep.subr.bf16.mxu0 0
    %6751 = vmatpush1.bf16.xpose.msra.mxu0 0
    %6752 = vmatprep.subr.bf16.mxu0 0
    %6753 = vmatpush1.bf16.xpose.msra.mxu0 0
    %6754 = vmatprep.subr.bf16.mxu0 0
    %6755 = vmatpush1.bf16.xpose.msra.mxu0 0
    %6756 = vmatprep.subr.bf16.mxu0 0
    %6757 = vmatpush1.bf16.xpose.msra.mxu0 0
    %6758 = vmatprep.subr.bf16.mxu0 0
    %6759 = vmatpush1.bf16.xpose.msra.mxu0 0
    %6760 = vmatprep.subr.bf16.mxu0 0
    %6761 = vmatpush1.bf16.xpose.msra.mxu0 0
    %6762 = vmatprep.subr.bf16.mxu0 0
    %6763 = vmatpush1.bf16.xpose.msra.mxu0 0
    %6764 = vmatprep.subr.bf16.mxu0 0
    %6765 = vmatpush1.bf16.xpose.msra.mxu0 0
    %6766 = vmatprep.subr.bf16.mxu0 0
    %6767 = vmatpush1.bf16.xpose.msra.mxu0 0
    %6768 = vmatprep.subr.bf16.mxu0 0
    %6769 = vmatpush1.bf16.xpose.msra.mxu0 0
    %6770 = vmatprep.subr.bf16.mxu0 0
    %6771 = vmatpush1.bf16.xpose.msra.mxu0 0
    %6772 = vmatprep.subr.bf16.mxu0 0
    %6773 = vmatpush1.bf16.xpose.msra.mxu0 0
    %6774 = vmatprep.subr.bf16.mxu0 0
    %6775 = vmatpush1.bf16.xpose.msra.mxu0 0
    %6776 = vmatprep.mubr.bf16.mxu0 %v5878
    %6777 = vmatmul.mubr.bf16.gmra.mrb[0].mxu0 %v5877
    %v6778 = vpop.f32.mrb[0].mxu0
    %v6779 = vadd.f32 %v6730, %v6778
    %v6780 = vpop.f32.mrb[0].mxu0
    %v6781 = vpop.f32.mrb[0].mxu0
    %v6782 = vadd.f32 %v6733, %v6781
    %v6783 = vpop.f32.mrb[0].mxu0
    %6784 = vmatprep.mubr.bf16.mxu0 %v5910
    %6785 = vmatmul.mubr.bf16.gmra.mrb[0].mxu0 %v5909
    %v6786 = vpop.f32.mrb[0].mxu0
    %v6787 = vadd.f32 %v6738, %v6786
    %v6788 = vpop.f32.mrb[0].mxu0
    %v6789 = vpop.f32.mrb[0].mxu0
    %v6790 = vadd.f32 %v6741, %v6789
    %v6791 = vpop.f32.mrb[0].mxu0
    %6792 = vdwg.mxu0
    %6793 = vmatprep.subr.bf16.mxu0 %v6072
    %6794 = vmatpush1.bf16.xpose.msra.mxu0 %v6071
    %6795 = vmatprep.subr.bf16.mxu0 0
    %6796 = vmatpush1.bf16.xpose.msra.mxu0 0
    %6797 = vmatprep.subr.bf16.mxu0 0
    %6798 = vmatpush1.bf16.xpose.msra.mxu0 0
    %6799 = vmatprep.subr.bf16.mxu0 0
    %6800 = vmatpush1.bf16.xpose.msra.mxu0 0
    %6801 = vmatprep.subr.bf16.mxu0 0
    %6802 = vmatpush1.bf16.xpose.msra.mxu0 0
    %6803 = vmatprep.subr.bf16.mxu0 0
    %6804 = vmatpush1.bf16.xpose.msra.mxu0 0
    %6805 = vmatprep.subr.bf16.mxu0 0
    %6806 = vmatpush1.bf16.xpose.msra.mxu0 0
    %6807 = vmatprep.subr.bf16.mxu0 0
    %6808 = vmatpush1.bf16.xpose.msra.mxu0 0
    %6809 = vmatprep.subr.bf16.mxu0 0
    %6810 = vmatpush1.bf16.xpose.msra.mxu0 0
    %6811 = vmatprep.subr.bf16.mxu0 0
    %6812 = vmatpush1.bf16.xpose.msra.mxu0 0
    %6813 = vmatprep.subr.bf16.mxu0 0
    %6814 = vmatpush1.bf16.xpose.msra.mxu0 0
    %6815 = vmatprep.subr.bf16.mxu0 0
    %6816 = vmatpush1.bf16.xpose.msra.mxu0 0
    %6817 = vmatprep.subr.bf16.mxu0 0
    %6818 = vmatpush1.bf16.xpose.msra.mxu0 0
    %6819 = vmatprep.subr.bf16.mxu0 0
    %6820 = vmatpush1.bf16.xpose.msra.mxu0 0
    %6821 = vmatprep.subr.bf16.mxu0 0
    %6822 = vmatpush1.bf16.xpose.msra.mxu0 0
    %6823 = vmatprep.subr.bf16.mxu0 0
    %6824 = vmatpush1.bf16.xpose.msra.mxu0 0
    %6825 = vmatprep.mubr.bf16.mxu0 %v5880
    %6826 = vmatmul.mubr.bf16.gmra.mrb[0].mxu0 %v5879
    %v6827 = vpop.f32.mrb[0].mxu0
    %v6828 = vadd.f32 %v6779, %v6827
    %v6829 = vpop.f32.mrb[0].mxu0
    %v6830 = vpop.f32.mrb[0].mxu0
    %v6831 = vadd.f32 %v6782, %v6830
    %v6832 = vpop.f32.mrb[0].mxu0
    %6833 = vmatprep.mubr.bf16.mxu0 %v5912
    %6834 = vmatmul.mubr.bf16.gmra.mrb[0].mxu0 %v5911
    %v6835 = vpop.f32.mrb[0].mxu0
    %v6836 = vadd.f32 %v6787, %v6835
    %v6837 = vpop.f32.mrb[0].mxu0
    %v6838 = vpop.f32.mrb[0].mxu0
    %v6839 = vadd.f32 %v6790, %v6838
    %v6840 = vpop.f32.mrb[0].mxu0
    %6841 = vdwg.mxu0
    %6842 = vmatprep.subr.bf16.mxu0 %v6074
    %6843 = vmatpush1.bf16.xpose.msra.mxu0 %v6073
    %6844 = vmatprep.subr.bf16.mxu0 0
    %6845 = vmatpush1.bf16.xpose.msra.mxu0 0
    %6846 = vmatprep.subr.bf16.mxu0 0
    %6847 = vmatpush1.bf16.xpose.msra.mxu0 0
    %6848 = vmatprep.subr.bf16.mxu0 0
    %6849 = vmatpush1.bf16.xpose.msra.mxu0 0
    %6850 = vmatprep.subr.bf16.mxu0 0
    %6851 = vmatpush1.bf16.xpose.msra.mxu0 0
    %6852 = vmatprep.subr.bf16.mxu0 0
    %6853 = vmatpush1.bf16.xpose.msra.mxu0 0
    %6854 = vmatprep.subr.bf16.mxu0 0
    %6855 = vmatpush1.bf16.xpose.msra.mxu0 0
    %6856 = vmatprep.subr.bf16.mxu0 0
    %6857 = vmatpush1.bf16.xpose.msra.mxu0 0
    %6858 = vmatprep.subr.bf16.mxu0 0
    %6859 = vmatpush1.bf16.xpose.msra.mxu0 0
    %6860 = vmatprep.subr.bf16.mxu0 0
    %6861 = vmatpush1.bf16.xpose.msra.mxu0 0
    %6862 = vmatprep.subr.bf16.mxu0 0
    %6863 = vmatpush1.bf16.xpose.msra.mxu0 0
    %6864 = vmatprep.subr.bf16.mxu0 0
    %6865 = vmatpush1.bf16.xpose.msra.mxu0 0
    %6866 = vmatprep.subr.bf16.mxu0 0
    %6867 = vmatpush1.bf16.xpose.msra.mxu0 0
    %6868 = vmatprep.subr.bf16.mxu0 0
    %6869 = vmatpush1.bf16.xpose.msra.mxu0 0
    %6870 = vmatprep.subr.bf16.mxu0 0
    %6871 = vmatpush1.bf16.xpose.msra.mxu0 0
    %6872 = vmatprep.subr.bf16.mxu0 0
    %6873 = vmatpush1.bf16.xpose.msra.mxu0 0
    %6874 = vmatprep.mubr.bf16.mxu0 %v5882
    %6875 = vmatmul.mubr.bf16.gmra.mrb[0].mxu0 %v5881
    %v6876 = vpop.f32.mrb[0].mxu0
    %v6877 = vadd.f32 %v6828, %v6876
    %v6878 = vpop.f32.mrb[0].mxu0
    %v6879 = vpop.f32.mrb[0].mxu0
    %v6880 = vadd.f32 %v6831, %v6879
    %v6881 = vpop.f32.mrb[0].mxu0
    %6882 = vmatprep.mubr.bf16.mxu0 %v5914
    %6883 = vmatmul.mubr.bf16.gmra.mrb[0].mxu0 %v5913
    %v6884 = vpop.f32.mrb[0].mxu0
    %v6885 = vadd.f32 %v6836, %v6884
    %v6886 = vpop.f32.mrb[0].mxu0
    %v6887 = vpop.f32.mrb[0].mxu0
    %v6888 = vadd.f32 %v6839, %v6887
    %v6889 = vpop.f32.mrb[0].mxu0
    %6890 = vdwg.mxu0
    %v6891 = vld [vmem:[%s5] sm:$0x1]
    %v6892 = vld [vmem:[%s6] sm:$0x1]
    %vm6893 = vcmask 130048
    %v6894 = vsel %vm6893, %v6877, 0.0
    %v6895 = vrot.slane %v6894, 4
    %v6896 = vadd.f32 %v6894, %v6895
    %v6897 = vrot.slane %v6896, 2
    %v6898 = vadd.f32 %v6896, %v6897
    %v6899 = vrot.slane %v6898, 1
    %v6900 = vadd.f32 %v6898, %v6899
    %v6901 = vsel %vm6893, %v6880, 0.0
    %v6902 = vrot.slane %v6901, 4
    %v6903 = vadd.f32 %v6901, %v6902
    %v6904 = vrot.slane %v6903, 2
    %v6905 = vadd.f32 %v6903, %v6904
    %v6906 = vrot.slane %v6905, 1
    %v6907 = vadd.f32 %v6905, %v6906
    %v6908 = vsel %vm6893, %v6885, 0.0
    %v6909 = vrot.slane %v6908, 4
    %v6910 = vadd.f32 %v6908, %v6909
    %v6911 = vrot.slane %v6910, 2
    %v6912 = vadd.f32 %v6910, %v6911
    %v6913 = vrot.slane %v6912, 1
    %v6914 = vadd.f32 %v6912, %v6913
    %v6915 = vsel %vm6893, %v6888, 0.0
    %v6916 = vrot.slane %v6915, 4
    %v6917 = vadd.f32 %v6915, %v6916
    %v6918 = vrot.slane %v6917, 2
    %v6919 = vadd.f32 %v6917, %v6918
    %v6920 = vrot.slane %v6919, 1
    %v6921 = vadd.f32 %v6919, %v6920
    %v6922 = vmul.f32 %v6900, 0.125
    %v6923 = vmul.f32 %v6907, 0.125
    %v6924 = vmul.f32 %v6914, 0.125
    %v6925 = vmul.f32 %v6921, 0.125
    %v6926 = vsub.f32 %v6877, %v6922
    %v6927 = vsub.f32 %v6880, %v6923
    %v6928 = vsub.f32 %v6885, %v6924
    %v6929 = vsub.f32 %v6888, %v6925
    %v6930 = vmul.f32 %v6926, %v6926
    %v6931 = vmul.f32 %v6927, %v6927
    %v6932 = vmul.f32 %v6928, %v6928
    %v6933 = vmul.f32 %v6929, %v6929
    %v6934 = vsel %vm6893, %v6930, 0.0
    %v6935 = vrot.slane %v6934, 4
    %v6936 = vadd.f32 %v6934, %v6935
    %v6937 = vrot.slane %v6936, 2
    %v6938 = vadd.f32 %v6936, %v6937
    %v6939 = vrot.slane %v6938, 1
    %v6940 = vadd.f32 %v6938, %v6939
    %v6941 = vsel %vm6893, %v6931, 0.0
    %v6942 = vrot.slane %v6941, 4
    %v6943 = vadd.f32 %v6941, %v6942
    %v6944 = vrot.slane %v6943, 2
    %v6945 = vadd.f32 %v6943, %v6944
    %v6946 = vrot.slane %v6945, 1
    %v6947 = vadd.f32 %v6945, %v6946
    %v6948 = vsel %vm6893, %v6932, 0.0
    %v6949 = vrot.slane %v6948, 4
    %v6950 = vadd.f32 %v6948, %v6949
    %v6951 = vrot.slane %v6950, 2
    %v6952 = vadd.f32 %v6950, %v6951
    %v6953 = vrot.slane %v6952, 1
    %v6954 = vadd.f32 %v6952, %v6953
    %v6955 = vsel %vm6893, %v6933, 0.0
    %v6956 = vrot.slane %v6955, 4
    %v6957 = vadd.f32 %v6955, %v6956
    %v6958 = vrot.slane %v6957, 2
    %v6959 = vadd.f32 %v6957, %v6958
    %v6960 = vrot.slane %v6959, 1
    %v6961 = vadd.f32 %v6959, %v6960
    %v6962 = vmul.f32 %v6940, 0.125
    %v6963 = vmul.f32 %v6947, 0.125
    %v6964 = vmul.f32 %v6954, 0.125
    %v6965 = vmul.f32 %v6961, 0.125
    %v6966 = vadd.f32 %v6962, 1e-05
    %v6967 = vadd.f32 %v6963, 1e-05
    %v6968 = vadd.f32 %v6964, 1e-05
    %v6969 = vadd.f32 %v6965, 1e-05
    %v6970 = vrsqrt.pop %v6966
    %v6971 = vrsqrt.pop %v6967
    %v6972 = vrsqrt.pop %v6968
    %v6973 = vrsqrt.pop %v6969
    %v6974 = vmul.f32 %v6891, %v6970
    %v6975 = vmul.f32 %v6891, %v6971
    %v6976 = vmul.f32 %v6891, %v6972
    %v6977 = vmul.f32 %v6891, %v6973
    %v6982 = vlaneseq
    %v6983 = vshrl.u32 %v6982, 7
    %v6984 = vsub.s32 0, %v6983
    %v6985 = vrot.slane %v6974, %v6984
    %v6986 = vlaneseq
    %v6987 = vshrl.u32 %v6986, 7
    %v6988 = vsub.s32 0, %v6987
    %v6989 = vrot.slane %v6975, %v6988
    %v6990 = vlaneseq
    %v6991 = vshrl.u32 %v6990, 7
    %v6992 = vsub.s32 0, %v6991
    %v6993 = vrot.slane %v6976, %v6992
    %v6994 = vlaneseq
    %v6995 = vshrl.u32 %v6994, 7
    %v6996 = vsub.s32 0, %v6995
    %v6997 = vrot.slane %v6977, %v6996
    %v7002 = vmul.f32 %v6926, %v6985
    %v7003 = vmul.f32 %v6927, %v6989
    %v7004 = vmul.f32 %v6928, %v6993
    %v7005 = vmul.f32 %v6929, %v6997
    %v7007 = vlaneseq
    %v7008 = vshrl.u32 %v7007, 7
    %v7009 = vsub.s32 0, %v7008
    %v7010 = vrot.slane %v6892, %v7009
    %v7012 = vadd.f32 %v7002, %v7010
    %v7013 = vadd.f32 %v7003, %v7010
    %v7014 = vadd.f32 %v7004, %v7010
    %v7015 = vadd.f32 %v7005, %v7010
    %v7016 = vpack.c.bf16 %v7013, %v7012
    %v7017 = vpack.c.bf16 %v7015, %v7014
    %v7018 = vld [vmem:[#allocation11] sm:$0xff]
    %v7019 = vld [vmem:[#allocation11 + $0x8] sm:$0xff]
    %v7020 = vld [vmem:[#allocation11 + $0x10] sm:$0xff]
    %v7021 = vld [vmem:[#allocation11 + $0x18] sm:$0xff]
    %v7022 = vld [vmem:[#allocation11 + $0x20] sm:$0xff]
    %v7023 = vld [vmem:[#allocation11 + $0x28] sm:$0xff]
    %v7024 = vld [vmem:[#allocation11 + $0x30] sm:$0xff]
    %v7025 = vld [vmem:[#allocation11 + $0x38] sm:$0xff]
    %v7026 = vld [vmem:[#allocation11 + $0x40] sm:$0xff]
    %v7027 = vld [vmem:[#allocation11 + $0x48] sm:$0xff]
    %v7028 = vld [vmem:[#allocation11 + $0x50] sm:$0xff]
    %v7029 = vld [vmem:[#allocation11 + $0x58] sm:$0xff]
    %v7030 = vld [vmem:[#allocation11 + $0x60] sm:$0xff]
    %v7031 = vld [vmem:[#allocation11 + $0x68] sm:$0xff]
    %v7032 = vld [vmem:[#allocation11 + $0x70] sm:$0xff]
    %v7033 = vld [vmem:[#allocation11 + $0x78] sm:$0xff]
    %v7034 = vld [vmem:[#allocation11 + $0x80] sm:$0xff]
    %v7035 = vld [vmem:[#allocation11 + $0x88] sm:$0xff]
    %v7036 = vld [vmem:[#allocation11 + $0x90] sm:$0xff]
    %v7037 = vld [vmem:[#allocation11 + $0x98] sm:$0xff]
    %v7038 = vld [vmem:[#allocation11 + $0xa0] sm:$0xff]
    %v7039 = vld [vmem:[#allocation11 + $0xa8] sm:$0xff]
    %v7040 = vld [vmem:[#allocation11 + $0xb0] sm:$0xff]
    %v7041 = vld [vmem:[#allocation11 + $0xb8] sm:$0xff]
    %v7042 = vld [vmem:[#allocation11 + $0xc0] sm:$0xff]
    %v7043 = vld [vmem:[#allocation11 + $0xc8] sm:$0xff]
    %v7044 = vld [vmem:[#allocation11 + $0xd0] sm:$0xff]
    %v7045 = vld [vmem:[#allocation11 + $0xd8] sm:$0xff]
    %v7046 = vld [vmem:[#allocation11 + $0xe0] sm:$0xff]
    %v7047 = vld [vmem:[#allocation11 + $0xe8] sm:$0xff]
    %v7048 = vld [vmem:[#allocation11 + $0xf0] sm:$0xff]
    %v7049 = vld [vmem:[#allocation11 + $0xf8] sm:$0xff]
    %v7082 = vunpack.c.l.b16 %v7018
    %v7083 = vunpack.c.h.b16 %v7018
    %v7084 = vunpack.c.l.b16 %v7019
    %v7085 = vunpack.c.h.b16 %v7019
    %v7086 = vunpack.c.l.b16 %v7020
    %v7087 = vunpack.c.h.b16 %v7020
    %v7088 = vunpack.c.l.b16 %v7021
    %v7089 = vunpack.c.h.b16 %v7021
    %v7090 = vunpack.c.l.b16 %v7022
    %v7091 = vunpack.c.h.b16 %v7022
    %v7092 = vunpack.c.l.b16 %v7023
    %v7093 = vunpack.c.h.b16 %v7023
    %v7094 = vunpack.c.l.b16 %v7024
    %v7095 = vunpack.c.h.b16 %v7024
    %v7096 = vunpack.c.l.b16 %v7025
    %v7097 = vunpack.c.h.b16 %v7025
    %v7098 = vunpack.c.l.b16 %v7026
    %v7099 = vunpack.c.h.b16 %v7026
    %v7100 = vunpack.c.l.b16 %v7027
    %v7101 = vunpack.c.h.b16 %v7027
    %v7102 = vunpack.c.l.b16 %v7028
    %v7103 = vunpack.c.h.b16 %v7028
    %v7104 = vunpack.c.l.b16 %v7029
    %v7105 = vunpack.c.h.b16 %v7029
    %v7106 = vunpack.c.l.b16 %v7030
    %v7107 = vunpack.c.h.b16 %v7030
    %v7108 = vunpack.c.l.b16 %v7031
    %v7109 = vunpack.c.h.b16 %v7031
    %v7110 = vunpack.c.l.b16 %v7032
    %v7111 = vunpack.c.h.b16 %v7032
    %v7112 = vunpack.c.l.b16 %v7033
    %v7113 = vunpack.c.h.b16 %v7033
    %v7114 = vunpack.c.l.b16 %v7034
    %v7115 = vunpack.c.h.b16 %v7034
    %v7116 = vunpack.c.l.b16 %v7035
    %v7117 = vunpack.c.h.b16 %v7035
    %v7118 = vunpack.c.l.b16 %v7036
    %v7119 = vunpack.c.h.b16 %v7036
    %v7120 = vunpack.c.l.b16 %v7037
    %v7121 = vunpack.c.h.b16 %v7037
    %v7122 = vunpack.c.l.b16 %v7038
    %v7123 = vunpack.c.h.b16 %v7038
    %v7124 = vunpack.c.l.b16 %v7039
    %v7125 = vunpack.c.h.b16 %v7039
    %v7126 = vunpack.c.l.b16 %v7040
    %v7127 = vunpack.c.h.b16 %v7040
    %v7128 = vunpack.c.l.b16 %v7041
    %v7129 = vunpack.c.h.b16 %v7041
    %v7130 = vunpack.c.l.b16 %v7042
    %v7131 = vunpack.c.h.b16 %v7042
    %v7132 = vunpack.c.l.b16 %v7043
    %v7133 = vunpack.c.h.b16 %v7043
    %v7134 = vunpack.c.l.b16 %v7044
    %v7135 = vunpack.c.h.b16 %v7044
    %v7136 = vunpack.c.l.b16 %v7045
    %v7137 = vunpack.c.h.b16 %v7045
    %v7138 = vunpack.c.l.b16 %v7046
    %v7139 = vunpack.c.h.b16 %v7046
    %v7140 = vunpack.c.l.b16 %v7047
    %v7141 = vunpack.c.h.b16 %v7047
    %v7142 = vunpack.c.l.b16 %v7048
    %v7143 = vunpack.c.h.b16 %v7048
    %v7144 = vunpack.c.l.b16 %v7049
    %v7145 = vunpack.c.h.b16 %v7049
    %v7146 = vpack.c.b16 %v7114, %v7082
    %v7147 = vpack.c.b16 %v7115, %v7083
    %v7148 = vpack.c.b16 %v7116, %v7084
    %v7149 = vpack.c.b16 %v7117, %v7085
    %v7150 = vpack.c.b16 %v7118, %v7086
    %v7151 = vpack.c.b16 %v7119, %v7087
    %v7152 = vpack.c.b16 %v7120, %v7088
    %v7153 = vpack.c.b16 %v7121, %v7089
    %v7154 = vpack.c.b16 %v7122, %v7090
    %v7155 = vpack.c.b16 %v7123, %v7091
    %v7156 = vpack.c.b16 %v7124, %v7092
    %v7157 = vpack.c.b16 %v7125, %v7093
    %v7158 = vpack.c.b16 %v7126, %v7094
    %v7159 = vpack.c.b16 %v7127, %v7095
    %v7160 = vpack.c.b16 %v7128, %v7096
    %v7161 = vpack.c.b16 %v7129, %v7097
    %v7162 = vpack.c.b16 %v7130, %v7098
    %v7163 = vpack.c.b16 %v7131, %v7099
    %v7164 = vpack.c.b16 %v7132, %v7100
    %v7165 = vpack.c.b16 %v7133, %v7101
    %v7166 = vpack.c.b16 %v7134, %v7102
    %v7167 = vpack.c.b16 %v7135, %v7103
    %v7168 = vpack.c.b16 %v7136, %v7104
    %v7169 = vpack.c.b16 %v7137, %v7105
    %v7170 = vpack.c.b16 %v7138, %v7106
    %v7171 = vpack.c.b16 %v7139, %v7107
    %v7172 = vpack.c.b16 %v7140, %v7108
    %v7173 = vpack.c.b16 %v7141, %v7109
    %v7174 = vpack.c.b16 %v7142, %v7110
    %v7175 = vpack.c.b16 %v7143, %v7111
    %v7176 = vpack.c.b16 %v7144, %v7112
    %v7177 = vpack.c.b16 %v7145, %v7113
    %v7211 = vsel %vm6893, %v7016, 0
    %v7214 = vsel %vm6893, %v7017, 0
    %7216 = vmatprep.subr.bf16.mxu0 %v7147
    %7217 = vmatpush1.bf16.msra.mxu0 %v7146
    %7218 = vmatprep.subr.bf16.mxu0 0
    %7219 = vmatpush1.bf16.msra.mxu0 0
    %7220 = vmatprep.subr.bf16.mxu0 0
    %7221 = vmatpush1.bf16.msra.mxu0 0
    %7222 = vmatprep.subr.bf16.mxu0 0
    %7223 = vmatpush1.bf16.msra.mxu0 0
    %7224 = vmatprep.subr.bf16.mxu0 0
    %7225 = vmatpush1.bf16.msra.mxu0 0
    %7226 = vmatprep.subr.bf16.mxu0 0
    %7227 = vmatpush1.bf16.msra.mxu0 0
    %7228 = vmatprep.subr.bf16.mxu0 0
    %7229 = vmatpush1.bf16.msra.mxu0 0
    %7230 = vmatprep.subr.bf16.mxu0 0
    %7231 = vmatpush1.bf16.msra.mxu0 0
    %7232 = vmatprep.subr.bf16.mxu0 0
    %7233 = vmatpush1.bf16.msra.mxu0 0
    %7234 = vmatprep.subr.bf16.mxu0 0
    %7235 = vmatpush1.bf16.msra.mxu0 0
    %7236 = vmatprep.subr.bf16.mxu0 0
    %7237 = vmatpush1.bf16.msra.mxu0 0
    %7238 = vmatprep.subr.bf16.mxu0 0
    %7239 = vmatpush1.bf16.msra.mxu0 0
    %7240 = vmatprep.subr.bf16.mxu0 0
    %7241 = vmatpush1.bf16.msra.mxu0 0
    %7242 = vmatprep.subr.bf16.mxu0 0
    %7243 = vmatpush1.bf16.msra.mxu0 0
    %7244 = vmatprep.subr.bf16.mxu0 0
    %7245 = vmatpush1.bf16.msra.mxu0 0
    %7246 = vmatprep.subr.bf16.mxu0 0
    %7247 = vmatpush1.bf16.msra.mxu0 0
    %7248 = vmatprep.mubr.bf16.mxu0 0
    %7249 = vmatmul.mubr.bf16.gmra.mrb[0].mxu0 %v7211
    %v7250 = vpop.f32.mrb[0].mxu0
    %v7251 = vadd.f32 0.0, %v7250
    %v7252 = vpop.f32.mrb[0].mxu0
    %v7253 = vadd.f32 0.0, %v7252
    %v7254 = vpop.f32.mrb[0].mxu0
    %v7255 = vadd.f32 0.0, %v7254
    %v7256 = vpop.f32.mrb[0].mxu0
    %v7257 = vadd.f32 0.0, %v7256
    %7258 = vmatprep.mubr.bf16.mxu0 0
    %7259 = vmatmul.mubr.bf16.gmra.mrb[0].mxu0 %v7214
    %v7260 = vpop.f32.mrb[0].mxu0
    %v7261 = vadd.f32 0.0, %v7260
    %v7262 = vpop.f32.mrb[0].mxu0
    %v7263 = vadd.f32 0.0, %v7262
    %v7264 = vpop.f32.mrb[0].mxu0
    %v7265 = vadd.f32 0.0, %v7264
    %v7266 = vpop.f32.mrb[0].mxu0
    %v7267 = vadd.f32 0.0, %v7266
    %7268 = vdwg.mxu0
    %7269 = vmatprep.subr.bf16.mxu0 %v7149
    %7270 = vmatpush1.bf16.msra.mxu0 %v7148
    %7271 = vmatprep.subr.bf16.mxu0 0
    %7272 = vmatpush1.bf16.msra.mxu0 0
    %7273 = vmatprep.subr.bf16.mxu0 0
    %7274 = vmatpush1.bf16.msra.mxu0 0
    %7275 = vmatprep.subr.bf16.mxu0 0
    %7276 = vmatpush1.bf16.msra.mxu0 0
    %7277 = vmatprep.subr.bf16.mxu0 0
    %7278 = vmatpush1.bf16.msra.mxu0 0
    %7279 = vmatprep.subr.bf16.mxu0 0
    %7280 = vmatpush1.bf16.msra.mxu0 0
    %7281 = vmatprep.subr.bf16.mxu0 0
    %7282 = vmatpush1.bf16.msra.mxu0 0
    %7283 = vmatprep.subr.bf16.mxu0 0
    %7284 = vmatpush1.bf16.msra.mxu0 0
    %7285 = vmatprep.subr.bf16.mxu0 0
    %7286 = vmatpush1.bf16.msra.mxu0 0
    %7287 = vmatprep.subr.bf16.mxu0 0
    %7288 = vmatpush1.bf16.msra.mxu0 0
    %7289 = vmatprep.subr.bf16.mxu0 0
    %7290 = vmatpush1.bf16.msra.mxu0 0
    %7291 = vmatprep.subr.bf16.mxu0 0
    %7292 = vmatpush1.bf16.msra.mxu0 0
    %7293 = vmatprep.subr.bf16.mxu0 0
    %7294 = vmatpush1.bf16.msra.mxu0 0
    %7295 = vmatprep.subr.bf16.mxu0 0
    %7296 = vmatpush1.bf16.msra.mxu0 0
    %7297 = vmatprep.subr.bf16.mxu0 0
    %7298 = vmatpush1.bf16.msra.mxu0 0
    %7299 = vmatprep.subr.bf16.mxu0 0
    %7300 = vmatpush1.bf16.msra.mxu0 0
    %7301 = vmatprep.mubr.bf16.mxu0 0
    %7302 = vmatmul.mubr.bf16.gmra.mrb[0].mxu0 %v7211
    %v7303 = vpop.f32.mrb[0].mxu0
    %v7304 = vadd.f32 0.0, %v7303
    %v7305 = vpop.f32.mrb[0].mxu0
    %v7306 = vadd.f32 0.0, %v7305
    %v7307 = vpop.f32.mrb[0].mxu0
    %v7308 = vadd.f32 0.0, %v7307
    %v7309 = vpop.f32.mrb[0].mxu0
    %v7310 = vadd.f32 0.0, %v7309
    %7311 = vmatprep.mubr.bf16.mxu0 0
    %7312 = vmatmul.mubr.bf16.gmra.mrb[0].mxu0 %v7214
    %v7313 = vpop.f32.mrb[0].mxu0
    %v7314 = vadd.f32 0.0, %v7313
    %v7315 = vpop.f32.mrb[0].mxu0
    %v7316 = vadd.f32 0.0, %v7315
    %v7317 = vpop.f32.mrb[0].mxu0
    %v7318 = vadd.f32 0.0, %v7317
    %v7319 = vpop.f32.mrb[0].mxu0
    %v7320 = vadd.f32 0.0, %v7319
    %7321 = vdwg.mxu0
    %7322 = vmatprep.subr.bf16.mxu0 %v7151
    %7323 = vmatpush1.bf16.msra.mxu0 %v7150
    %7324 = vmatprep.subr.bf16.mxu0 0
    %7325 = vmatpush1.bf16.msra.mxu0 0
    %7326 = vmatprep.subr.bf16.mxu0 0
    %7327 = vmatpush1.bf16.msra.mxu0 0
    %7328 = vmatprep.subr.bf16.mxu0 0
    %7329 = vmatpush1.bf16.msra.mxu0 0
    %7330 = vmatprep.subr.bf16.mxu0 0
    %7331 = vmatpush1.bf16.msra.mxu0 0
    %7332 = vmatprep.subr.bf16.mxu0 0
    %7333 = vmatpush1.bf16.msra.mxu0 0
    %7334 = vmatprep.subr.bf16.mxu0 0
    %7335 = vmatpush1.bf16.msra.mxu0 0
    %7336 = vmatprep.subr.bf16.mxu0 0
    %7337 = vmatpush1.bf16.msra.mxu0 0
    %7338 = vmatprep.subr.bf16.mxu0 0
    %7339 = vmatpush1.bf16.msra.mxu0 0
    %7340 = vmatprep.subr.bf16.mxu0 0
    %7341 = vmatpush1.bf16.msra.mxu0 0
    %7342 = vmatprep.subr.bf16.mxu0 0
    %7343 = vmatpush1.bf16.msra.mxu0 0
    %7344 = vmatprep.subr.bf16.mxu0 0
    %7345 = vmatpush1.bf16.msra.mxu0 0
    %7346 = vmatprep.subr.bf16.mxu0 0
    %7347 = vmatpush1.bf16.msra.mxu0 0
    %7348 = vmatprep.subr.bf16.mxu0 0
    %7349 = vmatpush1.bf16.msra.mxu0 0
    %7350 = vmatprep.subr.bf16.mxu0 0
    %7351 = vmatpush1.bf16.msra.mxu0 0
    %7352 = vmatprep.subr.bf16.mxu0 0
    %7353 = vmatpush1.bf16.msra.mxu0 0
    %7354 = vmatprep.mubr.bf16.mxu0 0
    %7355 = vmatmul.mubr.bf16.gmra.mrb[0].mxu0 %v7211
    %v7356 = vpop.f32.mrb[0].mxu0
    %v7357 = vadd.f32 0.0, %v7356
    %v7358 = vpop.f32.mrb[0].mxu0
    %v7359 = vadd.f32 0.0, %v7358
    %v7360 = vpop.f32.mrb[0].mxu0
    %v7361 = vadd.f32 0.0, %v7360
    %v7362 = vpop.f32.mrb[0].mxu0
    %v7363 = vadd.f32 0.0, %v7362
    %7364 = vmatprep.mubr.bf16.mxu0 0
    %7365 = vmatmul.mubr.bf16.gmra.mrb[0].mxu0 %v7214
    %v7366 = vpop.f32.mrb[0].mxu0
    %v7367 = vadd.f32 0.0, %v7366
    %v7368 = vpop.f32.mrb[0].mxu0
    %v7369 = vadd.f32 0.0, %v7368
    %v7370 = vpop.f32.mrb[0].mxu0
    %v7371 = vadd.f32 0.0, %v7370
    %v7372 = vpop.f32.mrb[0].mxu0
    %v7373 = vadd.f32 0.0, %v7372
    %7374 = vdwg.mxu0
    %7375 = vmatprep.subr.bf16.mxu0 %v7153
    %7376 = vmatpush1.bf16.msra.mxu0 %v7152
    %7377 = vmatprep.subr.bf16.mxu0 0
    %7378 = vmatpush1.bf16.msra.mxu0 0
    %7379 = vmatprep.subr.bf16.mxu0 0
    %7380 = vmatpush1.bf16.msra.mxu0 0
    %7381 = vmatprep.subr.bf16.mxu0 0
    %7382 = vmatpush1.bf16.msra.mxu0 0
    %7383 = vmatprep.subr.bf16.mxu0 0
    %7384 = vmatpush1.bf16.msra.mxu0 0
    %7385 = vmatprep.subr.bf16.mxu0 0
    %7386 = vmatpush1.bf16.msra.mxu0 0
    %7387 = vmatprep.subr.bf16.mxu0 0
    %7388 = vmatpush1.bf16.msra.mxu0 0
    %7389 = vmatprep.subr.bf16.mxu0 0
    %7390 = vmatpush1.bf16.msra.mxu0 0
    %7391 = vmatprep.subr.bf16.mxu0 0
    %7392 = vmatpush1.bf16.msra.mxu0 0
    %7393 = vmatprep.subr.bf16.mxu0 0
    %7394 = vmatpush1.bf16.msra.mxu0 0
    %7395 = vmatprep.subr.bf16.mxu0 0
    %7396 = vmatpush1.bf16.msra.mxu0 0
    %7397 = vmatprep.subr.bf16.mxu0 0
    %7398 = vmatpush1.bf16.msra.mxu0 0
    %7399 = vmatprep.subr.bf16.mxu0 0
    %7400 = vmatpush1.bf16.msra.mxu0 0
    %7401 = vmatprep.subr.bf16.mxu0 0
    %7402 = vmatpush1.bf16.msra.mxu0 0
    %7403 = vmatprep.subr.bf16.mxu0 0
    %7404 = vmatpush1.bf16.msra.mxu0 0
    %7405 = vmatprep.subr.bf16.mxu0 0
    %7406 = vmatpush1.bf16.msra.mxu0 0
    %7407 = vmatprep.mubr.bf16.mxu0 0
    %7408 = vmatmul.mubr.bf16.gmra.mrb[0].mxu0 %v7211
    %v7409 = vpop.f32.mrb[0].mxu0
    %v7410 = vadd.f32 0.0, %v7409
    %v7411 = vpop.f32.mrb[0].mxu0
    %v7412 = vadd.f32 0.0, %v7411
    %v7413 = vpop.f32.mrb[0].mxu0
    %v7414 = vadd.f32 0.0, %v7413
    %v7415 = vpop.f32.mrb[0].mxu0
    %v7416 = vadd.f32 0.0, %v7415
    %7417 = vmatprep.mubr.bf16.mxu0 0
    %7418 = vmatmul.mubr.bf16.gmra.mrb[0].mxu0 %v7214
    %v7419 = vpop.f32.mrb[0].mxu0
    %v7420 = vadd.f32 0.0, %v7419
    %v7421 = vpop.f32.mrb[0].mxu0
    %v7422 = vadd.f32 0.0, %v7421
    %v7423 = vpop.f32.mrb[0].mxu0
    %v7424 = vadd.f32 0.0, %v7423
    %v7425 = vpop.f32.mrb[0].mxu0
    %v7426 = vadd.f32 0.0, %v7425
    %7427 = vdwg.mxu0
    %7428 = vmatprep.subr.bf16.mxu0 %v7155
    %7429 = vmatpush1.bf16.msra.mxu0 %v7154
    %7430 = vmatprep.subr.bf16.mxu0 0
    %7431 = vmatpush1.bf16.msra.mxu0 0
    %7432 = vmatprep.subr.bf16.mxu0 0
    %7433 = vmatpush1.bf16.msra.mxu0 0
    %7434 = vmatprep.subr.bf16.mxu0 0
    %7435 = vmatpush1.bf16.msra.mxu0 0
    %7436 = vmatprep.subr.bf16.mxu0 0
    %7437 = vmatpush1.bf16.msra.mxu0 0
    %7438 = vmatprep.subr.bf16.mxu0 0
    %7439 = vmatpush1.bf16.msra.mxu0 0
    %7440 = vmatprep.subr.bf16.mxu0 0
    %7441 = vmatpush1.bf16.msra.mxu0 0
    %7442 = vmatprep.subr.bf16.mxu0 0
    %7443 = vmatpush1.bf16.msra.mxu0 0
    %7444 = vmatprep.subr.bf16.mxu0 0
    %7445 = vmatpush1.bf16.msra.mxu0 0
    %7446 = vmatprep.subr.bf16.mxu0 0
    %7447 = vmatpush1.bf16.msra.mxu0 0
    %7448 = vmatprep.subr.bf16.mxu0 0
    %7449 = vmatpush1.bf16.msra.mxu0 0
    %7450 = vmatprep.subr.bf16.mxu0 0
    %7451 = vmatpush1.bf16.msra.mxu0 0
    %7452 = vmatprep.subr.bf16.mxu0 0
    %7453 = vmatpush1.bf16.msra.mxu0 0
    %7454 = vmatprep.subr.bf16.mxu0 0
    %7455 = vmatpush1.bf16.msra.mxu0 0
    %7456 = vmatprep.subr.bf16.mxu0 0
    %7457 = vmatpush1.bf16.msra.mxu0 0
    %7458 = vmatprep.subr.bf16.mxu0 0
    %7459 = vmatpush1.bf16.msra.mxu0 0
    %7460 = vmatprep.mubr.bf16.mxu0 0
    %7461 = vmatmul.mubr.bf16.gmra.mrb[0].mxu0 %v7211
    %v7462 = vpop.f32.mrb[0].mxu0
    %v7463 = vadd.f32 0.0, %v7462
    %v7464 = vpop.f32.mrb[0].mxu0
    %v7465 = vadd.f32 0.0, %v7464
    %v7466 = vpop.f32.mrb[0].mxu0
    %v7467 = vadd.f32 0.0, %v7466
    %v7468 = vpop.f32.mrb[0].mxu0
    %v7469 = vadd.f32 0.0, %v7468
    %7470 = vmatprep.mubr.bf16.mxu0 0
    %7471 = vmatmul.mubr.bf16.gmra.mrb[0].mxu0 %v7214
    %v7472 = vpop.f32.mrb[0].mxu0
    %v7473 = vadd.f32 0.0, %v7472
    %v7474 = vpop.f32.mrb[0].mxu0
    %v7475 = vadd.f32 0.0, %v7474
    %v7476 = vpop.f32.mrb[0].mxu0
    %v7477 = vadd.f32 0.0, %v7476
    %v7478 = vpop.f32.mrb[0].mxu0
    %v7479 = vadd.f32 0.0, %v7478
    %7480 = vdwg.mxu0
    %7481 = vmatprep.subr.bf16.mxu0 %v7157
    %7482 = vmatpush1.bf16.msra.mxu0 %v7156
    %7483 = vmatprep.subr.bf16.mxu0 0
    %7484 = vmatpush1.bf16.msra.mxu0 0
    %7485 = vmatprep.subr.bf16.mxu0 0
    %7486 = vmatpush1.bf16.msra.mxu0 0
    %7487 = vmatprep.subr.bf16.mxu0 0
    %7488 = vmatpush1.bf16.msra.mxu0 0
    %7489 = vmatprep.subr.bf16.mxu0 0
    %7490 = vmatpush1.bf16.msra.mxu0 0
    %7491 = vmatprep.subr.bf16.mxu0 0
    %7492 = vmatpush1.bf16.msra.mxu0 0
    %7493 = vmatprep.subr.bf16.mxu0 0
    %7494 = vmatpush1.bf16.msra.mxu0 0
    %7495 = vmatprep.subr.bf16.mxu0 0
    %7496 = vmatpush1.bf16.msra.mxu0 0
    %7497 = vmatprep.subr.bf16.mxu0 0
    %7498 = vmatpush1.bf16.msra.mxu0 0
    %7499 = vmatprep.subr.bf16.mxu0 0
    %7500 = vmatpush1.bf16.msra.mxu0 0
    %7501 = vmatprep.subr.bf16.mxu0 0
    %7502 = vmatpush1.bf16.msra.mxu0 0
    %7503 = vmatprep.subr.bf16.mxu0 0
    %7504 = vmatpush1.bf16.msra.mxu0 0
    %7505 = vmatprep.subr.bf16.mxu0 0
    %7506 = vmatpush1.bf16.msra.mxu0 0
    %7507 = vmatprep.subr.bf16.mxu0 0
    %7508 = vmatpush1.bf16.msra.mxu0 0
    %7509 = vmatprep.subr.bf16.mxu0 0
    %7510 = vmatpush1.bf16.msra.mxu0 0
    %7511 = vmatprep.subr.bf16.mxu0 0
    %7512 = vmatpush1.bf16.msra.mxu0 0
    %7513 = vmatprep.mubr.bf16.mxu0 0
    %7514 = vmatmul.mubr.bf16.gmra.mrb[0].mxu0 %v7211
    %v7515 = vpop.f32.mrb[0].mxu0
    %v7516 = vadd.f32 0.0, %v7515
    %v7517 = vpop.f32.mrb[0].mxu0
    %v7518 = vadd.f32 0.0, %v7517
    %v7519 = vpop.f32.mrb[0].mxu0
    %v7520 = vadd.f32 0.0, %v7519
    %v7521 = vpop.f32.mrb[0].mxu0
    %v7522 = vadd.f32 0.0, %v7521
    %7523 = vmatprep.mubr.bf16.mxu0 0
    %7524 = vmatmul.mubr.bf16.gmra.mrb[0].mxu0 %v7214
    %v7525 = vpop.f32.mrb[0].mxu0
    %v7526 = vadd.f32 0.0, %v7525
    %v7527 = vpop.f32.mrb[0].mxu0
    %v7528 = vadd.f32 0.0, %v7527
    %v7529 = vpop.f32.mrb[0].mxu0
    %v7530 = vadd.f32 0.0, %v7529
    %v7531 = vpop.f32.mrb[0].mxu0
    %v7532 = vadd.f32 0.0, %v7531
    %7533 = vdwg.mxu0
    %7534 = vmatprep.subr.bf16.mxu0 %v7159
    %7535 = vmatpush1.bf16.msra.mxu0 %v7158
    %7536 = vmatprep.subr.bf16.mxu0 0
    %7537 = vmatpush1.bf16.msra.mxu0 0
    %7538 = vmatprep.subr.bf16.mxu0 0
    %7539 = vmatpush1.bf16.msra.mxu0 0
    %7540 = vmatprep.subr.bf16.mxu0 0
    %7541 = vmatpush1.bf16.msra.mxu0 0
    %7542 = vmatprep.subr.bf16.mxu0 0
    %7543 = vmatpush1.bf16.msra.mxu0 0
    %7544 = vmatprep.subr.bf16.mxu0 0
    %7545 = vmatpush1.bf16.msra.mxu0 0
    %7546 = vmatprep.subr.bf16.mxu0 0
    %7547 = vmatpush1.bf16.msra.mxu0 0
    %7548 = vmatprep.subr.bf16.mxu0 0
    %7549 = vmatpush1.bf16.msra.mxu0 0
    %7550 = vmatprep.subr.bf16.mxu0 0
    %7551 = vmatpush1.bf16.msra.mxu0 0
    %7552 = vmatprep.subr.bf16.mxu0 0
    %7553 = vmatpush1.bf16.msra.mxu0 0
    %7554 = vmatprep.subr.bf16.mxu0 0
    %7555 = vmatpush1.bf16.msra.mxu0 0
    %7556 = vmatprep.subr.bf16.mxu0 0
    %7557 = vmatpush1.bf16.msra.mxu0 0
    %7558 = vmatprep.subr.bf16.mxu0 0
    %7559 = vmatpush1.bf16.msra.mxu0 0
    %7560 = vmatprep.subr.bf16.mxu0 0
    %7561 = vmatpush1.bf16.msra.mxu0 0
    %7562 = vmatprep.subr.bf16.mxu0 0
    %7563 = vmatpush1.bf16.msra.mxu0 0
    %7564 = vmatprep.subr.bf16.mxu0 0
    %7565 = vmatpush1.bf16.msra.mxu0 0
    %7566 = vmatprep.mubr.bf16.mxu0 0
    %7567 = vmatmul.mubr.bf16.gmra.mrb[0].mxu0 %v7211
    %v7568 = vpop.f32.mrb[0].mxu0
    %v7569 = vadd.f32 0.0, %v7568
    %v7570 = vpop.f32.mrb[0].mxu0
    %v7571 = vadd.f32 0.0, %v7570
    %v7572 = vpop.f32.mrb[0].mxu0
    %v7573 = vadd.f32 0.0, %v7572
    %v7574 = vpop.f32.mrb[0].mxu0
    %v7575 = vadd.f32 0.0, %v7574
    %7576 = vmatprep.mubr.bf16.mxu0 0
    %7577 = vmatmul.mubr.bf16.gmra.mrb[0].mxu0 %v7214
    %v7578 = vpop.f32.mrb[0].mxu0
    %v7579 = vadd.f32 0.0, %v7578
    %v7580 = vpop.f32.mrb[0].mxu0
    %v7581 = vadd.f32 0.0, %v7580
    %v7582 = vpop.f32.mrb[0].mxu0
    %v7583 = vadd.f32 0.0, %v7582
    %v7584 = vpop.f32.mrb[0].mxu0
    %v7585 = vadd.f32 0.0, %v7584
    %7586 = vdwg.mxu0
    %7587 = vmatprep.subr.bf16.mxu0 %v7161
    %7588 = vmatpush1.bf16.msra.mxu0 %v7160
    %7589 = vmatprep.subr.bf16.mxu0 0
    %7590 = vmatpush1.bf16.msra.mxu0 0
    %7591 = vmatprep.subr.bf16.mxu0 0
    %7592 = vmatpush1.bf16.msra.mxu0 0
    %7593 = vmatprep.subr.bf16.mxu0 0
    %7594 = vmatpush1.bf16.msra.mxu0 0
    %7595 = vmatprep.subr.bf16.mxu0 0
    %7596 = vmatpush1.bf16.msra.mxu0 0
    %7597 = vmatprep.subr.bf16.mxu0 0
    %7598 = vmatpush1.bf16.msra.mxu0 0
    %7599 = vmatprep.subr.bf16.mxu0 0
    %7600 = vmatpush1.bf16.msra.mxu0 0
    %7601 = vmatprep.subr.bf16.mxu0 0
    %7602 = vmatpush1.bf16.msra.mxu0 0
    %7603 = vmatprep.subr.bf16.mxu0 0
    %7604 = vmatpush1.bf16.msra.mxu0 0
    %7605 = vmatprep.subr.bf16.mxu0 0
    %7606 = vmatpush1.bf16.msra.mxu0 0
    %7607 = vmatprep.subr.bf16.mxu0 0
    %7608 = vmatpush1.bf16.msra.mxu0 0
    %7609 = vmatprep.subr.bf16.mxu0 0
    %7610 = vmatpush1.bf16.msra.mxu0 0
    %7611 = vmatprep.subr.bf16.mxu0 0
    %7612 = vmatpush1.bf16.msra.mxu0 0
    %7613 = vmatprep.subr.bf16.mxu0 0
    %7614 = vmatpush1.bf16.msra.mxu0 0
    %7615 = vmatprep.subr.bf16.mxu0 0
    %7616 = vmatpush1.bf16.msra.mxu0 0
    %7617 = vmatprep.subr.bf16.mxu0 0
    %7618 = vmatpush1.bf16.msra.mxu0 0
    %7619 = vmatprep.mubr.bf16.mxu0 0
    %7620 = vmatmul.mubr.bf16.gmra.mrb[0].mxu0 %v7211
    %v7621 = vpop.f32.mrb[0].mxu0
    %v7622 = vadd.f32 0.0, %v7621
    %v7623 = vpop.f32.mrb[0].mxu0
    %v7624 = vadd.f32 0.0, %v7623
    %v7625 = vpop.f32.mrb[0].mxu0
    %v7626 = vadd.f32 0.0, %v7625
    %v7627 = vpop.f32.mrb[0].mxu0
    %v7628 = vadd.f32 0.0, %v7627
    %7629 = vmatprep.mubr.bf16.mxu0 0
    %7630 = vmatmul.mubr.bf16.gmra.mrb[0].mxu0 %v7214
    %v7631 = vpop.f32.mrb[0].mxu0
    %v7632 = vadd.f32 0.0, %v7631
    %v7633 = vpop.f32.mrb[0].mxu0
    %v7634 = vadd.f32 0.0, %v7633
    %v7635 = vpop.f32.mrb[0].mxu0
    %v7636 = vadd.f32 0.0, %v7635
    %v7637 = vpop.f32.mrb[0].mxu0
    %v7638 = vadd.f32 0.0, %v7637
    %7639 = vdwg.mxu0
    %7640 = vmatprep.subr.bf16.mxu0 %v7163
    %7641 = vmatpush1.bf16.msra.mxu0 %v7162
    %7642 = vmatprep.subr.bf16.mxu0 0
    %7643 = vmatpush1.bf16.msra.mxu0 0
    %7644 = vmatprep.subr.bf16.mxu0 0
    %7645 = vmatpush1.bf16.msra.mxu0 0
    %7646 = vmatprep.subr.bf16.mxu0 0
    %7647 = vmatpush1.bf16.msra.mxu0 0
    %7648 = vmatprep.subr.bf16.mxu0 0
    %7649 = vmatpush1.bf16.msra.mxu0 0
    %7650 = vmatprep.subr.bf16.mxu0 0
    %7651 = vmatpush1.bf16.msra.mxu0 0
    %7652 = vmatprep.subr.bf16.mxu0 0
    %7653 = vmatpush1.bf16.msra.mxu0 0
    %7654 = vmatprep.subr.bf16.mxu0 0
    %7655 = vmatpush1.bf16.msra.mxu0 0
    %7656 = vmatprep.subr.bf16.mxu0 0
    %7657 = vmatpush1.bf16.msra.mxu0 0
    %7658 = vmatprep.subr.bf16.mxu0 0
    %7659 = vmatpush1.bf16.msra.mxu0 0
    %7660 = vmatprep.subr.bf16.mxu0 0
    %7661 = vmatpush1.bf16.msra.mxu0 0
    %7662 = vmatprep.subr.bf16.mxu0 0
    %7663 = vmatpush1.bf16.msra.mxu0 0
    %7664 = vmatprep.subr.bf16.mxu0 0
    %7665 = vmatpush1.bf16.msra.mxu0 0
    %7666 = vmatprep.subr.bf16.mxu0 0
    %7667 = vmatpush1.bf16.msra.mxu0 0
    %7668 = vmatprep.subr.bf16.mxu0 0
    %7669 = vmatpush1.bf16.msra.mxu0 0
    %7670 = vmatprep.subr.bf16.mxu0 0
    %7671 = vmatpush1.bf16.msra.mxu0 0
    %7672 = vmatprep.mubr.bf16.mxu0 0
    %7673 = vmatmul.mubr.bf16.gmra.mrb[0].mxu0 %v7211
    %v7674 = vpop.f32.mrb[0].mxu0
    %v7675 = vadd.f32 0.0, %v7674
    %v7676 = vpop.f32.mrb[0].mxu0
    %v7677 = vadd.f32 0.0, %v7676
    %v7678 = vpop.f32.mrb[0].mxu0
    %v7679 = vadd.f32 0.0, %v7678
    %v7680 = vpop.f32.mrb[0].mxu0
    %v7681 = vadd.f32 0.0, %v7680
    %7682 = vmatprep.mubr.bf16.mxu0 0
    %7683 = vmatmul.mubr.bf16.gmra.mrb[0].mxu0 %v7214
    %v7684 = vpop.f32.mrb[0].mxu0
    %v7685 = vadd.f32 0.0, %v7684
    %v7686 = vpop.f32.mrb[0].mxu0
    %v7687 = vadd.f32 0.0, %v7686
    %v7688 = vpop.f32.mrb[0].mxu0
    %v7689 = vadd.f32 0.0, %v7688
    %v7690 = vpop.f32.mrb[0].mxu0
    %v7691 = vadd.f32 0.0, %v7690
    %7692 = vdwg.mxu0
    %7693 = vmatprep.subr.bf16.mxu0 %v7165
    %7694 = vmatpush1.bf16.msra.mxu0 %v7164
    %7695 = vmatprep.subr.bf16.mxu0 0
    %7696 = vmatpush1.bf16.msra.mxu0 0
    %7697 = vmatprep.subr.bf16.mxu0 0
    %7698 = vmatpush1.bf16.msra.mxu0 0
    %7699 = vmatprep.subr.bf16.mxu0 0
    %7700 = vmatpush1.bf16.msra.mxu0 0
    %7701 = vmatprep.subr.bf16.mxu0 0
    %7702 = vmatpush1.bf16.msra.mxu0 0
    %7703 = vmatprep.subr.bf16.mxu0 0
    %7704 = vmatpush1.bf16.msra.mxu0 0
    %7705 = vmatprep.subr.bf16.mxu0 0
    %7706 = vmatpush1.bf16.msra.mxu0 0
    %7707 = vmatprep.subr.bf16.mxu0 0
    %7708 = vmatpush1.bf16.msra.mxu0 0
    %7709 = vmatprep.subr.bf16.mxu0 0
    %7710 = vmatpush1.bf16.msra.mxu0 0
    %7711 = vmatprep.subr.bf16.mxu0 0
    %7712 = vmatpush1.bf16.msra.mxu0 0
    %7713 = vmatprep.subr.bf16.mxu0 0
    %7714 = vmatpush1.bf16.msra.mxu0 0
    %7715 = vmatprep.subr.bf16.mxu0 0
    %7716 = vmatpush1.bf16.msra.mxu0 0
    %7717 = vmatprep.subr.bf16.mxu0 0
    %7718 = vmatpush1.bf16.msra.mxu0 0
    %7719 = vmatprep.subr.bf16.mxu0 0
    %7720 = vmatpush1.bf16.msra.mxu0 0
    %7721 = vmatprep.subr.bf16.mxu0 0
    %7722 = vmatpush1.bf16.msra.mxu0 0
    %7723 = vmatprep.subr.bf16.mxu0 0
    %7724 = vmatpush1.bf16.msra.mxu0 0
    %7725 = vmatprep.mubr.bf16.mxu0 0
    %7726 = vmatmul.mubr.bf16.gmra.mrb[0].mxu0 %v7211
    %v7727 = vpop.f32.mrb[0].mxu0
    %v7728 = vadd.f32 0.0, %v7727
    %v7729 = vpop.f32.mrb[0].mxu0
    %v7730 = vadd.f32 0.0, %v7729
    %v7731 = vpop.f32.mrb[0].mxu0
    %v7732 = vadd.f32 0.0, %v7731
    %v7733 = vpop.f32.mrb[0].mxu0
    %v7734 = vadd.f32 0.0, %v7733
    %7735 = vmatprep.mubr.bf16.mxu0 0
    %7736 = vmatmul.mubr.bf16.gmra.mrb[0].mxu0 %v7214
    %v7737 = vpop.f32.mrb[0].mxu0
    %v7738 = vadd.f32 0.0, %v7737
    %v7739 = vpop.f32.mrb[0].mxu0
    %v7740 = vadd.f32 0.0, %v7739
    %v7741 = vpop.f32.mrb[0].mxu0
    %v7742 = vadd.f32 0.0, %v7741
    %v7743 = vpop.f32.mrb[0].mxu0
    %v7744 = vadd.f32 0.0, %v7743
    %7745 = vdwg.mxu0
    %7746 = vmatprep.subr.bf16.mxu0 %v7167
    %7747 = vmatpush1.bf16.msra.mxu0 %v7166
    %7748 = vmatprep.subr.bf16.mxu0 0
    %7749 = vmatpush1.bf16.msra.mxu0 0
    %7750 = vmatprep.subr.bf16.mxu0 0
    %7751 = vmatpush1.bf16.msra.mxu0 0
    %7752 = vmatprep.subr.bf16.mxu0 0
    %7753 = vmatpush1.bf16.msra.mxu0 0
    %7754 = vmatprep.subr.bf16.mxu0 0
    %7755 = vmatpush1.bf16.msra.mxu0 0
    %7756 = vmatprep.subr.bf16.mxu0 0
    %7757 = vmatpush1.bf16.msra.mxu0 0
    %7758 = vmatprep.subr.bf16.mxu0 0
    %7759 = vmatpush1.bf16.msra.mxu0 0
    %7760 = vmatprep.subr.bf16.mxu0 0
    %7761 = vmatpush1.bf16.msra.mxu0 0
    %7762 = vmatprep.subr.bf16.mxu0 0
    %7763 = vmatpush1.bf16.msra.mxu0 0
    %7764 = vmatprep.subr.bf16.mxu0 0
    %7765 = vmatpush1.bf16.msra.mxu0 0
    %7766 = vmatprep.subr.bf16.mxu0 0
    %7767 = vmatpush1.bf16.msra.mxu0 0
    %7768 = vmatprep.subr.bf16.mxu0 0
    %7769 = vmatpush1.bf16.msra.mxu0 0
    %7770 = vmatprep.subr.bf16.mxu0 0
    %7771 = vmatpush1.bf16.msra.mxu0 0
    %7772 = vmatprep.subr.bf16.mxu0 0
    %7773 = vmatpush1.bf16.msra.mxu0 0
    %7774 = vmatprep.subr.bf16.mxu0 0
    %7775 = vmatpush1.bf16.msra.mxu0 0
    %7776 = vmatprep.subr.bf16.mxu0 0
    %7777 = vmatpush1.bf16.msra.mxu0 0
    %7778 = vmatprep.mubr.bf16.mxu0 0
    %7779 = vmatmul.mubr.bf16.gmra.mrb[0].mxu0 %v7211
    %v7780 = vpop.f32.mrb[0].mxu0
    %v7781 = vadd.f32 0.0, %v7780
    %v7782 = vpop.f32.mrb[0].mxu0
    %v7783 = vadd.f32 0.0, %v7782
    %v7784 = vpop.f32.mrb[0].mxu0
    %v7785 = vadd.f32 0.0, %v7784
    %v7786 = vpop.f32.mrb[0].mxu0
    %v7787 = vadd.f32 0.0, %v7786
    %7788 = vmatprep.mubr.bf16.mxu0 0
    %7789 = vmatmul.mubr.bf16.gmra.mrb[0].mxu0 %v7214
    %v7790 = vpop.f32.mrb[0].mxu0
    %v7791 = vadd.f32 0.0, %v7790
    %v7792 = vpop.f32.mrb[0].mxu0
    %v7793 = vadd.f32 0.0, %v7792
    %v7794 = vpop.f32.mrb[0].mxu0
    %v7795 = vadd.f32 0.0, %v7794
    %v7796 = vpop.f32.mrb[0].mxu0
    %v7797 = vadd.f32 0.0, %v7796
    %7798 = vdwg.mxu0
    %7799 = vmatprep.subr.bf16.mxu0 %v7169
    %7800 = vmatpush1.bf16.msra.mxu0 %v7168
    %7801 = vmatprep.subr.bf16.mxu0 0
    %7802 = vmatpush1.bf16.msra.mxu0 0
    %7803 = vmatprep.subr.bf16.mxu0 0
    %7804 = vmatpush1.bf16.msra.mxu0 0
    %7805 = vmatprep.subr.bf16.mxu0 0
    %7806 = vmatpush1.bf16.msra.mxu0 0
    %7807 = vmatprep.subr.bf16.mxu0 0
    %7808 = vmatpush1.bf16.msra.mxu0 0
    %7809 = vmatprep.subr.bf16.mxu0 0
    %7810 = vmatpush1.bf16.msra.mxu0 0
    %7811 = vmatprep.subr.bf16.mxu0 0
    %7812 = vmatpush1.bf16.msra.mxu0 0
    %7813 = vmatprep.subr.bf16.mxu0 0
    %7814 = vmatpush1.bf16.msra.mxu0 0
    %7815 = vmatprep.subr.bf16.mxu0 0
    %7816 = vmatpush1.bf16.msra.mxu0 0
    %7817 = vmatprep.subr.bf16.mxu0 0
    %7818 = vmatpush1.bf16.msra.mxu0 0
    %7819 = vmatprep.subr.bf16.mxu0 0
    %7820 = vmatpush1.bf16.msra.mxu0 0
    %7821 = vmatprep.subr.bf16.mxu0 0
    %7822 = vmatpush1.bf16.msra.mxu0 0
    %7823 = vmatprep.subr.bf16.mxu0 0
    %7824 = vmatpush1.bf16.msra.mxu0 0
    %7825 = vmatprep.subr.bf16.mxu0 0
    %7826 = vmatpush1.bf16.msra.mxu0 0
    %7827 = vmatprep.subr.bf16.mxu0 0
    %7828 = vmatpush1.bf16.msra.mxu0 0
    %7829 = vmatprep.subr.bf16.mxu0 0
    %7830 = vmatpush1.bf16.msra.mxu0 0
    %7831 = vmatprep.mubr.bf16.mxu0 0
    %7832 = vmatmul.mubr.bf16.gmra.mrb[0].mxu0 %v7211
    %v7833 = vpop.f32.mrb[0].mxu0
    %v7834 = vadd.f32 0.0, %v7833
    %v7835 = vpop.f32.mrb[0].mxu0
    %v7836 = vadd.f32 0.0, %v7835
    %v7837 = vpop.f32.mrb[0].mxu0
    %v7838 = vadd.f32 0.0, %v7837
    %v7839 = vpop.f32.mrb[0].mxu0
    %v7840 = vadd.f32 0.0, %v7839
    %7841 = vmatprep.mubr.bf16.mxu0 0
    %7842 = vmatmul.mubr.bf16.gmra.mrb[0].mxu0 %v7214
    %v7843 = vpop.f32.mrb[0].mxu0
    %v7844 = vadd.f32 0.0, %v7843
    %v7845 = vpop.f32.mrb[0].mxu0
    %v7846 = vadd.f32 0.0, %v7845
    %v7847 = vpop.f32.mrb[0].mxu0
    %v7848 = vadd.f32 0.0, %v7847
    %v7849 = vpop.f32.mrb[0].mxu0
    %v7850 = vadd.f32 0.0, %v7849
    %7851 = vdwg.mxu0
    %7852 = vmatprep.subr.bf16.mxu0 %v7171
    %7853 = vmatpush1.bf16.msra.mxu0 %v7170
    %7854 = vmatprep.subr.bf16.mxu0 0
    %7855 = vmatpush1.bf16.msra.mxu0 0
    %7856 = vmatprep.subr.bf16.mxu0 0
    %7857 = vmatpush1.bf16.msra.mxu0 0
    %7858 = vmatprep.subr.bf16.mxu0 0
    %7859 = vmatpush1.bf16.msra.mxu0 0
    %7860 = vmatprep.subr.bf16.mxu0 0
    %7861 = vmatpush1.bf16.msra.mxu0 0
    %7862 = vmatprep.subr.bf16.mxu0 0
    %7863 = vmatpush1.bf16.msra.mxu0 0
    %7864 = vmatprep.subr.bf16.mxu0 0
    %7865 = vmatpush1.bf16.msra.mxu0 0
    %7866 = vmatprep.subr.bf16.mxu0 0
    %7867 = vmatpush1.bf16.msra.mxu0 0
    %7868 = vmatprep.subr.bf16.mxu0 0
    %7869 = vmatpush1.bf16.msra.mxu0 0
    %7870 = vmatprep.subr.bf16.mxu0 0
    %7871 = vmatpush1.bf16.msra.mxu0 0
    %7872 = vmatprep.subr.bf16.mxu0 0
    %7873 = vmatpush1.bf16.msra.mxu0 0
    %7874 = vmatprep.subr.bf16.mxu0 0
    %7875 = vmatpush1.bf16.msra.mxu0 0
    %7876 = vmatprep.subr.bf16.mxu0 0
    %7877 = vmatpush1.bf16.msra.mxu0 0
    %7878 = vmatprep.subr.bf16.mxu0 0
    %7879 = vmatpush1.bf16.msra.mxu0 0
    %7880 = vmatprep.subr.bf16.mxu0 0
    %7881 = vmatpush1.bf16.msra.mxu0 0
    %7882 = vmatprep.subr.bf16.mxu0 0
    %7883 = vmatpush1.bf16.msra.mxu0 0
    %7884 = vmatprep.mubr.bf16.mxu0 0
    %7885 = vmatmul.mubr.bf16.gmra.mrb[0].mxu0 %v7211
    %v7886 = vpop.f32.mrb[0].mxu0
    %v7887 = vadd.f32 0.0, %v7886
    %v7888 = vpop.f32.mrb[0].mxu0
    %v7889 = vadd.f32 0.0, %v7888
    %v7890 = vpop.f32.mrb[0].mxu0
    %v7891 = vadd.f32 0.0, %v7890
    %v7892 = vpop.f32.mrb[0].mxu0
    %v7893 = vadd.f32 0.0, %v7892
    %7894 = vmatprep.mubr.bf16.mxu0 0
    %7895 = vmatmul.mubr.bf16.gmra.mrb[0].mxu0 %v7214
    %v7896 = vpop.f32.mrb[0].mxu0
    %v7897 = vadd.f32 0.0, %v7896
    %v7898 = vpop.f32.mrb[0].mxu0
    %v7899 = vadd.f32 0.0, %v7898
    %v7900 = vpop.f32.mrb[0].mxu0
    %v7901 = vadd.f32 0.0, %v7900
    %v7902 = vpop.f32.mrb[0].mxu0
    %v7903 = vadd.f32 0.0, %v7902
    %7904 = vdwg.mxu0
    %7905 = vmatprep.subr.bf16.mxu0 %v7173
    %7906 = vmatpush1.bf16.msra.mxu0 %v7172
    %7907 = vmatprep.subr.bf16.mxu0 0
    %7908 = vmatpush1.bf16.msra.mxu0 0
    %7909 = vmatprep.subr.bf16.mxu0 0
    %7910 = vmatpush1.bf16.msra.mxu0 0
    %7911 = vmatprep.subr.bf16.mxu0 0
    %7912 = vmatpush1.bf16.msra.mxu0 0
    %7913 = vmatprep.subr.bf16.mxu0 0
    %7914 = vmatpush1.bf16.msra.mxu0 0
    %7915 = vmatprep.subr.bf16.mxu0 0
    %7916 = vmatpush1.bf16.msra.mxu0 0
    %7917 = vmatprep.subr.bf16.mxu0 0
    %7918 = vmatpush1.bf16.msra.mxu0 0
    %7919 = vmatprep.subr.bf16.mxu0 0
    %7920 = vmatpush1.bf16.msra.mxu0 0
    %7921 = vmatprep.subr.bf16.mxu0 0
    %7922 = vmatpush1.bf16.msra.mxu0 0
    %7923 = vmatprep.subr.bf16.mxu0 0
    %7924 = vmatpush1.bf16.msra.mxu0 0
    %7925 = vmatprep.subr.bf16.mxu0 0
    %7926 = vmatpush1.bf16.msra.mxu0 0
    %7927 = vmatprep.subr.bf16.mxu0 0
    %7928 = vmatpush1.bf16.msra.mxu0 0
    %7929 = vmatprep.subr.bf16.mxu0 0
    %7930 = vmatpush1.bf16.msra.mxu0 0
    %7931 = vmatprep.subr.bf16.mxu0 0
    %7932 = vmatpush1.bf16.msra.mxu0 0
    %7933 = vmatprep.subr.bf16.mxu0 0
    %7934 = vmatpush1.bf16.msra.mxu0 0
    %7935 = vmatprep.subr.bf16.mxu0 0
    %7936 = vmatpush1.bf16.msra.mxu0 0
    %7937 = vmatprep.mubr.bf16.mxu0 0
    %7938 = vmatmul.mubr.bf16.gmra.mrb[0].mxu0 %v7211
    %v7939 = vpop.f32.mrb[0].mxu0
    %v7940 = vadd.f32 0.0, %v7939
    %v7941 = vpop.f32.mrb[0].mxu0
    %v7942 = vadd.f32 0.0, %v7941
    %v7943 = vpop.f32.mrb[0].mxu0
    %v7944 = vadd.f32 0.0, %v7943
    %v7945 = vpop.f32.mrb[0].mxu0
    %v7946 = vadd.f32 0.0, %v7945
    %7947 = vmatprep.mubr.bf16.mxu0 0
    %7948 = vmatmul.mubr.bf16.gmra.mrb[0].mxu0 %v7214
    %v7949 = vpop.f32.mrb[0].mxu0
    %v7950 = vadd.f32 0.0, %v7949
    %v7951 = vpop.f32.mrb[0].mxu0
    %v7952 = vadd.f32 0.0, %v7951
    %v7953 = vpop.f32.mrb[0].mxu0
    %v7954 = vadd.f32 0.0, %v7953
    %v7955 = vpop.f32.mrb[0].mxu0
    %v7956 = vadd.f32 0.0, %v7955
    %7957 = vdwg.mxu0
    %7958 = vmatprep.subr.bf16.mxu0 %v7175
    %7959 = vmatpush1.bf16.msra.mxu0 %v7174
    %7960 = vmatprep.subr.bf16.mxu0 0
    %7961 = vmatpush1.bf16.msra.mxu0 0
    %7962 = vmatprep.subr.bf16.mxu0 0
    %7963 = vmatpush1.bf16.msra.mxu0 0
    %7964 = vmatprep.subr.bf16.mxu0 0
    %7965 = vmatpush1.bf16.msra.mxu0 0
    %7966 = vmatprep.subr.bf16.mxu0 0
    %7967 = vmatpush1.bf16.msra.mxu0 0
    %7968 = vmatprep.subr.bf16.mxu0 0
    %7969 = vmatpush1.bf16.msra.mxu0 0
    %7970 = vmatprep.subr.bf16.mxu0 0
    %7971 = vmatpush1.bf16.msra.mxu0 0
    %7972 = vmatprep.subr.bf16.mxu0 0
    %7973 = vmatpush1.bf16.msra.mxu0 0
    %7974 = vmatprep.subr.bf16.mxu0 0
    %7975 = vmatpush1.bf16.msra.mxu0 0
    %7976 = vmatprep.subr.bf16.mxu0 0
    %7977 = vmatpush1.bf16.msra.mxu0 0
    %7978 = vmatprep.subr.bf16.mxu0 0
    %7979 = vmatpush1.bf16.msra.mxu0 0
    %7980 = vmatprep.subr.bf16.mxu0 0
    %7981 = vmatpush1.bf16.msra.mxu0 0
    %7982 = vmatprep.subr.bf16.mxu0 0
    %7983 = vmatpush1.bf16.msra.mxu0 0
    %7984 = vmatprep.subr.bf16.mxu0 0
    %7985 = vmatpush1.bf16.msra.mxu0 0
    %7986 = vmatprep.subr.bf16.mxu0 0
    %7987 = vmatpush1.bf16.msra.mxu0 0
    %7988 = vmatprep.subr.bf16.mxu0 0
    %7989 = vmatpush1.bf16.msra.mxu0 0
    %7990 = vmatprep.mubr.bf16.mxu0 0
    %7991 = vmatmul.mubr.bf16.gmra.mrb[0].mxu0 %v7211
    %v7992 = vpop.f32.mrb[0].mxu0
    %v7993 = vadd.f32 0.0, %v7992
    %v7994 = vpop.f32.mrb[0].mxu0
    %v7995 = vadd.f32 0.0, %v7994
    %v7996 = vpop.f32.mrb[0].mxu0
    %v7997 = vadd.f32 0.0, %v7996
    %v7998 = vpop.f32.mrb[0].mxu0
    %v7999 = vadd.f32 0.0, %v7998
    %8000 = vmatprep.mubr.bf16.mxu0 0
    %8001 = vmatmul.mubr.bf16.gmra.mrb[0].mxu0 %v7214
    %v8002 = vpop.f32.mrb[0].mxu0
    %v8003 = vadd.f32 0.0, %v8002
    %v8004 = vpop.f32.mrb[0].mxu0
    %v8005 = vadd.f32 0.0, %v8004
    %v8006 = vpop.f32.mrb[0].mxu0
    %v8007 = vadd.f32 0.0, %v8006
    %v8008 = vpop.f32.mrb[0].mxu0
    %v8009 = vadd.f32 0.0, %v8008
    %8010 = vdwg.mxu0
    %8011 = vmatprep.subr.bf16.mxu0 %v7177
    %8012 = vmatpush1.bf16.msra.mxu0 %v7176
    %8013 = vmatprep.subr.bf16.mxu0 0
    %8014 = vmatpush1.bf16.msra.mxu0 0
    %8015 = vmatprep.subr.bf16.mxu0 0
    %8016 = vmatpush1.bf16.msra.mxu0 0
    %8017 = vmatprep.subr.bf16.mxu0 0
    %8018 = vmatpush1.bf16.msra.mxu0 0
    %8019 = vmatprep.subr.bf16.mxu0 0
    %8020 = vmatpush1.bf16.msra.mxu0 0
    %8021 = vmatprep.subr.bf16.mxu0 0
    %8022 = vmatpush1.bf16.msra.mxu0 0
    %8023 = vmatprep.subr.bf16.mxu0 0
    %8024 = vmatpush1.bf16.msra.mxu0 0
    %8025 = vmatprep.subr.bf16.mxu0 0
    %8026 = vmatpush1.bf16.msra.mxu0 0
    %8027 = vmatprep.subr.bf16.mxu0 0
    %8028 = vmatpush1.bf16.msra.mxu0 0
    %8029 = vmatprep.subr.bf16.mxu0 0
    %8030 = vmatpush1.bf16.msra.mxu0 0
    %8031 = vmatprep.subr.bf16.mxu0 0
    %8032 = vmatpush1.bf16.msra.mxu0 0
    %8033 = vmatprep.subr.bf16.mxu0 0
    %8034 = vmatpush1.bf16.msra.mxu0 0
    %8035 = vmatprep.subr.bf16.mxu0 0
    %8036 = vmatpush1.bf16.msra.mxu0 0
    %8037 = vmatprep.subr.bf16.mxu0 0
    %8038 = vmatpush1.bf16.msra.mxu0 0
    %8039 = vmatprep.subr.bf16.mxu0 0
    %8040 = vmatpush1.bf16.msra.mxu0 0
    %8041 = vmatprep.subr.bf16.mxu0 0
    %8042 = vmatpush1.bf16.msra.mxu0 0
    %8043 = vmatprep.mubr.bf16.mxu0 0
    %8044 = vmatmul.mubr.bf16.gmra.mrb[0].mxu0 %v7211
    %v8045 = vpop.f32.mrb[0].mxu0
    %v8046 = vadd.f32 0.0, %v8045
    %v8047 = vpop.f32.mrb[0].mxu0
    %v8048 = vadd.f32 0.0, %v8047
    %v8049 = vpop.f32.mrb[0].mxu0
    %v8050 = vadd.f32 0.0, %v8049
    %v8051 = vpop.f32.mrb[0].mxu0
    %v8052 = vadd.f32 0.0, %v8051
    %8053 = vmatprep.mubr.bf16.mxu0 0
    %8054 = vmatmul.mubr.bf16.gmra.mrb[0].mxu0 %v7214
    %v8055 = vpop.f32.mrb[0].mxu0
    %v8056 = vadd.f32 0.0, %v8055
    %v8057 = vpop.f32.mrb[0].mxu0
    %v8058 = vadd.f32 0.0, %v8057
    %v8059 = vpop.f32.mrb[0].mxu0
    %v8060 = vadd.f32 0.0, %v8059
    %v8061 = vpop.f32.mrb[0].mxu0
    %v8062 = vadd.f32 0.0, %v8061
    %8063 = vdwg.mxu0
    %v8064 = vld [vmem:[#allocation13] sm:$0xff]
    %v8065 = vld [vmem:[#allocation13 + $0x8] sm:$0xff]
    %v8066 = vld [vmem:[#allocation13 + $0x10] sm:$0xff]
    %v8067 = vld [vmem:[#allocation13 + $0x18] sm:$0xff]
    %v8068 = vld [vmem:[%s9] sm:$0xff]
    %v8069 = vld [vmem:[%s9 + $0x8] sm:$0xff]
    %v8070 = vld [vmem:[%s9 + $0x10] sm:$0xff]
    %v8071 = vld [vmem:[%s9 + $0x18] sm:$0xff]
    %v8072 = vrot.slane %v7251, 4
    %v8073 = vadd.f32 %v7251, %v8072
    %v8074 = vrot.slane %v8073, 2
    %v8075 = vadd.f32 %v8073, %v8074
    %v8076 = vrot.slane %v8075, 1
    %v8077 = vadd.f32 %v8075, %v8076
    %v8078 = vrot.slane %v7253, 4
    %v8079 = vadd.f32 %v7253, %v8078
    %v8080 = vrot.slane %v8079, 2
    %v8081 = vadd.f32 %v8079, %v8080
    %v8082 = vrot.slane %v8081, 1
    %v8083 = vadd.f32 %v8081, %v8082
    %v8084 = vrot.slane %v7304, 4
    %v8085 = vadd.f32 %v7304, %v8084
    %v8086 = vrot.slane %v8085, 2
    %v8087 = vadd.f32 %v8085, %v8086
    %v8088 = vrot.slane %v8087, 1
    %v8089 = vadd.f32 %v8087, %v8088
    %v8090 = vrot.slane %v7306, 4
    %v8091 = vadd.f32 %v7306, %v8090
    %v8092 = vrot.slane %v8091, 2
    %v8093 = vadd.f32 %v8091, %v8092
    %v8094 = vrot.slane %v8093, 1
    %v8095 = vadd.f32 %v8093, %v8094
    %v8096 = vrot.slane %v7357, 4
    %v8097 = vadd.f32 %v7357, %v8096
    %v8098 = vrot.slane %v8097, 2
    %v8099 = vadd.f32 %v8097, %v8098
    %v8100 = vrot.slane %v8099, 1
    %v8101 = vadd.f32 %v8099, %v8100
    %v8102 = vrot.slane %v7359, 4
    %v8103 = vadd.f32 %v7359, %v8102
    %v8104 = vrot.slane %v8103, 2
    %v8105 = vadd.f32 %v8103, %v8104
    %v8106 = vrot.slane %v8105, 1
    %v8107 = vadd.f32 %v8105, %v8106
    %v8108 = vrot.slane %v7410, 4
    %v8109 = vadd.f32 %v7410, %v8108
    %v8110 = vrot.slane %v8109, 2
    %v8111 = vadd.f32 %v8109, %v8110
    %v8112 = vrot.slane %v8111, 1
    %v8113 = vadd.f32 %v8111, %v8112
    %v8114 = vrot.slane %v7412, 4
    %v8115 = vadd.f32 %v7412, %v8114
    %v8116 = vrot.slane %v8115, 2
    %v8117 = vadd.f32 %v8115, %v8116
    %v8118 = vrot.slane %v8117, 1
    %v8119 = vadd.f32 %v8117, %v8118
    %v8120 = vrot.slane %v7463, 4
    %v8121 = vadd.f32 %v7463, %v8120
    %v8122 = vrot.slane %v8121, 2
    %v8123 = vadd.f32 %v8121, %v8122
    %v8124 = vrot.slane %v8123, 1
    %v8125 = vadd.f32 %v8123, %v8124
    %v8126 = vrot.slane %v7465, 4
    %v8127 = vadd.f32 %v7465, %v8126
    %v8128 = vrot.slane %v8127, 2
    %v8129 = vadd.f32 %v8127, %v8128
    %v8130 = vrot.slane %v8129, 1
    %v8131 = vadd.f32 %v8129, %v8130
    %v8132 = vrot.slane %v7516, 4
    %v8133 = vadd.f32 %v7516, %v8132
    %v8134 = vrot.slane %v8133, 2
    %v8135 = vadd.f32 %v8133, %v8134
    %v8136 = vrot.slane %v8135, 1
    %v8137 = vadd.f32 %v8135, %v8136
    %v8138 = vrot.slane %v7518, 4
    %v8139 = vadd.f32 %v7518, %v8138
    %v8140 = vrot.slane %v8139, 2
    %v8141 = vadd.f32 %v8139, %v8140
    %v8142 = vrot.slane %v8141, 1
    %v8143 = vadd.f32 %v8141, %v8142
    %v8144 = vrot.slane %v7569, 4
    %v8145 = vadd.f32 %v7569, %v8144
    %v8146 = vrot.slane %v8145, 2
    %v8147 = vadd.f32 %v8145, %v8146
    %v8148 = vrot.slane %v8147, 1
    %v8149 = vadd.f32 %v8147, %v8148
    %v8150 = vrot.slane %v7571, 4
    %v8151 = vadd.f32 %v7571, %v8150
    %v8152 = vrot.slane %v8151, 2
    %v8153 = vadd.f32 %v8151, %v8152
    %v8154 = vrot.slane %v8153, 1
    %v8155 = vadd.f32 %v8153, %v8154
    %v8156 = vrot.slane %v7622, 4
    %v8157 = vadd.f32 %v7622, %v8156
    %v8158 = vrot.slane %v8157, 2
    %v8159 = vadd.f32 %v8157, %v8158
    %v8160 = vrot.slane %v8159, 1
    %v8161 = vadd.f32 %v8159, %v8160
    %v8162 = vrot.slane %v7624, 4
    %v8163 = vadd.f32 %v7624, %v8162
    %v8164 = vrot.slane %v8163, 2
    %v8165 = vadd.f32 %v8163, %v8164
    %v8166 = vrot.slane %v8165, 1
    %v8167 = vadd.f32 %v8165, %v8166
    %v8168 = vrot.slane %v7675, 4
    %v8169 = vadd.f32 %v7675, %v8168
    %v8170 = vrot.slane %v8169, 2
    %v8171 = vadd.f32 %v8169, %v8170
    %v8172 = vrot.slane %v8171, 1
    %v8173 = vadd.f32 %v8171, %v8172
    %v8174 = vrot.slane %v7677, 4
    %v8175 = vadd.f32 %v7677, %v8174
    %v8176 = vrot.slane %v8175, 2
    %v8177 = vadd.f32 %v8175, %v8176
    %v8178 = vrot.slane %v8177, 1
    %v8179 = vadd.f32 %v8177, %v8178
    %v8180 = vrot.slane %v7728, 4
    %v8181 = vadd.f32 %v7728, %v8180
    %v8182 = vrot.slane %v8181, 2
    %v8183 = vadd.f32 %v8181, %v8182
    %v8184 = vrot.slane %v8183, 1
    %v8185 = vadd.f32 %v8183, %v8184
    %v8186 = vrot.slane %v7730, 4
    %v8187 = vadd.f32 %v7730, %v8186
    %v8188 = vrot.slane %v8187, 2
    %v8189 = vadd.f32 %v8187, %v8188
    %v8190 = vrot.slane %v8189, 1
    %v8191 = vadd.f32 %v8189, %v8190
    %v8192 = vrot.slane %v7781, 4
    %v8193 = vadd.f32 %v7781, %v8192
    %v8194 = vrot.slane %v8193, 2
    %v8195 = vadd.f32 %v8193, %v8194
    %v8196 = vrot.slane %v8195, 1
    %v8197 = vadd.f32 %v8195, %v8196
    %v8198 = vrot.slane %v7783, 4
    %v8199 = vadd.f32 %v7783, %v8198
    %v8200 = vrot.slane %v8199, 2
    %v8201 = vadd.f32 %v8199, %v8200
    %v8202 = vrot.slane %v8201, 1
    %v8203 = vadd.f32 %v8201, %v8202
    %v8204 = vrot.slane %v7834, 4
    %v8205 = vadd.f32 %v7834, %v8204
    %v8206 = vrot.slane %v8205, 2
    %v8207 = vadd.f32 %v8205, %v8206
    %v8208 = vrot.slane %v8207, 1
    %v8209 = vadd.f32 %v8207, %v8208
    %v8210 = vrot.slane %v7836, 4
    %v8211 = vadd.f32 %v7836, %v8210
    %v8212 = vrot.slane %v8211, 2
    %v8213 = vadd.f32 %v8211, %v8212
    %v8214 = vrot.slane %v8213, 1
    %v8215 = vadd.f32 %v8213, %v8214
    %v8216 = vrot.slane %v7887, 4
    %v8217 = vadd.f32 %v7887, %v8216
    %v8218 = vrot.slane %v8217, 2
    %v8219 = vadd.f32 %v8217, %v8218
    %v8220 = vrot.slane %v8219, 1
    %v8221 = vadd.f32 %v8219, %v8220
    %v8222 = vrot.slane %v7889, 4
    %v8223 = vadd.f32 %v7889, %v8222
    %v8224 = vrot.slane %v8223, 2
    %v8225 = vadd.f32 %v8223, %v8224
    %v8226 = vrot.slane %v8225, 1
    %v8227 = vadd.f32 %v8225, %v8226
    %v8228 = vrot.slane %v7940, 4
    %v8229 = vadd.f32 %v7940, %v8228
    %v8230 = vrot.slane %v8229, 2
    %v8231 = vadd.f32 %v8229, %v8230
    %v8232 = vrot.slane %v8231, 1
    %v8233 = vadd.f32 %v8231, %v8232
    %v8234 = vrot.slane %v7942, 4
    %v8235 = vadd.f32 %v7942, %v8234
    %v8236 = vrot.slane %v8235, 2
    %v8237 = vadd.f32 %v8235, %v8236
    %v8238 = vrot.slane %v8237, 1
    %v8239 = vadd.f32 %v8237, %v8238
    %v8240 = vrot.slane %v7993, 4
    %v8241 = vadd.f32 %v7993, %v8240
    %v8242 = vrot.slane %v8241, 2
    %v8243 = vadd.f32 %v8241, %v8242
    %v8244 = vrot.slane %v8243, 1
    %v8245 = vadd.f32 %v8243, %v8244
    %v8246 = vrot.slane %v7995, 4
    %v8247 = vadd.f32 %v7995, %v8246
    %v8248 = vrot.slane %v8247, 2
    %v8249 = vadd.f32 %v8247, %v8248
    %v8250 = vrot.slane %v8249, 1
    %v8251 = vadd.f32 %v8249, %v8250
    %v8252 = vrot.slane %v8046, 4
    %v8253 = vadd.f32 %v8046, %v8252
    %v8254 = vrot.slane %v8253, 2
    %v8255 = vadd.f32 %v8253, %v8254
    %v8256 = vrot.slane %v8255, 1
    %v8257 = vadd.f32 %v8255, %v8256
    %v8258 = vrot.slane %v8048, 4
    %v8259 = vadd.f32 %v8048, %v8258
    %v8260 = vrot.slane %v8259, 2
    %v8261 = vadd.f32 %v8259, %v8260
    %v8262 = vrot.slane %v8261, 1
    %v8263 = vadd.f32 %v8261, %v8262
    %v8264 = vrot.slane %v7255, 4
    %v8265 = vadd.f32 %v7255, %v8264
    %v8266 = vrot.slane %v8265, 2
    %v8267 = vadd.f32 %v8265, %v8266
    %v8268 = vrot.slane %v8267, 1
    %v8269 = vadd.f32 %v8267, %v8268
    %v8270 = vrot.slane %v7257, 4
    %v8271 = vadd.f32 %v7257, %v8270
    %v8272 = vrot.slane %v8271, 2
    %v8273 = vadd.f32 %v8271, %v8272
    %v8274 = vrot.slane %v8273, 1
    %v8275 = vadd.f32 %v8273, %v8274
    %v8276 = vrot.slane %v7308, 4
    %v8277 = vadd.f32 %v7308, %v8276
    %v8278 = vrot.slane %v8277, 2
    %v8279 = vadd.f32 %v8277, %v8278
    %v8280 = vrot.slane %v8279, 1
    %v8281 = vadd.f32 %v8279, %v8280
    %v8282 = vrot.slane %v7310, 4
    %v8283 = vadd.f32 %v7310, %v8282
    %v8284 = vrot.slane %v8283, 2
    %v8285 = vadd.f32 %v8283, %v8284
    %v8286 = vrot.slane %v8285, 1
    %v8287 = vadd.f32 %v8285, %v8286
    %v8288 = vrot.slane %v7361, 4
    %v8289 = vadd.f32 %v7361, %v8288
    %v8290 = vrot.slane %v8289, 2
    %v8291 = vadd.f32 %v8289, %v8290
    %v8292 = vrot.slane %v8291, 1
    %v8293 = vadd.f32 %v8291, %v8292
    %v8294 = vrot.slane %v7363, 4
    %v8295 = vadd.f32 %v7363, %v8294
    %v8296 = vrot.slane %v8295, 2
    %v8297 = vadd.f32 %v8295, %v8296
    %v8298 = vrot.slane %v8297, 1
    %v8299 = vadd.f32 %v8297, %v8298
    %v8300 = vrot.slane %v7414, 4
    %v8301 = vadd.f32 %v7414, %v8300
    %v8302 = vrot.slane %v8301, 2
    %v8303 = vadd.f32 %v8301, %v8302
    %v8304 = vrot.slane %v8303, 1
    %v8305 = vadd.f32 %v8303, %v8304
    %v8306 = vrot.slane %v7416, 4
    %v8307 = vadd.f32 %v7416, %v8306
    %v8308 = vrot.slane %v8307, 2
    %v8309 = vadd.f32 %v8307, %v8308
    %v8310 = vrot.slane %v8309, 1
    %v8311 = vadd.f32 %v8309, %v8310
    %v8312 = vrot.slane %v7467, 4
    %v8313 = vadd.f32 %v7467, %v8312
    %v8314 = vrot.slane %v8313, 2
    %v8315 = vadd.f32 %v8313, %v8314
    %v8316 = vrot.slane %v8315, 1
    %v8317 = vadd.f32 %v8315, %v8316
    %v8318 = vrot.slane %v7469, 4
    %v8319 = vadd.f32 %v7469, %v8318
    %v8320 = vrot.slane %v8319, 2
    %v8321 = vadd.f32 %v8319, %v8320
    %v8322 = vrot.slane %v8321, 1
    %v8323 = vadd.f32 %v8321, %v8322
    %v8324 = vrot.slane %v7520, 4
    %v8325 = vadd.f32 %v7520, %v8324
    %v8326 = vrot.slane %v8325, 2
    %v8327 = vadd.f32 %v8325, %v8326
    %v8328 = vrot.slane %v8327, 1
    %v8329 = vadd.f32 %v8327, %v8328
    %v8330 = vrot.slane %v7522, 4
    %v8331 = vadd.f32 %v7522, %v8330
    %v8332 = vrot.slane %v8331, 2
    %v8333 = vadd.f32 %v8331, %v8332
    %v8334 = vrot.slane %v8333, 1
    %v8335 = vadd.f32 %v8333, %v8334
    %v8336 = vrot.slane %v7573, 4
    %v8337 = vadd.f32 %v7573, %v8336
    %v8338 = vrot.slane %v8337, 2
    %v8339 = vadd.f32 %v8337, %v8338
    %v8340 = vrot.slane %v8339, 1
    %v8341 = vadd.f32 %v8339, %v8340
    %v8342 = vrot.slane %v7575, 4
    %v8343 = vadd.f32 %v7575, %v8342
    %v8344 = vrot.slane %v8343, 2
    %v8345 = vadd.f32 %v8343, %v8344
    %v8346 = vrot.slane %v8345, 1
    %v8347 = vadd.f32 %v8345, %v8346
    %v8348 = vrot.slane %v7626, 4
    %v8349 = vadd.f32 %v7626, %v8348
    %v8350 = vrot.slane %v8349, 2
    %v8351 = vadd.f32 %v8349, %v8350
    %v8352 = vrot.slane %v8351, 1
    %v8353 = vadd.f32 %v8351, %v8352
    %v8354 = vrot.slane %v7628, 4
    %v8355 = vadd.f32 %v7628, %v8354
    %v8356 = vrot.slane %v8355, 2
    %v8357 = vadd.f32 %v8355, %v8356
    %v8358 = vrot.slane %v8357, 1
    %v8359 = vadd.f32 %v8357, %v8358
    %v8360 = vrot.slane %v7679, 4
    %v8361 = vadd.f32 %v7679, %v8360
    %v8362 = vrot.slane %v8361, 2
    %v8363 = vadd.f32 %v8361, %v8362
    %v8364 = vrot.slane %v8363, 1
    %v8365 = vadd.f32 %v8363, %v8364
    %v8366 = vrot.slane %v7681, 4
    %v8367 = vadd.f32 %v7681, %v8366
    %v8368 = vrot.slane %v8367, 2
    %v8369 = vadd.f32 %v8367, %v8368
    %v8370 = vrot.slane %v8369, 1
    %v8371 = vadd.f32 %v8369, %v8370
    %v8372 = vrot.slane %v7732, 4
    %v8373 = vadd.f32 %v7732, %v8372
    %v8374 = vrot.slane %v8373, 2
    %v8375 = vadd.f32 %v8373, %v8374
    %v8376 = vrot.slane %v8375, 1
    %v8377 = vadd.f32 %v8375, %v8376
    %v8378 = vrot.slane %v7734, 4
    %v8379 = vadd.f32 %v7734, %v8378
    %v8380 = vrot.slane %v8379, 2
    %v8381 = vadd.f32 %v8379, %v8380
    %v8382 = vrot.slane %v8381, 1
    %v8383 = vadd.f32 %v8381, %v8382
    %v8384 = vrot.slane %v7785, 4
    %v8385 = vadd.f32 %v7785, %v8384
    %v8386 = vrot.slane %v8385, 2
    %v8387 = vadd.f32 %v8385, %v8386
    %v8388 = vrot.slane %v8387, 1
    %v8389 = vadd.f32 %v8387, %v8388
    %v8390 = vrot.slane %v7787, 4
    %v8391 = vadd.f32 %v7787, %v8390
    %v8392 = vrot.slane %v8391, 2
    %v8393 = vadd.f32 %v8391, %v8392
    %v8394 = vrot.slane %v8393, 1
    %v8395 = vadd.f32 %v8393, %v8394
    %v8396 = vrot.slane %v7838, 4
    %v8397 = vadd.f32 %v7838, %v8396
    %v8398 = vrot.slane %v8397, 2
    %v8399 = vadd.f32 %v8397, %v8398
    %v8400 = vrot.slane %v8399, 1
    %v8401 = vadd.f32 %v8399, %v8400
    %v8402 = vrot.slane %v7840, 4
    %v8403 = vadd.f32 %v7840, %v8402
    %v8404 = vrot.slane %v8403, 2
    %v8405 = vadd.f32 %v8403, %v8404
    %v8406 = vrot.slane %v8405, 1
    %v8407 = vadd.f32 %v8405, %v8406
    %v8408 = vrot.slane %v7891, 4
    %v8409 = vadd.f32 %v7891, %v8408
    %v8410 = vrot.slane %v8409, 2
    %v8411 = vadd.f32 %v8409, %v8410
    %v8412 = vrot.slane %v8411, 1
    %v8413 = vadd.f32 %v8411, %v8412
    %v8414 = vrot.slane %v7893, 4
    %v8415 = vadd.f32 %v7893, %v8414
    %v8416 = vrot.slane %v8415, 2
    %v8417 = vadd.f32 %v8415, %v8416
    %v8418 = vrot.slane %v8417, 1
    %v8419 = vadd.f32 %v8417, %v8418
    %v8420 = vrot.slane %v7944, 4
    %v8421 = vadd.f32 %v7944, %v8420
    %v8422 = vrot.slane %v8421, 2
    %v8423 = vadd.f32 %v8421, %v8422
    %v8424 = vrot.slane %v8423, 1
    %v8425 = vadd.f32 %v8423, %v8424
    %v8426 = vrot.slane %v7946, 4
    %v8427 = vadd.f32 %v7946, %v8426
    %v8428 = vrot.slane %v8427, 2
    %v8429 = vadd.f32 %v8427, %v8428
    %v8430 = vrot.slane %v8429, 1
    %v8431 = vadd.f32 %v8429, %v8430
    %v8432 = vrot.slane %v7997, 4
    %v8433 = vadd.f32 %v7997, %v8432
    %v8434 = vrot.slane %v8433, 2
    %v8435 = vadd.f32 %v8433, %v8434
    %v8436 = vrot.slane %v8435, 1
    %v8437 = vadd.f32 %v8435, %v8436
    %v8438 = vrot.slane %v7999, 4
    %v8439 = vadd.f32 %v7999, %v8438
    %v8440 = vrot.slane %v8439, 2
    %v8441 = vadd.f32 %v8439, %v8440
    %v8442 = vrot.slane %v8441, 1
    %v8443 = vadd.f32 %v8441, %v8442
    %v8444 = vrot.slane %v8050, 4
    %v8445 = vadd.f32 %v8050, %v8444
    %v8446 = vrot.slane %v8445, 2
    %v8447 = vadd.f32 %v8445, %v8446
    %v8448 = vrot.slane %v8447, 1
    %v8449 = vadd.f32 %v8447, %v8448
    %v8450 = vrot.slane %v8052, 4
    %v8451 = vadd.f32 %v8052, %v8450
    %v8452 = vrot.slane %v8451, 2
    %v8453 = vadd.f32 %v8451, %v8452
    %v8454 = vrot.slane %v8453, 1
    %v8455 = vadd.f32 %v8453, %v8454
    %v8456 = vrot.slane %v7261, 4
    %v8457 = vadd.f32 %v7261, %v8456
    %v8458 = vrot.slane %v8457, 2
    %v8459 = vadd.f32 %v8457, %v8458
    %v8460 = vrot.slane %v8459, 1
    %v8461 = vadd.f32 %v8459, %v8460
    %v8462 = vrot.slane %v7263, 4
    %v8463 = vadd.f32 %v7263, %v8462
    %v8464 = vrot.slane %v8463, 2
    %v8465 = vadd.f32 %v8463, %v8464
    %v8466 = vrot.slane %v8465, 1
    %v8467 = vadd.f32 %v8465, %v8466
    %v8468 = vrot.slane %v7314, 4
    %v8469 = vadd.f32 %v7314, %v8468
    %v8470 = vrot.slane %v8469, 2
    %v8471 = vadd.f32 %v8469, %v8470
    %v8472 = vrot.slane %v8471, 1
    %v8473 = vadd.f32 %v8471, %v8472
    %v8474 = vrot.slane %v7316, 4
    %v8475 = vadd.f32 %v7316, %v8474
    %v8476 = vrot.slane %v8475, 2
    %v8477 = vadd.f32 %v8475, %v8476
    %v8478 = vrot.slane %v8477, 1
    %v8479 = vadd.f32 %v8477, %v8478
    %v8480 = vrot.slane %v7367, 4
    %v8481 = vadd.f32 %v7367, %v8480
    %v8482 = vrot.slane %v8481, 2
    %v8483 = vadd.f32 %v8481, %v8482
    %v8484 = vrot.slane %v8483, 1
    %v8485 = vadd.f32 %v8483, %v8484
    %v8486 = vrot.slane %v7369, 4
    %v8487 = vadd.f32 %v7369, %v8486
    %v8488 = vrot.slane %v8487, 2
    %v8489 = vadd.f32 %v8487, %v8488
    %v8490 = vrot.slane %v8489, 1
    %v8491 = vadd.f32 %v8489, %v8490
    %v8492 = vrot.slane %v7420, 4
    %v8493 = vadd.f32 %v7420, %v8492
    %v8494 = vrot.slane %v8493, 2
    %v8495 = vadd.f32 %v8493, %v8494
    %v8496 = vrot.slane %v8495, 1
    %v8497 = vadd.f32 %v8495, %v8496
    %v8498 = vrot.slane %v7422, 4
    %v8499 = vadd.f32 %v7422, %v8498
    %v8500 = vrot.slane %v8499, 2
    %v8501 = vadd.f32 %v8499, %v8500
    %v8502 = vrot.slane %v8501, 1
    %v8503 = vadd.f32 %v8501, %v8502
    %v8504 = vrot.slane %v7473, 4
    %v8505 = vadd.f32 %v7473, %v8504
    %v8506 = vrot.slane %v8505, 2
    %v8507 = vadd.f32 %v8505, %v8506
    %v8508 = vrot.slane %v8507, 1
    %v8509 = vadd.f32 %v8507, %v8508
    %v8510 = vrot.slane %v7475, 4
    %v8511 = vadd.f32 %v7475, %v8510
    %v8512 = vrot.slane %v8511, 2
    %v8513 = vadd.f32 %v8511, %v8512
    %v8514 = vrot.slane %v8513, 1
    %v8515 = vadd.f32 %v8513, %v8514
    %v8516 = vrot.slane %v7526, 4
    %v8517 = vadd.f32 %v7526, %v8516
    %v8518 = vrot.slane %v8517, 2
    %v8519 = vadd.f32 %v8517, %v8518
    %v8520 = vrot.slane %v8519, 1
    %v8521 = vadd.f32 %v8519, %v8520
    %v8522 = vrot.slane %v7528, 4
    %v8523 = vadd.f32 %v7528, %v8522
    %v8524 = vrot.slane %v8523, 2
    %v8525 = vadd.f32 %v8523, %v8524
    %v8526 = vrot.slane %v8525, 1
    %v8527 = vadd.f32 %v8525, %v8526
    %v8528 = vrot.slane %v7579, 4
    %v8529 = vadd.f32 %v7579, %v8528
    %v8530 = vrot.slane %v8529, 2
    %v8531 = vadd.f32 %v8529, %v8530
    %v8532 = vrot.slane %v8531, 1
    %v8533 = vadd.f32 %v8531, %v8532
    %v8534 = vrot.slane %v7581, 4
    %v8535 = vadd.f32 %v7581, %v8534
    %v8536 = vrot.slane %v8535, 2
    %v8537 = vadd.f32 %v8535, %v8536
    %v8538 = vrot.slane %v8537, 1
    %v8539 = vadd.f32 %v8537, %v8538
    %v8540 = vrot.slane %v7632, 4
    %v8541 = vadd.f32 %v7632, %v8540
    %v8542 = vrot.slane %v8541, 2
    %v8543 = vadd.f32 %v8541, %v8542
    %v8544 = vrot.slane %v8543, 1
    %v8545 = vadd.f32 %v8543, %v8544
    %v8546 = vrot.slane %v7634, 4
    %v8547 = vadd.f32 %v7634, %v8546
    %v8548 = vrot.slane %v8547, 2
    %v8549 = vadd.f32 %v8547, %v8548
    %v8550 = vrot.slane %v8549, 1
    %v8551 = vadd.f32 %v8549, %v8550
    %v8552 = vrot.slane %v7685, 4
    %v8553 = vadd.f32 %v7685, %v8552
    %v8554 = vrot.slane %v8553, 2
    %v8555 = vadd.f32 %v8553, %v8554
    %v8556 = vrot.slane %v8555, 1
    %v8557 = vadd.f32 %v8555, %v8556
    %v8558 = vrot.slane %v7687, 4
    %v8559 = vadd.f32 %v7687, %v8558
    %v8560 = vrot.slane %v8559, 2
    %v8561 = vadd.f32 %v8559, %v8560
    %v8562 = vrot.slane %v8561, 1
    %v8563 = vadd.f32 %v8561, %v8562
    %v8564 = vrot.slane %v7738, 4
    %v8565 = vadd.f32 %v7738, %v8564
    %v8566 = vrot.slane %v8565, 2
    %v8567 = vadd.f32 %v8565, %v8566
    %v8568 = vrot.slane %v8567, 1
    %v8569 = vadd.f32 %v8567, %v8568
    %v8570 = vrot.slane %v7740, 4
    %v8571 = vadd.f32 %v7740, %v8570
    %v8572 = vrot.slane %v8571, 2
    %v8573 = vadd.f32 %v8571, %v8572
    %v8574 = vrot.slane %v8573, 1
    %v8575 = vadd.f32 %v8573, %v8574
    %v8576 = vrot.slane %v7791, 4
    %v8577 = vadd.f32 %v7791, %v8576
    %v8578 = vrot.slane %v8577, 2
    %v8579 = vadd.f32 %v8577, %v8578
    %v8580 = vrot.slane %v8579, 1
    %v8581 = vadd.f32 %v8579, %v8580
    %v8582 = vrot.slane %v7793, 4
    %v8583 = vadd.f32 %v7793, %v8582
    %v8584 = vrot.slane %v8583, 2
    %v8585 = vadd.f32 %v8583, %v8584
    %v8586 = vrot.slane %v8585, 1
    %v8587 = vadd.f32 %v8585, %v8586
    %v8588 = vrot.slane %v7844, 4
    %v8589 = vadd.f32 %v7844, %v8588
    %v8590 = vrot.slane %v8589, 2
    %v8591 = vadd.f32 %v8589, %v8590
    %v8592 = vrot.slane %v8591, 1
    %v8593 = vadd.f32 %v8591, %v8592
    %v8594 = vrot.slane %v7846, 4
    %v8595 = vadd.f32 %v7846, %v8594
    %v8596 = vrot.slane %v8595, 2
    %v8597 = vadd.f32 %v8595, %v8596
    %v8598 = vrot.slane %v8597, 1
    %v8599 = vadd.f32 %v8597, %v8598
    %v8600 = vrot.slane %v7897, 4
    %v8601 = vadd.f32 %v7897, %v8600
    %v8602 = vrot.slane %v8601, 2
    %v8603 = vadd.f32 %v8601, %v8602
    %v8604 = vrot.slane %v8603, 1
    %v8605 = vadd.f32 %v8603, %v8604
    %v8606 = vrot.slane %v7899, 4
    %v8607 = vadd.f32 %v7899, %v8606
    %v8608 = vrot.slane %v8607, 2
    %v8609 = vadd.f32 %v8607, %v8608
    %v8610 = vrot.slane %v8609, 1
    %v8611 = vadd.f32 %v8609, %v8610
    %v8612 = vrot.slane %v7950, 4
    %v8613 = vadd.f32 %v7950, %v8612
    %v8614 = vrot.slane %v8613, 2
    %v8615 = vadd.f32 %v8613, %v8614
    %v8616 = vrot.slane %v8615, 1
    %v8617 = vadd.f32 %v8615, %v8616
    %v8618 = vrot.slane %v7952, 4
    %v8619 = vadd.f32 %v7952, %v8618
    %v8620 = vrot.slane %v8619, 2
    %v8621 = vadd.f32 %v8619, %v8620
    %v8622 = vrot.slane %v8621, 1
    %v8623 = vadd.f32 %v8621, %v8622
    %v8624 = vrot.slane %v8003, 4
    %v8625 = vadd.f32 %v8003, %v8624
    %v8626 = vrot.slane %v8625, 2
    %v8627 = vadd.f32 %v8625, %v8626
    %v8628 = vrot.slane %v8627, 1
    %v8629 = vadd.f32 %v8627, %v8628
    %v8630 = vrot.slane %v8005, 4
    %v8631 = vadd.f32 %v8005, %v8630
    %v8632 = vrot.slane %v8631, 2
    %v8633 = vadd.f32 %v8631, %v8632
    %v8634 = vrot.slane %v8633, 1
    %v8635 = vadd.f32 %v8633, %v8634
    %v8636 = vrot.slane %v8056, 4
    %v8637 = vadd.f32 %v8056, %v8636
    %v8638 = vrot.slane %v8637, 2
    %v8639 = vadd.f32 %v8637, %v8638
    %v8640 = vrot.slane %v8639, 1
    %v8641 = vadd.f32 %v8639, %v8640
    %v8642 = vrot.slane %v8058, 4
    %v8643 = vadd.f32 %v8058, %v8642
    %v8644 = vrot.slane %v8643, 2
    %v8645 = vadd.f32 %v8643, %v8644
    %v8646 = vrot.slane %v8645, 1
    %v8647 = vadd.f32 %v8645, %v8646
    %v8648 = vrot.slane %v7265, 4
    %v8649 = vadd.f32 %v7265, %v8648
    %v8650 = vrot.slane %v8649, 2
    %v8651 = vadd.f32 %v8649, %v8650
    %v8652 = vrot.slane %v8651, 1
    %v8653 = vadd.f32 %v8651, %v8652
    %v8654 = vrot.slane %v7267, 4
    %v8655 = vadd.f32 %v7267, %v8654
    %v8656 = vrot.slane %v8655, 2
    %v8657 = vadd.f32 %v8655, %v8656
    %v8658 = vrot.slane %v8657, 1
    %v8659 = vadd.f32 %v8657, %v8658
    %v8660 = vrot.slane %v7318, 4
    %v8661 = vadd.f32 %v7318, %v8660
    %v8662 = vrot.slane %v8661, 2
    %v8663 = vadd.f32 %v8661, %v8662
    %v8664 = vrot.slane %v8663, 1
    %v8665 = vadd.f32 %v8663, %v8664
    %v8666 = vrot.slane %v7320, 4
    %v8667 = vadd.f32 %v7320, %v8666
    %v8668 = vrot.slane %v8667, 2
    %v8669 = vadd.f32 %v8667, %v8668
    %v8670 = vrot.slane %v8669, 1
    %v8671 = vadd.f32 %v8669, %v8670
    %v8672 = vrot.slane %v7371, 4
    %v8673 = vadd.f32 %v7371, %v8672
    %v8674 = vrot.slane %v8673, 2
    %v8675 = vadd.f32 %v8673, %v8674
    %v8676 = vrot.slane %v8675, 1
    %v8677 = vadd.f32 %v8675, %v8676
    %v8678 = vrot.slane %v7373, 4
    %v8679 = vadd.f32 %v7373, %v8678
    %v8680 = vrot.slane %v8679, 2
    %v8681 = vadd.f32 %v8679, %v8680
    %v8682 = vrot.slane %v8681, 1
    %v8683 = vadd.f32 %v8681, %v8682
    %v8684 = vrot.slane %v7424, 4
    %v8685 = vadd.f32 %v7424, %v8684
    %v8686 = vrot.slane %v8685, 2
    %v8687 = vadd.f32 %v8685, %v8686
    %v8688 = vrot.slane %v8687, 1
    %v8689 = vadd.f32 %v8687, %v8688
    %v8690 = vrot.slane %v7426, 4
    %v8691 = vadd.f32 %v7426, %v8690
    %v8692 = vrot.slane %v8691, 2
    %v8693 = vadd.f32 %v8691, %v8692
    %v8694 = vrot.slane %v8693, 1
    %v8695 = vadd.f32 %v8693, %v8694
    %v8696 = vrot.slane %v7477, 4
    %v8697 = vadd.f32 %v7477, %v8696
    %v8698 = vrot.slane %v8697, 2
    %v8699 = vadd.f32 %v8697, %v8698
    %v8700 = vrot.slane %v8699, 1
    %v8701 = vadd.f32 %v8699, %v8700
    %v8702 = vrot.slane %v7479, 4
    %v8703 = vadd.f32 %v7479, %v8702
    %v8704 = vrot.slane %v8703, 2
    %v8705 = vadd.f32 %v8703, %v8704
    %v8706 = vrot.slane %v8705, 1
    %v8707 = vadd.f32 %v8705, %v8706
    %v8708 = vrot.slane %v7530, 4
    %v8709 = vadd.f32 %v7530, %v8708
    %v8710 = vrot.slane %v8709, 2
    %v8711 = vadd.f32 %v8709, %v8710
    %v8712 = vrot.slane %v8711, 1
    %v8713 = vadd.f32 %v8711, %v8712
    %v8714 = vrot.slane %v7532, 4
    %v8715 = vadd.f32 %v7532, %v8714
    %v8716 = vrot.slane %v8715, 2
    %v8717 = vadd.f32 %v8715, %v8716
    %v8718 = vrot.slane %v8717, 1
    %v8719 = vadd.f32 %v8717, %v8718
    %v8720 = vrot.slane %v7583, 4
    %v8721 = vadd.f32 %v7583, %v8720
    %v8722 = vrot.slane %v8721, 2
    %v8723 = vadd.f32 %v8721, %v8722
    %v8724 = vrot.slane %v8723, 1
    %v8725 = vadd.f32 %v8723, %v8724
    %v8726 = vrot.slane %v7585, 4
    %v8727 = vadd.f32 %v7585, %v8726
    %v8728 = vrot.slane %v8727, 2
    %v8729 = vadd.f32 %v8727, %v8728
    %v8730 = vrot.slane %v8729, 1
    %v8731 = vadd.f32 %v8729, %v8730
    %v8732 = vrot.slane %v7636, 4
    %v8733 = vadd.f32 %v7636, %v8732
    %v8734 = vrot.slane %v8733, 2
    %v8735 = vadd.f32 %v8733, %v8734
    %v8736 = vrot.slane %v8735, 1
    %v8737 = vadd.f32 %v8735, %v8736
    %v8738 = vrot.slane %v7638, 4
    %v8739 = vadd.f32 %v7638, %v8738
    %v8740 = vrot.slane %v8739, 2
    %v8741 = vadd.f32 %v8739, %v8740
    %v8742 = vrot.slane %v8741, 1
    %v8743 = vadd.f32 %v8741, %v8742
    %v8744 = vrot.slane %v7689, 4
    %v8745 = vadd.f32 %v7689, %v8744
    %v8746 = vrot.slane %v8745, 2
    %v8747 = vadd.f32 %v8745, %v8746
    %v8748 = vrot.slane %v8747, 1
    %v8749 = vadd.f32 %v8747, %v8748
    %v8750 = vrot.slane %v7691, 4
    %v8751 = vadd.f32 %v7691, %v8750
    %v8752 = vrot.slane %v8751, 2
    %v8753 = vadd.f32 %v8751, %v8752
    %v8754 = vrot.slane %v8753, 1
    %v8755 = vadd.f32 %v8753, %v8754
    %v8756 = vrot.slane %v7742, 4
    %v8757 = vadd.f32 %v7742, %v8756
    %v8758 = vrot.slane %v8757, 2
    %v8759 = vadd.f32 %v8757, %v8758
    %v8760 = vrot.slane %v8759, 1
    %v8761 = vadd.f32 %v8759, %v8760
    %v8762 = vrot.slane %v7744, 4
    %v8763 = vadd.f32 %v7744, %v8762
    %v8764 = vrot.slane %v8763, 2
    %v8765 = vadd.f32 %v8763, %v8764
    %v8766 = vrot.slane %v8765, 1
    %v8767 = vadd.f32 %v8765, %v8766
    %v8768 = vrot.slane %v7795, 4
    %v8769 = vadd.f32 %v7795, %v8768
    %v8770 = vrot.slane %v8769, 2
    %v8771 = vadd.f32 %v8769, %v8770
    %v8772 = vrot.slane %v8771, 1
    %v8773 = vadd.f32 %v8771, %v8772
    %v8774 = vrot.slane %v7797, 4
    %v8775 = vadd.f32 %v7797, %v8774
    %v8776 = vrot.slane %v8775, 2
    %v8777 = vadd.f32 %v8775, %v8776
    %v8778 = vrot.slane %v8777, 1
    %v8779 = vadd.f32 %v8777, %v8778
    %v8780 = vrot.slane %v7848, 4
    %v8781 = vadd.f32 %v7848, %v8780
    %v8782 = vrot.slane %v8781, 2
    %v8783 = vadd.f32 %v8781, %v8782
    %v8784 = vrot.slane %v8783, 1
    %v8785 = vadd.f32 %v8783, %v8784
    %v8786 = vrot.slane %v7850, 4
    %v8787 = vadd.f32 %v7850, %v8786
    %v8788 = vrot.slane %v8787, 2
    %v8789 = vadd.f32 %v8787, %v8788
    %v8790 = vrot.slane %v8789, 1
    %v8791 = vadd.f32 %v8789, %v8790
    %v8792 = vrot.slane %v7901, 4
    %v8793 = vadd.f32 %v7901, %v8792
    %v8794 = vrot.slane %v8793, 2
    %v8795 = vadd.f32 %v8793, %v8794
    %v8796 = vrot.slane %v8795, 1
    %v8797 = vadd.f32 %v8795, %v8796
    %v8798 = vrot.slane %v7903, 4
    %v8799 = vadd.f32 %v7903, %v8798
    %v8800 = vrot.slane %v8799, 2
    %v8801 = vadd.f32 %v8799, %v8800
    %v8802 = vrot.slane %v8801, 1
    %v8803 = vadd.f32 %v8801, %v8802
    %v8804 = vrot.slane %v7954, 4
    %v8805 = vadd.f32 %v7954, %v8804
    %v8806 = vrot.slane %v8805, 2
    %v8807 = vadd.f32 %v8805, %v8806
    %v8808 = vrot.slane %v8807, 1
    %v8809 = vadd.f32 %v8807, %v8808
    %v8810 = vrot.slane %v7956, 4
    %v8811 = vadd.f32 %v7956, %v8810
    %v8812 = vrot.slane %v8811, 2
    %v8813 = vadd.f32 %v8811, %v8812
    %v8814 = vrot.slane %v8813, 1
    %v8815 = vadd.f32 %v8813, %v8814
    %v8816 = vrot.slane %v8007, 4
    %v8817 = vadd.f32 %v8007, %v8816
    %v8818 = vrot.slane %v8817, 2
    %v8819 = vadd.f32 %v8817, %v8818
    %v8820 = vrot.slane %v8819, 1
    %v8821 = vadd.f32 %v8819, %v8820
    %v8822 = vrot.slane %v8009, 4
    %v8823 = vadd.f32 %v8009, %v8822
    %v8824 = vrot.slane %v8823, 2
    %v8825 = vadd.f32 %v8823, %v8824
    %v8826 = vrot.slane %v8825, 1
    %v8827 = vadd.f32 %v8825, %v8826
    %v8828 = vrot.slane %v8060, 4
    %v8829 = vadd.f32 %v8060, %v8828
    %v8830 = vrot.slane %v8829, 2
    %v8831 = vadd.f32 %v8829, %v8830
    %v8832 = vrot.slane %v8831, 1
    %v8833 = vadd.f32 %v8831, %v8832
    %v8834 = vrot.slane %v8062, 4
    %v8835 = vadd.f32 %v8062, %v8834
    %v8836 = vrot.slane %v8835, 2
    %v8837 = vadd.f32 %v8835, %v8836
    %v8838 = vrot.slane %v8837, 1
    %v8839 = vadd.f32 %v8837, %v8838
    %v8840 = vmul.f32 %v8077, 0.125
    %v8841 = vmul.f32 %v8083, 0.125
    %v8842 = vmul.f32 %v8089, 0.125
    %v8843 = vmul.f32 %v8095, 0.125
    %v8844 = vmul.f32 %v8101, 0.125
    %v8845 = vmul.f32 %v8107, 0.125
    %v8846 = vmul.f32 %v8113, 0.125
    %v8847 = vmul.f32 %v8119, 0.125
    %v8848 = vmul.f32 %v8125, 0.125
    %v8849 = vmul.f32 %v8131, 0.125
    %v8850 = vmul.f32 %v8137, 0.125
    %v8851 = vmul.f32 %v8143, 0.125
    %v8852 = vmul.f32 %v8149, 0.125
    %v8853 = vmul.f32 %v8155, 0.125
    %v8854 = vmul.f32 %v8161, 0.125
    %v8855 = vmul.f32 %v8167, 0.125
    %v8856 = vmul.f32 %v8173, 0.125
    %v8857 = vmul.f32 %v8179, 0.125
    %v8858 = vmul.f32 %v8185, 0.125
    %v8859 = vmul.f32 %v8191, 0.125
    %v8860 = vmul.f32 %v8197, 0.125
    %v8861 = vmul.f32 %v8203, 0.125
    %v8862 = vmul.f32 %v8209, 0.125
    %v8863 = vmul.f32 %v8215, 0.125
    %v8864 = vmul.f32 %v8221, 0.125
    %v8865 = vmul.f32 %v8227, 0.125
    %v8866 = vmul.f32 %v8233, 0.125
    %v8867 = vmul.f32 %v8239, 0.125
    %v8868 = vmul.f32 %v8245, 0.125
    %v8869 = vmul.f32 %v8251, 0.125
    %v8870 = vmul.f32 %v8257, 0.125
    %v8871 = vmul.f32 %v8263, 0.125
    %v8872 = vmul.f32 %v8269, 0.125
    %v8873 = vmul.f32 %v8275, 0.125
    %v8874 = vmul.f32 %v8281, 0.125
    %v8875 = vmul.f32 %v8287, 0.125
    %v8876 = vmul.f32 %v8293, 0.125
    %v8877 = vmul.f32 %v8299, 0.125
    %v8878 = vmul.f32 %v8305, 0.125
    %v8879 = vmul.f32 %v8311, 0.125
    %v8880 = vmul.f32 %v8317, 0.125
    %v8881 = vmul.f32 %v8323, 0.125
    %v8882 = vmul.f32 %v8329, 0.125
    %v8883 = vmul.f32 %v8335, 0.125
    %v8884 = vmul.f32 %v8341, 0.125
    %v8885 = vmul.f32 %v8347, 0.125
    %v8886 = vmul.f32 %v8353, 0.125
    %v8887 = vmul.f32 %v8359, 0.125
    %v8888 = vmul.f32 %v8365, 0.125
    %v8889 = vmul.f32 %v8371, 0.125
    %v8890 = vmul.f32 %v8377, 0.125
    %v8891 = vmul.f32 %v8383, 0.125
    %v8892 = vmul.f32 %v8389, 0.125
    %v8893 = vmul.f32 %v8395, 0.125
    %v8894 = vmul.f32 %v8401, 0.125
    %v8895 = vmul.f32 %v8407, 0.125
    %v8896 = vmul.f32 %v8413, 0.125
    %v8897 = vmul.f32 %v8419, 0.125
    %v8898 = vmul.f32 %v8425, 0.125
    %v8899 = vmul.f32 %v8431, 0.125
    %v8900 = vmul.f32 %v8437, 0.125
    %v8901 = vmul.f32 %v8443, 0.125
    %v8902 = vmul.f32 %v8449, 0.125
    %v8903 = vmul.f32 %v8455, 0.125
    %v8904 = vmul.f32 %v8461, 0.125
    %v8905 = vmul.f32 %v8467, 0.125
    %v8906 = vmul.f32 %v8473, 0.125
    %v8907 = vmul.f32 %v8479, 0.125
    %v8908 = vmul.f32 %v8485, 0.125
    %v8909 = vmul.f32 %v8491, 0.125
    %v8910 = vmul.f32 %v8497, 0.125
    %v8911 = vmul.f32 %v8503, 0.125
    %v8912 = vmul.f32 %v8509, 0.125
    %v8913 = vmul.f32 %v8515, 0.125
    %v8914 = vmul.f32 %v8521, 0.125
    %v8915 = vmul.f32 %v8527, 0.125
    %v8916 = vmul.f32 %v8533, 0.125
    %v8917 = vmul.f32 %v8539, 0.125
    %v8918 = vmul.f32 %v8545, 0.125
    %v8919 = vmul.f32 %v8551, 0.125
    %v8920 = vmul.f32 %v8557, 0.125
    %v8921 = vmul.f32 %v8563, 0.125
    %v8922 = vmul.f32 %v8569, 0.125
    %v8923 = vmul.f32 %v8575, 0.125
    %v8924 = vmul.f32 %v8581, 0.125
    %v8925 = vmul.f32 %v8587, 0.125
    %v8926 = vmul.f32 %v8593, 0.125
    %v8927 = vmul.f32 %v8599, 0.125
    %v8928 = vmul.f32 %v8605, 0.125
    %v8929 = vmul.f32 %v8611, 0.125
    %v8930 = vmul.f32 %v8617, 0.125
    %v8931 = vmul.f32 %v8623, 0.125
    %v8932 = vmul.f32 %v8629, 0.125
    %v8933 = vmul.f32 %v8635, 0.125
    %v8934 = vmul.f32 %v8641, 0.125
    %v8935 = vmul.f32 %v8647, 0.125
    %v8936 = vmul.f32 %v8653, 0.125
    %v8937 = vmul.f32 %v8659, 0.125
    %v8938 = vmul.f32 %v8665, 0.125
    %v8939 = vmul.f32 %v8671, 0.125
    %v8940 = vmul.f32 %v8677, 0.125
    %v8941 = vmul.f32 %v8683, 0.125
    %v8942 = vmul.f32 %v8689, 0.125
    %v8943 = vmul.f32 %v8695, 0.125
    %v8944 = vmul.f32 %v8701, 0.125
    %v8945 = vmul.f32 %v8707, 0.125
    %v8946 = vmul.f32 %v8713, 0.125
    %v8947 = vmul.f32 %v8719, 0.125
    %v8948 = vmul.f32 %v8725, 0.125
    %v8949 = vmul.f32 %v8731, 0.125
    %v8950 = vmul.f32 %v8737, 0.125
    %v8951 = vmul.f32 %v8743, 0.125
    %v8952 = vmul.f32 %v8749, 0.125
    %v8953 = vmul.f32 %v8755, 0.125
    %v8954 = vmul.f32 %v8761, 0.125
    %v8955 = vmul.f32 %v8767, 0.125
    %v8956 = vmul.f32 %v8773, 0.125
    %v8957 = vmul.f32 %v8779, 0.125
    %v8958 = vmul.f32 %v8785, 0.125
    %v8959 = vmul.f32 %v8791, 0.125
    %v8960 = vmul.f32 %v8797, 0.125
    %v8961 = vmul.f32 %v8803, 0.125
    %v8962 = vmul.f32 %v8809, 0.125
    %v8963 = vmul.f32 %v8815, 0.125
    %v8964 = vmul.f32 %v8821, 0.125
    %v8965 = vmul.f32 %v8827, 0.125
    %v8966 = vmul.f32 %v8833, 0.125
    %v8967 = vmul.f32 %v8839, 0.125
    %v8968 = vsub.f32 %v7251, %v8840
    %v8969 = vsub.f32 %v7253, %v8841
    %v8970 = vsub.f32 %v7304, %v8842
    %v8971 = vsub.f32 %v7306, %v8843
    %v8972 = vsub.f32 %v7357, %v8844
    %v8973 = vsub.f32 %v7359, %v8845
    %v8974 = vsub.f32 %v7410, %v8846
    %v8975 = vsub.f32 %v7412, %v8847
    %v8976 = vsub.f32 %v7463, %v8848
    %v8977 = vsub.f32 %v7465, %v8849
    %v8978 = vsub.f32 %v7516, %v8850
    %v8979 = vsub.f32 %v7518, %v8851
    %v8980 = vsub.f32 %v7569, %v8852
    %v8981 = vsub.f32 %v7571, %v8853
    %v8982 = vsub.f32 %v7622, %v8854
    %v8983 = vsub.f32 %v7624, %v8855
    %v8984 = vsub.f32 %v7675, %v8856
    %v8985 = vsub.f32 %v7677, %v8857
    %v8986 = vsub.f32 %v7728, %v8858
    %v8987 = vsub.f32 %v7730, %v8859
    %v8988 = vsub.f32 %v7781, %v8860
    %v8989 = vsub.f32 %v7783, %v8861
    %v8990 = vsub.f32 %v7834, %v8862
    %v8991 = vsub.f32 %v7836, %v8863
    %v8992 = vsub.f32 %v7887, %v8864
    %v8993 = vsub.f32 %v7889, %v8865
    %v8994 = vsub.f32 %v7940, %v8866
    %v8995 = vsub.f32 %v7942, %v8867
    %v8996 = vsub.f32 %v7993, %v8868
    %v8997 = vsub.f32 %v7995, %v8869
    %v8998 = vsub.f32 %v8046, %v8870
    %v8999 = vsub.f32 %v8048, %v8871
    %v9000 = vsub.f32 %v7255, %v8872
    %v9001 = vsub.f32 %v7257, %v8873
    %v9002 = vsub.f32 %v7308, %v8874
    %v9003 = vsub.f32 %v7310, %v8875
    %v9004 = vsub.f32 %v7361, %v8876
    %v9005 = vsub.f32 %v7363, %v8877
    %v9006 = vsub.f32 %v7414, %v8878
    %v9007 = vsub.f32 %v7416, %v8879
    %v9008 = vsub.f32 %v7467, %v8880
    %v9009 = vsub.f32 %v7469, %v8881
    %v9010 = vsub.f32 %v7520, %v8882
    %v9011 = vsub.f32 %v7522, %v8883
    %v9012 = vsub.f32 %v7573, %v8884
    %v9013 = vsub.f32 %v7575, %v8885
    %v9014 = vsub.f32 %v7626, %v8886
    %v9015 = vsub.f32 %v7628, %v8887
    %v9016 = vsub.f32 %v7679, %v8888
    %v9017 = vsub.f32 %v7681, %v8889
    %v9018 = vsub.f32 %v7732, %v8890
    %v9019 = vsub.f32 %v7734, %v8891
    %v9020 = vsub.f32 %v7785, %v8892
    %v9021 = vsub.f32 %v7787, %v8893
    %v9022 = vsub.f32 %v7838, %v8894
    %v9023 = vsub.f32 %v7840, %v8895
    %v9024 = vsub.f32 %v7891, %v8896
    %v9025 = vsub.f32 %v7893, %v8897
    %v9026 = vsub.f32 %v7944, %v8898
    %v9027 = vsub.f32 %v7946, %v8899
    %v9028 = vsub.f32 %v7997, %v8900
    %v9029 = vsub.f32 %v7999, %v8901
    %v9030 = vsub.f32 %v8050, %v8902
    %v9031 = vsub.f32 %v8052, %v8903
    %v9032 = vsub.f32 %v7261, %v8904
    %v9033 = vsub.f32 %v7263, %v8905
    %v9034 = vsub.f32 %v7314, %v8906
    %v9035 = vsub.f32 %v7316, %v8907
    %v9036 = vsub.f32 %v7367, %v8908
    %v9037 = vsub.f32 %v7369, %v8909
    %v9038 = vsub.f32 %v7420, %v8910
    %v9039 = vsub.f32 %v7422, %v8911
    %v9040 = vsub.f32 %v7473, %v8912
    %v9041 = vsub.f32 %v7475, %v8913
    %v9042 = vsub.f32 %v7526, %v8914
    %v9043 = vsub.f32 %v7528, %v8915
    %v9044 = vsub.f32 %v7579, %v8916
    %v9045 = vsub.f32 %v7581, %v8917
    %v9046 = vsub.f32 %v7632, %v8918
    %v9047 = vsub.f32 %v7634, %v8919
    %v9048 = vsub.f32 %v7685, %v8920
    %v9049 = vsub.f32 %v7687, %v8921
    %v9050 = vsub.f32 %v7738, %v8922
    %v9051 = vsub.f32 %v7740, %v8923
    %v9052 = vsub.f32 %v7791, %v8924
    %v9053 = vsub.f32 %v7793, %v8925
    %v9054 = vsub.f32 %v7844, %v8926
    %v9055 = vsub.f32 %v7846, %v8927
    %v9056 = vsub.f32 %v7897, %v8928
    %v9057 = vsub.f32 %v7899, %v8929
    %v9058 = vsub.f32 %v7950, %v8930
    %v9059 = vsub.f32 %v7952, %v8931
    %v9060 = vsub.f32 %v8003, %v8932
    %v9061 = vsub.f32 %v8005, %v8933
    %v9062 = vsub.f32 %v8056, %v8934
    %v9063 = vsub.f32 %v8058, %v8935
    %v9064 = vsub.f32 %v7265, %v8936
    %v9065 = vsub.f32 %v7267, %v8937
    %v9066 = vsub.f32 %v7318, %v8938
    %v9067 = vsub.f32 %v7320, %v8939
    %v9068 = vsub.f32 %v7371, %v8940
    %v9069 = vsub.f32 %v7373, %v8941
    %v9070 = vsub.f32 %v7424, %v8942
    %v9071 = vsub.f32 %v7426, %v8943
    %v9072 = vsub.f32 %v7477, %v8944
    %v9073 = vsub.f32 %v7479, %v8945
    %v9074 = vsub.f32 %v7530, %v8946
    %v9075 = vsub.f32 %v7532, %v8947
    %v9076 = vsub.f32 %v7583, %v8948
    %v9077 = vsub.f32 %v7585, %v8949
    %v9078 = vsub.f32 %v7636, %v8950
    %v9079 = vsub.f32 %v7638, %v8951
    %v9080 = vsub.f32 %v7689, %v8952
    %v9081 = vsub.f32 %v7691, %v8953
    %v9082 = vsub.f32 %v7742, %v8954
    %v9083 = vsub.f32 %v7744, %v8955
    %v9084 = vsub.f32 %v7795, %v8956
    %v9085 = vsub.f32 %v7797, %v8957
    %v9086 = vsub.f32 %v7848, %v8958
    %v9087 = vsub.f32 %v7850, %v8959
    %v9088 = vsub.f32 %v7901, %v8960
    %v9089 = vsub.f32 %v7903, %v8961
    %v9090 = vsub.f32 %v7954, %v8962
    %v9091 = vsub.f32 %v7956, %v8963
    %v9092 = vsub.f32 %v8007, %v8964
    %v9093 = vsub.f32 %v8009, %v8965
    %v9094 = vsub.f32 %v8060, %v8966
    %v9095 = vsub.f32 %v8062, %v8967
    %v9096 = vmul.f32 %v8968, %v8968
    %v9097 = vmul.f32 %v8969, %v8969
    %v9098 = vmul.f32 %v8970, %v8970
    %v9099 = vmul.f32 %v8971, %v8971
    %v9100 = vmul.f32 %v8972, %v8972
    %v9101 = vmul.f32 %v8973, %v8973
    %v9102 = vmul.f32 %v8974, %v8974
    %v9103 = vmul.f32 %v8975, %v8975
    %v9104 = vmul.f32 %v8976, %v8976
    %v9105 = vmul.f32 %v8977, %v8977
    %v9106 = vmul.f32 %v8978, %v8978
    %v9107 = vmul.f32 %v8979, %v8979
    %v9108 = vmul.f32 %v8980, %v8980
    %v9109 = vmul.f32 %v8981, %v8981
    %v9110 = vmul.f32 %v8982, %v8982
    %v9111 = vmul.f32 %v8983, %v8983
    %v9112 = vmul.f32 %v8984, %v8984
    %v9113 = vmul.f32 %v8985, %v8985
    %v9114 = vmul.f32 %v8986, %v8986
    %v9115 = vmul.f32 %v8987, %v8987
    %v9116 = vmul.f32 %v8988, %v8988
    %v9117 = vmul.f32 %v8989, %v8989
    %v9118 = vmul.f32 %v8990, %v8990
    %v9119 = vmul.f32 %v8991, %v8991
    %v9120 = vmul.f32 %v8992, %v8992
    %v9121 = vmul.f32 %v8993, %v8993
    %v9122 = vmul.f32 %v8994, %v8994
    %v9123 = vmul.f32 %v8995, %v8995
    %v9124 = vmul.f32 %v8996, %v8996
    %v9125 = vmul.f32 %v8997, %v8997
    %v9126 = vmul.f32 %v8998, %v8998
    %v9127 = vmul.f32 %v8999, %v8999
    %v9128 = vmul.f32 %v9000, %v9000
    %v9129 = vmul.f32 %v9001, %v9001
    %v9130 = vmul.f32 %v9002, %v9002
    %v9131 = vmul.f32 %v9003, %v9003
    %v9132 = vmul.f32 %v9004, %v9004
    %v9133 = vmul.f32 %v9005, %v9005
    %v9134 = vmul.f32 %v9006, %v9006
    %v9135 = vmul.f32 %v9007, %v9007
    %v9136 = vmul.f32 %v9008, %v9008
    %v9137 = vmul.f32 %v9009, %v9009
    %v9138 = vmul.f32 %v9010, %v9010
    %v9139 = vmul.f32 %v9011, %v9011
    %v9140 = vmul.f32 %v9012, %v9012
    %v9141 = vmul.f32 %v9013, %v9013
    %v9142 = vmul.f32 %v9014, %v9014
    %v9143 = vmul.f32 %v9015, %v9015
    %v9144 = vmul.f32 %v9016, %v9016
    %v9145 = vmul.f32 %v9017, %v9017
    %v9146 = vmul.f32 %v9018, %v9018
    %v9147 = vmul.f32 %v9019, %v9019
    %v9148 = vmul.f32 %v9020, %v9020
    %v9149 = vmul.f32 %v9021, %v9021
    %v9150 = vmul.f32 %v9022, %v9022
    %v9151 = vmul.f32 %v9023, %v9023
    %v9152 = vmul.f32 %v9024, %v9024
    %v9153 = vmul.f32 %v9025, %v9025
    %v9154 = vmul.f32 %v9026, %v9026
    %v9155 = vmul.f32 %v9027, %v9027
    %v9156 = vmul.f32 %v9028, %v9028
    %v9157 = vmul.f32 %v9029, %v9029
    %v9158 = vmul.f32 %v9030, %v9030
    %v9159 = vmul.f32 %v9031, %v9031
    %v9160 = vmul.f32 %v9032, %v9032
    %v9161 = vmul.f32 %v9033, %v9033
    %v9162 = vmul.f32 %v9034, %v9034
    %v9163 = vmul.f32 %v9035, %v9035
    %v9164 = vmul.f32 %v9036, %v9036
    %v9165 = vmul.f32 %v9037, %v9037
    %v9166 = vmul.f32 %v9038, %v9038
    %v9167 = vmul.f32 %v9039, %v9039
    %v9168 = vmul.f32 %v9040, %v9040
    %v9169 = vmul.f32 %v9041, %v9041
    %v9170 = vmul.f32 %v9042, %v9042
    %v9171 = vmul.f32 %v9043, %v9043
    %v9172 = vmul.f32 %v9044, %v9044
    %v9173 = vmul.f32 %v9045, %v9045
    %v9174 = vmul.f32 %v9046, %v9046
    %v9175 = vmul.f32 %v9047, %v9047
    %v9176 = vmul.f32 %v9048, %v9048
    %v9177 = vmul.f32 %v9049, %v9049
    %v9178 = vmul.f32 %v9050, %v9050
    %v9179 = vmul.f32 %v9051, %v9051
    %v9180 = vmul.f32 %v9052, %v9052
    %v9181 = vmul.f32 %v9053, %v9053
    %v9182 = vmul.f32 %v9054, %v9054
    %v9183 = vmul.f32 %v9055, %v9055
    %v9184 = vmul.f32 %v9056, %v9056
    %v9185 = vmul.f32 %v9057, %v9057
    %v9186 = vmul.f32 %v9058, %v9058
    %v9187 = vmul.f32 %v9059, %v9059
    %v9188 = vmul.f32 %v9060, %v9060
    %v9189 = vmul.f32 %v9061, %v9061
    %v9190 = vmul.f32 %v9062, %v9062
    %v9191 = vmul.f32 %v9063, %v9063
    %v9192 = vmul.f32 %v9064, %v9064
    %v9193 = vmul.f32 %v9065, %v9065
    %v9194 = vmul.f32 %v9066, %v9066
    %v9195 = vmul.f32 %v9067, %v9067
    %v9196 = vmul.f32 %v9068, %v9068
    %v9197 = vmul.f32 %v9069, %v9069
    %v9198 = vmul.f32 %v9070, %v9070
    %v9199 = vmul.f32 %v9071, %v9071
    %v9200 = vmul.f32 %v9072, %v9072
    %v9201 = vmul.f32 %v9073, %v9073
    %v9202 = vmul.f32 %v9074, %v9074
    %v9203 = vmul.f32 %v9075, %v9075
    %v9204 = vmul.f32 %v9076, %v9076
    %v9205 = vmul.f32 %v9077, %v9077
    %v9206 = vmul.f32 %v9078, %v9078
    %v9207 = vmul.f32 %v9079, %v9079
    %v9208 = vmul.f32 %v9080, %v9080
    %v9209 = vmul.f32 %v9081, %v9081
    %v9210 = vmul.f32 %v9082, %v9082
    %v9211 = vmul.f32 %v9083, %v9083
    %v9212 = vmul.f32 %v9084, %v9084
    %v9213 = vmul.f32 %v9085, %v9085
    %v9214 = vmul.f32 %v9086, %v9086
    %v9215 = vmul.f32 %v9087, %v9087
    %v9216 = vmul.f32 %v9088, %v9088
    %v9217 = vmul.f32 %v9089, %v9089
    %v9218 = vmul.f32 %v9090, %v9090
    %v9219 = vmul.f32 %v9091, %v9091
    %v9220 = vmul.f32 %v9092, %v9092
    %v9221 = vmul.f32 %v9093, %v9093
    %v9222 = vmul.f32 %v9094, %v9094
    %v9223 = vmul.f32 %v9095, %v9095
    %v9224 = vrot.slane %v9096, 4
    %v9225 = vadd.f32 %v9096, %v9224
    %v9226 = vrot.slane %v9225, 2
    %v9227 = vadd.f32 %v9225, %v9226
    %v9228 = vrot.slane %v9227, 1
    %v9229 = vadd.f32 %v9227, %v9228
    %v9230 = vrot.slane %v9097, 4
    %v9231 = vadd.f32 %v9097, %v9230
    %v9232 = vrot.slane %v9231, 2
    %v9233 = vadd.f32 %v9231, %v9232
    %v9234 = vrot.slane %v9233, 1
    %v9235 = vadd.f32 %v9233, %v9234
    %v9236 = vrot.slane %v9098, 4
    %v9237 = vadd.f32 %v9098, %v9236
    %v9238 = vrot.slane %v9237, 2
    %v9239 = vadd.f32 %v9237, %v9238
    %v9240 = vrot.slane %v9239, 1
    %v9241 = vadd.f32 %v9239, %v9240
    %v9242 = vrot.slane %v9099, 4
    %v9243 = vadd.f32 %v9099, %v9242
    %v9244 = vrot.slane %v9243, 2
    %v9245 = vadd.f32 %v9243, %v9244
    %v9246 = vrot.slane %v9245, 1
    %v9247 = vadd.f32 %v9245, %v9246
    %v9248 = vrot.slane %v9100, 4
    %v9249 = vadd.f32 %v9100, %v9248
    %v9250 = vrot.slane %v9249, 2
    %v9251 = vadd.f32 %v9249, %v9250
    %v9252 = vrot.slane %v9251, 1
    %v9253 = vadd.f32 %v9251, %v9252
    %v9254 = vrot.slane %v9101, 4
    %v9255 = vadd.f32 %v9101, %v9254
    %v9256 = vrot.slane %v9255, 2
    %v9257 = vadd.f32 %v9255, %v9256
    %v9258 = vrot.slane %v9257, 1
    %v9259 = vadd.f32 %v9257, %v9258
    %v9260 = vrot.slane %v9102, 4
    %v9261 = vadd.f32 %v9102, %v9260
    %v9262 = vrot.slane %v9261, 2
    %v9263 = vadd.f32 %v9261, %v9262
    %v9264 = vrot.slane %v9263, 1
    %v9265 = vadd.f32 %v9263, %v9264
    %v9266 = vrot.slane %v9103, 4
    %v9267 = vadd.f32 %v9103, %v9266
    %v9268 = vrot.slane %v9267, 2
    %v9269 = vadd.f32 %v9267, %v9268
    %v9270 = vrot.slane %v9269, 1
    %v9271 = vadd.f32 %v9269, %v9270
    %v9272 = vrot.slane %v9104, 4
    %v9273 = vadd.f32 %v9104, %v9272
    %v9274 = vrot.slane %v9273, 2
    %v9275 = vadd.f32 %v9273, %v9274
    %v9276 = vrot.slane %v9275, 1
    %v9277 = vadd.f32 %v9275, %v9276
    %v9278 = vrot.slane %v9105, 4
    %v9279 = vadd.f32 %v9105, %v9278
    %v9280 = vrot.slane %v9279, 2
    %v9281 = vadd.f32 %v9279, %v9280
    %v9282 = vrot.slane %v9281, 1
    %v9283 = vadd.f32 %v9281, %v9282
    %v9284 = vrot.slane %v9106, 4
    %v9285 = vadd.f32 %v9106, %v9284
    %v9286 = vrot.slane %v9285, 2
    %v9287 = vadd.f32 %v9285, %v9286
    %v9288 = vrot.slane %v9287, 1
    %v9289 = vadd.f32 %v9287, %v9288
    %v9290 = vrot.slane %v9107, 4
    %v9291 = vadd.f32 %v9107, %v9290
    %v9292 = vrot.slane %v9291, 2
    %v9293 = vadd.f32 %v9291, %v9292
    %v9294 = vrot.slane %v9293, 1
    %v9295 = vadd.f32 %v9293, %v9294
    %v9296 = vrot.slane %v9108, 4
    %v9297 = vadd.f32 %v9108, %v9296
    %v9298 = vrot.slane %v9297, 2
    %v9299 = vadd.f32 %v9297, %v9298
    %v9300 = vrot.slane %v9299, 1
    %v9301 = vadd.f32 %v9299, %v9300
    %v9302 = vrot.slane %v9109, 4
    %v9303 = vadd.f32 %v9109, %v9302
    %v9304 = vrot.slane %v9303, 2
    %v9305 = vadd.f32 %v9303, %v9304
    %v9306 = vrot.slane %v9305, 1
    %v9307 = vadd.f32 %v9305, %v9306
    %v9308 = vrot.slane %v9110, 4
    %v9309 = vadd.f32 %v9110, %v9308
    %v9310 = vrot.slane %v9309, 2
    %v9311 = vadd.f32 %v9309, %v9310
    %v9312 = vrot.slane %v9311, 1
    %v9313 = vadd.f32 %v9311, %v9312
    %v9314 = vrot.slane %v9111, 4
    %v9315 = vadd.f32 %v9111, %v9314
    %v9316 = vrot.slane %v9315, 2
    %v9317 = vadd.f32 %v9315, %v9316
    %v9318 = vrot.slane %v9317, 1
    %v9319 = vadd.f32 %v9317, %v9318
    %v9320 = vrot.slane %v9112, 4
    %v9321 = vadd.f32 %v9112, %v9320
    %v9322 = vrot.slane %v9321, 2
    %v9323 = vadd.f32 %v9321, %v9322
    %v9324 = vrot.slane %v9323, 1
    %v9325 = vadd.f32 %v9323, %v9324
    %v9326 = vrot.slane %v9113, 4
    %v9327 = vadd.f32 %v9113, %v9326
    %v9328 = vrot.slane %v9327, 2
    %v9329 = vadd.f32 %v9327, %v9328
    %v9330 = vrot.slane %v9329, 1
    %v9331 = vadd.f32 %v9329, %v9330
    %v9332 = vrot.slane %v9114, 4
    %v9333 = vadd.f32 %v9114, %v9332
    %v9334 = vrot.slane %v9333, 2
    %v9335 = vadd.f32 %v9333, %v9334
    %v9336 = vrot.slane %v9335, 1
    %v9337 = vadd.f32 %v9335, %v9336
    %v9338 = vrot.slane %v9115, 4
    %v9339 = vadd.f32 %v9115, %v9338
    %v9340 = vrot.slane %v9339, 2
    %v9341 = vadd.f32 %v9339, %v9340
    %v9342 = vrot.slane %v9341, 1
    %v9343 = vadd.f32 %v9341, %v9342
    %v9344 = vrot.slane %v9116, 4
    %v9345 = vadd.f32 %v9116, %v9344
    %v9346 = vrot.slane %v9345, 2
    %v9347 = vadd.f32 %v9345, %v9346
    %v9348 = vrot.slane %v9347, 1
    %v9349 = vadd.f32 %v9347, %v9348
    %v9350 = vrot.slane %v9117, 4
    %v9351 = vadd.f32 %v9117, %v9350
    %v9352 = vrot.slane %v9351, 2
    %v9353 = vadd.f32 %v9351, %v9352
    %v9354 = vrot.slane %v9353, 1
    %v9355 = vadd.f32 %v9353, %v9354
    %v9356 = vrot.slane %v9118, 4
    %v9357 = vadd.f32 %v9118, %v9356
    %v9358 = vrot.slane %v9357, 2
    %v9359 = vadd.f32 %v9357, %v9358
    %v9360 = vrot.slane %v9359, 1
    %v9361 = vadd.f32 %v9359, %v9360
    %v9362 = vrot.slane %v9119, 4
    %v9363 = vadd.f32 %v9119, %v9362
    %v9364 = vrot.slane %v9363, 2
    %v9365 = vadd.f32 %v9363, %v9364
    %v9366 = vrot.slane %v9365, 1
    %v9367 = vadd.f32 %v9365, %v9366
    %v9368 = vrot.slane %v9120, 4
    %v9369 = vadd.f32 %v9120, %v9368
    %v9370 = vrot.slane %v9369, 2
    %v9371 = vadd.f32 %v9369, %v9370
    %v9372 = vrot.slane %v9371, 1
    %v9373 = vadd.f32 %v9371, %v9372
    %v9374 = vrot.slane %v9121, 4
    %v9375 = vadd.f32 %v9121, %v9374
    %v9376 = vrot.slane %v9375, 2
    %v9377 = vadd.f32 %v9375, %v9376
    %v9378 = vrot.slane %v9377, 1
    %v9379 = vadd.f32 %v9377, %v9378
    %v9380 = vrot.slane %v9122, 4
    %v9381 = vadd.f32 %v9122, %v9380
    %v9382 = vrot.slane %v9381, 2
    %v9383 = vadd.f32 %v9381, %v9382
    %v9384 = vrot.slane %v9383, 1
    %v9385 = vadd.f32 %v9383, %v9384
    %v9386 = vrot.slane %v9123, 4
    %v9387 = vadd.f32 %v9123, %v9386
    %v9388 = vrot.slane %v9387, 2
    %v9389 = vadd.f32 %v9387, %v9388
    %v9390 = vrot.slane %v9389, 1
    %v9391 = vadd.f32 %v9389, %v9390
    %v9392 = vrot.slane %v9124, 4
    %v9393 = vadd.f32 %v9124, %v9392
    %v9394 = vrot.slane %v9393, 2
    %v9395 = vadd.f32 %v9393, %v9394
    %v9396 = vrot.slane %v9395, 1
    %v9397 = vadd.f32 %v9395, %v9396
    %v9398 = vrot.slane %v9125, 4
    %v9399 = vadd.f32 %v9125, %v9398
    %v9400 = vrot.slane %v9399, 2
    %v9401 = vadd.f32 %v9399, %v9400
    %v9402 = vrot.slane %v9401, 1
    %v9403 = vadd.f32 %v9401, %v9402
    %v9404 = vrot.slane %v9126, 4
    %v9405 = vadd.f32 %v9126, %v9404
    %v9406 = vrot.slane %v9405, 2
    %v9407 = vadd.f32 %v9405, %v9406
    %v9408 = vrot.slane %v9407, 1
    %v9409 = vadd.f32 %v9407, %v9408
    %v9410 = vrot.slane %v9127, 4
    %v9411 = vadd.f32 %v9127, %v9410
    %v9412 = vrot.slane %v9411, 2
    %v9413 = vadd.f32 %v9411, %v9412
    %v9414 = vrot.slane %v9413, 1
    %v9415 = vadd.f32 %v9413, %v9414
    %v9416 = vrot.slane %v9128, 4
    %v9417 = vadd.f32 %v9128, %v9416
    %v9418 = vrot.slane %v9417, 2
    %v9419 = vadd.f32 %v9417, %v9418
    %v9420 = vrot.slane %v9419, 1
    %v9421 = vadd.f32 %v9419, %v9420
    %v9422 = vrot.slane %v9129, 4
    %v9423 = vadd.f32 %v9129, %v9422
    %v9424 = vrot.slane %v9423, 2
    %v9425 = vadd.f32 %v9423, %v9424
    %v9426 = vrot.slane %v9425, 1
    %v9427 = vadd.f32 %v9425, %v9426
    %v9428 = vrot.slane %v9130, 4
    %v9429 = vadd.f32 %v9130, %v9428
    %v9430 = vrot.slane %v9429, 2
    %v9431 = vadd.f32 %v9429, %v9430
    %v9432 = vrot.slane %v9431, 1
    %v9433 = vadd.f32 %v9431, %v9432
    %v9434 = vrot.slane %v9131, 4
    %v9435 = vadd.f32 %v9131, %v9434
    %v9436 = vrot.slane %v9435, 2
    %v9437 = vadd.f32 %v9435, %v9436
    %v9438 = vrot.slane %v9437, 1
    %v9439 = vadd.f32 %v9437, %v9438
    %v9440 = vrot.slane %v9132, 4
    %v9441 = vadd.f32 %v9132, %v9440
    %v9442 = vrot.slane %v9441, 2
    %v9443 = vadd.f32 %v9441, %v9442
    %v9444 = vrot.slane %v9443, 1
    %v9445 = vadd.f32 %v9443, %v9444
    %v9446 = vrot.slane %v9133, 4
    %v9447 = vadd.f32 %v9133, %v9446
    %v9448 = vrot.slane %v9447, 2
    %v9449 = vadd.f32 %v9447, %v9448
    %v9450 = vrot.slane %v9449, 1
    %v9451 = vadd.f32 %v9449, %v9450
    %v9452 = vrot.slane %v9134, 4
    %v9453 = vadd.f32 %v9134, %v9452
    %v9454 = vrot.slane %v9453, 2
    %v9455 = vadd.f32 %v9453, %v9454
    %v9456 = vrot.slane %v9455, 1
    %v9457 = vadd.f32 %v9455, %v9456
    %v9458 = vrot.slane %v9135, 4
    %v9459 = vadd.f32 %v9135, %v9458
    %v9460 = vrot.slane %v9459, 2
    %v9461 = vadd.f32 %v9459, %v9460
    %v9462 = vrot.slane %v9461, 1
    %v9463 = vadd.f32 %v9461, %v9462
    %v9464 = vrot.slane %v9136, 4
    %v9465 = vadd.f32 %v9136, %v9464
    %v9466 = vrot.slane %v9465, 2
    %v9467 = vadd.f32 %v9465, %v9466
    %v9468 = vrot.slane %v9467, 1
    %v9469 = vadd.f32 %v9467, %v9468
    %v9470 = vrot.slane %v9137, 4
    %v9471 = vadd.f32 %v9137, %v9470
    %v9472 = vrot.slane %v9471, 2
    %v9473 = vadd.f32 %v9471, %v9472
    %v9474 = vrot.slane %v9473, 1
    %v9475 = vadd.f32 %v9473, %v9474
    %v9476 = vrot.slane %v9138, 4
    %v9477 = vadd.f32 %v9138, %v9476
    %v9478 = vrot.slane %v9477, 2
    %v9479 = vadd.f32 %v9477, %v9478
    %v9480 = vrot.slane %v9479, 1
    %v9481 = vadd.f32 %v9479, %v9480
    %v9482 = vrot.slane %v9139, 4
    %v9483 = vadd.f32 %v9139, %v9482
    %v9484 = vrot.slane %v9483, 2
    %v9485 = vadd.f32 %v9483, %v9484
    %v9486 = vrot.slane %v9485, 1
    %v9487 = vadd.f32 %v9485, %v9486
    %v9488 = vrot.slane %v9140, 4
    %v9489 = vadd.f32 %v9140, %v9488
    %v9490 = vrot.slane %v9489, 2
    %v9491 = vadd.f32 %v9489, %v9490
    %v9492 = vrot.slane %v9491, 1
    %v9493 = vadd.f32 %v9491, %v9492
    %v9494 = vrot.slane %v9141, 4
    %v9495 = vadd.f32 %v9141, %v9494
    %v9496 = vrot.slane %v9495, 2
    %v9497 = vadd.f32 %v9495, %v9496
    %v9498 = vrot.slane %v9497, 1
    %v9499 = vadd.f32 %v9497, %v9498
    %v9500 = vrot.slane %v9142, 4
    %v9501 = vadd.f32 %v9142, %v9500
    %v9502 = vrot.slane %v9501, 2
    %v9503 = vadd.f32 %v9501, %v9502
    %v9504 = vrot.slane %v9503, 1
    %v9505 = vadd.f32 %v9503, %v9504
    %v9506 = vrot.slane %v9143, 4
    %v9507 = vadd.f32 %v9143, %v9506
    %v9508 = vrot.slane %v9507, 2
    %v9509 = vadd.f32 %v9507, %v9508
    %v9510 = vrot.slane %v9509, 1
    %v9511 = vadd.f32 %v9509, %v9510
    %v9512 = vrot.slane %v9144, 4
    %v9513 = vadd.f32 %v9144, %v9512
    %v9514 = vrot.slane %v9513, 2
    %v9515 = vadd.f32 %v9513, %v9514
    %v9516 = vrot.slane %v9515, 1
    %v9517 = vadd.f32 %v9515, %v9516
    %v9518 = vrot.slane %v9145, 4
    %v9519 = vadd.f32 %v9145, %v9518
    %v9520 = vrot.slane %v9519, 2
    %v9521 = vadd.f32 %v9519, %v9520
    %v9522 = vrot.slane %v9521, 1
    %v9523 = vadd.f32 %v9521, %v9522
    %v9524 = vrot.slane %v9146, 4
    %v9525 = vadd.f32 %v9146, %v9524
    %v9526 = vrot.slane %v9525, 2
    %v9527 = vadd.f32 %v9525, %v9526
    %v9528 = vrot.slane %v9527, 1
    %v9529 = vadd.f32 %v9527, %v9528
    %v9530 = vrot.slane %v9147, 4
    %v9531 = vadd.f32 %v9147, %v9530
    %v9532 = vrot.slane %v9531, 2
    %v9533 = vadd.f32 %v9531, %v9532
    %v9534 = vrot.slane %v9533, 1
    %v9535 = vadd.f32 %v9533, %v9534
    %v9536 = vrot.slane %v9148, 4
    %v9537 = vadd.f32 %v9148, %v9536
    %v9538 = vrot.slane %v9537, 2
    %v9539 = vadd.f32 %v9537, %v9538
    %v9540 = vrot.slane %v9539, 1
    %v9541 = vadd.f32 %v9539, %v9540
    %v9542 = vrot.slane %v9149, 4
    %v9543 = vadd.f32 %v9149, %v9542
    %v9544 = vrot.slane %v9543, 2
    %v9545 = vadd.f32 %v9543, %v9544
    %v9546 = vrot.slane %v9545, 1
    %v9547 = vadd.f32 %v9545, %v9546
    %v9548 = vrot.slane %v9150, 4
    %v9549 = vadd.f32 %v9150, %v9548
    %v9550 = vrot.slane %v9549, 2
    %v9551 = vadd.f32 %v9549, %v9550
    %v9552 = vrot.slane %v9551, 1
    %v9553 = vadd.f32 %v9551, %v9552
    %v9554 = vrot.slane %v9151, 4
    %v9555 = vadd.f32 %v9151, %v9554
    %v9556 = vrot.slane %v9555, 2
    %v9557 = vadd.f32 %v9555, %v9556
    %v9558 = vrot.slane %v9557, 1
    %v9559 = vadd.f32 %v9557, %v9558
    %v9560 = vrot.slane %v9152, 4
    %v9561 = vadd.f32 %v9152, %v9560
    %v9562 = vrot.slane %v9561, 2
    %v9563 = vadd.f32 %v9561, %v9562
    %v9564 = vrot.slane %v9563, 1
    %v9565 = vadd.f32 %v9563, %v9564
    %v9566 = vrot.slane %v9153, 4
    %v9567 = vadd.f32 %v9153, %v9566
    %v9568 = vrot.slane %v9567, 2
    %v9569 = vadd.f32 %v9567, %v9568
    %v9570 = vrot.slane %v9569, 1
    %v9571 = vadd.f32 %v9569, %v9570
    %v9572 = vrot.slane %v9154, 4
    %v9573 = vadd.f32 %v9154, %v9572
    %v9574 = vrot.slane %v9573, 2
    %v9575 = vadd.f32 %v9573, %v9574
    %v9576 = vrot.slane %v9575, 1
    %v9577 = vadd.f32 %v9575, %v9576
    %v9578 = vrot.slane %v9155, 4
    %v9579 = vadd.f32 %v9155, %v9578
    %v9580 = vrot.slane %v9579, 2
    %v9581 = vadd.f32 %v9579, %v9580
    %v9582 = vrot.slane %v9581, 1
    %v9583 = vadd.f32 %v9581, %v9582
    %v9584 = vrot.slane %v9156, 4
    %v9585 = vadd.f32 %v9156, %v9584
    %v9586 = vrot.slane %v9585, 2
    %v9587 = vadd.f32 %v9585, %v9586
    %v9588 = vrot.slane %v9587, 1
    %v9589 = vadd.f32 %v9587, %v9588
    %v9590 = vrot.slane %v9157, 4
    %v9591 = vadd.f32 %v9157, %v9590
    %v9592 = vrot.slane %v9591, 2
    %v9593 = vadd.f32 %v9591, %v9592
    %v9594 = vrot.slane %v9593, 1
    %v9595 = vadd.f32 %v9593, %v9594
    %v9596 = vrot.slane %v9158, 4
    %v9597 = vadd.f32 %v9158, %v9596
    %v9598 = vrot.slane %v9597, 2
    %v9599 = vadd.f32 %v9597, %v9598
    %v9600 = vrot.slane %v9599, 1
    %v9601 = vadd.f32 %v9599, %v9600
    %v9602 = vrot.slane %v9159, 4
    %v9603 = vadd.f32 %v9159, %v9602
    %v9604 = vrot.slane %v9603, 2
    %v9605 = vadd.f32 %v9603, %v9604
    %v9606 = vrot.slane %v9605, 1
    %v9607 = vadd.f32 %v9605, %v9606
    %v9608 = vrot.slane %v9160, 4
    %v9609 = vadd.f32 %v9160, %v9608
    %v9610 = vrot.slane %v9609, 2
    %v9611 = vadd.f32 %v9609, %v9610
    %v9612 = vrot.slane %v9611, 1
    %v9613 = vadd.f32 %v9611, %v9612
    %v9614 = vrot.slane %v9161, 4
    %v9615 = vadd.f32 %v9161, %v9614
    %v9616 = vrot.slane %v9615, 2
    %v9617 = vadd.f32 %v9615, %v9616
    %v9618 = vrot.slane %v9617, 1
    %v9619 = vadd.f32 %v9617, %v9618
    %v9620 = vrot.slane %v9162, 4
    %v9621 = vadd.f32 %v9162, %v9620
    %v9622 = vrot.slane %v9621, 2
    %v9623 = vadd.f32 %v9621, %v9622
    %v9624 = vrot.slane %v9623, 1
    %v9625 = vadd.f32 %v9623, %v9624
    %v9626 = vrot.slane %v9163, 4
    %v9627 = vadd.f32 %v9163, %v9626
    %v9628 = vrot.slane %v9627, 2
    %v9629 = vadd.f32 %v9627, %v9628
    %v9630 = vrot.slane %v9629, 1
    %v9631 = vadd.f32 %v9629, %v9630
    %v9632 = vrot.slane %v9164, 4
    %v9633 = vadd.f32 %v9164, %v9632
    %v9634 = vrot.slane %v9633, 2
    %v9635 = vadd.f32 %v9633, %v9634
    %v9636 = vrot.slane %v9635, 1
    %v9637 = vadd.f32 %v9635, %v9636
    %v9638 = vrot.slane %v9165, 4
    %v9639 = vadd.f32 %v9165, %v9638
    %v9640 = vrot.slane %v9639, 2
    %v9641 = vadd.f32 %v9639, %v9640
    %v9642 = vrot.slane %v9641, 1
    %v9643 = vadd.f32 %v9641, %v9642
    %v9644 = vrot.slane %v9166, 4
    %v9645 = vadd.f32 %v9166, %v9644
    %v9646 = vrot.slane %v9645, 2
    %v9647 = vadd.f32 %v9645, %v9646
    %v9648 = vrot.slane %v9647, 1
    %v9649 = vadd.f32 %v9647, %v9648
    %v9650 = vrot.slane %v9167, 4
    %v9651 = vadd.f32 %v9167, %v9650
    %v9652 = vrot.slane %v9651, 2
    %v9653 = vadd.f32 %v9651, %v9652
    %v9654 = vrot.slane %v9653, 1
    %v9655 = vadd.f32 %v9653, %v9654
    %v9656 = vrot.slane %v9168, 4
    %v9657 = vadd.f32 %v9168, %v9656
    %v9658 = vrot.slane %v9657, 2
    %v9659 = vadd.f32 %v9657, %v9658
    %v9660 = vrot.slane %v9659, 1
    %v9661 = vadd.f32 %v9659, %v9660
    %v9662 = vrot.slane %v9169, 4
    %v9663 = vadd.f32 %v9169, %v9662
    %v9664 = vrot.slane %v9663, 2
    %v9665 = vadd.f32 %v9663, %v9664
    %v9666 = vrot.slane %v9665, 1
    %v9667 = vadd.f32 %v9665, %v9666
    %v9668 = vrot.slane %v9170, 4
    %v9669 = vadd.f32 %v9170, %v9668
    %v9670 = vrot.slane %v9669, 2
    %v9671 = vadd.f32 %v9669, %v9670
    %v9672 = vrot.slane %v9671, 1
    %v9673 = vadd.f32 %v9671, %v9672
    %v9674 = vrot.slane %v9171, 4
    %v9675 = vadd.f32 %v9171, %v9674
    %v9676 = vrot.slane %v9675, 2
    %v9677 = vadd.f32 %v9675, %v9676
    %v9678 = vrot.slane %v9677, 1
    %v9679 = vadd.f32 %v9677, %v9678
    %v9680 = vrot.slane %v9172, 4
    %v9681 = vadd.f32 %v9172, %v9680
    %v9682 = vrot.slane %v9681, 2
    %v9683 = vadd.f32 %v9681, %v9682
    %v9684 = vrot.slane %v9683, 1
    %v9685 = vadd.f32 %v9683, %v9684
    %v9686 = vrot.slane %v9173, 4
    %v9687 = vadd.f32 %v9173, %v9686
    %v9688 = vrot.slane %v9687, 2
    %v9689 = vadd.f32 %v9687, %v9688
    %v9690 = vrot.slane %v9689, 1
    %v9691 = vadd.f32 %v9689, %v9690
    %v9692 = vrot.slane %v9174, 4
    %v9693 = vadd.f32 %v9174, %v9692
    %v9694 = vrot.slane %v9693, 2
    %v9695 = vadd.f32 %v9693, %v9694
    %v9696 = vrot.slane %v9695, 1
    %v9697 = vadd.f32 %v9695, %v9696
    %v9698 = vrot.slane %v9175, 4
    %v9699 = vadd.f32 %v9175, %v9698
    %v9700 = vrot.slane %v9699, 2
    %v9701 = vadd.f32 %v9699, %v9700
    %v9702 = vrot.slane %v9701, 1
    %v9703 = vadd.f32 %v9701, %v9702
    %v9704 = vrot.slane %v9176, 4
    %v9705 = vadd.f32 %v9176, %v9704
    %v9706 = vrot.slane %v9705, 2
    %v9707 = vadd.f32 %v9705, %v9706
    %v9708 = vrot.slane %v9707, 1
    %v9709 = vadd.f32 %v9707, %v9708
    %v9710 = vrot.slane %v9177, 4
    %v9711 = vadd.f32 %v9177, %v9710
    %v9712 = vrot.slane %v9711, 2
    %v9713 = vadd.f32 %v9711, %v9712
    %v9714 = vrot.slane %v9713, 1
    %v9715 = vadd.f32 %v9713, %v9714
    %v9716 = vrot.slane %v9178, 4
    %v9717 = vadd.f32 %v9178, %v9716
    %v9718 = vrot.slane %v9717, 2
    %v9719 = vadd.f32 %v9717, %v9718
    %v9720 = vrot.slane %v9719, 1
    %v9721 = vadd.f32 %v9719, %v9720
    %v9722 = vrot.slane %v9179, 4
    %v9723 = vadd.f32 %v9179, %v9722
    %v9724 = vrot.slane %v9723, 2
    %v9725 = vadd.f32 %v9723, %v9724
    %v9726 = vrot.slane %v9725, 1
    %v9727 = vadd.f32 %v9725, %v9726
    %v9728 = vrot.slane %v9180, 4
    %v9729 = vadd.f32 %v9180, %v9728
    %v9730 = vrot.slane %v9729, 2
    %v9731 = vadd.f32 %v9729, %v9730
    %v9732 = vrot.slane %v9731, 1
    %v9733 = vadd.f32 %v9731, %v9732
    %v9734 = vrot.slane %v9181, 4
    %v9735 = vadd.f32 %v9181, %v9734
    %v9736 = vrot.slane %v9735, 2
    %v9737 = vadd.f32 %v9735, %v9736
    %v9738 = vrot.slane %v9737, 1
    %v9739 = vadd.f32 %v9737, %v9738
    %v9740 = vrot.slane %v9182, 4
    %v9741 = vadd.f32 %v9182, %v9740
    %v9742 = vrot.slane %v9741, 2
    %v9743 = vadd.f32 %v9741, %v9742
    %v9744 = vrot.slane %v9743, 1
    %v9745 = vadd.f32 %v9743, %v9744
    %v9746 = vrot.slane %v9183, 4
    %v9747 = vadd.f32 %v9183, %v9746
    %v9748 = vrot.slane %v9747, 2
    %v9749 = vadd.f32 %v9747, %v9748
    %v9750 = vrot.slane %v9749, 1
    %v9751 = vadd.f32 %v9749, %v9750
    %v9752 = vrot.slane %v9184, 4
    %v9753 = vadd.f32 %v9184, %v9752
    %v9754 = vrot.slane %v9753, 2
    %v9755 = vadd.f32 %v9753, %v9754
    %v9756 = vrot.slane %v9755, 1
    %v9757 = vadd.f32 %v9755, %v9756
    %v9758 = vrot.slane %v9185, 4
    %v9759 = vadd.f32 %v9185, %v9758
    %v9760 = vrot.slane %v9759, 2
    %v9761 = vadd.f32 %v9759, %v9760
    %v9762 = vrot.slane %v9761, 1
    %v9763 = vadd.f32 %v9761, %v9762
    %v9764 = vrot.slane %v9186, 4
    %v9765 = vadd.f32 %v9186, %v9764
    %v9766 = vrot.slane %v9765, 2
    %v9767 = vadd.f32 %v9765, %v9766
    %v9768 = vrot.slane %v9767, 1
    %v9769 = vadd.f32 %v9767, %v9768
    %v9770 = vrot.slane %v9187, 4
    %v9771 = vadd.f32 %v9187, %v9770
    %v9772 = vrot.slane %v9771, 2
    %v9773 = vadd.f32 %v9771, %v9772
    %v9774 = vrot.slane %v9773, 1
    %v9775 = vadd.f32 %v9773, %v9774
    %v9776 = vrot.slane %v9188, 4
    %v9777 = vadd.f32 %v9188, %v9776
    %v9778 = vrot.slane %v9777, 2
    %v9779 = vadd.f32 %v9777, %v9778
    %v9780 = vrot.slane %v9779, 1
    %v9781 = vadd.f32 %v9779, %v9780
    %v9782 = vrot.slane %v9189, 4
    %v9783 = vadd.f32 %v9189, %v9782
    %v9784 = vrot.slane %v9783, 2
    %v9785 = vadd.f32 %v9783, %v9784
    %v9786 = vrot.slane %v9785, 1
    %v9787 = vadd.f32 %v9785, %v9786
    %v9788 = vrot.slane %v9190, 4
    %v9789 = vadd.f32 %v9190, %v9788
    %v9790 = vrot.slane %v9789, 2
    %v9791 = vadd.f32 %v9789, %v9790
    %v9792 = vrot.slane %v9791, 1
    %v9793 = vadd.f32 %v9791, %v9792
    %v9794 = vrot.slane %v9191, 4
    %v9795 = vadd.f32 %v9191, %v9794
    %v9796 = vrot.slane %v9795, 2
    %v9797 = vadd.f32 %v9795, %v9796
    %v9798 = vrot.slane %v9797, 1
    %v9799 = vadd.f32 %v9797, %v9798
    %v9800 = vrot.slane %v9192, 4
    %v9801 = vadd.f32 %v9192, %v9800
    %v9802 = vrot.slane %v9801, 2
    %v9803 = vadd.f32 %v9801, %v9802
    %v9804 = vrot.slane %v9803, 1
    %v9805 = vadd.f32 %v9803, %v9804
    %v9806 = vrot.slane %v9193, 4
    %v9807 = vadd.f32 %v9193, %v9806
    %v9808 = vrot.slane %v9807, 2
    %v9809 = vadd.f32 %v9807, %v9808
    %v9810 = vrot.slane %v9809, 1
    %v9811 = vadd.f32 %v9809, %v9810
    %v9812 = vrot.slane %v9194, 4
    %v9813 = vadd.f32 %v9194, %v9812
    %v9814 = vrot.slane %v9813, 2
    %v9815 = vadd.f32 %v9813, %v9814
    %v9816 = vrot.slane %v9815, 1
    %v9817 = vadd.f32 %v9815, %v9816
    %v9818 = vrot.slane %v9195, 4
    %v9819 = vadd.f32 %v9195, %v9818
    %v9820 = vrot.slane %v9819, 2
    %v9821 = vadd.f32 %v9819, %v9820
    %v9822 = vrot.slane %v9821, 1
    %v9823 = vadd.f32 %v9821, %v9822
    %v9824 = vrot.slane %v9196, 4
    %v9825 = vadd.f32 %v9196, %v9824
    %v9826 = vrot.slane %v9825, 2
    %v9827 = vadd.f32 %v9825, %v9826
    %v9828 = vrot.slane %v9827, 1
    %v9829 = vadd.f32 %v9827, %v9828
    %v9830 = vrot.slane %v9197, 4
    %v9831 = vadd.f32 %v9197, %v9830
    %v9832 = vrot.slane %v9831, 2
    %v9833 = vadd.f32 %v9831, %v9832
    %v9834 = vrot.slane %v9833, 1
    %v9835 = vadd.f32 %v9833, %v9834
    %v9836 = vrot.slane %v9198, 4
    %v9837 = vadd.f32 %v9198, %v9836
    %v9838 = vrot.slane %v9837, 2
    %v9839 = vadd.f32 %v9837, %v9838
    %v9840 = vrot.slane %v9839, 1
    %v9841 = vadd.f32 %v9839, %v9840
    %v9842 = vrot.slane %v9199, 4
    %v9843 = vadd.f32 %v9199, %v9842
    %v9844 = vrot.slane %v9843, 2
    %v9845 = vadd.f32 %v9843, %v9844
    %v9846 = vrot.slane %v9845, 1
    %v9847 = vadd.f32 %v9845, %v9846
    %v9848 = vrot.slane %v9200, 4
    %v9849 = vadd.f32 %v9200, %v9848
    %v9850 = vrot.slane %v9849, 2
    %v9851 = vadd.f32 %v9849, %v9850
    %v9852 = vrot.slane %v9851, 1
    %v9853 = vadd.f32 %v9851, %v9852
    %v9854 = vrot.slane %v9201, 4
    %v9855 = vadd.f32 %v9201, %v9854
    %v9856 = vrot.slane %v9855, 2
    %v9857 = vadd.f32 %v9855, %v9856
    %v9858 = vrot.slane %v9857, 1
    %v9859 = vadd.f32 %v9857, %v9858
    %v9860 = vrot.slane %v9202, 4
    %v9861 = vadd.f32 %v9202, %v9860
    %v9862 = vrot.slane %v9861, 2
    %v9863 = vadd.f32 %v9861, %v9862
    %v9864 = vrot.slane %v9863, 1
    %v9865 = vadd.f32 %v9863, %v9864
    %v9866 = vrot.slane %v9203, 4
    %v9867 = vadd.f32 %v9203, %v9866
    %v9868 = vrot.slane %v9867, 2
    %v9869 = vadd.f32 %v9867, %v9868
    %v9870 = vrot.slane %v9869, 1
    %v9871 = vadd.f32 %v9869, %v9870
    %v9872 = vrot.slane %v9204, 4
    %v9873 = vadd.f32 %v9204, %v9872
    %v9874 = vrot.slane %v9873, 2
    %v9875 = vadd.f32 %v9873, %v9874
    %v9876 = vrot.slane %v9875, 1
    %v9877 = vadd.f32 %v9875, %v9876
    %v9878 = vrot.slane %v9205, 4
    %v9879 = vadd.f32 %v9205, %v9878
    %v9880 = vrot.slane %v9879, 2
    %v9881 = vadd.f32 %v9879, %v9880
    %v9882 = vrot.slane %v9881, 1
    %v9883 = vadd.f32 %v9881, %v9882
    %v9884 = vrot.slane %v9206, 4
    %v9885 = vadd.f32 %v9206, %v9884
    %v9886 = vrot.slane %v9885, 2
    %v9887 = vadd.f32 %v9885, %v9886
    %v9888 = vrot.slane %v9887, 1
    %v9889 = vadd.f32 %v9887, %v9888
    %v9890 = vrot.slane %v9207, 4
    %v9891 = vadd.f32 %v9207, %v9890
    %v9892 = vrot.slane %v9891, 2
    %v9893 = vadd.f32 %v9891, %v9892
    %v9894 = vrot.slane %v9893, 1
    %v9895 = vadd.f32 %v9893, %v9894
    %v9896 = vrot.slane %v9208, 4
    %v9897 = vadd.f32 %v9208, %v9896
    %v9898 = vrot.slane %v9897, 2
    %v9899 = vadd.f32 %v9897, %v9898
    %v9900 = vrot.slane %v9899, 1
    %v9901 = vadd.f32 %v9899, %v9900
    %v9902 = vrot.slane %v9209, 4
    %v9903 = vadd.f32 %v9209, %v9902
    %v9904 = vrot.slane %v9903, 2
    %v9905 = vadd.f32 %v9903, %v9904
    %v9906 = vrot.slane %v9905, 1
    %v9907 = vadd.f32 %v9905, %v9906
    %v9908 = vrot.slane %v9210, 4
    %v9909 = vadd.f32 %v9210, %v9908
    %v9910 = vrot.slane %v9909, 2
    %v9911 = vadd.f32 %v9909, %v9910
    %v9912 = vrot.slane %v9911, 1
    %v9913 = vadd.f32 %v9911, %v9912
    %v9914 = vrot.slane %v9211, 4
    %v9915 = vadd.f32 %v9211, %v9914
    %v9916 = vrot.slane %v9915, 2
    %v9917 = vadd.f32 %v9915, %v9916
    %v9918 = vrot.slane %v9917, 1
    %v9919 = vadd.f32 %v9917, %v9918
    %v9920 = vrot.slane %v9212, 4
    %v9921 = vadd.f32 %v9212, %v9920
    %v9922 = vrot.slane %v9921, 2
    %v9923 = vadd.f32 %v9921, %v9922
    %v9924 = vrot.slane %v9923, 1
    %v9925 = vadd.f32 %v9923, %v9924
    %v9926 = vrot.slane %v9213, 4
    %v9927 = vadd.f32 %v9213, %v9926
    %v9928 = vrot.slane %v9927, 2
    %v9929 = vadd.f32 %v9927, %v9928
    %v9930 = vrot.slane %v9929, 1
    %v9931 = vadd.f32 %v9929, %v9930
    %v9932 = vrot.slane %v9214, 4
    %v9933 = vadd.f32 %v9214, %v9932
    %v9934 = vrot.slane %v9933, 2
    %v9935 = vadd.f32 %v9933, %v9934
    %v9936 = vrot.slane %v9935, 1
    %v9937 = vadd.f32 %v9935, %v9936
    %v9938 = vrot.slane %v9215, 4
    %v9939 = vadd.f32 %v9215, %v9938
    %v9940 = vrot.slane %v9939, 2
    %v9941 = vadd.f32 %v9939, %v9940
    %v9942 = vrot.slane %v9941, 1
    %v9943 = vadd.f32 %v9941, %v9942
    %v9944 = vrot.slane %v9216, 4
    %v9945 = vadd.f32 %v9216, %v9944
    %v9946 = vrot.slane %v9945, 2
    %v9947 = vadd.f32 %v9945, %v9946
    %v9948 = vrot.slane %v9947, 1
    %v9949 = vadd.f32 %v9947, %v9948
    %v9950 = vrot.slane %v9217, 4
    %v9951 = vadd.f32 %v9217, %v9950
    %v9952 = vrot.slane %v9951, 2
    %v9953 = vadd.f32 %v9951, %v9952
    %v9954 = vrot.slane %v9953, 1
    %v9955 = vadd.f32 %v9953, %v9954
    %v9956 = vrot.slane %v9218, 4
    %v9957 = vadd.f32 %v9218, %v9956
    %v9958 = vrot.slane %v9957, 2
    %v9959 = vadd.f32 %v9957, %v9958
    %v9960 = vrot.slane %v9959, 1
    %v9961 = vadd.f32 %v9959, %v9960
    %v9962 = vrot.slane %v9219, 4
    %v9963 = vadd.f32 %v9219, %v9962
    %v9964 = vrot.slane %v9963, 2
    %v9965 = vadd.f32 %v9963, %v9964
    %v9966 = vrot.slane %v9965, 1
    %v9967 = vadd.f32 %v9965, %v9966
    %v9968 = vrot.slane %v9220, 4
    %v9969 = vadd.f32 %v9220, %v9968
    %v9970 = vrot.slane %v9969, 2
    %v9971 = vadd.f32 %v9969, %v9970
    %v9972 = vrot.slane %v9971, 1
    %v9973 = vadd.f32 %v9971, %v9972
    %v9974 = vrot.slane %v9221, 4
    %v9975 = vadd.f32 %v9221, %v9974
    %v9976 = vrot.slane %v9975, 2
    %v9977 = vadd.f32 %v9975, %v9976
    %v9978 = vrot.slane %v9977, 1
    %v9979 = vadd.f32 %v9977, %v9978
    %v9980 = vrot.slane %v9222, 4
    %v9981 = vadd.f32 %v9222, %v9980
    %v9982 = vrot.slane %v9981, 2
    %v9983 = vadd.f32 %v9981, %v9982
    %v9984 = vrot.slane %v9983, 1
    %v9985 = vadd.f32 %v9983, %v9984
    %v9986 = vrot.slane %v9223, 4
    %v9987 = vadd.f32 %v9223, %v9986
    %v9988 = vrot.slane %v9987, 2
    %v9989 = vadd.f32 %v9987, %v9988
    %v9990 = vrot.slane %v9989, 1
    %v9991 = vadd.f32 %v9989, %v9990
    %v9992 = vmul.f32 %v9229, 0.125
    %v9993 = vmul.f32 %v9235, 0.125
    %v9994 = vmul.f32 %v9241, 0.125
    %v9995 = vmul.f32 %v9247, 0.125
    %v9996 = vmul.f32 %v9253, 0.125
    %v9997 = vmul.f32 %v9259, 0.125
    %v9998 = vmul.f32 %v9265, 0.125
    %v9999 = vmul.f32 %v9271, 0.125
    %v10000 = vmul.f32 %v9277, 0.125
    %v10001 = vmul.f32 %v9283, 0.125
    %v10002 = vmul.f32 %v9289, 0.125
    %v10003 = vmul.f32 %v9295, 0.125
    %v10004 = vmul.f32 %v9301, 0.125
    %v10005 = vmul.f32 %v9307, 0.125
    %v10006 = vmul.f32 %v9313, 0.125
    %v10007 = vmul.f32 %v9319, 0.125
    %v10008 = vmul.f32 %v9325, 0.125
    %v10009 = vmul.f32 %v9331, 0.125
    %v10010 = vmul.f32 %v9337, 0.125
    %v10011 = vmul.f32 %v9343, 0.125
    %v10012 = vmul.f32 %v9349, 0.125
    %v10013 = vmul.f32 %v9355, 0.125
    %v10014 = vmul.f32 %v9361, 0.125
    %v10015 = vmul.f32 %v9367, 0.125
    %v10016 = vmul.f32 %v9373, 0.125
    %v10017 = vmul.f32 %v9379, 0.125
    %v10018 = vmul.f32 %v9385, 0.125
    %v10019 = vmul.f32 %v9391, 0.125
    %v10020 = vmul.f32 %v9397, 0.125
    %v10021 = vmul.f32 %v9403, 0.125
    %v10022 = vmul.f32 %v9409, 0.125
    %v10023 = vmul.f32 %v9415, 0.125
    %v10024 = vmul.f32 %v9421, 0.125
    %v10025 = vmul.f32 %v9427, 0.125
    %v10026 = vmul.f32 %v9433, 0.125
    %v10027 = vmul.f32 %v9439, 0.125
    %v10028 = vmul.f32 %v9445, 0.125
    %v10029 = vmul.f32 %v9451, 0.125
    %v10030 = vmul.f32 %v9457, 0.125
    %v10031 = vmul.f32 %v9463, 0.125
    %v10032 = vmul.f32 %v9469, 0.125
    %v10033 = vmul.f32 %v9475, 0.125
    %v10034 = vmul.f32 %v9481, 0.125
    %v10035 = vmul.f32 %v9487, 0.125
    %v10036 = vmul.f32 %v9493, 0.125
    %v10037 = vmul.f32 %v9499, 0.125
    %v10038 = vmul.f32 %v9505, 0.125
    %v10039 = vmul.f32 %v9511, 0.125
    %v10040 = vmul.f32 %v9517, 0.125
    %v10041 = vmul.f32 %v9523, 0.125
    %v10042 = vmul.f32 %v9529, 0.125
    %v10043 = vmul.f32 %v9535, 0.125
    %v10044 = vmul.f32 %v9541, 0.125
    %v10045 = vmul.f32 %v9547, 0.125
    %v10046 = vmul.f32 %v9553, 0.125
    %v10047 = vmul.f32 %v9559, 0.125
    %v10048 = vmul.f32 %v9565, 0.125
    %v10049 = vmul.f32 %v9571, 0.125
    %v10050 = vmul.f32 %v9577, 0.125
    %v10051 = vmul.f32 %v9583, 0.125
    %v10052 = vmul.f32 %v9589, 0.125
    %v10053 = vmul.f32 %v9595, 0.125
    %v10054 = vmul.f32 %v9601, 0.125
    %v10055 = vmul.f32 %v9607, 0.125
    %v10056 = vmul.f32 %v9613, 0.125
    %v10057 = vmul.f32 %v9619, 0.125
    %v10058 = vmul.f32 %v9625, 0.125
    %v10059 = vmul.f32 %v9631, 0.125
    %v10060 = vmul.f32 %v9637, 0.125
    %v10061 = vmul.f32 %v9643, 0.125
    %v10062 = vmul.f32 %v9649, 0.125
    %v10063 = vmul.f32 %v9655, 0.125
    %v10064 = vmul.f32 %v9661, 0.125
    %v10065 = vmul.f32 %v9667, 0.125
    %v10066 = vmul.f32 %v9673, 0.125
    %v10067 = vmul.f32 %v9679, 0.125
    %v10068 = vmul.f32 %v9685, 0.125
    %v10069 = vmul.f32 %v9691, 0.125
    %v10070 = vmul.f32 %v9697, 0.125
    %v10071 = vmul.f32 %v9703, 0.125
    %v10072 = vmul.f32 %v9709, 0.125
    %v10073 = vmul.f32 %v9715, 0.125
    %v10074 = vmul.f32 %v9721, 0.125
    %v10075 = vmul.f32 %v9727, 0.125
    %v10076 = vmul.f32 %v9733, 0.125
    %v10077 = vmul.f32 %v9739, 0.125
    %v10078 = vmul.f32 %v9745, 0.125
    %v10079 = vmul.f32 %v9751, 0.125
    %v10080 = vmul.f32 %v9757, 0.125
    %v10081 = vmul.f32 %v9763, 0.125
    %v10082 = vmul.f32 %v9769, 0.125
    %v10083 = vmul.f32 %v9775, 0.125
    %v10084 = vmul.f32 %v9781, 0.125
    %v10085 = vmul.f32 %v9787, 0.125
    %v10086 = vmul.f32 %v9793, 0.125
    %v10087 = vmul.f32 %v9799, 0.125
    %v10088 = vmul.f32 %v9805, 0.125
    %v10089 = vmul.f32 %v9811, 0.125
    %v10090 = vmul.f32 %v9817, 0.125
    %v10091 = vmul.f32 %v9823, 0.125
    %v10092 = vmul.f32 %v9829, 0.125
    %v10093 = vmul.f32 %v9835, 0.125
    %v10094 = vmul.f32 %v9841, 0.125
    %v10095 = vmul.f32 %v9847, 0.125
    %v10096 = vmul.f32 %v9853, 0.125
    %v10097 = vmul.f32 %v9859, 0.125
    %v10098 = vmul.f32 %v9865, 0.125
    %v10099 = vmul.f32 %v9871, 0.125
    %v10100 = vmul.f32 %v9877, 0.125
    %v10101 = vmul.f32 %v9883, 0.125
    %v10102 = vmul.f32 %v9889, 0.125
    %v10103 = vmul.f32 %v9895, 0.125
    %v10104 = vmul.f32 %v9901, 0.125
    %v10105 = vmul.f32 %v9907, 0.125
    %v10106 = vmul.f32 %v9913, 0.125
    %v10107 = vmul.f32 %v9919, 0.125
    %v10108 = vmul.f32 %v9925, 0.125
    %v10109 = vmul.f32 %v9931, 0.125
    %v10110 = vmul.f32 %v9937, 0.125
    %v10111 = vmul.f32 %v9943, 0.125
    %v10112 = vmul.f32 %v9949, 0.125
    %v10113 = vmul.f32 %v9955, 0.125
    %v10114 = vmul.f32 %v9961, 0.125
    %v10115 = vmul.f32 %v9967, 0.125
    %v10116 = vmul.f32 %v9973, 0.125
    %v10117 = vmul.f32 %v9979, 0.125
    %v10118 = vmul.f32 %v9985, 0.125
    %v10119 = vmul.f32 %v9991, 0.125
    %v10120 = vadd.f32 %v9992, 1e-05
    %v10121 = vadd.f32 %v9993, 1e-05
    %v10122 = vadd.f32 %v9994, 1e-05
    %v10123 = vadd.f32 %v9995, 1e-05
    %v10124 = vadd.f32 %v9996, 1e-05
    %v10125 = vadd.f32 %v9997, 1e-05
    %v10126 = vadd.f32 %v9998, 1e-05
    %v10127 = vadd.f32 %v9999, 1e-05
    %v10128 = vadd.f32 %v10000, 1e-05
    %v10129 = vadd.f32 %v10001, 1e-05
    %v10130 = vadd.f32 %v10002, 1e-05
    %v10131 = vadd.f32 %v10003, 1e-05
    %v10132 = vadd.f32 %v10004, 1e-05
    %v10133 = vadd.f32 %v10005, 1e-05
    %v10134 = vadd.f32 %v10006, 1e-05
    %v10135 = vadd.f32 %v10007, 1e-05
    %v10136 = vadd.f32 %v10008, 1e-05
    %v10137 = vadd.f32 %v10009, 1e-05
    %v10138 = vadd.f32 %v10010, 1e-05
    %v10139 = vadd.f32 %v10011, 1e-05
    %v10140 = vadd.f32 %v10012, 1e-05
    %v10141 = vadd.f32 %v10013, 1e-05
    %v10142 = vadd.f32 %v10014, 1e-05
    %v10143 = vadd.f32 %v10015, 1e-05
    %v10144 = vadd.f32 %v10016, 1e-05
    %v10145 = vadd.f32 %v10017, 1e-05
    %v10146 = vadd.f32 %v10018, 1e-05
    %v10147 = vadd.f32 %v10019, 1e-05
    %v10148 = vadd.f32 %v10020, 1e-05
    %v10149 = vadd.f32 %v10021, 1e-05
    %v10150 = vadd.f32 %v10022, 1e-05
    %v10151 = vadd.f32 %v10023, 1e-05
    %v10152 = vadd.f32 %v10024, 1e-05
    %v10153 = vadd.f32 %v10025, 1e-05
    %v10154 = vadd.f32 %v10026, 1e-05
    %v10155 = vadd.f32 %v10027, 1e-05
    %v10156 = vadd.f32 %v10028, 1e-05
    %v10157 = vadd.f32 %v10029, 1e-05
    %v10158 = vadd.f32 %v10030, 1e-05
    %v10159 = vadd.f32 %v10031, 1e-05
    %v10160 = vadd.f32 %v10032, 1e-05
    %v10161 = vadd.f32 %v10033, 1e-05
    %v10162 = vadd.f32 %v10034, 1e-05
    %v10163 = vadd.f32 %v10035, 1e-05
    %v10164 = vadd.f32 %v10036, 1e-05
    %v10165 = vadd.f32 %v10037, 1e-05
    %v10166 = vadd.f32 %v10038, 1e-05
    %v10167 = vadd.f32 %v10039, 1e-05
    %v10168 = vadd.f32 %v10040, 1e-05
    %v10169 = vadd.f32 %v10041, 1e-05
    %v10170 = vadd.f32 %v10042, 1e-05
    %v10171 = vadd.f32 %v10043, 1e-05
    %v10172 = vadd.f32 %v10044, 1e-05
    %v10173 = vadd.f32 %v10045, 1e-05
    %v10174 = vadd.f32 %v10046, 1e-05
    %v10175 = vadd.f32 %v10047, 1e-05
    %v10176 = vadd.f32 %v10048, 1e-05
    %v10177 = vadd.f32 %v10049, 1e-05
    %v10178 = vadd.f32 %v10050, 1e-05
    %v10179 = vadd.f32 %v10051, 1e-05
    %v10180 = vadd.f32 %v10052, 1e-05
    %v10181 = vadd.f32 %v10053, 1e-05
    %v10182 = vadd.f32 %v10054, 1e-05
    %v10183 = vadd.f32 %v10055, 1e-05
    %v10184 = vadd.f32 %v10056, 1e-05
    %v10185 = vadd.f32 %v10057, 1e-05
    %v10186 = vadd.f32 %v10058, 1e-05
    %v10187 = vadd.f32 %v10059, 1e-05
    %v10188 = vadd.f32 %v10060, 1e-05
    %v10189 = vadd.f32 %v10061, 1e-05
    %v10190 = vadd.f32 %v10062, 1e-05
    %v10191 = vadd.f32 %v10063, 1e-05
    %v10192 = vadd.f32 %v10064, 1e-05
    %v10193 = vadd.f32 %v10065, 1e-05
    %v10194 = vadd.f32 %v10066, 1e-05
    %v10195 = vadd.f32 %v10067, 1e-05
    %v10196 = vadd.f32 %v10068, 1e-05
    %v10197 = vadd.f32 %v10069, 1e-05
    %v10198 = vadd.f32 %v10070, 1e-05
    %v10199 = vadd.f32 %v10071, 1e-05
    %v10200 = vadd.f32 %v10072, 1e-05
    %v10201 = vadd.f32 %v10073, 1e-05
    %v10202 = vadd.f32 %v10074, 1e-05
    %v10203 = vadd.f32 %v10075, 1e-05
    %v10204 = vadd.f32 %v10076, 1e-05
    %v10205 = vadd.f32 %v10077, 1e-05
    %v10206 = vadd.f32 %v10078, 1e-05
    %v10207 = vadd.f32 %v10079, 1e-05
    %v10208 = vadd.f32 %v10080, 1e-05
    %v10209 = vadd.f32 %v10081, 1e-05
    %v10210 = vadd.f32 %v10082, 1e-05
    %v10211 = vadd.f32 %v10083, 1e-05
    %v10212 = vadd.f32 %v10084, 1e-05
    %v10213 = vadd.f32 %v10085, 1e-05
    %v10214 = vadd.f32 %v10086, 1e-05
    %v10215 = vadd.f32 %v10087, 1e-05
    %v10216 = vadd.f32 %v10088, 1e-05
    %v10217 = vadd.f32 %v10089, 1e-05
    %v10218 = vadd.f32 %v10090, 1e-05
    %v10219 = vadd.f32 %v10091, 1e-05
    %v10220 = vadd.f32 %v10092, 1e-05
    %v10221 = vadd.f32 %v10093, 1e-05
    %v10222 = vadd.f32 %v10094, 1e-05
    %v10223 = vadd.f32 %v10095, 1e-05
    %v10224 = vadd.f32 %v10096, 1e-05
    %v10225 = vadd.f32 %v10097, 1e-05
    %v10226 = vadd.f32 %v10098, 1e-05
    %v10227 = vadd.f32 %v10099, 1e-05
    %v10228 = vadd.f32 %v10100, 1e-05
    %v10229 = vadd.f32 %v10101, 1e-05
    %v10230 = vadd.f32 %v10102, 1e-05
    %v10231 = vadd.f32 %v10103, 1e-05
    %v10232 = vadd.f32 %v10104, 1e-05
    %v10233 = vadd.f32 %v10105, 1e-05
    %v10234 = vadd.f32 %v10106, 1e-05
    %v10235 = vadd.f32 %v10107, 1e-05
    %v10236 = vadd.f32 %v10108, 1e-05
    %v10237 = vadd.f32 %v10109, 1e-05
    %v10238 = vadd.f32 %v10110, 1e-05
    %v10239 = vadd.f32 %v10111, 1e-05
    %v10240 = vadd.f32 %v10112, 1e-05
    %v10241 = vadd.f32 %v10113, 1e-05
    %v10242 = vadd.f32 %v10114, 1e-05
    %v10243 = vadd.f32 %v10115, 1e-05
    %v10244 = vadd.f32 %v10116, 1e-05
    %v10245 = vadd.f32 %v10117, 1e-05
    %v10246 = vadd.f32 %v10118, 1e-05
    %v10247 = vadd.f32 %v10119, 1e-05
    %v10248 = vrsqrt.pop %v10120
    %v10249 = vrsqrt.pop %v10121
    %v10250 = vrsqrt.pop %v10122
    %v10251 = vrsqrt.pop %v10123
    %v10252 = vrsqrt.pop %v10124
    %v10253 = vrsqrt.pop %v10125
    %v10254 = vrsqrt.pop %v10126
    %v10255 = vrsqrt.pop %v10127
    %v10256 = vrsqrt.pop %v10128
    %v10257 = vrsqrt.pop %v10129
    %v10258 = vrsqrt.pop %v10130
    %v10259 = vrsqrt.pop %v10131
    %v10260 = vrsqrt.pop %v10132
    %v10261 = vrsqrt.pop %v10133
    %v10262 = vrsqrt.pop %v10134
    %v10263 = vrsqrt.pop %v10135
    %v10264 = vrsqrt.pop %v10136
    %v10265 = vrsqrt.pop %v10137
    %v10266 = vrsqrt.pop %v10138
    %v10267 = vrsqrt.pop %v10139
    %v10268 = vrsqrt.pop %v10140
    %v10269 = vrsqrt.pop %v10141
    %v10270 = vrsqrt.pop %v10142
    %v10271 = vrsqrt.pop %v10143
    %v10272 = vrsqrt.pop %v10144
    %v10273 = vrsqrt.pop %v10145
    %v10274 = vrsqrt.pop %v10146
    %v10275 = vrsqrt.pop %v10147
    %v10276 = vrsqrt.pop %v10148
    %v10277 = vrsqrt.pop %v10149
    %v10278 = vrsqrt.pop %v10150
    %v10279 = vrsqrt.pop %v10151
    %v10280 = vrsqrt.pop %v10152
    %v10281 = vrsqrt.pop %v10153
    %v10282 = vrsqrt.pop %v10154
    %v10283 = vrsqrt.pop %v10155
    %v10284 = vrsqrt.pop %v10156
    %v10285 = vrsqrt.pop %v10157
    %v10286 = vrsqrt.pop %v10158
    %v10287 = vrsqrt.pop %v10159
    %v10288 = vrsqrt.pop %v10160
    %v10289 = vrsqrt.pop %v10161
    %v10290 = vrsqrt.pop %v10162
    %v10291 = vrsqrt.pop %v10163
    %v10292 = vrsqrt.pop %v10164
    %v10293 = vrsqrt.pop %v10165
    %v10294 = vrsqrt.pop %v10166
    %v10295 = vrsqrt.pop %v10167
    %v10296 = vrsqrt.pop %v10168
    %v10297 = vrsqrt.pop %v10169
    %v10298 = vrsqrt.pop %v10170
    %v10299 = vrsqrt.pop %v10171
    %v10300 = vrsqrt.pop %v10172
    %v10301 = vrsqrt.pop %v10173
    %v10302 = vrsqrt.pop %v10174
    %v10303 = vrsqrt.pop %v10175
    %v10304 = vrsqrt.pop %v10176
    %v10305 = vrsqrt.pop %v10177
    %v10306 = vrsqrt.pop %v10178
    %v10307 = vrsqrt.pop %v10179
    %v10308 = vrsqrt.pop %v10180
    %v10309 = vrsqrt.pop %v10181
    %v10310 = vrsqrt.pop %v10182
    %v10311 = vrsqrt.pop %v10183
    %v10312 = vrsqrt.pop %v10184
    %v10313 = vrsqrt.pop %v10185
    %v10314 = vrsqrt.pop %v10186
    %v10315 = vrsqrt.pop %v10187
    %v10316 = vrsqrt.pop %v10188
    %v10317 = vrsqrt.pop %v10189
    %v10318 = vrsqrt.pop %v10190
    %v10319 = vrsqrt.pop %v10191
    %v10320 = vrsqrt.pop %v10192
    %v10321 = vrsqrt.pop %v10193
    %v10322 = vrsqrt.pop %v10194
    %v10323 = vrsqrt.pop %v10195
    %v10324 = vrsqrt.pop %v10196
    %v10325 = vrsqrt.pop %v10197
    %v10326 = vrsqrt.pop %v10198
    %v10327 = vrsqrt.pop %v10199
    %v10328 = vrsqrt.pop %v10200
    %v10329 = vrsqrt.pop %v10201
    %v10330 = vrsqrt.pop %v10202
    %v10331 = vrsqrt.pop %v10203
    %v10332 = vrsqrt.pop %v10204
    %v10333 = vrsqrt.pop %v10205
    %v10334 = vrsqrt.pop %v10206
    %v10335 = vrsqrt.pop %v10207
    %v10336 = vrsqrt.pop %v10208
    %v10337 = vrsqrt.pop %v10209
    %v10338 = vrsqrt.pop %v10210
    %v10339 = vrsqrt.pop %v10211
    %v10340 = vrsqrt.pop %v10212
    %v10341 = vrsqrt.pop %v10213
    %v10342 = vrsqrt.pop %v10214
    %v10343 = vrsqrt.pop %v10215
    %v10344 = vrsqrt.pop %v10216
    %v10345 = vrsqrt.pop %v10217
    %v10346 = vrsqrt.pop %v10218
    %v10347 = vrsqrt.pop %v10219
    %v10348 = vrsqrt.pop %v10220
    %v10349 = vrsqrt.pop %v10221
    %v10350 = vrsqrt.pop %v10222
    %v10351 = vrsqrt.pop %v10223
    %v10352 = vrsqrt.pop %v10224
    %v10353 = vrsqrt.pop %v10225
    %v10354 = vrsqrt.pop %v10226
    %v10355 = vrsqrt.pop %v10227
    %v10356 = vrsqrt.pop %v10228
    %v10357 = vrsqrt.pop %v10229
    %v10358 = vrsqrt.pop %v10230
    %v10359 = vrsqrt.pop %v10231
    %v10360 = vrsqrt.pop %v10232
    %v10361 = vrsqrt.pop %v10233
    %v10362 = vrsqrt.pop %v10234
    %v10363 = vrsqrt.pop %v10235
    %v10364 = vrsqrt.pop %v10236
    %v10365 = vrsqrt.pop %v10237
    %v10366 = vrsqrt.pop %v10238
    %v10367 = vrsqrt.pop %v10239
    %v10368 = vrsqrt.pop %v10240
    %v10369 = vrsqrt.pop %v10241
    %v10370 = vrsqrt.pop %v10242
    %v10371 = vrsqrt.pop %v10243
    %v10372 = vrsqrt.pop %v10244
    %v10373 = vrsqrt.pop %v10245
    %v10374 = vrsqrt.pop %v10246
    %v10375 = vrsqrt.pop %v10247
    %v10504 = vcombine.low %v10248, %v10249
    %v10505 = vcombine.low %v10250, %v10251
    %v10506 = vcombine.low %v10252, %v10253
    %v10507 = vcombine.low %v10254, %v10255
    %v10509 = vunpack.c.l.s4 1966171168
    %v10510 = vunpack.c.0.s8 %v10509
    %v10511 = vlaneseq
    %v10512 = vshrl.u32 %v10511, 7
    %v10513 = vsub.s32 %v10510, %v10512
    %v10514 = vrot.slane %v10504, %v10513
    %v10516 = vunpack.c.l.s4 1966171168
    %v10517 = vunpack.c.0.s8 %v10516
    %v10518 = vlaneseq
    %v10519 = vshrl.u32 %v10518, 7
    %v10520 = vsub.s32 %v10517, %v10519
    %v10521 = vrot.slane %v10505, %v10520
    %v10523 = vunpack.c.l.s4 1966171168
    %v10524 = vunpack.c.0.s8 %v10523
    %v10525 = vlaneseq
    %v10526 = vshrl.u32 %v10525, 7
    %v10527 = vsub.s32 %v10524, %v10526
    %v10528 = vrot.slane %v10506, %v10527
    %v10530 = vunpack.c.l.s4 1966171168
    %v10531 = vunpack.c.0.s8 %v10530
    %v10532 = vlaneseq
    %v10533 = vshrl.u32 %v10532, 7
    %v10534 = vsub.s32 %v10531, %v10533
    %v10535 = vrot.slane %v10507, %v10534
    %v10536 = vcombine.low %v10514, %v10521
    %v10537 = vcombine.low %v10528, %v10535
    %v10539 = vunpack.c.l.s4 1966171168
    %v10540 = vunpack.c.0.s8 %v10539
    %v10541 = vlaneseq
    %v10542 = vshrl.u32 %v10541, 7
    %v10543 = vsub.s32 %v10540, %v10542
    %v10544 = vrot.slane %v10536, %v10543
    %v10546 = vunpack.c.l.s4 1966171168
    %v10547 = vunpack.c.0.s8 %v10546
    %v10548 = vlaneseq
    %v10549 = vshrl.u32 %v10548, 7
    %v10550 = vsub.s32 %v10547, %v10549
    %v10551 = vrot.slane %v10537, %v10550
    %v10552 = vcombine.low %v10544, %v10551
    %v10553 = vcombine.low %v10256, %v10257
    %v10554 = vcombine.low %v10258, %v10259
    %v10555 = vcombine.low %v10260, %v10261
    %v10556 = vcombine.low %v10262, %v10263
    %v10558 = vunpack.c.l.s4 1966171168
    %v10559 = vunpack.c.0.s8 %v10558
    %v10560 = vlaneseq
    %v10561 = vshrl.u32 %v10560, 7
    %v10562 = vsub.s32 %v10559, %v10561
    %v10563 = vrot.slane %v10553, %v10562
    %v10565 = vunpack.c.l.s4 1966171168
    %v10566 = vunpack.c.0.s8 %v10565
    %v10567 = vlaneseq
    %v10568 = vshrl.u32 %v10567, 7
    %v10569 = vsub.s32 %v10566, %v10568
    %v10570 = vrot.slane %v10554, %v10569
    %v10572 = vunpack.c.l.s4 1966171168
    %v10573 = vunpack.c.0.s8 %v10572
    %v10574 = vlaneseq
    %v10575 = vshrl.u32 %v10574, 7
    %v10576 = vsub.s32 %v10573, %v10575
    %v10577 = vrot.slane %v10555, %v10576
    %v10579 = vunpack.c.l.s4 1966171168
    %v10580 = vunpack.c.0.s8 %v10579
    %v10581 = vlaneseq
    %v10582 = vshrl.u32 %v10581, 7
    %v10583 = vsub.s32 %v10580, %v10582
    %v10584 = vrot.slane %v10556, %v10583
    %v10585 = vcombine.low %v10563, %v10570
    %v10586 = vcombine.low %v10577, %v10584
    %v10588 = vunpack.c.l.s4 1966171168
    %v10589 = vunpack.c.0.s8 %v10588
    %v10590 = vlaneseq
    %v10591 = vshrl.u32 %v10590, 7
    %v10592 = vsub.s32 %v10589, %v10591
    %v10593 = vrot.slane %v10585, %v10592
    %v10595 = vunpack.c.l.s4 1966171168
    %v10596 = vunpack.c.0.s8 %v10595
    %v10597 = vlaneseq
    %v10598 = vshrl.u32 %v10597, 7
    %v10599 = vsub.s32 %v10596, %v10598
    %v10600 = vrot.slane %v10586, %v10599
    %v10601 = vcombine.low %v10593, %v10600
    %v10602 = vcombine.low %v10264, %v10265
    %v10603 = vcombine.low %v10266, %v10267
    %v10604 = vcombine.low %v10268, %v10269
    %v10605 = vcombine.low %v10270, %v10271
    %v10607 = vunpack.c.l.s4 1966171168
    %v10608 = vunpack.c.0.s8 %v10607
    %v10609 = vlaneseq
    %v10610 = vshrl.u32 %v10609, 7
    %v10611 = vsub.s32 %v10608, %v10610
    %v10612 = vrot.slane %v10602, %v10611
    %v10614 = vunpack.c.l.s4 1966171168
    %v10615 = vunpack.c.0.s8 %v10614
    %v10616 = vlaneseq
    %v10617 = vshrl.u32 %v10616, 7
    %v10618 = vsub.s32 %v10615, %v10617
    %v10619 = vrot.slane %v10603, %v10618
    %v10621 = vunpack.c.l.s4 1966171168
    %v10622 = vunpack.c.0.s8 %v10621
    %v10623 = vlaneseq
    %v10624 = vshrl.u32 %v10623, 7
    %v10625 = vsub.s32 %v10622, %v10624
    %v10626 = vrot.slane %v10604, %v10625
    %v10628 = vunpack.c.l.s4 1966171168
    %v10629 = vunpack.c.0.s8 %v10628
    %v10630 = vlaneseq
    %v10631 = vshrl.u32 %v10630, 7
    %v10632 = vsub.s32 %v10629, %v10631
    %v10633 = vrot.slane %v10605, %v10632
    %v10634 = vcombine.low %v10612, %v10619
    %v10635 = vcombine.low %v10626, %v10633
    %v10637 = vunpack.c.l.s4 1966171168
    %v10638 = vunpack.c.0.s8 %v10637
    %v10639 = vlaneseq
    %v10640 = vshrl.u32 %v10639, 7
    %v10641 = vsub.s32 %v10638, %v10640
    %v10642 = vrot.slane %v10634, %v10641
    %v10644 = vunpack.c.l.s4 1966171168
    %v10645 = vunpack.c.0.s8 %v10644
    %v10646 = vlaneseq
    %v10647 = vshrl.u32 %v10646, 7
    %v10648 = vsub.s32 %v10645, %v10647
    %v10649 = vrot.slane %v10635, %v10648
    %v10650 = vcombine.low %v10642, %v10649
    %v10651 = vcombine.low %v10272, %v10273
    %v10652 = vcombine.low %v10274, %v10275
    %v10653 = vcombine.low %v10276, %v10277
    %v10654 = vcombine.low %v10278, %v10279
    %v10656 = vunpack.c.l.s4 1966171168
    %v10657 = vunpack.c.0.s8 %v10656
    %v10658 = vlaneseq
    %v10659 = vshrl.u32 %v10658, 7
    %v10660 = vsub.s32 %v10657, %v10659
    %v10661 = vrot.slane %v10651, %v10660
    %v10663 = vunpack.c.l.s4 1966171168
    %v10664 = vunpack.c.0.s8 %v10663
    %v10665 = vlaneseq
    %v10666 = vshrl.u32 %v10665, 7
    %v10667 = vsub.s32 %v10664, %v10666
    %v10668 = vrot.slane %v10652, %v10667
    %v10670 = vunpack.c.l.s4 1966171168
    %v10671 = vunpack.c.0.s8 %v10670
    %v10672 = vlaneseq
    %v10673 = vshrl.u32 %v10672, 7
    %v10674 = vsub.s32 %v10671, %v10673
    %v10675 = vrot.slane %v10653, %v10674
    %v10677 = vunpack.c.l.s4 1966171168
    %v10678 = vunpack.c.0.s8 %v10677
    %v10679 = vlaneseq
    %v10680 = vshrl.u32 %v10679, 7
    %v10681 = vsub.s32 %v10678, %v10680
    %v10682 = vrot.slane %v10654, %v10681
    %v10683 = vcombine.low %v10661, %v10668
    %v10684 = vcombine.low %v10675, %v10682
    %v10686 = vunpack.c.l.s4 1966171168
    %v10687 = vunpack.c.0.s8 %v10686
    %v10688 = vlaneseq
    %v10689 = vshrl.u32 %v10688, 7
    %v10690 = vsub.s32 %v10687, %v10689
    %v10691 = vrot.slane %v10683, %v10690
    %v10693 = vunpack.c.l.s4 1966171168
    %v10694 = vunpack.c.0.s8 %v10693
    %v10695 = vlaneseq
    %v10696 = vshrl.u32 %v10695, 7
    %v10697 = vsub.s32 %v10694, %v10696
    %v10698 = vrot.slane %v10684, %v10697
    %v10699 = vcombine.low %v10691, %v10698
    %v10700 = vcombine.low %v10280, %v10281
    %v10701 = vcombine.low %v10282, %v10283
    %v10702 = vcombine.low %v10284, %v10285
    %v10703 = vcombine.low %v10286, %v10287
    %v10705 = vunpack.c.l.s4 1966171168
    %v10706 = vunpack.c.0.s8 %v10705
    %v10707 = vlaneseq
    %v10708 = vshrl.u32 %v10707, 7
    %v10709 = vsub.s32 %v10706, %v10708
    %v10710 = vrot.slane %v10700, %v10709
    %v10712 = vunpack.c.l.s4 1966171168
    %v10713 = vunpack.c.0.s8 %v10712
    %v10714 = vlaneseq
    %v10715 = vshrl.u32 %v10714, 7
    %v10716 = vsub.s32 %v10713, %v10715
    %v10717 = vrot.slane %v10701, %v10716
    %v10719 = vunpack.c.l.s4 1966171168
    %v10720 = vunpack.c.0.s8 %v10719
    %v10721 = vlaneseq
    %v10722 = vshrl.u32 %v10721, 7
    %v10723 = vsub.s32 %v10720, %v10722
    %v10724 = vrot.slane %v10702, %v10723
    %v10726 = vunpack.c.l.s4 1966171168
    %v10727 = vunpack.c.0.s8 %v10726
    %v10728 = vlaneseq
    %v10729 = vshrl.u32 %v10728, 7
    %v10730 = vsub.s32 %v10727, %v10729
    %v10731 = vrot.slane %v10703, %v10730
    %v10732 = vcombine.low %v10710, %v10717
    %v10733 = vcombine.low %v10724, %v10731
    %v10735 = vunpack.c.l.s4 1966171168
    %v10736 = vunpack.c.0.s8 %v10735
    %v10737 = vlaneseq
    %v10738 = vshrl.u32 %v10737, 7
    %v10739 = vsub.s32 %v10736, %v10738
    %v10740 = vrot.slane %v10732, %v10739
    %v10742 = vunpack.c.l.s4 1966171168
    %v10743 = vunpack.c.0.s8 %v10742
    %v10744 = vlaneseq
    %v10745 = vshrl.u32 %v10744, 7
    %v10746 = vsub.s32 %v10743, %v10745
    %v10747 = vrot.slane %v10733, %v10746
    %v10748 = vcombine.low %v10740, %v10747
    %v10749 = vcombine.low %v10288, %v10289
    %v10750 = vcombine.low %v10290, %v10291
    %v10751 = vcombine.low %v10292, %v10293
    %v10752 = vcombine.low %v10294, %v10295
    %v10754 = vunpack.c.l.s4 1966171168
    %v10755 = vunpack.c.0.s8 %v10754
    %v10756 = vlaneseq
    %v10757 = vshrl.u32 %v10756, 7
    %v10758 = vsub.s32 %v10755, %v10757
    %v10759 = vrot.slane %v10749, %v10758
    %v10761 = vunpack.c.l.s4 1966171168
    %v10762 = vunpack.c.0.s8 %v10761
    %v10763 = vlaneseq
    %v10764 = vshrl.u32 %v10763, 7
    %v10765 = vsub.s32 %v10762, %v10764
    %v10766 = vrot.slane %v10750, %v10765
    %v10768 = vunpack.c.l.s4 1966171168
    %v10769 = vunpack.c.0.s8 %v10768
    %v10770 = vlaneseq
    %v10771 = vshrl.u32 %v10770, 7
    %v10772 = vsub.s32 %v10769, %v10771
    %v10773 = vrot.slane %v10751, %v10772
    %v10775 = vunpack.c.l.s4 1966171168
    %v10776 = vunpack.c.0.s8 %v10775
    %v10777 = vlaneseq
    %v10778 = vshrl.u32 %v10777, 7
    %v10779 = vsub.s32 %v10776, %v10778
    %v10780 = vrot.slane %v10752, %v10779
    %v10781 = vcombine.low %v10759, %v10766
    %v10782 = vcombine.low %v10773, %v10780
    %v10784 = vunpack.c.l.s4 1966171168
    %v10785 = vunpack.c.0.s8 %v10784
    %v10786 = vlaneseq
    %v10787 = vshrl.u32 %v10786, 7
    %v10788 = vsub.s32 %v10785, %v10787
    %v10789 = vrot.slane %v10781, %v10788
    %v10791 = vunpack.c.l.s4 1966171168
    %v10792 = vunpack.c.0.s8 %v10791
    %v10793 = vlaneseq
    %v10794 = vshrl.u32 %v10793, 7
    %v10795 = vsub.s32 %v10792, %v10794
    %v10796 = vrot.slane %v10782, %v10795
    %v10797 = vcombine.low %v10789, %v10796
    %v10798 = vcombine.low %v10296, %v10297
    %v10799 = vcombine.low %v10298, %v10299
    %v10800 = vcombine.low %v10300, %v10301
    %v10801 = vcombine.low %v10302, %v10303
    %v10803 = vunpack.c.l.s4 1966171168
    %v10804 = vunpack.c.0.s8 %v10803
    %v10805 = vlaneseq
    %v10806 = vshrl.u32 %v10805, 7
    %v10807 = vsub.s32 %v10804, %v10806
    %v10808 = vrot.slane %v10798, %v10807
    %v10810 = vunpack.c.l.s4 1966171168
    %v10811 = vunpack.c.0.s8 %v10810
    %v10812 = vlaneseq
    %v10813 = vshrl.u32 %v10812, 7
    %v10814 = vsub.s32 %v10811, %v10813
    %v10815 = vrot.slane %v10799, %v10814
    %v10817 = vunpack.c.l.s4 1966171168
    %v10818 = vunpack.c.0.s8 %v10817
    %v10819 = vlaneseq
    %v10820 = vshrl.u32 %v10819, 7
    %v10821 = vsub.s32 %v10818, %v10820
    %v10822 = vrot.slane %v10800, %v10821
    %v10824 = vunpack.c.l.s4 1966171168
    %v10825 = vunpack.c.0.s8 %v10824
    %v10826 = vlaneseq
    %v10827 = vshrl.u32 %v10826, 7
    %v10828 = vsub.s32 %v10825, %v10827
    %v10829 = vrot.slane %v10801, %v10828
    %v10830 = vcombine.low %v10808, %v10815
    %v10831 = vcombine.low %v10822, %v10829
    %v10833 = vunpack.c.l.s4 1966171168
    %v10834 = vunpack.c.0.s8 %v10833
    %v10835 = vlaneseq
    %v10836 = vshrl.u32 %v10835, 7
    %v10837 = vsub.s32 %v10834, %v10836
    %v10838 = vrot.slane %v10830, %v10837
    %v10840 = vunpack.c.l.s4 1966171168
    %v10841 = vunpack.c.0.s8 %v10840
    %v10842 = vlaneseq
    %v10843 = vshrl.u32 %v10842, 7
    %v10844 = vsub.s32 %v10841, %v10843
    %v10845 = vrot.slane %v10831, %v10844
    %v10846 = vcombine.low %v10838, %v10845
    %v10847 = vcombine.low %v10304, %v10305
    %v10848 = vcombine.low %v10306, %v10307
    %v10849 = vcombine.low %v10308, %v10309
    %v10850 = vcombine.low %v10310, %v10311
    %v10852 = vunpack.c.l.s4 1966171168
    %v10853 = vunpack.c.0.s8 %v10852
    %v10854 = vlaneseq
    %v10855 = vshrl.u32 %v10854, 7
    %v10856 = vsub.s32 %v10853, %v10855
    %v10857 = vrot.slane %v10847, %v10856
    %v10859 = vunpack.c.l.s4 1966171168
    %v10860 = vunpack.c.0.s8 %v10859
    %v10861 = vlaneseq
    %v10862 = vshrl.u32 %v10861, 7
    %v10863 = vsub.s32 %v10860, %v10862
    %v10864 = vrot.slane %v10848, %v10863
    %v10866 = vunpack.c.l.s4 1966171168
    %v10867 = vunpack.c.0.s8 %v10866
    %v10868 = vlaneseq
    %v10869 = vshrl.u32 %v10868, 7
    %v10870 = vsub.s32 %v10867, %v10869
    %v10871 = vrot.slane %v10849, %v10870
    %v10873 = vunpack.c.l.s4 1966171168
    %v10874 = vunpack.c.0.s8 %v10873
    %v10875 = vlaneseq
    %v10876 = vshrl.u32 %v10875, 7
    %v10877 = vsub.s32 %v10874, %v10876
    %v10878 = vrot.slane %v10850, %v10877
    %v10879 = vcombine.low %v10857, %v10864
    %v10880 = vcombine.low %v10871, %v10878
    %v10882 = vunpack.c.l.s4 1966171168
    %v10883 = vunpack.c.0.s8 %v10882
    %v10884 = vlaneseq
    %v10885 = vshrl.u32 %v10884, 7
    %v10886 = vsub.s32 %v10883, %v10885
    %v10887 = vrot.slane %v10879, %v10886
    %v10889 = vunpack.c.l.s4 1966171168
    %v10890 = vunpack.c.0.s8 %v10889
    %v10891 = vlaneseq
    %v10892 = vshrl.u32 %v10891, 7
    %v10893 = vsub.s32 %v10890, %v10892
    %v10894 = vrot.slane %v10880, %v10893
    %v10895 = vcombine.low %v10887, %v10894
    %v10896 = vcombine.low %v10312, %v10313
    %v10897 = vcombine.low %v10314, %v10315
    %v10898 = vcombine.low %v10316, %v10317
    %v10899 = vcombine.low %v10318, %v10319
    %v10901 = vunpack.c.l.s4 1966171168
    %v10902 = vunpack.c.0.s8 %v10901
    %v10903 = vlaneseq
    %v10904 = vshrl.u32 %v10903, 7
    %v10905 = vsub.s32 %v10902, %v10904
    %v10906 = vrot.slane %v10896, %v10905
    %v10908 = vunpack.c.l.s4 1966171168
    %v10909 = vunpack.c.0.s8 %v10908
    %v10910 = vlaneseq
    %v10911 = vshrl.u32 %v10910, 7
    %v10912 = vsub.s32 %v10909, %v10911
    %v10913 = vrot.slane %v10897, %v10912
    %v10915 = vunpack.c.l.s4 1966171168
    %v10916 = vunpack.c.0.s8 %v10915
    %v10917 = vlaneseq
    %v10918 = vshrl.u32 %v10917, 7
    %v10919 = vsub.s32 %v10916, %v10918
    %v10920 = vrot.slane %v10898, %v10919
    %v10922 = vunpack.c.l.s4 1966171168
    %v10923 = vunpack.c.0.s8 %v10922
    %v10924 = vlaneseq
    %v10925 = vshrl.u32 %v10924, 7
    %v10926 = vsub.s32 %v10923, %v10925
    %v10927 = vrot.slane %v10899, %v10926
    %v10928 = vcombine.low %v10906, %v10913
    %v10929 = vcombine.low %v10920, %v10927
    %v10931 = vunpack.c.l.s4 1966171168
    %v10932 = vunpack.c.0.s8 %v10931
    %v10933 = vlaneseq
    %v10934 = vshrl.u32 %v10933, 7
    %v10935 = vsub.s32 %v10932, %v10934
    %v10936 = vrot.slane %v10928, %v10935
    %v10938 = vunpack.c.l.s4 1966171168
    %v10939 = vunpack.c.0.s8 %v10938
    %v10940 = vlaneseq
    %v10941 = vshrl.u32 %v10940, 7
    %v10942 = vsub.s32 %v10939, %v10941
    %v10943 = vrot.slane %v10929, %v10942
    %v10944 = vcombine.low %v10936, %v10943
    %v10945 = vcombine.low %v10320, %v10321
    %v10946 = vcombine.low %v10322, %v10323
    %v10947 = vcombine.low %v10324, %v10325
    %v10948 = vcombine.low %v10326, %v10327
    %v10950 = vunpack.c.l.s4 1966171168
    %v10951 = vunpack.c.0.s8 %v10950
    %v10952 = vlaneseq
    %v10953 = vshrl.u32 %v10952, 7
    %v10954 = vsub.s32 %v10951, %v10953
    %v10955 = vrot.slane %v10945, %v10954
    %v10957 = vunpack.c.l.s4 1966171168
    %v10958 = vunpack.c.0.s8 %v10957
    %v10959 = vlaneseq
    %v10960 = vshrl.u32 %v10959, 7
    %v10961 = vsub.s32 %v10958, %v10960
    %v10962 = vrot.slane %v10946, %v10961
    %v10964 = vunpack.c.l.s4 1966171168
    %v10965 = vunpack.c.0.s8 %v10964
    %v10966 = vlaneseq
    %v10967 = vshrl.u32 %v10966, 7
    %v10968 = vsub.s32 %v10965, %v10967
    %v10969 = vrot.slane %v10947, %v10968
    %v10971 = vunpack.c.l.s4 1966171168
    %v10972 = vunpack.c.0.s8 %v10971
    %v10973 = vlaneseq
    %v10974 = vshrl.u32 %v10973, 7
    %v10975 = vsub.s32 %v10972, %v10974
    %v10976 = vrot.slane %v10948, %v10975
    %v10977 = vcombine.low %v10955, %v10962
    %v10978 = vcombine.low %v10969, %v10976
    %v10980 = vunpack.c.l.s4 1966171168
    %v10981 = vunpack.c.0.s8 %v10980
    %v10982 = vlaneseq
    %v10983 = vshrl.u32 %v10982, 7
    %v10984 = vsub.s32 %v10981, %v10983
    %v10985 = vrot.slane %v10977, %v10984
    %v10987 = vunpack.c.l.s4 1966171168
    %v10988 = vunpack.c.0.s8 %v10987
    %v10989 = vlaneseq
    %v10990 = vshrl.u32 %v10989, 7
    %v10991 = vsub.s32 %v10988, %v10990
    %v10992 = vrot.slane %v10978, %v10991
    %v10993 = vcombine.low %v10985, %v10992
    %v10994 = vcombine.low %v10328, %v10329
    %v10995 = vcombine.low %v10330, %v10331
    %v10996 = vcombine.low %v10332, %v10333
    %v10997 = vcombine.low %v10334, %v10335
    %v10999 = vunpack.c.l.s4 1966171168
    %v11000 = vunpack.c.0.s8 %v10999
    %v11001 = vlaneseq
    %v11002 = vshrl.u32 %v11001, 7
    %v11003 = vsub.s32 %v11000, %v11002
    %v11004 = vrot.slane %v10994, %v11003
    %v11006 = vunpack.c.l.s4 1966171168
    %v11007 = vunpack.c.0.s8 %v11006
    %v11008 = vlaneseq
    %v11009 = vshrl.u32 %v11008, 7
    %v11010 = vsub.s32 %v11007, %v11009
    %v11011 = vrot.slane %v10995, %v11010
    %v11013 = vunpack.c.l.s4 1966171168
    %v11014 = vunpack.c.0.s8 %v11013
    %v11015 = vlaneseq
    %v11016 = vshrl.u32 %v11015, 7
    %v11017 = vsub.s32 %v11014, %v11016
    %v11018 = vrot.slane %v10996, %v11017
    %v11020 = vunpack.c.l.s4 1966171168
    %v11021 = vunpack.c.0.s8 %v11020
    %v11022 = vlaneseq
    %v11023 = vshrl.u32 %v11022, 7
    %v11024 = vsub.s32 %v11021, %v11023
    %v11025 = vrot.slane %v10997, %v11024
    %v11026 = vcombine.low %v11004, %v11011
    %v11027 = vcombine.low %v11018, %v11025
    %v11029 = vunpack.c.l.s4 1966171168
    %v11030 = vunpack.c.0.s8 %v11029
    %v11031 = vlaneseq
    %v11032 = vshrl.u32 %v11031, 7
    %v11033 = vsub.s32 %v11030, %v11032
    %v11034 = vrot.slane %v11026, %v11033
    %v11036 = vunpack.c.l.s4 1966171168
    %v11037 = vunpack.c.0.s8 %v11036
    %v11038 = vlaneseq
    %v11039 = vshrl.u32 %v11038, 7
    %v11040 = vsub.s32 %v11037, %v11039
    %v11041 = vrot.slane %v11027, %v11040
    %v11042 = vcombine.low %v11034, %v11041
    %v11043 = vcombine.low %v10336, %v10337
    %v11044 = vcombine.low %v10338, %v10339
    %v11045 = vcombine.low %v10340, %v10341
    %v11046 = vcombine.low %v10342, %v10343
    %v11048 = vunpack.c.l.s4 1966171168
    %v11049 = vunpack.c.0.s8 %v11048
    %v11050 = vlaneseq
    %v11051 = vshrl.u32 %v11050, 7
    %v11052 = vsub.s32 %v11049, %v11051
    %v11053 = vrot.slane %v11043, %v11052
    %v11055 = vunpack.c.l.s4 1966171168
    %v11056 = vunpack.c.0.s8 %v11055
    %v11057 = vlaneseq
    %v11058 = vshrl.u32 %v11057, 7
    %v11059 = vsub.s32 %v11056, %v11058
    %v11060 = vrot.slane %v11044, %v11059
    %v11062 = vunpack.c.l.s4 1966171168
    %v11063 = vunpack.c.0.s8 %v11062
    %v11064 = vlaneseq
    %v11065 = vshrl.u32 %v11064, 7
    %v11066 = vsub.s32 %v11063, %v11065
    %v11067 = vrot.slane %v11045, %v11066
    %v11069 = vunpack.c.l.s4 1966171168
    %v11070 = vunpack.c.0.s8 %v11069
    %v11071 = vlaneseq
    %v11072 = vshrl.u32 %v11071, 7
    %v11073 = vsub.s32 %v11070, %v11072
    %v11074 = vrot.slane %v11046, %v11073
    %v11075 = vcombine.low %v11053, %v11060
    %v11076 = vcombine.low %v11067, %v11074
    %v11078 = vunpack.c.l.s4 1966171168
    %v11079 = vunpack.c.0.s8 %v11078
    %v11080 = vlaneseq
    %v11081 = vshrl.u32 %v11080, 7
    %v11082 = vsub.s32 %v11079, %v11081
    %v11083 = vrot.slane %v11075, %v11082
    %v11085 = vunpack.c.l.s4 1966171168
    %v11086 = vunpack.c.0.s8 %v11085
    %v11087 = vlaneseq
    %v11088 = vshrl.u32 %v11087, 7
    %v11089 = vsub.s32 %v11086, %v11088
    %v11090 = vrot.slane %v11076, %v11089
    %v11091 = vcombine.low %v11083, %v11090
    %v11092 = vcombine.low %v10344, %v10345
    %v11093 = vcombine.low %v10346, %v10347
    %v11094 = vcombine.low %v10348, %v10349
    %v11095 = vcombine.low %v10350, %v10351
    %v11097 = vunpack.c.l.s4 1966171168
    %v11098 = vunpack.c.0.s8 %v11097
    %v11099 = vlaneseq
    %v11100 = vshrl.u32 %v11099, 7
    %v11101 = vsub.s32 %v11098, %v11100
    %v11102 = vrot.slane %v11092, %v11101
    %v11104 = vunpack.c.l.s4 1966171168
    %v11105 = vunpack.c.0.s8 %v11104
    %v11106 = vlaneseq
    %v11107 = vshrl.u32 %v11106, 7
    %v11108 = vsub.s32 %v11105, %v11107
    %v11109 = vrot.slane %v11093, %v11108
    %v11111 = vunpack.c.l.s4 1966171168
    %v11112 = vunpack.c.0.s8 %v11111
    %v11113 = vlaneseq
    %v11114 = vshrl.u32 %v11113, 7
    %v11115 = vsub.s32 %v11112, %v11114
    %v11116 = vrot.slane %v11094, %v11115
    %v11118 = vunpack.c.l.s4 1966171168
    %v11119 = vunpack.c.0.s8 %v11118
    %v11120 = vlaneseq
    %v11121 = vshrl.u32 %v11120, 7
    %v11122 = vsub.s32 %v11119, %v11121
    %v11123 = vrot.slane %v11095, %v11122
    %v11124 = vcombine.low %v11102, %v11109
    %v11125 = vcombine.low %v11116, %v11123
    %v11127 = vunpack.c.l.s4 1966171168
    %v11128 = vunpack.c.0.s8 %v11127
    %v11129 = vlaneseq
    %v11130 = vshrl.u32 %v11129, 7
    %v11131 = vsub.s32 %v11128, %v11130
    %v11132 = vrot.slane %v11124, %v11131
    %v11134 = vunpack.c.l.s4 1966171168
    %v11135 = vunpack.c.0.s8 %v11134
    %v11136 = vlaneseq
    %v11137 = vshrl.u32 %v11136, 7
    %v11138 = vsub.s32 %v11135, %v11137
    %v11139 = vrot.slane %v11125, %v11138
    %v11140 = vcombine.low %v11132, %v11139
    %v11141 = vcombine.low %v10352, %v10353
    %v11142 = vcombine.low %v10354, %v10355
    %v11143 = vcombine.low %v10356, %v10357
    %v11144 = vcombine.low %v10358, %v10359
    %v11146 = vunpack.c.l.s4 1966171168
    %v11147 = vunpack.c.0.s8 %v11146
    %v11148 = vlaneseq
    %v11149 = vshrl.u32 %v11148, 7
    %v11150 = vsub.s32 %v11147, %v11149
    %v11151 = vrot.slane %v11141, %v11150
    %v11153 = vunpack.c.l.s4 1966171168
    %v11154 = vunpack.c.0.s8 %v11153
    %v11155 = vlaneseq
    %v11156 = vshrl.u32 %v11155, 7
    %v11157 = vsub.s32 %v11154, %v11156
    %v11158 = vrot.slane %v11142, %v11157
    %v11160 = vunpack.c.l.s4 1966171168
    %v11161 = vunpack.c.0.s8 %v11160
    %v11162 = vlaneseq
    %v11163 = vshrl.u32 %v11162, 7
    %v11164 = vsub.s32 %v11161, %v11163
    %v11165 = vrot.slane %v11143, %v11164
    %v11167 = vunpack.c.l.s4 1966171168
    %v11168 = vunpack.c.0.s8 %v11167
    %v11169 = vlaneseq
    %v11170 = vshrl.u32 %v11169, 7
    %v11171 = vsub.s32 %v11168, %v11170
    %v11172 = vrot.slane %v11144, %v11171
    %v11173 = vcombine.low %v11151, %v11158
    %v11174 = vcombine.low %v11165, %v11172
    %v11176 = vunpack.c.l.s4 1966171168
    %v11177 = vunpack.c.0.s8 %v11176
    %v11178 = vlaneseq
    %v11179 = vshrl.u32 %v11178, 7
    %v11180 = vsub.s32 %v11177, %v11179
    %v11181 = vrot.slane %v11173, %v11180
    %v11183 = vunpack.c.l.s4 1966171168
    %v11184 = vunpack.c.0.s8 %v11183
    %v11185 = vlaneseq
    %v11186 = vshrl.u32 %v11185, 7
    %v11187 = vsub.s32 %v11184, %v11186
    %v11188 = vrot.slane %v11174, %v11187
    %v11189 = vcombine.low %v11181, %v11188
    %v11190 = vcombine.low %v10360, %v10361
    %v11191 = vcombine.low %v10362, %v10363
    %v11192 = vcombine.low %v10364, %v10365
    %v11193 = vcombine.low %v10366, %v10367
    %v11195 = vunpack.c.l.s4 1966171168
    %v11196 = vunpack.c.0.s8 %v11195
    %v11197 = vlaneseq
    %v11198 = vshrl.u32 %v11197, 7
    %v11199 = vsub.s32 %v11196, %v11198
    %v11200 = vrot.slane %v11190, %v11199
    %v11202 = vunpack.c.l.s4 1966171168
    %v11203 = vunpack.c.0.s8 %v11202
    %v11204 = vlaneseq
    %v11205 = vshrl.u32 %v11204, 7
    %v11206 = vsub.s32 %v11203, %v11205
    %v11207 = vrot.slane %v11191, %v11206
    %v11209 = vunpack.c.l.s4 1966171168
    %v11210 = vunpack.c.0.s8 %v11209
    %v11211 = vlaneseq
    %v11212 = vshrl.u32 %v11211, 7
    %v11213 = vsub.s32 %v11210, %v11212
    %v11214 = vrot.slane %v11192, %v11213
    %v11216 = vunpack.c.l.s4 1966171168
    %v11217 = vunpack.c.0.s8 %v11216
    %v11218 = vlaneseq
    %v11219 = vshrl.u32 %v11218, 7
    %v11220 = vsub.s32 %v11217, %v11219
    %v11221 = vrot.slane %v11193, %v11220
    %v11222 = vcombine.low %v11200, %v11207
    %v11223 = vcombine.low %v11214, %v11221
    %v11225 = vunpack.c.l.s4 1966171168
    %v11226 = vunpack.c.0.s8 %v11225
    %v11227 = vlaneseq
    %v11228 = vshrl.u32 %v11227, 7
    %v11229 = vsub.s32 %v11226, %v11228
    %v11230 = vrot.slane %v11222, %v11229
    %v11232 = vunpack.c.l.s4 1966171168
    %v11233 = vunpack.c.0.s8 %v11232
    %v11234 = vlaneseq
    %v11235 = vshrl.u32 %v11234, 7
    %v11236 = vsub.s32 %v11233, %v11235
    %v11237 = vrot.slane %v11223, %v11236
    %v11238 = vcombine.low %v11230, %v11237
    %v11239 = vcombine.low %v10368, %v10369
    %v11240 = vcombine.low %v10370, %v10371
    %v11241 = vcombine.low %v10372, %v10373
    %v11242 = vcombine.low %v10374, %v10375
    %v11244 = vunpack.c.l.s4 1966171168
    %v11245 = vunpack.c.0.s8 %v11244
    %v11246 = vlaneseq
    %v11247 = vshrl.u32 %v11246, 7
    %v11248 = vsub.s32 %v11245, %v11247
    %v11249 = vrot.slane %v11239, %v11248
    %v11251 = vunpack.c.l.s4 1966171168
    %v11252 = vunpack.c.0.s8 %v11251
    %v11253 = vlaneseq
    %v11254 = vshrl.u32 %v11253, 7
    %v11255 = vsub.s32 %v11252, %v11254
    %v11256 = vrot.slane %v11240, %v11255
    %v11258 = vunpack.c.l.s4 1966171168
    %v11259 = vunpack.c.0.s8 %v11258
    %v11260 = vlaneseq
    %v11261 = vshrl.u32 %v11260, 7
    %v11262 = vsub.s32 %v11259, %v11261
    %v11263 = vrot.slane %v11241, %v11262
    %v11265 = vunpack.c.l.s4 1966171168
    %v11266 = vunpack.c.0.s8 %v11265
    %v11267 = vlaneseq
    %v11268 = vshrl.u32 %v11267, 7
    %v11269 = vsub.s32 %v11266, %v11268
    %v11270 = vrot.slane %v11242, %v11269
    %v11271 = vcombine.low %v11249, %v11256
    %v11272 = vcombine.low %v11263, %v11270
    %v11274 = vunpack.c.l.s4 1966171168
    %v11275 = vunpack.c.0.s8 %v11274
    %v11276 = vlaneseq
    %v11277 = vshrl.u32 %v11276, 7
    %v11278 = vsub.s32 %v11275, %v11277
    %v11279 = vrot.slane %v11271, %v11278
    %v11281 = vunpack.c.l.s4 1966171168
    %v11282 = vunpack.c.0.s8 %v11281
    %v11283 = vlaneseq
    %v11284 = vshrl.u32 %v11283, 7
    %v11285 = vsub.s32 %v11282, %v11284
    %v11286 = vrot.slane %v11272, %v11285
    %v11287 = vcombine.low %v11279, %v11286
    %v11304 = vmul.f32 %v8064, %v10552
    %v11305 = vmul.f32 %v8065, %v10601
    %v11306 = vmul.f32 %v8066, %v10650
    %v11307 = vmul.f32 %v8067, %v10699
    %v11308 = vmul.f32 %v8064, %v10748
    %v11309 = vmul.f32 %v8065, %v10797
    %v11310 = vmul.f32 %v8066, %v10846
    %v11311 = vmul.f32 %v8067, %v10895
    %v11312 = vmul.f32 %v8064, %v10944
    %v11313 = vmul.f32 %v8065, %v10993
    %v11314 = vmul.f32 %v8066, %v11042
    %v11315 = vmul.f32 %v8067, %v11091
    %v11316 = vmul.f32 %v8064, %v11140
    %v11317 = vmul.f32 %v8065, %v11189
    %v11318 = vmul.f32 %v8066, %v11238
    %v11319 = vmul.f32 %v8067, %v11287
    %v11336 = vlaneseq
    %v11337 = vshrl.u32 %v11336, 7
    %v11338 = vsub.s32 0, %v11337
    %v11339 = vrot.slane %v11304, %v11338
    %v11340 = vlaneseq
    %v11341 = vshrl.u32 %v11340, 7
    %v11342 = vsub.s32 1, %v11341
    %v11343 = vrot.slane %v11304, %v11342
    %v11344 = vlaneseq
    %v11345 = vshrl.u32 %v11344, 7
    %v11346 = vsub.s32 2, %v11345
    %v11347 = vrot.slane %v11304, %v11346
    %v11348 = vlaneseq
    %v11349 = vshrl.u32 %v11348, 7
    %v11350 = vsub.s32 3, %v11349
    %v11351 = vrot.slane %v11304, %v11350
    %v11352 = vlaneseq
    %v11353 = vshrl.u32 %v11352, 7
    %v11354 = vsub.s32 4, %v11353
    %v11355 = vrot.slane %v11304, %v11354
    %v11356 = vlaneseq
    %v11357 = vshrl.u32 %v11356, 7
    %v11358 = vsub.s32 5, %v11357
    %v11359 = vrot.slane %v11304, %v11358
    %v11360 = vlaneseq
    %v11361 = vshrl.u32 %v11360, 7
    %v11362 = vsub.s32 6, %v11361
    %v11363 = vrot.slane %v11304, %v11362
    %v11364 = vlaneseq
    %v11365 = vshrl.u32 %v11364, 7
    %v11366 = vsub.s32 7, %v11365
    %v11367 = vrot.slane %v11304, %v11366
    %v11368 = vlaneseq
    %v11369 = vshrl.u32 %v11368, 7
    %v11370 = vsub.s32 0, %v11369
    %v11371 = vrot.slane %v11305, %v11370
    %v11372 = vlaneseq
    %v11373 = vshrl.u32 %v11372, 7
    %v11374 = vsub.s32 1, %v11373
    %v11375 = vrot.slane %v11305, %v11374
    %v11376 = vlaneseq
    %v11377 = vshrl.u32 %v11376, 7
    %v11378 = vsub.s32 2, %v11377
    %v11379 = vrot.slane %v11305, %v11378
    %v11380 = vlaneseq
    %v11381 = vshrl.u32 %v11380, 7
    %v11382 = vsub.s32 3, %v11381
    %v11383 = vrot.slane %v11305, %v11382
    %v11384 = vlaneseq
    %v11385 = vshrl.u32 %v11384, 7
    %v11386 = vsub.s32 4, %v11385
    %v11387 = vrot.slane %v11305, %v11386
    %v11388 = vlaneseq
    %v11389 = vshrl.u32 %v11388, 7
    %v11390 = vsub.s32 5, %v11389
    %v11391 = vrot.slane %v11305, %v11390
    %v11392 = vlaneseq
    %v11393 = vshrl.u32 %v11392, 7
    %v11394 = vsub.s32 6, %v11393
    %v11395 = vrot.slane %v11305, %v11394
    %v11396 = vlaneseq
    %v11397 = vshrl.u32 %v11396, 7
    %v11398 = vsub.s32 7, %v11397
    %v11399 = vrot.slane %v11305, %v11398
    %v11400 = vlaneseq
    %v11401 = vshrl.u32 %v11400, 7
    %v11402 = vsub.s32 0, %v11401
    %v11403 = vrot.slane %v11306, %v11402
    %v11404 = vlaneseq
    %v11405 = vshrl.u32 %v11404, 7
    %v11406 = vsub.s32 1, %v11405
    %v11407 = vrot.slane %v11306, %v11406
    %v11408 = vlaneseq
    %v11409 = vshrl.u32 %v11408, 7
    %v11410 = vsub.s32 2, %v11409
    %v11411 = vrot.slane %v11306, %v11410
    %v11412 = vlaneseq
    %v11413 = vshrl.u32 %v11412, 7
    %v11414 = vsub.s32 3, %v11413
    %v11415 = vrot.slane %v11306, %v11414
    %v11416 = vlaneseq
    %v11417 = vshrl.u32 %v11416, 7
    %v11418 = vsub.s32 4, %v11417
    %v11419 = vrot.slane %v11306, %v11418
    %v11420 = vlaneseq
    %v11421 = vshrl.u32 %v11420, 7
    %v11422 = vsub.s32 5, %v11421
    %v11423 = vrot.slane %v11306, %v11422
    %v11424 = vlaneseq
    %v11425 = vshrl.u32 %v11424, 7
    %v11426 = vsub.s32 6, %v11425
    %v11427 = vrot.slane %v11306, %v11426
    %v11428 = vlaneseq
    %v11429 = vshrl.u32 %v11428, 7
    %v11430 = vsub.s32 7, %v11429
    %v11431 = vrot.slane %v11306, %v11430
    %v11432 = vlaneseq
    %v11433 = vshrl.u32 %v11432, 7
    %v11434 = vsub.s32 0, %v11433
    %v11435 = vrot.slane %v11307, %v11434
    %v11436 = vlaneseq
    %v11437 = vshrl.u32 %v11436, 7
    %v11438 = vsub.s32 1, %v11437
    %v11439 = vrot.slane %v11307, %v11438
    %v11440 = vlaneseq
    %v11441 = vshrl.u32 %v11440, 7
    %v11442 = vsub.s32 2, %v11441
    %v11443 = vrot.slane %v11307, %v11442
    %v11444 = vlaneseq
    %v11445 = vshrl.u32 %v11444, 7
    %v11446 = vsub.s32 3, %v11445
    %v11447 = vrot.slane %v11307, %v11446
    %v11448 = vlaneseq
    %v11449 = vshrl.u32 %v11448, 7
    %v11450 = vsub.s32 4, %v11449
    %v11451 = vrot.slane %v11307, %v11450
    %v11452 = vlaneseq
    %v11453 = vshrl.u32 %v11452, 7
    %v11454 = vsub.s32 5, %v11453
    %v11455 = vrot.slane %v11307, %v11454
    %v11456 = vlaneseq
    %v11457 = vshrl.u32 %v11456, 7
    %v11458 = vsub.s32 6, %v11457
    %v11459 = vrot.slane %v11307, %v11458
    %v11460 = vlaneseq
    %v11461 = vshrl.u32 %v11460, 7
    %v11462 = vsub.s32 7, %v11461
    %v11463 = vrot.slane %v11307, %v11462
    %v11464 = vlaneseq
    %v11465 = vshrl.u32 %v11464, 7
    %v11466 = vsub.s32 0, %v11465
    %v11467 = vrot.slane %v11308, %v11466
    %v11468 = vlaneseq
    %v11469 = vshrl.u32 %v11468, 7
    %v11470 = vsub.s32 1, %v11469
    %v11471 = vrot.slane %v11308, %v11470
    %v11472 = vlaneseq
    %v11473 = vshrl.u32 %v11472, 7
    %v11474 = vsub.s32 2, %v11473
    %v11475 = vrot.slane %v11308, %v11474
    %v11476 = vlaneseq
    %v11477 = vshrl.u32 %v11476, 7
    %v11478 = vsub.s32 3, %v11477
    %v11479 = vrot.slane %v11308, %v11478
    %v11480 = vlaneseq
    %v11481 = vshrl.u32 %v11480, 7
    %v11482 = vsub.s32 4, %v11481
    %v11483 = vrot.slane %v11308, %v11482
    %v11484 = vlaneseq
    %v11485 = vshrl.u32 %v11484, 7
    %v11486 = vsub.s32 5, %v11485
    %v11487 = vrot.slane %v11308, %v11486
    %v11488 = vlaneseq
    %v11489 = vshrl.u32 %v11488, 7
    %v11490 = vsub.s32 6, %v11489
    %v11491 = vrot.slane %v11308, %v11490
    %v11492 = vlaneseq
    %v11493 = vshrl.u32 %v11492, 7
    %v11494 = vsub.s32 7, %v11493
    %v11495 = vrot.slane %v11308, %v11494
    %v11496 = vlaneseq
    %v11497 = vshrl.u32 %v11496, 7
    %v11498 = vsub.s32 0, %v11497
    %v11499 = vrot.slane %v11309, %v11498
    %v11500 = vlaneseq
    %v11501 = vshrl.u32 %v11500, 7
    %v11502 = vsub.s32 1, %v11501
    %v11503 = vrot.slane %v11309, %v11502
    %v11504 = vlaneseq
    %v11505 = vshrl.u32 %v11504, 7
    %v11506 = vsub.s32 2, %v11505
    %v11507 = vrot.slane %v11309, %v11506
    %v11508 = vlaneseq
    %v11509 = vshrl.u32 %v11508, 7
    %v11510 = vsub.s32 3, %v11509
    %v11511 = vrot.slane %v11309, %v11510
    %v11512 = vlaneseq
    %v11513 = vshrl.u32 %v11512, 7
    %v11514 = vsub.s32 4, %v11513
    %v11515 = vrot.slane %v11309, %v11514
    %v11516 = vlaneseq
    %v11517 = vshrl.u32 %v11516, 7
    %v11518 = vsub.s32 5, %v11517
    %v11519 = vrot.slane %v11309, %v11518
    %v11520 = vlaneseq
    %v11521 = vshrl.u32 %v11520, 7
    %v11522 = vsub.s32 6, %v11521
    %v11523 = vrot.slane %v11309, %v11522
    %v11524 = vlaneseq
    %v11525 = vshrl.u32 %v11524, 7
    %v11526 = vsub.s32 7, %v11525
    %v11527 = vrot.slane %v11309, %v11526
    %v11528 = vlaneseq
    %v11529 = vshrl.u32 %v11528, 7
    %v11530 = vsub.s32 0, %v11529
    %v11531 = vrot.slane %v11310, %v11530
    %v11532 = vlaneseq
    %v11533 = vshrl.u32 %v11532, 7
    %v11534 = vsub.s32 1, %v11533
    %v11535 = vrot.slane %v11310, %v11534
    %v11536 = vlaneseq
    %v11537 = vshrl.u32 %v11536, 7
    %v11538 = vsub.s32 2, %v11537
    %v11539 = vrot.slane %v11310, %v11538
    %v11540 = vlaneseq
    %v11541 = vshrl.u32 %v11540, 7
    %v11542 = vsub.s32 3, %v11541
    %v11543 = vrot.slane %v11310, %v11542
    %v11544 = vlaneseq
    %v11545 = vshrl.u32 %v11544, 7
    %v11546 = vsub.s32 4, %v11545
    %v11547 = vrot.slane %v11310, %v11546
    %v11548 = vlaneseq
    %v11549 = vshrl.u32 %v11548, 7
    %v11550 = vsub.s32 5, %v11549
    %v11551 = vrot.slane %v11310, %v11550
    %v11552 = vlaneseq
    %v11553 = vshrl.u32 %v11552, 7
    %v11554 = vsub.s32 6, %v11553
    %v11555 = vrot.slane %v11310, %v11554
    %v11556 = vlaneseq
    %v11557 = vshrl.u32 %v11556, 7
    %v11558 = vsub.s32 7, %v11557
    %v11559 = vrot.slane %v11310, %v11558
    %v11560 = vlaneseq
    %v11561 = vshrl.u32 %v11560, 7
    %v11562 = vsub.s32 0, %v11561
    %v11563 = vrot.slane %v11311, %v11562
    %v11564 = vlaneseq
    %v11565 = vshrl.u32 %v11564, 7
    %v11566 = vsub.s32 1, %v11565
    %v11567 = vrot.slane %v11311, %v11566
    %v11568 = vlaneseq
    %v11569 = vshrl.u32 %v11568, 7
    %v11570 = vsub.s32 2, %v11569
    %v11571 = vrot.slane %v11311, %v11570
    %v11572 = vlaneseq
    %v11573 = vshrl.u32 %v11572, 7
    %v11574 = vsub.s32 3, %v11573
    %v11575 = vrot.slane %v11311, %v11574
    %v11576 = vlaneseq
    %v11577 = vshrl.u32 %v11576, 7
    %v11578 = vsub.s32 4, %v11577
    %v11579 = vrot.slane %v11311, %v11578
    %v11580 = vlaneseq
    %v11581 = vshrl.u32 %v11580, 7
    %v11582 = vsub.s32 5, %v11581
    %v11583 = vrot.slane %v11311, %v11582
    %v11584 = vlaneseq
    %v11585 = vshrl.u32 %v11584, 7
    %v11586 = vsub.s32 6, %v11585
    %v11587 = vrot.slane %v11311, %v11586
    %v11588 = vlaneseq
    %v11589 = vshrl.u32 %v11588, 7
    %v11590 = vsub.s32 7, %v11589
    %v11591 = vrot.slane %v11311, %v11590
    %v11592 = vlaneseq
    %v11593 = vshrl.u32 %v11592, 7
    %v11594 = vsub.s32 0, %v11593
    %v11595 = vrot.slane %v11312, %v11594
    %v11596 = vlaneseq
    %v11597 = vshrl.u32 %v11596, 7
    %v11598 = vsub.s32 1, %v11597
    %v11599 = vrot.slane %v11312, %v11598
    %v11600 = vlaneseq
    %v11601 = vshrl.u32 %v11600, 7
    %v11602 = vsub.s32 2, %v11601
    %v11603 = vrot.slane %v11312, %v11602
    %v11604 = vlaneseq
    %v11605 = vshrl.u32 %v11604, 7
    %v11606 = vsub.s32 3, %v11605
    %v11607 = vrot.slane %v11312, %v11606
    %v11608 = vlaneseq
    %v11609 = vshrl.u32 %v11608, 7
    %v11610 = vsub.s32 4, %v11609
    %v11611 = vrot.slane %v11312, %v11610
    %v11612 = vlaneseq
    %v11613 = vshrl.u32 %v11612, 7
    %v11614 = vsub.s32 5, %v11613
    %v11615 = vrot.slane %v11312, %v11614
    %v11616 = vlaneseq
    %v11617 = vshrl.u32 %v11616, 7
    %v11618 = vsub.s32 6, %v11617
    %v11619 = vrot.slane %v11312, %v11618
    %v11620 = vlaneseq
    %v11621 = vshrl.u32 %v11620, 7
    %v11622 = vsub.s32 7, %v11621
    %v11623 = vrot.slane %v11312, %v11622
    %v11624 = vlaneseq
    %v11625 = vshrl.u32 %v11624, 7
    %v11626 = vsub.s32 0, %v11625
    %v11627 = vrot.slane %v11313, %v11626
    %v11628 = vlaneseq
    %v11629 = vshrl.u32 %v11628, 7
    %v11630 = vsub.s32 1, %v11629
    %v11631 = vrot.slane %v11313, %v11630
    %v11632 = vlaneseq
    %v11633 = vshrl.u32 %v11632, 7
    %v11634 = vsub.s32 2, %v11633
    %v11635 = vrot.slane %v11313, %v11634
    %v11636 = vlaneseq
    %v11637 = vshrl.u32 %v11636, 7
    %v11638 = vsub.s32 3, %v11637
    %v11639 = vrot.slane %v11313, %v11638
    %v11640 = vlaneseq
    %v11641 = vshrl.u32 %v11640, 7
    %v11642 = vsub.s32 4, %v11641
    %v11643 = vrot.slane %v11313, %v11642
    %v11644 = vlaneseq
    %v11645 = vshrl.u32 %v11644, 7
    %v11646 = vsub.s32 5, %v11645
    %v11647 = vrot.slane %v11313, %v11646
    %v11648 = vlaneseq
    %v11649 = vshrl.u32 %v11648, 7
    %v11650 = vsub.s32 6, %v11649
    %v11651 = vrot.slane %v11313, %v11650
    %v11652 = vlaneseq
    %v11653 = vshrl.u32 %v11652, 7
    %v11654 = vsub.s32 7, %v11653
    %v11655 = vrot.slane %v11313, %v11654
    %v11656 = vlaneseq
    %v11657 = vshrl.u32 %v11656, 7
    %v11658 = vsub.s32 0, %v11657
    %v11659 = vrot.slane %v11314, %v11658
    %v11660 = vlaneseq
    %v11661 = vshrl.u32 %v11660, 7
    %v11662 = vsub.s32 1, %v11661
    %v11663 = vrot.slane %v11314, %v11662
    %v11664 = vlaneseq
    %v11665 = vshrl.u32 %v11664, 7
    %v11666 = vsub.s32 2, %v11665
    %v11667 = vrot.slane %v11314, %v11666
    %v11668 = vlaneseq
    %v11669 = vshrl.u32 %v11668, 7
    %v11670 = vsub.s32 3, %v11669
    %v11671 = vrot.slane %v11314, %v11670
    %v11672 = vlaneseq
    %v11673 = vshrl.u32 %v11672, 7
    %v11674 = vsub.s32 4, %v11673
    %v11675 = vrot.slane %v11314, %v11674
    %v11676 = vlaneseq
    %v11677 = vshrl.u32 %v11676, 7
    %v11678 = vsub.s32 5, %v11677
    %v11679 = vrot.slane %v11314, %v11678
    %v11680 = vlaneseq
    %v11681 = vshrl.u32 %v11680, 7
    %v11682 = vsub.s32 6, %v11681
    %v11683 = vrot.slane %v11314, %v11682
    %v11684 = vlaneseq
    %v11685 = vshrl.u32 %v11684, 7
    %v11686 = vsub.s32 7, %v11685
    %v11687 = vrot.slane %v11314, %v11686
    %v11688 = vlaneseq
    %v11689 = vshrl.u32 %v11688, 7
    %v11690 = vsub.s32 0, %v11689
    %v11691 = vrot.slane %v11315, %v11690
    %v11692 = vlaneseq
    %v11693 = vshrl.u32 %v11692, 7
    %v11694 = vsub.s32 1, %v11693
    %v11695 = vrot.slane %v11315, %v11694
    %v11696 = vlaneseq
    %v11697 = vshrl.u32 %v11696, 7
    %v11698 = vsub.s32 2, %v11697
    %v11699 = vrot.slane %v11315, %v11698
    %v11700 = vlaneseq
    %v11701 = vshrl.u32 %v11700, 7
    %v11702 = vsub.s32 3, %v11701
    %v11703 = vrot.slane %v11315, %v11702
    %v11704 = vlaneseq
    %v11705 = vshrl.u32 %v11704, 7
    %v11706 = vsub.s32 4, %v11705
    %v11707 = vrot.slane %v11315, %v11706
    %v11708 = vlaneseq
    %v11709 = vshrl.u32 %v11708, 7
    %v11710 = vsub.s32 5, %v11709
    %v11711 = vrot.slane %v11315, %v11710
    %v11712 = vlaneseq
    %v11713 = vshrl.u32 %v11712, 7
    %v11714 = vsub.s32 6, %v11713
    %v11715 = vrot.slane %v11315, %v11714
    %v11716 = vlaneseq
    %v11717 = vshrl.u32 %v11716, 7
    %v11718 = vsub.s32 7, %v11717
    %v11719 = vrot.slane %v11315, %v11718
    %v11720 = vlaneseq
    %v11721 = vshrl.u32 %v11720, 7
    %v11722 = vsub.s32 0, %v11721
    %v11723 = vrot.slane %v11316, %v11722
    %v11724 = vlaneseq
    %v11725 = vshrl.u32 %v11724, 7
    %v11726 = vsub.s32 1, %v11725
    %v11727 = vrot.slane %v11316, %v11726
    %v11728 = vlaneseq
    %v11729 = vshrl.u32 %v11728, 7
    %v11730 = vsub.s32 2, %v11729
    %v11731 = vrot.slane %v11316, %v11730
    %v11732 = vlaneseq
    %v11733 = vshrl.u32 %v11732, 7
    %v11734 = vsub.s32 3, %v11733
    %v11735 = vrot.slane %v11316, %v11734
    %v11736 = vlaneseq
    %v11737 = vshrl.u32 %v11736, 7
    %v11738 = vsub.s32 4, %v11737
    %v11739 = vrot.slane %v11316, %v11738
    %v11740 = vlaneseq
    %v11741 = vshrl.u32 %v11740, 7
    %v11742 = vsub.s32 5, %v11741
    %v11743 = vrot.slane %v11316, %v11742
    %v11744 = vlaneseq
    %v11745 = vshrl.u32 %v11744, 7
    %v11746 = vsub.s32 6, %v11745
    %v11747 = vrot.slane %v11316, %v11746
    %v11748 = vlaneseq
    %v11749 = vshrl.u32 %v11748, 7
    %v11750 = vsub.s32 7, %v11749
    %v11751 = vrot.slane %v11316, %v11750
    %v11752 = vlaneseq
    %v11753 = vshrl.u32 %v11752, 7
    %v11754 = vsub.s32 0, %v11753
    %v11755 = vrot.slane %v11317, %v11754
    %v11756 = vlaneseq
    %v11757 = vshrl.u32 %v11756, 7
    %v11758 = vsub.s32 1, %v11757
    %v11759 = vrot.slane %v11317, %v11758
    %v11760 = vlaneseq
    %v11761 = vshrl.u32 %v11760, 7
    %v11762 = vsub.s32 2, %v11761
    %v11763 = vrot.slane %v11317, %v11762
    %v11764 = vlaneseq
    %v11765 = vshrl.u32 %v11764, 7
    %v11766 = vsub.s32 3, %v11765
    %v11767 = vrot.slane %v11317, %v11766
    %v11768 = vlaneseq
    %v11769 = vshrl.u32 %v11768, 7
    %v11770 = vsub.s32 4, %v11769
    %v11771 = vrot.slane %v11317, %v11770
    %v11772 = vlaneseq
    %v11773 = vshrl.u32 %v11772, 7
    %v11774 = vsub.s32 5, %v11773
    %v11775 = vrot.slane %v11317, %v11774
    %v11776 = vlaneseq
    %v11777 = vshrl.u32 %v11776, 7
    %v11778 = vsub.s32 6, %v11777
    %v11779 = vrot.slane %v11317, %v11778
    %v11780 = vlaneseq
    %v11781 = vshrl.u32 %v11780, 7
    %v11782 = vsub.s32 7, %v11781
    %v11783 = vrot.slane %v11317, %v11782
    %v11784 = vlaneseq
    %v11785 = vshrl.u32 %v11784, 7
    %v11786 = vsub.s32 0, %v11785
    %v11787 = vrot.slane %v11318, %v11786
    %v11788 = vlaneseq
    %v11789 = vshrl.u32 %v11788, 7
    %v11790 = vsub.s32 1, %v11789
    %v11791 = vrot.slane %v11318, %v11790
    %v11792 = vlaneseq
    %v11793 = vshrl.u32 %v11792, 7
    %v11794 = vsub.s32 2, %v11793
    %v11795 = vrot.slane %v11318, %v11794
    %v11796 = vlaneseq
    %v11797 = vshrl.u32 %v11796, 7
    %v11798 = vsub.s32 3, %v11797
    %v11799 = vrot.slane %v11318, %v11798
    %v11800 = vlaneseq
    %v11801 = vshrl.u32 %v11800, 7
    %v11802 = vsub.s32 4, %v11801
    %v11803 = vrot.slane %v11318, %v11802
    %v11804 = vlaneseq
    %v11805 = vshrl.u32 %v11804, 7
    %v11806 = vsub.s32 5, %v11805
    %v11807 = vrot.slane %v11318, %v11806
    %v11808 = vlaneseq
    %v11809 = vshrl.u32 %v11808, 7
    %v11810 = vsub.s32 6, %v11809
    %v11811 = vrot.slane %v11318, %v11810
    %v11812 = vlaneseq
    %v11813 = vshrl.u32 %v11812, 7
    %v11814 = vsub.s32 7, %v11813
    %v11815 = vrot.slane %v11318, %v11814
    %v11816 = vlaneseq
    %v11817 = vshrl.u32 %v11816, 7
    %v11818 = vsub.s32 0, %v11817
    %v11819 = vrot.slane %v11319, %v11818
    %v11820 = vlaneseq
    %v11821 = vshrl.u32 %v11820, 7
    %v11822 = vsub.s32 1, %v11821
    %v11823 = vrot.slane %v11319, %v11822
    %v11824 = vlaneseq
    %v11825 = vshrl.u32 %v11824, 7
    %v11826 = vsub.s32 2, %v11825
    %v11827 = vrot.slane %v11319, %v11826
    %v11828 = vlaneseq
    %v11829 = vshrl.u32 %v11828, 7
    %v11830 = vsub.s32 3, %v11829
    %v11831 = vrot.slane %v11319, %v11830
    %v11832 = vlaneseq
    %v11833 = vshrl.u32 %v11832, 7
    %v11834 = vsub.s32 4, %v11833
    %v11835 = vrot.slane %v11319, %v11834
    %v11836 = vlaneseq
    %v11837 = vshrl.u32 %v11836, 7
    %v11838 = vsub.s32 5, %v11837
    %v11839 = vrot.slane %v11319, %v11838
    %v11840 = vlaneseq
    %v11841 = vshrl.u32 %v11840, 7
    %v11842 = vsub.s32 6, %v11841
    %v11843 = vrot.slane %v11319, %v11842
    %v11844 = vlaneseq
    %v11845 = vshrl.u32 %v11844, 7
    %v11846 = vsub.s32 7, %v11845
    %v11847 = vrot.slane %v11319, %v11846
    %v11976 = vmul.f32 %v8968, %v11339
    %v11977 = vmul.f32 %v8969, %v11343
    %v11978 = vmul.f32 %v8970, %v11347
    %v11979 = vmul.f32 %v8971, %v11351
    %v11980 = vmul.f32 %v8972, %v11355
    %v11981 = vmul.f32 %v8973, %v11359
    %v11982 = vmul.f32 %v8974, %v11363
    %v11983 = vmul.f32 %v8975, %v11367
    %v11984 = vmul.f32 %v8976, %v11371
    %v11985 = vmul.f32 %v8977, %v11375
    %v11986 = vmul.f32 %v8978, %v11379
    %v11987 = vmul.f32 %v8979, %v11383
    %v11988 = vmul.f32 %v8980, %v11387
    %v11989 = vmul.f32 %v8981, %v11391
    %v11990 = vmul.f32 %v8982, %v11395
    %v11991 = vmul.f32 %v8983, %v11399
    %v11992 = vmul.f32 %v8984, %v11403
    %v11993 = vmul.f32 %v8985, %v11407
    %v11994 = vmul.f32 %v8986, %v11411
    %v11995 = vmul.f32 %v8987, %v11415
    %v11996 = vmul.f32 %v8988, %v11419
    %v11997 = vmul.f32 %v8989, %v11423
    %v11998 = vmul.f32 %v8990, %v11427
    %v11999 = vmul.f32 %v8991, %v11431
    %v12000 = vmul.f32 %v8992, %v11435
    %v12001 = vmul.f32 %v8993, %v11439
    %v12002 = vmul.f32 %v8994, %v11443
    %v12003 = vmul.f32 %v8995, %v11447
    %v12004 = vmul.f32 %v8996, %v11451
    %v12005 = vmul.f32 %v8997, %v11455
    %v12006 = vmul.f32 %v8998, %v11459
    %v12007 = vmul.f32 %v8999, %v11463
    %v12008 = vmul.f32 %v9000, %v11467
    %v12009 = vmul.f32 %v9001, %v11471
    %v12010 = vmul.f32 %v9002, %v11475
    %v12011 = vmul.f32 %v9003, %v11479
    %v12012 = vmul.f32 %v9004, %v11483
    %v12013 = vmul.f32 %v9005, %v11487
    %v12014 = vmul.f32 %v9006, %v11491
    %v12015 = vmul.f32 %v9007, %v11495
    %v12016 = vmul.f32 %v9008, %v11499
    %v12017 = vmul.f32 %v9009, %v11503
    %v12018 = vmul.f32 %v9010, %v11507
    %v12019 = vmul.f32 %v9011, %v11511
    %v12020 = vmul.f32 %v9012, %v11515
    %v12021 = vmul.f32 %v9013, %v11519
    %v12022 = vmul.f32 %v9014, %v11523
    %v12023 = vmul.f32 %v9015, %v11527
    %v12024 = vmul.f32 %v9016, %v11531
    %v12025 = vmul.f32 %v9017, %v11535
    %v12026 = vmul.f32 %v9018, %v11539
    %v12027 = vmul.f32 %v9019, %v11543
    %v12028 = vmul.f32 %v9020, %v11547
    %v12029 = vmul.f32 %v9021, %v11551
    %v12030 = vmul.f32 %v9022, %v11555
    %v12031 = vmul.f32 %v9023, %v11559
    %v12032 = vmul.f32 %v9024, %v11563
    %v12033 = vmul.f32 %v9025, %v11567
    %v12034 = vmul.f32 %v9026, %v11571
    %v12035 = vmul.f32 %v9027, %v11575
    %v12036 = vmul.f32 %v9028, %v11579
    %v12037 = vmul.f32 %v9029, %v11583
    %v12038 = vmul.f32 %v9030, %v11587
    %v12039 = vmul.f32 %v9031, %v11591
    %v12040 = vmul.f32 %v9032, %v11595
    %v12041 = vmul.f32 %v9033, %v11599
    %v12042 = vmul.f32 %v9034, %v11603
    %v12043 = vmul.f32 %v9035, %v11607
    %v12044 = vmul.f32 %v9036, %v11611
    %v12045 = vmul.f32 %v9037, %v11615
    %v12046 = vmul.f32 %v9038, %v11619
    %v12047 = vmul.f32 %v9039, %v11623
    %v12048 = vmul.f32 %v9040, %v11627
    %v12049 = vmul.f32 %v9041, %v11631
    %v12050 = vmul.f32 %v9042, %v11635
    %v12051 = vmul.f32 %v9043, %v11639
    %v12052 = vmul.f32 %v9044, %v11643
    %v12053 = vmul.f32 %v9045, %v11647
    %v12054 = vmul.f32 %v9046, %v11651
    %v12055 = vmul.f32 %v9047, %v11655
    %v12056 = vmul.f32 %v9048, %v11659
    %v12057 = vmul.f32 %v9049, %v11663
    %v12058 = vmul.f32 %v9050, %v11667
    %v12059 = vmul.f32 %v9051, %v11671
    %v12060 = vmul.f32 %v9052, %v11675
    %v12061 = vmul.f32 %v9053, %v11679
    %v12062 = vmul.f32 %v9054, %v11683
    %v12063 = vmul.f32 %v9055, %v11687
    %v12064 = vmul.f32 %v9056, %v11691
    %v12065 = vmul.f32 %v9057, %v11695
    %v12066 = vmul.f32 %v9058, %v11699
    %v12067 = vmul.f32 %v9059, %v11703
    %v12068 = vmul.f32 %v9060, %v11707
    %v12069 = vmul.f32 %v9061, %v11711
    %v12070 = vmul.f32 %v9062, %v11715
    %v12071 = vmul.f32 %v9063, %v11719
    %v12072 = vmul.f32 %v9064, %v11723
    %v12073 = vmul.f32 %v9065, %v11727
    %v12074 = vmul.f32 %v9066, %v11731
    %v12075 = vmul.f32 %v9067, %v11735
    %v12076 = vmul.f32 %v9068, %v11739
    %v12077 = vmul.f32 %v9069, %v11743
    %v12078 = vmul.f32 %v9070, %v11747
    %v12079 = vmul.f32 %v9071, %v11751
    %v12080 = vmul.f32 %v9072, %v11755
    %v12081 = vmul.f32 %v9073, %v11759
    %v12082 = vmul.f32 %v9074, %v11763
    %v12083 = vmul.f32 %v9075, %v11767
    %v12084 = vmul.f32 %v9076, %v11771
    %v12085 = vmul.f32 %v9077, %v11775
    %v12086 = vmul.f32 %v9078, %v11779
    %v12087 = vmul.f32 %v9079, %v11783
    %v12088 = vmul.f32 %v9080, %v11787
    %v12089 = vmul.f32 %v9081, %v11791
    %v12090 = vmul.f32 %v9082, %v11795
    %v12091 = vmul.f32 %v9083, %v11799
    %v12092 = vmul.f32 %v9084, %v11803
    %v12093 = vmul.f32 %v9085, %v11807
    %v12094 = vmul.f32 %v9086, %v11811
    %v12095 = vmul.f32 %v9087, %v11815
    %v12096 = vmul.f32 %v9088, %v11819
    %v12097 = vmul.f32 %v9089, %v11823
    %v12098 = vmul.f32 %v9090, %v11827
    %v12099 = vmul.f32 %v9091, %v11831
    %v12100 = vmul.f32 %v9092, %v11835
    %v12101 = vmul.f32 %v9093, %v11839
    %v12102 = vmul.f32 %v9094, %v11843
    %v12103 = vmul.f32 %v9095, %v11847
    %v12108 = vlaneseq
    %v12109 = vshrl.u32 %v12108, 7
    %v12110 = vsub.s32 0, %v12109
    %v12111 = vrot.slane %v8068, %v12110
    %v12112 = vlaneseq
    %v12113 = vshrl.u32 %v12112, 7
    %v12114 = vsub.s32 1, %v12113
    %v12115 = vrot.slane %v8068, %v12114
    %v12116 = vlaneseq
    %v12117 = vshrl.u32 %v12116, 7
    %v12118 = vsub.s32 2, %v12117
    %v12119 = vrot.slane %v8068, %v12118
    %v12120 = vlaneseq
    %v12121 = vshrl.u32 %v12120, 7
    %v12122 = vsub.s32 3, %v12121
    %v12123 = vrot.slane %v8068, %v12122
    %v12124 = vlaneseq
    %v12125 = vshrl.u32 %v12124, 7
    %v12126 = vsub.s32 4, %v12125
    %v12127 = vrot.slane %v8068, %v12126
    %v12128 = vlaneseq
    %v12129 = vshrl.u32 %v12128, 7
    %v12130 = vsub.s32 5, %v12129
    %v12131 = vrot.slane %v8068, %v12130
    %v12132 = vlaneseq
    %v12133 = vshrl.u32 %v12132, 7
    %v12134 = vsub.s32 6, %v12133
    %v12135 = vrot.slane %v8068, %v12134
    %v12136 = vlaneseq
    %v12137 = vshrl.u32 %v12136, 7
    %v12138 = vsub.s32 7, %v12137
    %v12139 = vrot.slane %v8068, %v12138
    %v12140 = vlaneseq
    %v12141 = vshrl.u32 %v12140, 7
    %v12142 = vsub.s32 0, %v12141
    %v12143 = vrot.slane %v8069, %v12142
    %v12144 = vlaneseq
    %v12145 = vshrl.u32 %v12144, 7
    %v12146 = vsub.s32 1, %v12145
    %v12147 = vrot.slane %v8069, %v12146
    %v12148 = vlaneseq
    %v12149 = vshrl.u32 %v12148, 7
    %v12150 = vsub.s32 2, %v12149
    %v12151 = vrot.slane %v8069, %v12150
    %v12152 = vlaneseq
    %v12153 = vshrl.u32 %v12152, 7
    %v12154 = vsub.s32 3, %v12153
    %v12155 = vrot.slane %v8069, %v12154
    %v12156 = vlaneseq
    %v12157 = vshrl.u32 %v12156, 7
    %v12158 = vsub.s32 4, %v12157
    %v12159 = vrot.slane %v8069, %v12158
    %v12160 = vlaneseq
    %v12161 = vshrl.u32 %v12160, 7
    %v12162 = vsub.s32 5, %v12161
    %v12163 = vrot.slane %v8069, %v12162
    %v12164 = vlaneseq
    %v12165 = vshrl.u32 %v12164, 7
    %v12166 = vsub.s32 6, %v12165
    %v12167 = vrot.slane %v8069, %v12166
    %v12168 = vlaneseq
    %v12169 = vshrl.u32 %v12168, 7
    %v12170 = vsub.s32 7, %v12169
    %v12171 = vrot.slane %v8069, %v12170
    %v12172 = vlaneseq
    %v12173 = vshrl.u32 %v12172, 7
    %v12174 = vsub.s32 0, %v12173
    %v12175 = vrot.slane %v8070, %v12174
    %v12176 = vlaneseq
    %v12177 = vshrl.u32 %v12176, 7
    %v12178 = vsub.s32 1, %v12177
    %v12179 = vrot.slane %v8070, %v12178
    %v12180 = vlaneseq
    %v12181 = vshrl.u32 %v12180, 7
    %v12182 = vsub.s32 2, %v12181
    %v12183 = vrot.slane %v8070, %v12182
    %v12184 = vlaneseq
    %v12185 = vshrl.u32 %v12184, 7
    %v12186 = vsub.s32 3, %v12185
    %v12187 = vrot.slane %v8070, %v12186
    %v12188 = vlaneseq
    %v12189 = vshrl.u32 %v12188, 7
    %v12190 = vsub.s32 4, %v12189
    %v12191 = vrot.slane %v8070, %v12190
    %v12192 = vlaneseq
    %v12193 = vshrl.u32 %v12192, 7
    %v12194 = vsub.s32 5, %v12193
    %v12195 = vrot.slane %v8070, %v12194
    %v12196 = vlaneseq
    %v12197 = vshrl.u32 %v12196, 7
    %v12198 = vsub.s32 6, %v12197
    %v12199 = vrot.slane %v8070, %v12198
    %v12200 = vlaneseq
    %v12201 = vshrl.u32 %v12200, 7
    %v12202 = vsub.s32 7, %v12201
    %v12203 = vrot.slane %v8070, %v12202
    %v12204 = vlaneseq
    %v12205 = vshrl.u32 %v12204, 7
    %v12206 = vsub.s32 0, %v12205
    %v12207 = vrot.slane %v8071, %v12206
    %v12208 = vlaneseq
    %v12209 = vshrl.u32 %v12208, 7
    %v12210 = vsub.s32 1, %v12209
    %v12211 = vrot.slane %v8071, %v12210
    %v12212 = vlaneseq
    %v12213 = vshrl.u32 %v12212, 7
    %v12214 = vsub.s32 2, %v12213
    %v12215 = vrot.slane %v8071, %v12214
    %v12216 = vlaneseq
    %v12217 = vshrl.u32 %v12216, 7
    %v12218 = vsub.s32 3, %v12217
    %v12219 = vrot.slane %v8071, %v12218
    %v12220 = vlaneseq
    %v12221 = vshrl.u32 %v12220, 7
    %v12222 = vsub.s32 4, %v12221
    %v12223 = vrot.slane %v8071, %v12222
    %v12224 = vlaneseq
    %v12225 = vshrl.u32 %v12224, 7
    %v12226 = vsub.s32 5, %v12225
    %v12227 = vrot.slane %v8071, %v12226
    %v12228 = vlaneseq
    %v12229 = vshrl.u32 %v12228, 7
    %v12230 = vsub.s32 6, %v12229
    %v12231 = vrot.slane %v8071, %v12230
    %v12232 = vlaneseq
    %v12233 = vshrl.u32 %v12232, 7
    %v12234 = vsub.s32 7, %v12233
    %v12235 = vrot.slane %v8071, %v12234
    %v12268 = vadd.f32 %v11976, %v12111
    %v12269 = vadd.f32 %v11977, %v12115
    %v12270 = vadd.f32 %v11978, %v12119
    %v12271 = vadd.f32 %v11979, %v12123
    %v12272 = vadd.f32 %v11980, %v12127
    %v12273 = vadd.f32 %v11981, %v12131
    %v12274 = vadd.f32 %v11982, %v12135
    %v12275 = vadd.f32 %v11983, %v12139
    %v12276 = vadd.f32 %v11984, %v12143
    %v12277 = vadd.f32 %v11985, %v12147
    %v12278 = vadd.f32 %v11986, %v12151
    %v12279 = vadd.f32 %v11987, %v12155
    %v12280 = vadd.f32 %v11988, %v12159
    %v12281 = vadd.f32 %v11989, %v12163
    %v12282 = vadd.f32 %v11990, %v12167
    %v12283 = vadd.f32 %v11991, %v12171
    %v12284 = vadd.f32 %v11992, %v12175
    %v12285 = vadd.f32 %v11993, %v12179
    %v12286 = vadd.f32 %v11994, %v12183
    %v12287 = vadd.f32 %v11995, %v12187
    %v12288 = vadd.f32 %v11996, %v12191
    %v12289 = vadd.f32 %v11997, %v12195
    %v12290 = vadd.f32 %v11998, %v12199
    %v12291 = vadd.f32 %v11999, %v12203
    %v12292 = vadd.f32 %v12000, %v12207
    %v12293 = vadd.f32 %v12001, %v12211
    %v12294 = vadd.f32 %v12002, %v12215
    %v12295 = vadd.f32 %v12003, %v12219
    %v12296 = vadd.f32 %v12004, %v12223
    %v12297 = vadd.f32 %v12005, %v12227
    %v12298 = vadd.f32 %v12006, %v12231
    %v12299 = vadd.f32 %v12007, %v12235
    %v12300 = vadd.f32 %v12008, %v12111
    %v12301 = vadd.f32 %v12009, %v12115
    %v12302 = vadd.f32 %v12010, %v12119
    %v12303 = vadd.f32 %v12011, %v12123
    %v12304 = vadd.f32 %v12012, %v12127
    %v12305 = vadd.f32 %v12013, %v12131
    %v12306 = vadd.f32 %v12014, %v12135
    %v12307 = vadd.f32 %v12015, %v12139
    %v12308 = vadd.f32 %v12016, %v12143
    %v12309 = vadd.f32 %v12017, %v12147
    %v12310 = vadd.f32 %v12018, %v12151
    %v12311 = vadd.f32 %v12019, %v12155
    %v12312 = vadd.f32 %v12020, %v12159
    %v12313 = vadd.f32 %v12021, %v12163
    %v12314 = vadd.f32 %v12022, %v12167
    %v12315 = vadd.f32 %v12023, %v12171
    %v12316 = vadd.f32 %v12024, %v12175
    %v12317 = vadd.f32 %v12025, %v12179
    %v12318 = vadd.f32 %v12026, %v12183
    %v12319 = vadd.f32 %v12027, %v12187
    %v12320 = vadd.f32 %v12028, %v12191
    %v12321 = vadd.f32 %v12029, %v12195
    %v12322 = vadd.f32 %v12030, %v12199
    %v12323 = vadd.f32 %v12031, %v12203
    %v12324 = vadd.f32 %v12032, %v12207
    %v12325 = vadd.f32 %v12033, %v12211
    %v12326 = vadd.f32 %v12034, %v12215
    %v12327 = vadd.f32 %v12035, %v12219
    %v12328 = vadd.f32 %v12036, %v12223
    %v12329 = vadd.f32 %v12037, %v12227
    %v12330 = vadd.f32 %v12038, %v12231
    %v12331 = vadd.f32 %v12039, %v12235
    %v12332 = vadd.f32 %v12040, %v12111
    %v12333 = vadd.f32 %v12041, %v12115
    %v12334 = vadd.f32 %v12042, %v12119
    %v12335 = vadd.f32 %v12043, %v12123
    %v12336 = vadd.f32 %v12044, %v12127
    %v12337 = vadd.f32 %v12045, %v12131
    %v12338 = vadd.f32 %v12046, %v12135
    %v12339 = vadd.f32 %v12047, %v12139
    %v12340 = vadd.f32 %v12048, %v12143
    %v12341 = vadd.f32 %v12049, %v12147
    %v12342 = vadd.f32 %v12050, %v12151
    %v12343 = vadd.f32 %v12051, %v12155
    %v12344 = vadd.f32 %v12052, %v12159
    %v12345 = vadd.f32 %v12053, %v12163
    %v12346 = vadd.f32 %v12054, %v12167
    %v12347 = vadd.f32 %v12055, %v12171
    %v12348 = vadd.f32 %v12056, %v12175
    %v12349 = vadd.f32 %v12057, %v12179
    %v12350 = vadd.f32 %v12058, %v12183
    %v12351 = vadd.f32 %v12059, %v12187
    %v12352 = vadd.f32 %v12060, %v12191
    %v12353 = vadd.f32 %v12061, %v12195
    %v12354 = vadd.f32 %v12062, %v12199
    %v12355 = vadd.f32 %v12063, %v12203
    %v12356 = vadd.f32 %v12064, %v12207
    %v12357 = vadd.f32 %v12065, %v12211
    %v12358 = vadd.f32 %v12066, %v12215
    %v12359 = vadd.f32 %v12067, %v12219
    %v12360 = vadd.f32 %v12068, %v12223
    %v12361 = vadd.f32 %v12069, %v12227
    %v12362 = vadd.f32 %v12070, %v12231
    %v12363 = vadd.f32 %v12071, %v12235
    %v12364 = vadd.f32 %v12072, %v12111
    %v12365 = vadd.f32 %v12073, %v12115
    %v12366 = vadd.f32 %v12074, %v12119
    %v12367 = vadd.f32 %v12075, %v12123
    %v12368 = vadd.f32 %v12076, %v12127
    %v12369 = vadd.f32 %v12077, %v12131
    %v12370 = vadd.f32 %v12078, %v12135
    %v12371 = vadd.f32 %v12079, %v12139
    %v12372 = vadd.f32 %v12080, %v12143
    %v12373 = vadd.f32 %v12081, %v12147
    %v12374 = vadd.f32 %v12082, %v12151
    %v12375 = vadd.f32 %v12083, %v12155
    %v12376 = vadd.f32 %v12084, %v12159
    %v12377 = vadd.f32 %v12085, %v12163
    %v12378 = vadd.f32 %v12086, %v12167
    %v12379 = vadd.f32 %v12087, %v12171
    %v12380 = vadd.f32 %v12088, %v12175
    %v12381 = vadd.f32 %v12089, %v12179
    %v12382 = vadd.f32 %v12090, %v12183
    %v12383 = vadd.f32 %v12091, %v12187
    %v12384 = vadd.f32 %v12092, %v12191
    %v12385 = vadd.f32 %v12093, %v12195
    %v12386 = vadd.f32 %v12094, %v12199
    %v12387 = vadd.f32 %v12095, %v12203
    %v12388 = vadd.f32 %v12096, %v12207
    %v12389 = vadd.f32 %v12097, %v12211
    %v12390 = vadd.f32 %v12098, %v12215
    %v12391 = vadd.f32 %v12099, %v12219
    %v12392 = vadd.f32 %v12100, %v12223
    %v12393 = vadd.f32 %v12101, %v12227
    %v12394 = vadd.f32 %v12102, %v12231
    %v12395 = vadd.f32 %v12103, %v12235
    %v12396 = vmax.f32 %v12268, 0.0
    %v12397 = vmax.f32 %v12269, 0.0
    %v12398 = vmax.f32 %v12270, 0.0
    %v12399 = vmax.f32 %v12271, 0.0
    %v12400 = vmax.f32 %v12272, 0.0
    %v12401 = vmax.f32 %v12273, 0.0
    %v12402 = vmax.f32 %v12274, 0.0
    %v12403 = vmax.f32 %v12275, 0.0
    %v12404 = vmax.f32 %v12276, 0.0
    %v12405 = vmax.f32 %v12277, 0.0
    %v12406 = vmax.f32 %v12278, 0.0
    %v12407 = vmax.f32 %v12279, 0.0
    %v12408 = vmax.f32 %v12280, 0.0
    %v12409 = vmax.f32 %v12281, 0.0
    %v12410 = vmax.f32 %v12282, 0.0
    %v12411 = vmax.f32 %v12283, 0.0
    %v12412 = vmax.f32 %v12284, 0.0
    %v12413 = vmax.f32 %v12285, 0.0
    %v12414 = vmax.f32 %v12286, 0.0
    %v12415 = vmax.f32 %v12287, 0.0
    %v12416 = vmax.f32 %v12288, 0.0
    %v12417 = vmax.f32 %v12289, 0.0
    %v12418 = vmax.f32 %v12290, 0.0
    %v12419 = vmax.f32 %v12291, 0.0
    %v12420 = vmax.f32 %v12292, 0.0
    %v12421 = vmax.f32 %v12293, 0.0
    %v12422 = vmax.f32 %v12294, 0.0
    %v12423 = vmax.f32 %v12295, 0.0
    %v12424 = vmax.f32 %v12296, 0.0
    %v12425 = vmax.f32 %v12297, 0.0
    %v12426 = vmax.f32 %v12298, 0.0
    %v12427 = vmax.f32 %v12299, 0.0
    %v12428 = vmax.f32 %v12300, 0.0
    %v12429 = vmax.f32 %v12301, 0.0
    %v12430 = vmax.f32 %v12302, 0.0
    %v12431 = vmax.f32 %v12303, 0.0
    %v12432 = vmax.f32 %v12304, 0.0
    %v12433 = vmax.f32 %v12305, 0.0
    %v12434 = vmax.f32 %v12306, 0.0
    %v12435 = vmax.f32 %v12307, 0.0
    %v12436 = vmax.f32 %v12308, 0.0
    %v12437 = vmax.f32 %v12309, 0.0
    %v12438 = vmax.f32 %v12310, 0.0
    %v12439 = vmax.f32 %v12311, 0.0
    %v12440 = vmax.f32 %v12312, 0.0
    %v12441 = vmax.f32 %v12313, 0.0
    %v12442 = vmax.f32 %v12314, 0.0
    %v12443 = vmax.f32 %v12315, 0.0
    %v12444 = vmax.f32 %v12316, 0.0
    %v12445 = vmax.f32 %v12317, 0.0
    %v12446 = vmax.f32 %v12318, 0.0
    %v12447 = vmax.f32 %v12319, 0.0
    %v12448 = vmax.f32 %v12320, 0.0
    %v12449 = vmax.f32 %v12321, 0.0
    %v12450 = vmax.f32 %v12322, 0.0
    %v12451 = vmax.f32 %v12323, 0.0
    %v12452 = vmax.f32 %v12324, 0.0
    %v12453 = vmax.f32 %v12325, 0.0
    %v12454 = vmax.f32 %v12326, 0.0
    %v12455 = vmax.f32 %v12327, 0.0
    %v12456 = vmax.f32 %v12328, 0.0
    %v12457 = vmax.f32 %v12329, 0.0
    %v12458 = vmax.f32 %v12330, 0.0
    %v12459 = vmax.f32 %v12331, 0.0
    %v12460 = vmax.f32 %v12332, 0.0
    %v12461 = vmax.f32 %v12333, 0.0
    %v12462 = vmax.f32 %v12334, 0.0
    %v12463 = vmax.f32 %v12335, 0.0
    %v12464 = vmax.f32 %v12336, 0.0
    %v12465 = vmax.f32 %v12337, 0.0
    %v12466 = vmax.f32 %v12338, 0.0
    %v12467 = vmax.f32 %v12339, 0.0
    %v12468 = vmax.f32 %v12340, 0.0
    %v12469 = vmax.f32 %v12341, 0.0
    %v12470 = vmax.f32 %v12342, 0.0
    %v12471 = vmax.f32 %v12343, 0.0
    %v12472 = vmax.f32 %v12344, 0.0
    %v12473 = vmax.f32 %v12345, 0.0
    %v12474 = vmax.f32 %v12346, 0.0
    %v12475 = vmax.f32 %v12347, 0.0
    %v12476 = vmax.f32 %v12348, 0.0
    %v12477 = vmax.f32 %v12349, 0.0
    %v12478 = vmax.f32 %v12350, 0.0
    %v12479 = vmax.f32 %v12351, 0.0
    %v12480 = vmax.f32 %v12352, 0.0
    %v12481 = vmax.f32 %v12353, 0.0
    %v12482 = vmax.f32 %v12354, 0.0
    %v12483 = vmax.f32 %v12355, 0.0
    %v12484 = vmax.f32 %v12356, 0.0
    %v12485 = vmax.f32 %v12357, 0.0
    %v12486 = vmax.f32 %v12358, 0.0
    %v12487 = vmax.f32 %v12359, 0.0
    %v12488 = vmax.f32 %v12360, 0.0
    %v12489 = vmax.f32 %v12361, 0.0
    %v12490 = vmax.f32 %v12362, 0.0
    %v12491 = vmax.f32 %v12363, 0.0
    %v12492 = vmax.f32 %v12364, 0.0
    %v12493 = vmax.f32 %v12365, 0.0
    %v12494 = vmax.f32 %v12366, 0.0
    %v12495 = vmax.f32 %v12367, 0.0
    %v12496 = vmax.f32 %v12368, 0.0
    %v12497 = vmax.f32 %v12369, 0.0
    %v12498 = vmax.f32 %v12370, 0.0
    %v12499 = vmax.f32 %v12371, 0.0
    %v12500 = vmax.f32 %v12372, 0.0
    %v12501 = vmax.f32 %v12373, 0.0
    %v12502 = vmax.f32 %v12374, 0.0
    %v12503 = vmax.f32 %v12375, 0.0
    %v12504 = vmax.f32 %v12376, 0.0
    %v12505 = vmax.f32 %v12377, 0.0
    %v12506 = vmax.f32 %v12378, 0.0
    %v12507 = vmax.f32 %v12379, 0.0
    %v12508 = vmax.f32 %v12380, 0.0
    %v12509 = vmax.f32 %v12381, 0.0
    %v12510 = vmax.f32 %v12382, 0.0
    %v12511 = vmax.f32 %v12383, 0.0
    %v12512 = vmax.f32 %v12384, 0.0
    %v12513 = vmax.f32 %v12385, 0.0
    %v12514 = vmax.f32 %v12386, 0.0
    %v12515 = vmax.f32 %v12387, 0.0
    %v12516 = vmax.f32 %v12388, 0.0
    %v12517 = vmax.f32 %v12389, 0.0
    %v12518 = vmax.f32 %v12390, 0.0
    %v12519 = vmax.f32 %v12391, 0.0
    %v12520 = vmax.f32 %v12392, 0.0
    %v12521 = vmax.f32 %v12393, 0.0
    %v12522 = vmax.f32 %v12394, 0.0
    %v12523 = vmax.f32 %v12395, 0.0
    %v12524 = vpack.c.bf16 %v12428, %v12396
    %v12525 = vpack.c.bf16 %v12429, %v12397
    %v12526 = vpack.c.bf16 %v12430, %v12398
    %v12527 = vpack.c.bf16 %v12431, %v12399
    %v12528 = vpack.c.bf16 %v12432, %v12400
    %v12529 = vpack.c.bf16 %v12433, %v12401
    %v12530 = vpack.c.bf16 %v12434, %v12402
    %v12531 = vpack.c.bf16 %v12435, %v12403
    %v12532 = vpack.c.bf16 %v12436, %v12404
    %v12533 = vpack.c.bf16 %v12437, %v12405
    %v12534 = vpack.c.bf16 %v12438, %v12406
    %v12535 = vpack.c.bf16 %v12439, %v12407
    %v12536 = vpack.c.bf16 %v12440, %v12408
    %v12537 = vpack.c.bf16 %v12441, %v12409
    %v12538 = vpack.c.bf16 %v12442, %v12410
    %v12539 = vpack.c.bf16 %v12443, %v12411
    %v12540 = vpack.c.bf16 %v12444, %v12412
    %v12541 = vpack.c.bf16 %v12445, %v12413
    %v12542 = vpack.c.bf16 %v12446, %v12414
    %v12543 = vpack.c.bf16 %v12447, %v12415
    %v12544 = vpack.c.bf16 %v12448, %v12416
    %v12545 = vpack.c.bf16 %v12449, %v12417
    %v12546 = vpack.c.bf16 %v12450, %v12418
    %v12547 = vpack.c.bf16 %v12451, %v12419
    %v12548 = vpack.c.bf16 %v12452, %v12420
    %v12549 = vpack.c.bf16 %v12453, %v12421
    %v12550 = vpack.c.bf16 %v12454, %v12422
    %v12551 = vpack.c.bf16 %v12455, %v12423
    %v12552 = vpack.c.bf16 %v12456, %v12424
    %v12553 = vpack.c.bf16 %v12457, %v12425
    %v12554 = vpack.c.bf16 %v12458, %v12426
    %v12555 = vpack.c.bf16 %v12459, %v12427
    %v12556 = vpack.c.bf16 %v12492, %v12460
    %v12557 = vpack.c.bf16 %v12493, %v12461
    %v12558 = vpack.c.bf16 %v12494, %v12462
    %v12559 = vpack.c.bf16 %v12495, %v12463
    %v12560 = vpack.c.bf16 %v12496, %v12464
    %v12561 = vpack.c.bf16 %v12497, %v12465
    %v12562 = vpack.c.bf16 %v12498, %v12466
    %v12563 = vpack.c.bf16 %v12499, %v12467
    %v12564 = vpack.c.bf16 %v12500, %v12468
    %v12565 = vpack.c.bf16 %v12501, %v12469
    %v12566 = vpack.c.bf16 %v12502, %v12470
    %v12567 = vpack.c.bf16 %v12503, %v12471
    %v12568 = vpack.c.bf16 %v12504, %v12472
    %v12569 = vpack.c.bf16 %v12505, %v12473
    %v12570 = vpack.c.bf16 %v12506, %v12474
    %v12571 = vpack.c.bf16 %v12507, %v12475
    %v12572 = vpack.c.bf16 %v12508, %v12476
    %v12573 = vpack.c.bf16 %v12509, %v12477
    %v12574 = vpack.c.bf16 %v12510, %v12478
    %v12575 = vpack.c.bf16 %v12511, %v12479
    %v12576 = vpack.c.bf16 %v12512, %v12480
    %v12577 = vpack.c.bf16 %v12513, %v12481
    %v12578 = vpack.c.bf16 %v12514, %v12482
    %v12579 = vpack.c.bf16 %v12515, %v12483
    %v12580 = vpack.c.bf16 %v12516, %v12484
    %v12581 = vpack.c.bf16 %v12517, %v12485
    %v12582 = vpack.c.bf16 %v12518, %v12486
    %v12583 = vpack.c.bf16 %v12519, %v12487
    %v12584 = vpack.c.bf16 %v12520, %v12488
    %v12585 = vpack.c.bf16 %v12521, %v12489
    %v12586 = vpack.c.bf16 %v12522, %v12490
    %v12587 = vpack.c.bf16 %v12523, %v12491
    %v12588 = vld [vmem:[#allocation14] sm:$0xff]
    %v12589 = vld [vmem:[#allocation14 + $0x8] sm:$0xff]
    %v12590 = vld [vmem:[#allocation14 + $0x10] sm:$0xff]
    %v12591 = vld [vmem:[#allocation14 + $0x18] sm:$0xff]
    %v12592 = vld [vmem:[#allocation14 + $0x20] sm:$0xff]
    %v12593 = vld [vmem:[#allocation14 + $0x28] sm:$0xff]
    %v12594 = vld [vmem:[#allocation14 + $0x30] sm:$0xff]
    %v12595 = vld [vmem:[#allocation14 + $0x38] sm:$0xff]
    %v12596 = vld [vmem:[#allocation14 + $0x40] sm:$0xff]
    %v12597 = vld [vmem:[#allocation14 + $0x48] sm:$0xff]
    %v12598 = vld [vmem:[#allocation14 + $0x50] sm:$0xff]
    %v12599 = vld [vmem:[#allocation14 + $0x58] sm:$0xff]
    %v12600 = vld [vmem:[#allocation14 + $0x60] sm:$0xff]
    %v12601 = vld [vmem:[#allocation14 + $0x68] sm:$0xff]
    %v12602 = vld [vmem:[#allocation14 + $0x70] sm:$0xff]
    %v12603 = vld [vmem:[#allocation14 + $0x78] sm:$0xff]
    %v12604 = vld [vmem:[#allocation14 + $0x80] sm:$0xff]
    %v12605 = vld [vmem:[#allocation14 + $0x88] sm:$0xff]
    %v12606 = vld [vmem:[#allocation14 + $0x90] sm:$0xff]
    %v12607 = vld [vmem:[#allocation14 + $0x98] sm:$0xff]
    %v12608 = vld [vmem:[#allocation14 + $0xa0] sm:$0xff]
    %v12609 = vld [vmem:[#allocation14 + $0xa8] sm:$0xff]
    %v12610 = vld [vmem:[#allocation14 + $0xb0] sm:$0xff]
    %v12611 = vld [vmem:[#allocation14 + $0xb8] sm:$0xff]
    %v12612 = vld [vmem:[#allocation14 + $0xc0] sm:$0xff]
    %v12613 = vld [vmem:[#allocation14 + $0xc8] sm:$0xff]
    %v12614 = vld [vmem:[#allocation14 + $0xd0] sm:$0xff]
    %v12615 = vld [vmem:[#allocation14 + $0xd8] sm:$0xff]
    %v12616 = vld [vmem:[#allocation14 + $0xe0] sm:$0xff]
    %v12617 = vld [vmem:[#allocation14 + $0xe8] sm:$0xff]
    %v12618 = vld [vmem:[#allocation14 + $0xf0] sm:$0xff]
    %v12619 = vld [vmem:[#allocation14 + $0xf8] sm:$0xff]
    %v12620 = vld [vmem:[%s11] sm:$0x1]
    %v12622 = vlaneseq
    %v12623 = vshrl.u32 %v12622, 7
    %v12624 = vsub.s32 0, %v12623
    %v12625 = vrot.slane %v12620, %v12624
    %v12659 = vunpack.c.l.b16 %v12588
    %v12660 = vunpack.c.h.b16 %v12588
    %v12661 = vunpack.c.l.b16 %v12589
    %v12662 = vunpack.c.h.b16 %v12589
    %v12663 = vunpack.c.l.b16 %v12590
    %v12664 = vunpack.c.h.b16 %v12590
    %v12665 = vunpack.c.l.b16 %v12591
    %v12666 = vunpack.c.h.b16 %v12591
    %v12667 = vunpack.c.l.b16 %v12592
    %v12668 = vunpack.c.h.b16 %v12592
    %v12669 = vunpack.c.l.b16 %v12593
    %v12670 = vunpack.c.h.b16 %v12593
    %v12671 = vunpack.c.l.b16 %v12594
    %v12672 = vunpack.c.h.b16 %v12594
    %v12673 = vunpack.c.l.b16 %v12595
    %v12674 = vunpack.c.h.b16 %v12595
    %v12675 = vunpack.c.l.b16 %v12596
    %v12676 = vunpack.c.h.b16 %v12596
    %v12677 = vunpack.c.l.b16 %v12597
    %v12678 = vunpack.c.h.b16 %v12597
    %v12679 = vunpack.c.l.b16 %v12598
    %v12680 = vunpack.c.h.b16 %v12598
    %v12681 = vunpack.c.l.b16 %v12599
    %v12682 = vunpack.c.h.b16 %v12599
    %v12683 = vunpack.c.l.b16 %v12600
    %v12684 = vunpack.c.h.b16 %v12600
    %v12685 = vunpack.c.l.b16 %v12601
    %v12686 = vunpack.c.h.b16 %v12601
    %v12687 = vunpack.c.l.b16 %v12602
    %v12688 = vunpack.c.h.b16 %v12602
    %v12689 = vunpack.c.l.b16 %v12603
    %v12690 = vunpack.c.h.b16 %v12603
    %v12691 = vunpack.c.l.b16 %v12604
    %v12692 = vunpack.c.h.b16 %v12604
    %v12693 = vunpack.c.l.b16 %v12605
    %v12694 = vunpack.c.h.b16 %v12605
    %v12695 = vunpack.c.l.b16 %v12606
    %v12696 = vunpack.c.h.b16 %v12606
    %v12697 = vunpack.c.l.b16 %v12607
    %v12698 = vunpack.c.h.b16 %v12607
    %v12699 = vunpack.c.l.b16 %v12608
    %v12700 = vunpack.c.h.b16 %v12608
    %v12701 = vunpack.c.l.b16 %v12609
    %v12702 = vunpack.c.h.b16 %v12609
    %v12703 = vunpack.c.l.b16 %v12610
    %v12704 = vunpack.c.h.b16 %v12610
    %v12705 = vunpack.c.l.b16 %v12611
    %v12706 = vunpack.c.h.b16 %v12611
    %v12707 = vunpack.c.l.b16 %v12612
    %v12708 = vunpack.c.h.b16 %v12612
    %v12709 = vunpack.c.l.b16 %v12613
    %v12710 = vunpack.c.h.b16 %v12613
    %v12711 = vunpack.c.l.b16 %v12614
    %v12712 = vunpack.c.h.b16 %v12614
    %v12713 = vunpack.c.l.b16 %v12615
    %v12714 = vunpack.c.h.b16 %v12615
    %v12715 = vunpack.c.l.b16 %v12616
    %v12716 = vunpack.c.h.b16 %v12616
    %v12717 = vunpack.c.l.b16 %v12617
    %v12718 = vunpack.c.h.b16 %v12617
    %v12719 = vunpack.c.l.b16 %v12618
    %v12720 = vunpack.c.h.b16 %v12618
    %v12721 = vunpack.c.l.b16 %v12619
    %v12722 = vunpack.c.h.b16 %v12619
    %v12723 = vpack.c.b16 %v12691, %v12659
    %v12724 = vpack.c.b16 %v12692, %v12660
    %v12725 = vpack.c.b16 %v12693, %v12661
    %v12726 = vpack.c.b16 %v12694, %v12662
    %v12727 = vpack.c.b16 %v12695, %v12663
    %v12728 = vpack.c.b16 %v12696, %v12664
    %v12729 = vpack.c.b16 %v12697, %v12665
    %v12730 = vpack.c.b16 %v12698, %v12666
    %v12731 = vpack.c.b16 %v12699, %v12667
    %v12732 = vpack.c.b16 %v12700, %v12668
    %v12733 = vpack.c.b16 %v12701, %v12669
    %v12734 = vpack.c.b16 %v12702, %v12670
    %v12735 = vpack.c.b16 %v12703, %v12671
    %v12736 = vpack.c.b16 %v12704, %v12672
    %v12737 = vpack.c.b16 %v12705, %v12673
    %v12738 = vpack.c.b16 %v12706, %v12674
    %v12739 = vpack.c.b16 %v12707, %v12675
    %v12740 = vpack.c.b16 %v12708, %v12676
    %v12741 = vpack.c.b16 %v12709, %v12677
    %v12742 = vpack.c.b16 %v12710, %v12678
    %v12743 = vpack.c.b16 %v12711, %v12679
    %v12744 = vpack.c.b16 %v12712, %v12680
    %v12745 = vpack.c.b16 %v12713, %v12681
    %v12746 = vpack.c.b16 %v12714, %v12682
    %v12747 = vpack.c.b16 %v12715, %v12683
    %v12748 = vpack.c.b16 %v12716, %v12684
    %v12749 = vpack.c.b16 %v12717, %v12685
    %v12750 = vpack.c.b16 %v12718, %v12686
    %v12751 = vpack.c.b16 %v12719, %v12687
    %v12752 = vpack.c.b16 %v12720, %v12688
    %v12753 = vpack.c.b16 %v12721, %v12689
    %v12754 = vpack.c.b16 %v12722, %v12690
    %12787 = vmatprep.subr.bf16.mxu0 %v12724
    %12788 = vmatpush1.bf16.xpose.msra.mxu0 %v12723
    %12789 = vmatprep.subr.bf16.mxu0 0
    %12790 = vmatpush1.bf16.xpose.msra.mxu0 0
    %12791 = vmatprep.subr.bf16.mxu0 0
    %12792 = vmatpush1.bf16.xpose.msra.mxu0 0
    %12793 = vmatprep.subr.bf16.mxu0 0
    %12794 = vmatpush1.bf16.xpose.msra.mxu0 0
    %12795 = vmatprep.subr.bf16.mxu0 0
    %12796 = vmatpush1.bf16.xpose.msra.mxu0 0
    %12797 = vmatprep.subr.bf16.mxu0 0
    %12798 = vmatpush1.bf16.xpose.msra.mxu0 0
    %12799 = vmatprep.subr.bf16.mxu0 0
    %12800 = vmatpush1.bf16.xpose.msra.mxu0 0
    %12801 = vmatprep.subr.bf16.mxu0 0
    %12802 = vmatpush1.bf16.xpose.msra.mxu0 0
    %12803 = vmatprep.subr.bf16.mxu0 0
    %12804 = vmatpush1.bf16.xpose.msra.mxu0 0
    %12805 = vmatprep.subr.bf16.mxu0 0
    %12806 = vmatpush1.bf16.xpose.msra.mxu0 0
    %12807 = vmatprep.subr.bf16.mxu0 0
    %12808 = vmatpush1.bf16.xpose.msra.mxu0 0
    %12809 = vmatprep.subr.bf16.mxu0 0
    %12810 = vmatpush1.bf16.xpose.msra.mxu0 0
    %12811 = vmatprep.subr.bf16.mxu0 0
    %12812 = vmatpush1.bf16.xpose.msra.mxu0 0
    %12813 = vmatprep.subr.bf16.mxu0 0
    %12814 = vmatpush1.bf16.xpose.msra.mxu0 0
    %12815 = vmatprep.subr.bf16.mxu0 0
    %12816 = vmatpush1.bf16.xpose.msra.mxu0 0
    %12817 = vmatprep.subr.bf16.mxu0 0
    %12818 = vmatpush1.bf16.xpose.msra.mxu0 0
    %12819 = vmatprep.mubr.bf16.mxu0 %v12525
    %12820 = vmatmul.mubr.bf16.gmra.mrb[0].mxu0 %v12524
    %v12821 = vpop.f32.mrb[0].mxu0
    %v12822 = vadd.f32 %v12625, %v12821
    %v12823 = vpop.f32.mrb[0].mxu0
    %v12824 = vpop.f32.mrb[0].mxu0
    %v12825 = vadd.f32 %v12625, %v12824
    %v12826 = vpop.f32.mrb[0].mxu0
    %12827 = vmatprep.mubr.bf16.mxu0 %v12557
    %12828 = vmatmul.mubr.bf16.gmra.mrb[0].mxu0 %v12556
    %v12829 = vpop.f32.mrb[0].mxu0
    %v12830 = vadd.f32 %v12625, %v12829
    %v12831 = vpop.f32.mrb[0].mxu0
    %v12832 = vpop.f32.mrb[0].mxu0
    %v12833 = vadd.f32 %v12625, %v12832
    %v12834 = vpop.f32.mrb[0].mxu0
    %12835 = vdwg.mxu0
    %12836 = vmatprep.subr.bf16.mxu0 %v12726
    %12837 = vmatpush1.bf16.xpose.msra.mxu0 %v12725
    %12838 = vmatprep.subr.bf16.mxu0 0
    %12839 = vmatpush1.bf16.xpose.msra.mxu0 0
    %12840 = vmatprep.subr.bf16.mxu0 0
    %12841 = vmatpush1.bf16.xpose.msra.mxu0 0
    %12842 = vmatprep.subr.bf16.mxu0 0
    %12843 = vmatpush1.bf16.xpose.msra.mxu0 0
    %12844 = vmatprep.subr.bf16.mxu0 0
    %12845 = vmatpush1.bf16.xpose.msra.mxu0 0
    %12846 = vmatprep.subr.bf16.mxu0 0
    %12847 = vmatpush1.bf16.xpose.msra.mxu0 0
    %12848 = vmatprep.subr.bf16.mxu0 0
    %12849 = vmatpush1.bf16.xpose.msra.mxu0 0
    %12850 = vmatprep.subr.bf16.mxu0 0
    %12851 = vmatpush1.bf16.xpose.msra.mxu0 0
    %12852 = vmatprep.subr.bf16.mxu0 0
    %12853 = vmatpush1.bf16.xpose.msra.mxu0 0
    %12854 = vmatprep.subr.bf16.mxu0 0
    %12855 = vmatpush1.bf16.xpose.msra.mxu0 0
    %12856 = vmatprep.subr.bf16.mxu0 0
    %12857 = vmatpush1.bf16.xpose.msra.mxu0 0
    %12858 = vmatprep.subr.bf16.mxu0 0
    %12859 = vmatpush1.bf16.xpose.msra.mxu0 0
    %12860 = vmatprep.subr.bf16.mxu0 0
    %12861 = vmatpush1.bf16.xpose.msra.mxu0 0
    %12862 = vmatprep.subr.bf16.mxu0 0
    %12863 = vmatpush1.bf16.xpose.msra.mxu0 0
    %12864 = vmatprep.subr.bf16.mxu0 0
    %12865 = vmatpush1.bf16.xpose.msra.mxu0 0
    %12866 = vmatprep.subr.bf16.mxu0 0
    %12867 = vmatpush1.bf16.xpose.msra.mxu0 0
    %12868 = vmatprep.mubr.bf16.mxu0 %v12527
    %12869 = vmatmul.mubr.bf16.gmra.mrb[0].mxu0 %v12526
    %v12870 = vpop.f32.mrb[0].mxu0
    %v12871 = vadd.f32 %v12822, %v12870
    %v12872 = vpop.f32.mrb[0].mxu0
    %v12873 = vpop.f32.mrb[0].mxu0
    %v12874 = vadd.f32 %v12825, %v12873
    %v12875 = vpop.f32.mrb[0].mxu0
    %12876 = vmatprep.mubr.bf16.mxu0 %v12559
    %12877 = vmatmul.mubr.bf16.gmra.mrb[0].mxu0 %v12558
    %v12878 = vpop.f32.mrb[0].mxu0
    %v12879 = vadd.f32 %v12830, %v12878
    %v12880 = vpop.f32.mrb[0].mxu0
    %v12881 = vpop.f32.mrb[0].mxu0
    %v12882 = vadd.f32 %v12833, %v12881
    %v12883 = vpop.f32.mrb[0].mxu0
    %12884 = vdwg.mxu0
    %12885 = vmatprep.subr.bf16.mxu0 %v12728
    %12886 = vmatpush1.bf16.xpose.msra.mxu0 %v12727
    %12887 = vmatprep.subr.bf16.mxu0 0
    %12888 = vmatpush1.bf16.xpose.msra.mxu0 0
    %12889 = vmatprep.subr.bf16.mxu0 0
    %12890 = vmatpush1.bf16.xpose.msra.mxu0 0
    %12891 = vmatprep.subr.bf16.mxu0 0
    %12892 = vmatpush1.bf16.xpose.msra.mxu0 0
    %12893 = vmatprep.subr.bf16.mxu0 0
    %12894 = vmatpush1.bf16.xpose.msra.mxu0 0
    %12895 = vmatprep.subr.bf16.mxu0 0
    %12896 = vmatpush1.bf16.xpose.msra.mxu0 0
    %12897 = vmatprep.subr.bf16.mxu0 0
    %12898 = vmatpush1.bf16.xpose.msra.mxu0 0
    %12899 = vmatprep.subr.bf16.mxu0 0
    %12900 = vmatpush1.bf16.xpose.msra.mxu0 0
    %12901 = vmatprep.subr.bf16.mxu0 0
    %12902 = vmatpush1.bf16.xpose.msra.mxu0 0
    %12903 = vmatprep.subr.bf16.mxu0 0
    %12904 = vmatpush1.bf16.xpose.msra.mxu0 0
    %12905 = vmatprep.subr.bf16.mxu0 0
    %12906 = vmatpush1.bf16.xpose.msra.mxu0 0
    %12907 = vmatprep.subr.bf16.mxu0 0
    %12908 = vmatpush1.bf16.xpose.msra.mxu0 0
    %12909 = vmatprep.subr.bf16.mxu0 0
    %12910 = vmatpush1.bf16.xpose.msra.mxu0 0
    %12911 = vmatprep.subr.bf16.mxu0 0
    %12912 = vmatpush1.bf16.xpose.msra.mxu0 0
    %12913 = vmatprep.subr.bf16.mxu0 0
    %12914 = vmatpush1.bf16.xpose.msra.mxu0 0
    %12915 = vmatprep.subr.bf16.mxu0 0
    %12916 = vmatpush1.bf16.xpose.msra.mxu0 0
    %12917 = vmatprep.mubr.bf16.mxu0 %v12529
    %12918 = vmatmul.mubr.bf16.gmra.mrb[0].mxu0 %v12528
    %v12919 = vpop.f32.mrb[0].mxu0
    %v12920 = vadd.f32 %v12871, %v12919
    %v12921 = vpop.f32.mrb[0].mxu0
    %v12922 = vpop.f32.mrb[0].mxu0
    %v12923 = vadd.f32 %v12874, %v12922
    %v12924 = vpop.f32.mrb[0].mxu0
    %12925 = vmatprep.mubr.bf16.mxu0 %v12561
    %12926 = vmatmul.mubr.bf16.gmra.mrb[0].mxu0 %v12560
    %v12927 = vpop.f32.mrb[0].mxu0
    %v12928 = vadd.f32 %v12879, %v12927
    %v12929 = vpop.f32.mrb[0].mxu0
    %v12930 = vpop.f32.mrb[0].mxu0
    %v12931 = vadd.f32 %v12882, %v12930
    %v12932 = vpop.f32.mrb[0].mxu0
    %12933 = vdwg.mxu0
    %12934 = vmatprep.subr.bf16.mxu0 %v12730
    %12935 = vmatpush1.bf16.xpose.msra.mxu0 %v12729
    %12936 = vmatprep.subr.bf16.mxu0 0
    %12937 = vmatpush1.bf16.xpose.msra.mxu0 0
    %12938 = vmatprep.subr.bf16.mxu0 0
    %12939 = vmatpush1.bf16.xpose.msra.mxu0 0
    %12940 = vmatprep.subr.bf16.mxu0 0
    %12941 = vmatpush1.bf16.xpose.msra.mxu0 0
    %12942 = vmatprep.subr.bf16.mxu0 0
    %12943 = vmatpush1.bf16.xpose.msra.mxu0 0
    %12944 = vmatprep.subr.bf16.mxu0 0
    %12945 = vmatpush1.bf16.xpose.msra.mxu0 0
    %12946 = vmatprep.subr.bf16.mxu0 0
    %12947 = vmatpush1.bf16.xpose.msra.mxu0 0
    %12948 = vmatprep.subr.bf16.mxu0 0
    %12949 = vmatpush1.bf16.xpose.msra.mxu0 0
    %12950 = vmatprep.subr.bf16.mxu0 0
    %12951 = vmatpush1.bf16.xpose.msra.mxu0 0
    %12952 = vmatprep.subr.bf16.mxu0 0
    %12953 = vmatpush1.bf16.xpose.msra.mxu0 0
    %12954 = vmatprep.subr.bf16.mxu0 0
    %12955 = vmatpush1.bf16.xpose.msra.mxu0 0
    %12956 = vmatprep.subr.bf16.mxu0 0
    %12957 = vmatpush1.bf16.xpose.msra.mxu0 0
    %12958 = vmatprep.subr.bf16.mxu0 0
    %12959 = vmatpush1.bf16.xpose.msra.mxu0 0
    %12960 = vmatprep.subr.bf16.mxu0 0
    %12961 = vmatpush1.bf16.xpose.msra.mxu0 0
    %12962 = vmatprep.subr.bf16.mxu0 0
    %12963 = vmatpush1.bf16.xpose.msra.mxu0 0
    %12964 = vmatprep.subr.bf16.mxu0 0
    %12965 = vmatpush1.bf16.xpose.msra.mxu0 0
    %12966 = vmatprep.mubr.bf16.mxu0 %v12531
    %12967 = vmatmul.mubr.bf16.gmra.mrb[0].mxu0 %v12530
    %v12968 = vpop.f32.mrb[0].mxu0
    %v12969 = vadd.f32 %v12920, %v12968
    %v12970 = vpop.f32.mrb[0].mxu0
    %v12971 = vpop.f32.mrb[0].mxu0
    %v12972 = vadd.f32 %v12923, %v12971
    %v12973 = vpop.f32.mrb[0].mxu0
    %12974 = vmatprep.mubr.bf16.mxu0 %v12563
    %12975 = vmatmul.mubr.bf16.gmra.mrb[0].mxu0 %v12562
    %v12976 = vpop.f32.mrb[0].mxu0
    %v12977 = vadd.f32 %v12928, %v12976
    %v12978 = vpop.f32.mrb[0].mxu0
    %v12979 = vpop.f32.mrb[0].mxu0
    %v12980 = vadd.f32 %v12931, %v12979
    %v12981 = vpop.f32.mrb[0].mxu0
    %12982 = vdwg.mxu0
    %12983 = vmatprep.subr.bf16.mxu0 %v12732
    %12984 = vmatpush1.bf16.xpose.msra.mxu0 %v12731
    %12985 = vmatprep.subr.bf16.mxu0 0
    %12986 = vmatpush1.bf16.xpose.msra.mxu0 0
    %12987 = vmatprep.subr.bf16.mxu0 0
    %12988 = vmatpush1.bf16.xpose.msra.mxu0 0
    %12989 = vmatprep.subr.bf16.mxu0 0
    %12990 = vmatpush1.bf16.xpose.msra.mxu0 0
    %12991 = vmatprep.subr.bf16.mxu0 0
    %12992 = vmatpush1.bf16.xpose.msra.mxu0 0
    %12993 = vmatprep.subr.bf16.mxu0 0
    %12994 = vmatpush1.bf16.xpose.msra.mxu0 0
    %12995 = vmatprep.subr.bf16.mxu0 0
    %12996 = vmatpush1.bf16.xpose.msra.mxu0 0
    %12997 = vmatprep.subr.bf16.mxu0 0
    %12998 = vmatpush1.bf16.xpose.msra.mxu0 0
    %12999 = vmatprep.subr.bf16.mxu0 0
    %13000 = vmatpush1.bf16.xpose.msra.mxu0 0
    %13001 = vmatprep.subr.bf16.mxu0 0
    %13002 = vmatpush1.bf16.xpose.msra.mxu0 0
    %13003 = vmatprep.subr.bf16.mxu0 0
    %13004 = vmatpush1.bf16.xpose.msra.mxu0 0
    %13005 = vmatprep.subr.bf16.mxu0 0
    %13006 = vmatpush1.bf16.xpose.msra.mxu0 0
    %13007 = vmatprep.subr.bf16.mxu0 0
    %13008 = vmatpush1.bf16.xpose.msra.mxu0 0
    %13009 = vmatprep.subr.bf16.mxu0 0
    %13010 = vmatpush1.bf16.xpose.msra.mxu0 0
    %13011 = vmatprep.subr.bf16.mxu0 0
    %13012 = vmatpush1.bf16.xpose.msra.mxu0 0
    %13013 = vmatprep.subr.bf16.mxu0 0
    %13014 = vmatpush1.bf16.xpose.msra.mxu0 0
    %13015 = vmatprep.mubr.bf16.mxu0 %v12533
    %13016 = vmatmul.mubr.bf16.gmra.mrb[0].mxu0 %v12532
    %v13017 = vpop.f32.mrb[0].mxu0
    %v13018 = vadd.f32 %v12969, %v13017
    %v13019 = vpop.f32.mrb[0].mxu0
    %v13020 = vpop.f32.mrb[0].mxu0
    %v13021 = vadd.f32 %v12972, %v13020
    %v13022 = vpop.f32.mrb[0].mxu0
    %13023 = vmatprep.mubr.bf16.mxu0 %v12565
    %13024 = vmatmul.mubr.bf16.gmra.mrb[0].mxu0 %v12564
    %v13025 = vpop.f32.mrb[0].mxu0
    %v13026 = vadd.f32 %v12977, %v13025
    %v13027 = vpop.f32.mrb[0].mxu0
    %v13028 = vpop.f32.mrb[0].mxu0
    %v13029 = vadd.f32 %v12980, %v13028
    %v13030 = vpop.f32.mrb[0].mxu0
    %13031 = vdwg.mxu0
    %13032 = vmatprep.subr.bf16.mxu0 %v12734
    %13033 = vmatpush1.bf16.xpose.msra.mxu0 %v12733
    %13034 = vmatprep.subr.bf16.mxu0 0
    %13035 = vmatpush1.bf16.xpose.msra.mxu0 0
    %13036 = vmatprep.subr.bf16.mxu0 0
    %13037 = vmatpush1.bf16.xpose.msra.mxu0 0
    %13038 = vmatprep.subr.bf16.mxu0 0
    %13039 = vmatpush1.bf16.xpose.msra.mxu0 0
    %13040 = vmatprep.subr.bf16.mxu0 0
    %13041 = vmatpush1.bf16.xpose.msra.mxu0 0
    %13042 = vmatprep.subr.bf16.mxu0 0
    %13043 = vmatpush1.bf16.xpose.msra.mxu0 0
    %13044 = vmatprep.subr.bf16.mxu0 0
    %13045 = vmatpush1.bf16.xpose.msra.mxu0 0
    %13046 = vmatprep.subr.bf16.mxu0 0
    %13047 = vmatpush1.bf16.xpose.msra.mxu0 0
    %13048 = vmatprep.subr.bf16.mxu0 0
    %13049 = vmatpush1.bf16.xpose.msra.mxu0 0
    %13050 = vmatprep.subr.bf16.mxu0 0
    %13051 = vmatpush1.bf16.xpose.msra.mxu0 0
    %13052 = vmatprep.subr.bf16.mxu0 0
    %13053 = vmatpush1.bf16.xpose.msra.mxu0 0
    %13054 = vmatprep.subr.bf16.mxu0 0
    %13055 = vmatpush1.bf16.xpose.msra.mxu0 0
    %13056 = vmatprep.subr.bf16.mxu0 0
    %13057 = vmatpush1.bf16.xpose.msra.mxu0 0
    %13058 = vmatprep.subr.bf16.mxu0 0
    %13059 = vmatpush1.bf16.xpose.msra.mxu0 0
    %13060 = vmatprep.subr.bf16.mxu0 0
    %13061 = vmatpush1.bf16.xpose.msra.mxu0 0
    %13062 = vmatprep.subr.bf16.mxu0 0
    %13063 = vmatpush1.bf16.xpose.msra.mxu0 0
    %13064 = vmatprep.mubr.bf16.mxu0 %v12535
    %13065 = vmatmul.mubr.bf16.gmra.mrb[0].mxu0 %v12534
    %v13066 = vpop.f32.mrb[0].mxu0
    %v13067 = vadd.f32 %v13018, %v13066
    %v13068 = vpop.f32.mrb[0].mxu0
    %v13069 = vpop.f32.mrb[0].mxu0
    %v13070 = vadd.f32 %v13021, %v13069
    %v13071 = vpop.f32.mrb[0].mxu0
    %13072 = vmatprep.mubr.bf16.mxu0 %v12567
    %13073 = vmatmul.mubr.bf16.gmra.mrb[0].mxu0 %v12566
    %v13074 = vpop.f32.mrb[0].mxu0
    %v13075 = vadd.f32 %v13026, %v13074
    %v13076 = vpop.f32.mrb[0].mxu0
    %v13077 = vpop.f32.mrb[0].mxu0
    %v13078 = vadd.f32 %v13029, %v13077
    %v13079 = vpop.f32.mrb[0].mxu0
    %13080 = vdwg.mxu0
    %13081 = vmatprep.subr.bf16.mxu0 %v12736
    %13082 = vmatpush1.bf16.xpose.msra.mxu0 %v12735
    %13083 = vmatprep.subr.bf16.mxu0 0
    %13084 = vmatpush1.bf16.xpose.msra.mxu0 0
    %13085 = vmatprep.subr.bf16.mxu0 0
    %13086 = vmatpush1.bf16.xpose.msra.mxu0 0
    %13087 = vmatprep.subr.bf16.mxu0 0
    %13088 = vmatpush1.bf16.xpose.msra.mxu0 0
    %13089 = vmatprep.subr.bf16.mxu0 0
    %13090 = vmatpush1.bf16.xpose.msra.mxu0 0
    %13091 = vmatprep.subr.bf16.mxu0 0
    %13092 = vmatpush1.bf16.xpose.msra.mxu0 0
    %13093 = vmatprep.subr.bf16.mxu0 0
    %13094 = vmatpush1.bf16.xpose.msra.mxu0 0
    %13095 = vmatprep.subr.bf16.mxu0 0
    %13096 = vmatpush1.bf16.xpose.msra.mxu0 0
    %13097 = vmatprep.subr.bf16.mxu0 0
    %13098 = vmatpush1.bf16.xpose.msra.mxu0 0
    %13099 = vmatprep.subr.bf16.mxu0 0
    %13100 = vmatpush1.bf16.xpose.msra.mxu0 0
    %13101 = vmatprep.subr.bf16.mxu0 0
    %13102 = vmatpush1.bf16.xpose.msra.mxu0 0
    %13103 = vmatprep.subr.bf16.mxu0 0
    %13104 = vmatpush1.bf16.xpose.msra.mxu0 0
    %13105 = vmatprep.subr.bf16.mxu0 0
    %13106 = vmatpush1.bf16.xpose.msra.mxu0 0
    %13107 = vmatprep.subr.bf16.mxu0 0
    %13108 = vmatpush1.bf16.xpose.msra.mxu0 0
    %13109 = vmatprep.subr.bf16.mxu0 0
    %13110 = vmatpush1.bf16.xpose.msra.mxu0 0
    %13111 = vmatprep.subr.bf16.mxu0 0
    %13112 = vmatpush1.bf16.xpose.msra.mxu0 0
    %13113 = vmatprep.mubr.bf16.mxu0 %v12537
    %13114 = vmatmul.mubr.bf16.gmra.mrb[0].mxu0 %v12536
    %v13115 = vpop.f32.mrb[0].mxu0
    %v13116 = vadd.f32 %v13067, %v13115
    %v13117 = vpop.f32.mrb[0].mxu0
    %v13118 = vpop.f32.mrb[0].mxu0
    %v13119 = vadd.f32 %v13070, %v13118
    %v13120 = vpop.f32.mrb[0].mxu0
    %13121 = vmatprep.mubr.bf16.mxu0 %v12569
    %13122 = vmatmul.mubr.bf16.gmra.mrb[0].mxu0 %v12568
    %v13123 = vpop.f32.mrb[0].mxu0
    %v13124 = vadd.f32 %v13075, %v13123
    %v13125 = vpop.f32.mrb[0].mxu0
    %v13126 = vpop.f32.mrb[0].mxu0
    %v13127 = vadd.f32 %v13078, %v13126
    %v13128 = vpop.f32.mrb[0].mxu0
    %13129 = vdwg.mxu0
    %13130 = vmatprep.subr.bf16.mxu0 %v12738
    %13131 = vmatpush1.bf16.xpose.msra.mxu0 %v12737
    %13132 = vmatprep.subr.bf16.mxu0 0
    %13133 = vmatpush1.bf16.xpose.msra.mxu0 0
    %13134 = vmatprep.subr.bf16.mxu0 0
    %13135 = vmatpush1.bf16.xpose.msra.mxu0 0
    %13136 = vmatprep.subr.bf16.mxu0 0
    %13137 = vmatpush1.bf16.xpose.msra.mxu0 0
    %13138 = vmatprep.subr.bf16.mxu0 0
    %13139 = vmatpush1.bf16.xpose.msra.mxu0 0
    %13140 = vmatprep.subr.bf16.mxu0 0
    %13141 = vmatpush1.bf16.xpose.msra.mxu0 0
    %13142 = vmatprep.subr.bf16.mxu0 0
    %13143 = vmatpush1.bf16.xpose.msra.mxu0 0
    %13144 = vmatprep.subr.bf16.mxu0 0
    %13145 = vmatpush1.bf16.xpose.msra.mxu0 0
    %13146 = vmatprep.subr.bf16.mxu0 0
    %13147 = vmatpush1.bf16.xpose.msra.mxu0 0
    %13148 = vmatprep.subr.bf16.mxu0 0
    %13149 = vmatpush1.bf16.xpose.msra.mxu0 0
    %13150 = vmatprep.subr.bf16.mxu0 0
    %13151 = vmatpush1.bf16.xpose.msra.mxu0 0
    %13152 = vmatprep.subr.bf16.mxu0 0
    %13153 = vmatpush1.bf16.xpose.msra.mxu0 0
    %13154 = vmatprep.subr.bf16.mxu0 0
    %13155 = vmatpush1.bf16.xpose.msra.mxu0 0
    %13156 = vmatprep.subr.bf16.mxu0 0
    %13157 = vmatpush1.bf16.xpose.msra.mxu0 0
    %13158 = vmatprep.subr.bf16.mxu0 0
    %13159 = vmatpush1.bf16.xpose.msra.mxu0 0
    %13160 = vmatprep.subr.bf16.mxu0 0
    %13161 = vmatpush1.bf16.xpose.msra.mxu0 0
    %13162 = vmatprep.mubr.bf16.mxu0 %v12539
    %13163 = vmatmul.mubr.bf16.gmra.mrb[0].mxu0 %v12538
    %v13164 = vpop.f32.mrb[0].mxu0
    %v13165 = vadd.f32 %v13116, %v13164
    %v13166 = vpop.f32.mrb[0].mxu0
    %v13167 = vpop.f32.mrb[0].mxu0
    %v13168 = vadd.f32 %v13119, %v13167
    %v13169 = vpop.f32.mrb[0].mxu0
    %13170 = vmatprep.mubr.bf16.mxu0 %v12571
    %13171 = vmatmul.mubr.bf16.gmra.mrb[0].mxu0 %v12570
    %v13172 = vpop.f32.mrb[0].mxu0
    %v13173 = vadd.f32 %v13124, %v13172
    %v13174 = vpop.f32.mrb[0].mxu0
    %v13175 = vpop.f32.mrb[0].mxu0
    %v13176 = vadd.f32 %v13127, %v13175
    %v13177 = vpop.f32.mrb[0].mxu0
    %13178 = vdwg.mxu0
    %13179 = vmatprep.subr.bf16.mxu0 %v12740
    %13180 = vmatpush1.bf16.xpose.msra.mxu0 %v12739
    %13181 = vmatprep.subr.bf16.mxu0 0
    %13182 = vmatpush1.bf16.xpose.msra.mxu0 0
    %13183 = vmatprep.subr.bf16.mxu0 0
    %13184 = vmatpush1.bf16.xpose.msra.mxu0 0
    %13185 = vmatprep.subr.bf16.mxu0 0
    %13186 = vmatpush1.bf16.xpose.msra.mxu0 0
    %13187 = vmatprep.subr.bf16.mxu0 0
    %13188 = vmatpush1.bf16.xpose.msra.mxu0 0
    %13189 = vmatprep.subr.bf16.mxu0 0
    %13190 = vmatpush1.bf16.xpose.msra.mxu0 0
    %13191 = vmatprep.subr.bf16.mxu0 0
    %13192 = vmatpush1.bf16.xpose.msra.mxu0 0
    %13193 = vmatprep.subr.bf16.mxu0 0
    %13194 = vmatpush1.bf16.xpose.msra.mxu0 0
    %13195 = vmatprep.subr.bf16.mxu0 0
    %13196 = vmatpush1.bf16.xpose.msra.mxu0 0
    %13197 = vmatprep.subr.bf16.mxu0 0
    %13198 = vmatpush1.bf16.xpose.msra.mxu0 0
    %13199 = vmatprep.subr.bf16.mxu0 0
    %13200 = vmatpush1.bf16.xpose.msra.mxu0 0
    %13201 = vmatprep.subr.bf16.mxu0 0
    %13202 = vmatpush1.bf16.xpose.msra.mxu0 0
    %13203 = vmatprep.subr.bf16.mxu0 0
    %13204 = vmatpush1.bf16.xpose.msra.mxu0 0
    %13205 = vmatprep.subr.bf16.mxu0 0
    %13206 = vmatpush1.bf16.xpose.msra.mxu0 0
    %13207 = vmatprep.subr.bf16.mxu0 0
    %13208 = vmatpush1.bf16.xpose.msra.mxu0 0
    %13209 = vmatprep.subr.bf16.mxu0 0
    %13210 = vmatpush1.bf16.xpose.msra.mxu0 0
    %13211 = vmatprep.mubr.bf16.mxu0 %v12541
    %13212 = vmatmul.mubr.bf16.gmra.mrb[0].mxu0 %v12540
    %v13213 = vpop.f32.mrb[0].mxu0
    %v13214 = vadd.f32 %v13165, %v13213
    %v13215 = vpop.f32.mrb[0].mxu0
    %v13216 = vpop.f32.mrb[0].mxu0
    %v13217 = vadd.f32 %v13168, %v13216
    %v13218 = vpop.f32.mrb[0].mxu0
    %13219 = vmatprep.mubr.bf16.mxu0 %v12573
    %13220 = vmatmul.mubr.bf16.gmra.mrb[0].mxu0 %v12572
    %v13221 = vpop.f32.mrb[0].mxu0
    %v13222 = vadd.f32 %v13173, %v13221
    %v13223 = vpop.f32.mrb[0].mxu0
    %v13224 = vpop.f32.mrb[0].mxu0
    %v13225 = vadd.f32 %v13176, %v13224
    %v13226 = vpop.f32.mrb[0].mxu0
    %13227 = vdwg.mxu0
    %13228 = vmatprep.subr.bf16.mxu0 %v12742
    %13229 = vmatpush1.bf16.xpose.msra.mxu0 %v12741
    %13230 = vmatprep.subr.bf16.mxu0 0
    %13231 = vmatpush1.bf16.xpose.msra.mxu0 0
    %13232 = vmatprep.subr.bf16.mxu0 0
    %13233 = vmatpush1.bf16.xpose.msra.mxu0 0
    %13234 = vmatprep.subr.bf16.mxu0 0
    %13235 = vmatpush1.bf16.xpose.msra.mxu0 0
    %13236 = vmatprep.subr.bf16.mxu0 0
    %13237 = vmatpush1.bf16.xpose.msra.mxu0 0
    %13238 = vmatprep.subr.bf16.mxu0 0
    %13239 = vmatpush1.bf16.xpose.msra.mxu0 0
    %13240 = vmatprep.subr.bf16.mxu0 0
    %13241 = vmatpush1.bf16.xpose.msra.mxu0 0
    %13242 = vmatprep.subr.bf16.mxu0 0
    %13243 = vmatpush1.bf16.xpose.msra.mxu0 0
    %13244 = vmatprep.subr.bf16.mxu0 0
    %13245 = vmatpush1.bf16.xpose.msra.mxu0 0
    %13246 = vmatprep.subr.bf16.mxu0 0
    %13247 = vmatpush1.bf16.xpose.msra.mxu0 0
    %13248 = vmatprep.subr.bf16.mxu0 0
    %13249 = vmatpush1.bf16.xpose.msra.mxu0 0
    %13250 = vmatprep.subr.bf16.mxu0 0
    %13251 = vmatpush1.bf16.xpose.msra.mxu0 0
    %13252 = vmatprep.subr.bf16.mxu0 0
    %13253 = vmatpush1.bf16.xpose.msra.mxu0 0
    %13254 = vmatprep.subr.bf16.mxu0 0
    %13255 = vmatpush1.bf16.xpose.msra.mxu0 0
    %13256 = vmatprep.subr.bf16.mxu0 0
    %13257 = vmatpush1.bf16.xpose.msra.mxu0 0
    %13258 = vmatprep.subr.bf16.mxu0 0
    %13259 = vmatpush1.bf16.xpose.msra.mxu0 0
    %13260 = vmatprep.mubr.bf16.mxu0 %v12543
    %13261 = vmatmul.mubr.bf16.gmra.mrb[0].mxu0 %v12542
    %v13262 = vpop.f32.mrb[0].mxu0
    %v13263 = vadd.f32 %v13214, %v13262
    %v13264 = vpop.f32.mrb[0].mxu0
    %v13265 = vpop.f32.mrb[0].mxu0
    %v13266 = vadd.f32 %v13217, %v13265
    %v13267 = vpop.f32.mrb[0].mxu0
    %13268 = vmatprep.mubr.bf16.mxu0 %v12575
    %13269 = vmatmul.mubr.bf16.gmra.mrb[0].mxu0 %v12574
    %v13270 = vpop.f32.mrb[0].mxu0
    %v13271 = vadd.f32 %v13222, %v13270
    %v13272 = vpop.f32.mrb[0].mxu0
    %v13273 = vpop.f32.mrb[0].mxu0
    %v13274 = vadd.f32 %v13225, %v13273
    %v13275 = vpop.f32.mrb[0].mxu0
    %13276 = vdwg.mxu0
    %13277 = vmatprep.subr.bf16.mxu0 %v12744
    %13278 = vmatpush1.bf16.xpose.msra.mxu0 %v12743
    %13279 = vmatprep.subr.bf16.mxu0 0
    %13280 = vmatpush1.bf16.xpose.msra.mxu0 0
    %13281 = vmatprep.subr.bf16.mxu0 0
    %13282 = vmatpush1.bf16.xpose.msra.mxu0 0
    %13283 = vmatprep.subr.bf16.mxu0 0
    %13284 = vmatpush1.bf16.xpose.msra.mxu0 0
    %13285 = vmatprep.subr.bf16.mxu0 0
    %13286 = vmatpush1.bf16.xpose.msra.mxu0 0
    %13287 = vmatprep.subr.bf16.mxu0 0
    %13288 = vmatpush1.bf16.xpose.msra.mxu0 0
    %13289 = vmatprep.subr.bf16.mxu0 0
    %13290 = vmatpush1.bf16.xpose.msra.mxu0 0
    %13291 = vmatprep.subr.bf16.mxu0 0
    %13292 = vmatpush1.bf16.xpose.msra.mxu0 0
    %13293 = vmatprep.subr.bf16.mxu0 0
    %13294 = vmatpush1.bf16.xpose.msra.mxu0 0
    %13295 = vmatprep.subr.bf16.mxu0 0
    %13296 = vmatpush1.bf16.xpose.msra.mxu0 0
    %13297 = vmatprep.subr.bf16.mxu0 0
    %13298 = vmatpush1.bf16.xpose.msra.mxu0 0
    %13299 = vmatprep.subr.bf16.mxu0 0
    %13300 = vmatpush1.bf16.xpose.msra.mxu0 0
    %13301 = vmatprep.subr.bf16.mxu0 0
    %13302 = vmatpush1.bf16.xpose.msra.mxu0 0
    %13303 = vmatprep.subr.bf16.mxu0 0
    %13304 = vmatpush1.bf16.xpose.msra.mxu0 0
    %13305 = vmatprep.subr.bf16.mxu0 0
    %13306 = vmatpush1.bf16.xpose.msra.mxu0 0
    %13307 = vmatprep.subr.bf16.mxu0 0
    %13308 = vmatpush1.bf16.xpose.msra.mxu0 0
    %13309 = vmatprep.mubr.bf16.mxu0 %v12545
    %13310 = vmatmul.mubr.bf16.gmra.mrb[0].mxu0 %v12544
    %v13311 = vpop.f32.mrb[0].mxu0
    %v13312 = vadd.f32 %v13263, %v13311
    %v13313 = vpop.f32.mrb[0].mxu0
    %v13314 = vpop.f32.mrb[0].mxu0
    %v13315 = vadd.f32 %v13266, %v13314
    %v13316 = vpop.f32.mrb[0].mxu0
    %13317 = vmatprep.mubr.bf16.mxu0 %v12577
    %13318 = vmatmul.mubr.bf16.gmra.mrb[0].mxu0 %v12576
    %v13319 = vpop.f32.mrb[0].mxu0
    %v13320 = vadd.f32 %v13271, %v13319
    %v13321 = vpop.f32.mrb[0].mxu0
    %v13322 = vpop.f32.mrb[0].mxu0
    %v13323 = vadd.f32 %v13274, %v13322
    %v13324 = vpop.f32.mrb[0].mxu0
    %13325 = vdwg.mxu0
    %13326 = vmatprep.subr.bf16.mxu0 %v12746
    %13327 = vmatpush1.bf16.xpose.msra.mxu0 %v12745
    %13328 = vmatprep.subr.bf16.mxu0 0
    %13329 = vmatpush1.bf16.xpose.msra.mxu0 0
    %13330 = vmatprep.subr.bf16.mxu0 0
    %13331 = vmatpush1.bf16.xpose.msra.mxu0 0
    %13332 = vmatprep.subr.bf16.mxu0 0
    %13333 = vmatpush1.bf16.xpose.msra.mxu0 0
    %13334 = vmatprep.subr.bf16.mxu0 0
    %13335 = vmatpush1.bf16.xpose.msra.mxu0 0
    %13336 = vmatprep.subr.bf16.mxu0 0
    %13337 = vmatpush1.bf16.xpose.msra.mxu0 0
    %13338 = vmatprep.subr.bf16.mxu0 0
    %13339 = vmatpush1.bf16.xpose.msra.mxu0 0
    %13340 = vmatprep.subr.bf16.mxu0 0
    %13341 = vmatpush1.bf16.xpose.msra.mxu0 0
    %13342 = vmatprep.subr.bf16.mxu0 0
    %13343 = vmatpush1.bf16.xpose.msra.mxu0 0
    %13344 = vmatprep.subr.bf16.mxu0 0
    %13345 = vmatpush1.bf16.xpose.msra.mxu0 0
    %13346 = vmatprep.subr.bf16.mxu0 0
    %13347 = vmatpush1.bf16.xpose.msra.mxu0 0
    %13348 = vmatprep.subr.bf16.mxu0 0
    %13349 = vmatpush1.bf16.xpose.msra.mxu0 0
    %13350 = vmatprep.subr.bf16.mxu0 0
    %13351 = vmatpush1.bf16.xpose.msra.mxu0 0
    %13352 = vmatprep.subr.bf16.mxu0 0
    %13353 = vmatpush1.bf16.xpose.msra.mxu0 0
    %13354 = vmatprep.subr.bf16.mxu0 0
    %13355 = vmatpush1.bf16.xpose.msra.mxu0 0
    %13356 = vmatprep.subr.bf16.mxu0 0
    %13357 = vmatpush1.bf16.xpose.msra.mxu0 0
    %13358 = vmatprep.mubr.bf16.mxu0 %v12547
    %13359 = vmatmul.mubr.bf16.gmra.mrb[0].mxu0 %v12546
    %v13360 = vpop.f32.mrb[0].mxu0
    %v13361 = vadd.f32 %v13312, %v13360
    %v13362 = vpop.f32.mrb[0].mxu0
    %v13363 = vpop.f32.mrb[0].mxu0
    %v13364 = vadd.f32 %v13315, %v13363
    %v13365 = vpop.f32.mrb[0].mxu0
    %13366 = vmatprep.mubr.bf16.mxu0 %v12579
    %13367 = vmatmul.mubr.bf16.gmra.mrb[0].mxu0 %v12578
    %v13368 = vpop.f32.mrb[0].mxu0
    %v13369 = vadd.f32 %v13320, %v13368
    %v13370 = vpop.f32.mrb[0].mxu0
    %v13371 = vpop.f32.mrb[0].mxu0
    %v13372 = vadd.f32 %v13323, %v13371
    %v13373 = vpop.f32.mrb[0].mxu0
    %13374 = vdwg.mxu0
    %13375 = vmatprep.subr.bf16.mxu0 %v12748
    %13376 = vmatpush1.bf16.xpose.msra.mxu0 %v12747
    %13377 = vmatprep.subr.bf16.mxu0 0
    %13378 = vmatpush1.bf16.xpose.msra.mxu0 0
    %13379 = vmatprep.subr.bf16.mxu0 0
    %13380 = vmatpush1.bf16.xpose.msra.mxu0 0
    %13381 = vmatprep.subr.bf16.mxu0 0
    %13382 = vmatpush1.bf16.xpose.msra.mxu0 0
    %13383 = vmatprep.subr.bf16.mxu0 0
    %13384 = vmatpush1.bf16.xpose.msra.mxu0 0
    %13385 = vmatprep.subr.bf16.mxu0 0
    %13386 = vmatpush1.bf16.xpose.msra.mxu0 0
    %13387 = vmatprep.subr.bf16.mxu0 0
    %13388 = vmatpush1.bf16.xpose.msra.mxu0 0
    %13389 = vmatprep.subr.bf16.mxu0 0
    %13390 = vmatpush1.bf16.xpose.msra.mxu0 0
    %13391 = vmatprep.subr.bf16.mxu0 0
    %13392 = vmatpush1.bf16.xpose.msra.mxu0 0
    %13393 = vmatprep.subr.bf16.mxu0 0
    %13394 = vmatpush1.bf16.xpose.msra.mxu0 0
    %13395 = vmatprep.subr.bf16.mxu0 0
    %13396 = vmatpush1.bf16.xpose.msra.mxu0 0
    %13397 = vmatprep.subr.bf16.mxu0 0
    %13398 = vmatpush1.bf16.xpose.msra.mxu0 0
    %13399 = vmatprep.subr.bf16.mxu0 0
    %13400 = vmatpush1.bf16.xpose.msra.mxu0 0
    %13401 = vmatprep.subr.bf16.mxu0 0
    %13402 = vmatpush1.bf16.xpose.msra.mxu0 0
    %13403 = vmatprep.subr.bf16.mxu0 0
    %13404 = vmatpush1.bf16.xpose.msra.mxu0 0
    %13405 = vmatprep.subr.bf16.mxu0 0
    %13406 = vmatpush1.bf16.xpose.msra.mxu0 0
    %13407 = vmatprep.mubr.bf16.mxu0 %v12549
    %13408 = vmatmul.mubr.bf16.gmra.mrb[0].mxu0 %v12548
    %v13409 = vpop.f32.mrb[0].mxu0
    %v13410 = vadd.f32 %v13361, %v13409
    %v13411 = vpop.f32.mrb[0].mxu0
    %v13412 = vpop.f32.mrb[0].mxu0
    %v13413 = vadd.f32 %v13364, %v13412
    %v13414 = vpop.f32.mrb[0].mxu0
    %13415 = vmatprep.mubr.bf16.mxu0 %v12581
    %13416 = vmatmul.mubr.bf16.gmra.mrb[0].mxu0 %v12580
    %v13417 = vpop.f32.mrb[0].mxu0
    %v13418 = vadd.f32 %v13369, %v13417
    %v13419 = vpop.f32.mrb[0].mxu0
    %v13420 = vpop.f32.mrb[0].mxu0
    %v13421 = vadd.f32 %v13372, %v13420
    %v13422 = vpop.f32.mrb[0].mxu0
    %13423 = vdwg.mxu0
    %13424 = vmatprep.subr.bf16.mxu0 %v12750
    %13425 = vmatpush1.bf16.xpose.msra.mxu0 %v12749
    %13426 = vmatprep.subr.bf16.mxu0 0
    %13427 = vmatpush1.bf16.xpose.msra.mxu0 0
    %13428 = vmatprep.subr.bf16.mxu0 0
    %13429 = vmatpush1.bf16.xpose.msra.mxu0 0
    %13430 = vmatprep.subr.bf16.mxu0 0
    %13431 = vmatpush1.bf16.xpose.msra.mxu0 0
    %13432 = vmatprep.subr.bf16.mxu0 0
    %13433 = vmatpush1.bf16.xpose.msra.mxu0 0
    %13434 = vmatprep.subr.bf16.mxu0 0
    %13435 = vmatpush1.bf16.xpose.msra.mxu0 0
    %13436 = vmatprep.subr.bf16.mxu0 0
    %13437 = vmatpush1.bf16.xpose.msra.mxu0 0
    %13438 = vmatprep.subr.bf16.mxu0 0
    %13439 = vmatpush1.bf16.xpose.msra.mxu0 0
    %13440 = vmatprep.subr.bf16.mxu0 0
    %13441 = vmatpush1.bf16.xpose.msra.mxu0 0
    %13442 = vmatprep.subr.bf16.mxu0 0
    %13443 = vmatpush1.bf16.xpose.msra.mxu0 0
    %13444 = vmatprep.subr.bf16.mxu0 0
    %13445 = vmatpush1.bf16.xpose.msra.mxu0 0
    %13446 = vmatprep.subr.bf16.mxu0 0
    %13447 = vmatpush1.bf16.xpose.msra.mxu0 0
    %13448 = vmatprep.subr.bf16.mxu0 0
    %13449 = vmatpush1.bf16.xpose.msra.mxu0 0
    %13450 = vmatprep.subr.bf16.mxu0 0
    %13451 = vmatpush1.bf16.xpose.msra.mxu0 0
    %13452 = vmatprep.subr.bf16.mxu0 0
    %13453 = vmatpush1.bf16.xpose.msra.mxu0 0
    %13454 = vmatprep.subr.bf16.mxu0 0
    %13455 = vmatpush1.bf16.xpose.msra.mxu0 0
    %13456 = vmatprep.mubr.bf16.mxu0 %v12551
    %13457 = vmatmul.mubr.bf16.gmra.mrb[0].mxu0 %v12550
    %v13458 = vpop.f32.mrb[0].mxu0
    %v13459 = vadd.f32 %v13410, %v13458
    %v13460 = vpop.f32.mrb[0].mxu0
    %v13461 = vpop.f32.mrb[0].mxu0
    %v13462 = vadd.f32 %v13413, %v13461
    %v13463 = vpop.f32.mrb[0].mxu0
    %13464 = vmatprep.mubr.bf16.mxu0 %v12583
    %13465 = vmatmul.mubr.bf16.gmra.mrb[0].mxu0 %v12582
    %v13466 = vpop.f32.mrb[0].mxu0
    %v13467 = vadd.f32 %v13418, %v13466
    %v13468 = vpop.f32.mrb[0].mxu0
    %v13469 = vpop.f32.mrb[0].mxu0
    %v13470 = vadd.f32 %v13421, %v13469
    %v13471 = vpop.f32.mrb[0].mxu0
    %13472 = vdwg.mxu0
    %13473 = vmatprep.subr.bf16.mxu0 %v12752
    %13474 = vmatpush1.bf16.xpose.msra.mxu0 %v12751
    %13475 = vmatprep.subr.bf16.mxu0 0
    %13476 = vmatpush1.bf16.xpose.msra.mxu0 0
    %13477 = vmatprep.subr.bf16.mxu0 0
    %13478 = vmatpush1.bf16.xpose.msra.mxu0 0
    %13479 = vmatprep.subr.bf16.mxu0 0
    %13480 = vmatpush1.bf16.xpose.msra.mxu0 0
    %13481 = vmatprep.subr.bf16.mxu0 0
    %13482 = vmatpush1.bf16.xpose.msra.mxu0 0
    %13483 = vmatprep.subr.bf16.mxu0 0
    %13484 = vmatpush1.bf16.xpose.msra.mxu0 0
    %13485 = vmatprep.subr.bf16.mxu0 0
    %13486 = vmatpush1.bf16.xpose.msra.mxu0 0
    %13487 = vmatprep.subr.bf16.mxu0 0
    %13488 = vmatpush1.bf16.xpose.msra.mxu0 0
    %13489 = vmatprep.subr.bf16.mxu0 0
    %13490 = vmatpush1.bf16.xpose.msra.mxu0 0
    %13491 = vmatprep.subr.bf16.mxu0 0
    %13492 = vmatpush1.bf16.xpose.msra.mxu0 0
    %13493 = vmatprep.subr.bf16.mxu0 0
    %13494 = vmatpush1.bf16.xpose.msra.mxu0 0
    %13495 = vmatprep.subr.bf16.mxu0 0
    %13496 = vmatpush1.bf16.xpose.msra.mxu0 0
    %13497 = vmatprep.subr.bf16.mxu0 0
    %13498 = vmatpush1.bf16.xpose.msra.mxu0 0
    %13499 = vmatprep.subr.bf16.mxu0 0
    %13500 = vmatpush1.bf16.xpose.msra.mxu0 0
    %13501 = vmatprep.subr.bf16.mxu0 0
    %13502 = vmatpush1.bf16.xpose.msra.mxu0 0
    %13503 = vmatprep.subr.bf16.mxu0 0
    %13504 = vmatpush1.bf16.xpose.msra.mxu0 0
    %13505 = vmatprep.mubr.bf16.mxu0 %v12553
    %13506 = vmatmul.mubr.bf16.gmra.mrb[0].mxu0 %v12552
    %v13507 = vpop.f32.mrb[0].mxu0
    %v13508 = vadd.f32 %v13459, %v13507
    %v13509 = vpop.f32.mrb[0].mxu0
    %v13510 = vpop.f32.mrb[0].mxu0
    %v13511 = vadd.f32 %v13462, %v13510
    %v13512 = vpop.f32.mrb[0].mxu0
    %13513 = vmatprep.mubr.bf16.mxu0 %v12585
    %13514 = vmatmul.mubr.bf16.gmra.mrb[0].mxu0 %v12584
    %v13515 = vpop.f32.mrb[0].mxu0
    %v13516 = vadd.f32 %v13467, %v13515
    %v13517 = vpop.f32.mrb[0].mxu0
    %v13518 = vpop.f32.mrb[0].mxu0
    %v13519 = vadd.f32 %v13470, %v13518
    %v13520 = vpop.f32.mrb[0].mxu0
    %13521 = vdwg.mxu0
    %13522 = vmatprep.subr.bf16.mxu0 %v12754
    %13523 = vmatpush1.bf16.xpose.msra.mxu0 %v12753
    %13524 = vmatprep.subr.bf16.mxu0 0
    %13525 = vmatpush1.bf16.xpose.msra.mxu0 0
    %13526 = vmatprep.subr.bf16.mxu0 0
    %13527 = vmatpush1.bf16.xpose.msra.mxu0 0
    %13528 = vmatprep.subr.bf16.mxu0 0
    %13529 = vmatpush1.bf16.xpose.msra.mxu0 0
    %13530 = vmatprep.subr.bf16.mxu0 0
    %13531 = vmatpush1.bf16.xpose.msra.mxu0 0
    %13532 = vmatprep.subr.bf16.mxu0 0
    %13533 = vmatpush1.bf16.xpose.msra.mxu0 0
    %13534 = vmatprep.subr.bf16.mxu0 0
    %13535 = vmatpush1.bf16.xpose.msra.mxu0 0
    %13536 = vmatprep.subr.bf16.mxu0 0
    %13537 = vmatpush1.bf16.xpose.msra.mxu0 0
    %13538 = vmatprep.subr.bf16.mxu0 0
    %13539 = vmatpush1.bf16.xpose.msra.mxu0 0
    %13540 = vmatprep.subr.bf16.mxu0 0
    %13541 = vmatpush1.bf16.xpose.msra.mxu0 0
    %13542 = vmatprep.subr.bf16.mxu0 0
    %13543 = vmatpush1.bf16.xpose.msra.mxu0 0
    %13544 = vmatprep.subr.bf16.mxu0 0
    %13545 = vmatpush1.bf16.xpose.msra.mxu0 0
    %13546 = vmatprep.subr.bf16.mxu0 0
    %13547 = vmatpush1.bf16.xpose.msra.mxu0 0
    %13548 = vmatprep.subr.bf16.mxu0 0
    %13549 = vmatpush1.bf16.xpose.msra.mxu0 0
    %13550 = vmatprep.subr.bf16.mxu0 0
    %13551 = vmatpush1.bf16.xpose.msra.mxu0 0
    %13552 = vmatprep.subr.bf16.mxu0 0
    %13553 = vmatpush1.bf16.xpose.msra.mxu0 0
    %13554 = vmatprep.mubr.bf16.mxu0 %v12555
    %13555 = vmatmul.mubr.bf16.gmra.mrb[0].mxu0 %v12554
    %v13556 = vpop.f32.mrb[0].mxu0
    %v13557 = vadd.f32 %v13508, %v13556
    %v13558 = vpop.f32.mrb[0].mxu0
    %v13559 = vpop.f32.mrb[0].mxu0
    %v13560 = vadd.f32 %v13511, %v13559
    %v13561 = vpop.f32.mrb[0].mxu0
    %13562 = vmatprep.mubr.bf16.mxu0 %v12587
    %13563 = vmatmul.mubr.bf16.gmra.mrb[0].mxu0 %v12586
    %v13564 = vpop.f32.mrb[0].mxu0
    %v13565 = vadd.f32 %v13516, %v13564
    %v13566 = vpop.f32.mrb[0].mxu0
    %v13567 = vpop.f32.mrb[0].mxu0
    %v13568 = vadd.f32 %v13519, %v13567
    %v13569 = vpop.f32.mrb[0].mxu0
    %13570 = vdwg.mxu0
    %v13571 = vsub.f32 %v13557, %v7013
    %v13572 = vmul.f32 %v13571, %v13571
    %v13573 = vsel %vm6893, %v13572, 0.0
    %13574 = vadd.xlane.f32.xlu0 %v13573
    %v13575 = vpop.xlane.xlu0 %13574
    %v13576 = vrot.slane %v13575, 4
    %v13577 = vadd.f32 %v13575, %v13576
    %v13578 = vrot.slane %v13577, 2
    %v13579 = vadd.f32 %v13577, %v13578
    %v13580 = vrot.slane %v13579, 1
    %v13581 = vadd.f32 %v13579, %v13580
    %s13582 = vtos %v13581
    %s13583 = smul.f32 %s13582, 0.0078125
    %v13584 = vsub.f32 %v13560, %v7012
    %v13585 = vmul.f32 %v13584, %v13584
    %v13586 = vsel %vm6893, %v13585, 0.0
    %13587 = vadd.xlane.f32.xlu0 %v13586
    %v13588 = vpop.xlane.xlu0 %13587
    %v13589 = vrot.slane %v13588, 4
    %v13590 = vadd.f32 %v13588, %v13589
    %v13591 = vrot.slane %v13590, 2
    %v13592 = vadd.f32 %v13590, %v13591
    %v13593 = vrot.slane %v13592, 1
    %v13594 = vadd.f32 %v13592, %v13593
    %s13595 = vtos %v13594
    %s13596 = smul.f32 %s13595, 0.0078125
    %s13597 = sadd.f32 %s13583, %s13596
    %v13598 = vsub.f32 %v13557, %v7014
    %v13599 = vmul.f32 %v13598, %v13598
    %v13600 = vsel %vm6893, %v13599, 0.0
    %13601 = vadd.xlane.f32.xlu0 %v13600
    %v13602 = vpop.xlane.xlu0 %13601
    %v13603 = vrot.slane %v13602, 4
    %v13604 = vadd.f32 %v13602, %v13603
    %v13605 = vrot.slane %v13604, 2
    %v13606 = vadd.f32 %v13604, %v13605
    %v13607 = vrot.slane %v13606, 1
    %v13608 = vadd.f32 %v13606, %v13607
    %s13609 = vtos %v13608
    %s13610 = smul.f32 %s13609, 0.0078125
    %s13611 = sadd.f32 %s13597, %s13610
    %v13612 = vsub.f32 %v13565, %v7012
    %v13613 = vmul.f32 %v13612, %v13612
    %v13614 = vsel %vm6893, %v13613, 0.0
    %13615 = vadd.xlane.f32.xlu0 %v13614
    %v13616 = vpop.xlane.xlu0 %13615
    %v13617 = vrot.slane %v13616, 4
    %v13618 = vadd.f32 %v13616, %v13617
    %v13619 = vrot.slane %v13618, 2
    %v13620 = vadd.f32 %v13618, %v13619
    %v13621 = vrot.slane %v13620, 1
    %v13622 = vadd.f32 %v13620, %v13621
    %s13623 = vtos %v13622
    %s13624 = smul.f32 %s13623, 0.0078125
    %s13625 = sadd.f32 %s13611, %s13624
    %v13626 = vsub.f32 %v13557, %v7015
    %v13627 = vmul.f32 %v13626, %v13626
    %v13628 = vsel %vm6893, %v13627, 0.0
    %13629 = vadd.xlane.f32.xlu0 %v13628
    %v13630 = vpop.xlane.xlu0 %13629
    %v13631 = vrot.slane %v13630, 4
    %v13632 = vadd.f32 %v13630, %v13631
    %v13633 = vrot.slane %v13632, 2
    %v13634 = vadd.f32 %v13632, %v13633
    %v13635 = vrot.slane %v13634, 1
    %v13636 = vadd.f32 %v13634, %v13635
    %s13637 = vtos %v13636
    %s13638 = smul.f32 %s13637, 0.0078125
    %s13639 = sadd.f32 %s13625, %s13638
    %v13640 = vsub.f32 %v13568, %v7012
    %v13641 = vmul.f32 %v13640, %v13640
    %v13642 = vsel %vm6893, %v13641, 0.0
    %13643 = vadd.xlane.f32.xlu0 %v13642
    %v13644 = vpop.xlane.xlu0 %13643
    %v13645 = vrot.slane %v13644, 4
    %v13646 = vadd.f32 %v13644, %v13645
    %v13647 = vrot.slane %v13646, 2
    %v13648 = vadd.f32 %v13646, %v13647
    %v13649 = vrot.slane %v13648, 1
    %v13650 = vadd.f32 %v13648, %v13649
    %s13651 = vtos %v13650
    %s13652 = smul.f32 %s13651, 0.0078125
    %s13653 = sadd.f32 %s13639, %s13652
    %s13654 = scalar_lea.smem [#allocation16], 0
    %13655 = sst [smem:[%s13654]] %s13653
    // Predicated region
    $region82: #{tpu_custom_call.1} parent=1 // pred_check
      _
    $region83: #{tpu_custom_call.1} parent=1 // pred_check_branch
      %13657 = sbr.rel (0) target = $region85
    $region84: #{tpu_custom_call.1} parent=1 // pred_region
      %s13659 = ssub.s32 16, 16
      %13660 = vsyncadd [#allocation4], %s13659
      %13663 = dma.smem_to_hbm [#allocation16], 16, %s12, [#allocation4]
    $region85: #{tpu_custom_call.1} parent=1 // pred_fallthru
      _
    // Predicated region
    $region86: #{tpu_custom_call.1} parent=1 // pred_check
      _
    $region87: #{tpu_custom_call.1} parent=1 // pred_check_branch
      %13665 = sbr.rel (0) target = $region89
    $region88: #{tpu_custom_call.1} parent=1 // pred_region
      %13666 = dma.done [#allocation4], 16
    $region89: #{tpu_custom_call.1} parent=1 // pred_fallthru
      _
    %13667 = sfence
    %13668 = vsyncpa [#allocation3], 1
    %13669 = vsyncpa [#allocation6], 1
    %13670 = vsyncpa [#allocation9], 1
    %13671 = vsyncpa [#allocation12], 1
    %13672 = vsyncpa [#allocation15], 1
    %13673 = vsyncpa [#allocation4], 1

</llo_original>
